<compile_context>
chip_gen: v5e
topology: v5e:2x2
jax: 0.10.0
libtpu: 0.0.40
codegen_flags: <defaults>
</compile_context>

<pallas_src>
import functools

import jax
import jax.numpy as jnp
from jax.experimental import pallas as pl
from jax.experimental.pallas import tpu as pltpu

_LANES = 128  # vreg lane width; running-max scratch is (1024, _LANES)


def _round_up(x, m):
    return (x + m - 1) // m * m


# ----------------------------------------------------------------------------
# Kernel 1: pointwise convs (channels-first, bf16 MXU) + running max over N
# ----------------------------------------------------------------------------
def stn3d_conv_kernel(x_ref,
                      w1_ref, b1_ref,
                      w2_ref, b2_ref,
                      w3_ref, b3_ref,
                      g_ref,
                      acc_ref):
    """One grid step = (batch element b, points-tile n).

    x_ref  : (1, 3, TN)       points tile, NCW / channels-first layout, f32
    w*_ref : (C_out, C_in)    bf16 pointwise-conv weights
    b*_ref : (C_out, 1)       f32 biases
    g_ref  : (1, 1024, 1)     per-channel max output (written on last n tile)
    acc_ref: (1024, 128)      f32 VMEM running-max scratch (lane-dense, VPU)
    """
    n = pl.program_id(1)
    nt = pl.num_programs(1)

    # ReLU output >= 0, so a zero-initialized accumulator (a) implements
    # conv3's ReLU for free via the max and (b) makes replicated-point padding
    # of the last tile a no-op.
    @pl.when(n == 0)
    def _init():
        acc_ref[...] = jnp.zeros_like(acc_ref)

    x = x_ref[0].astype(jnp.bfloat16)                                # (3, TN)

    h = jnp.dot(w1_ref[...], x, preferred_element_type=jnp.float32)
    h = jnp.maximum(h + b1_ref[...], 0.0).astype(jnp.bfloat16)       # (64, TN)

    h = jnp.dot(w2_ref[...], h, preferred_element_type=jnp.float32)
    h = jnp.maximum(h + b2_ref[...], 0.0).astype(jnp.bfloat16)       # (128, TN)

    z = jnp.dot(w3_ref[...], h, preferred_element_type=jnp.float32)
    z = z + b3_ref[...]                                              # (1024, TN) f32
    # conv3's ReLU is fused into the max against the >= 0 accumulator below.

    # Lane-aligned running max on the VPU (static 128-wide slices).  The
    # cross-lane (XLU) reduce runs only once per batch element, on the last
    # tile, instead of every tile.
    acc = acc_ref[...]                                               # (1024, 128)
    tn = z.shape[1]
    for c in range(tn // _LANES):
        acc = jnp.maximum(acc, z[:, c * _LANES:(c + 1) * _LANES])
    acc_ref[...] = acc

    @pl.when(n == nt - 1)
    def _finalize():
        g_ref[0] = jnp.max(acc, axis=1, keepdims=True)               # (1024, 1)


# ----------------------------------------------------------------------------
# Kernel 2: batched FC head (bf16 weights, f32 accumulation; identity folded
# into fc3's bias on the host)
# ----------------------------------------------------------------------------
def stn3d_fc_kernel(g_ref,
                    fw1_ref, fb1_ref,
                    fw2_ref, fb2_ref,
                    fw3_ref, fb3_ref,
                    out_ref):
    g = g_ref[...].astype(jnp.bfloat16)                              # (B, 1024)
    f = jnp.maximum(
        jnp.dot(g, fw1_ref[...], preferred_element_type=jnp.float32)
        + fb1_ref[...], 0.0).astype(jnp.bfloat16)                    # (B, 512)
    f = jnp.maximum(
        jnp.dot(f, fw2_ref[...], preferred_element_type=jnp.float32)
        + fb2_ref[...], 0.0).astype(jnp.bfloat16)                    # (B, 256)
    out_ref[...] = (
        jnp.dot(f, fw3_ref[...], preferred_element_type=jnp.float32)
        + fb3_ref[...])                                              # (B, 9)


# ----------------------------------------------------------------------------
# Host-side param prep (done once, outside the per-forward path)
# ----------------------------------------------------------------------------
def prepare_params(params):
    """bf16-cast all matmul weights, keep f32 biases, fold the identity."""
    (w1, b1, w2, b2, w3, b3, fw1, fb1, fw2, fb2, fw3, fb3) = params
    iden = jnp.array([1, 0, 0, 0, 1, 0, 0, 0, 1], jnp.float32).reshape(1, 9)
    return (w1.astype(jnp.bfloat16), b1,
            w2.astype(jnp.bfloat16), b2,
            w3.astype(jnp.bfloat16), b3,
            fw1.astype(jnp.bfloat16), fb1,
            fw2.astype(jnp.bfloat16), fb2,
            fw3.astype(jnp.bfloat16), fb3 + iden)


# ----------------------------------------------------------------------------
# Wrapper
# ----------------------------------------------------------------------------
def stn3d_forward(x_nc, prepped, *, tn=1024):
    """x_nc: (B, 3, N) float32 (PyTorch NCW layout).  Returns (B, 3, 3)."""
    B, C, N = x_nc.shape
    assert C == 3
    (w1b, b1, w2b, b2, w3b, b3, fw1b, fb1, fw2b, fb2, fw3b, fb3i) = prepped

    # Points-tile size: lane-dense multiple of 128, no larger than the
    # (rounded-up) points axis, capped at 2048 for v7x's smaller VMEM.
    tn = max(128, min(_round_up(min(tn, N), 128), 2048))
    n_pad = _round_up(N, tn)
    if n_pad != N:
        # Replicate the last point; duplicates do not change the max-pool.
        x_nc = jnp.pad(x_nc, ((0, 0), (0, 0), (0, n_pad - N)), mode="edge")
    nt = n_pad // tn

    def const_spec(shape):   # whole array, same block for every grid step
        return pl.BlockSpec(shape, lambda b, n: tuple(0 for _ in shape))

    pooled = pl.pallas_call(
        stn3d_conv_kernel,
        out_shape=jax.ShapeDtypeStruct((B, 1024, 1), jnp.float32),
        grid_spec=pltpu.PrefetchScalarGridSpec(
            num_scalar_prefetch=0,
            grid=(B, nt),
            in_specs=[
                pl.BlockSpec((1, 3, tn), lambda b, n: (b, 0, n)),   # x tile
                const_spec(w1b.shape), const_spec(b1.shape),
                const_spec(w2b.shape), const_spec(b2.shape),
                const_spec(w3b.shape), const_spec(b3.shape),
            ],
            out_specs=pl.BlockSpec((1, 1024, 1), lambda b, n: (b, 0, 0)),
            scratch_shapes=[pltpu.VMEM((1024, _LANES), jnp.float32)],
        ),
        compiler_params=pltpu.CompilerParams(
            dimension_semantics=("parallel", "arbitrary")),
    )(x_nc, w1b, b1, w2b, b2, w3b, b3)

    g = pooled.reshape(B, 1024)   # trailing dim is 1 -> free metadata reshape

    def full_spec(shape):
        return pl.BlockSpec(shape, lambda i: tuple(0 for _ in shape))

    out9 = pl.pallas_call(
        stn3d_fc_kernel,
        out_shape=jax.ShapeDtypeStruct((B, 9), jnp.float32),
        grid_spec=pltpu.PrefetchScalarGridSpec(
            num_scalar_prefetch=0,
            grid=(1,),
            in_specs=[
                full_spec(g.shape),
                full_spec(fw1b.shape), full_spec(fb1.shape),
                full_spec(fw2b.shape), full_spec(fb2.shape),
                full_spec(fw3b.shape), full_spec(fb3i.shape),
            ],
            out_specs=full_spec((B, 9)),
        ),
        compiler_params=pltpu.CompilerParams(
            dimension_semantics=("arbitrary",)),
    )(g, fw1b, fb1, fw2b, fb2, fw3b, fb3i)

    return out9.reshape(B, 3, 3)


# ----------------------------------------------------------------------------
# Parameter init (PyTorch-style uniform(-1/sqrt(fan_in))) and references
# ----------------------------------------------------------------------------
def init_params(key):
    conv_dims = [(3, 64), (64, 128), (128, 1024)]
    fc_dims = [(1024, 512), (512, 256), (256, 9)]
    params = []
    idx = 0
    for cin, cout in conv_dims:
        kw, kb = jax.random.split(jax.random.fold_in(key, idx)); idx += 1
        bound = 1.0 / (cin ** 0.5)
        w = jax.random.uniform(kw, (cout, cin), jnp.float32, -bound, bound)
        b = jax.random.uniform(kb, (cout, 1), jnp.float32, -bound, bound)
        params += [w, b]
    for cin, cout in fc_dims:
        kw, kb = jax.random.split(jax.random.fold_in(key, idx)); idx += 1
        bound = 1.0 / (cin ** 0.5)
        w = jax.random.uniform(kw, (cin, cout), jnp.float32, -bound, bound)
        b = jax.random.uniform(kb, (1, cout), jnp.float32, -bound, bound)
        params += [w, b]
    return tuple(params)


_IDEN9 = jnp.array([1, 0, 0, 0, 1, 0, 0, 0, 1], jnp.float32).reshape(1, 9)


def stn3d_reference_f32(x_nc, params):
    """Pure-f32 JAX reference of the PyTorch forward."""
    (w1t, b1, w2t, b2, w3t, b3, fw1, fb1, fw2, fb2, fw3, fb3) = params
    x = jnp.transpose(x_nc, (0, 2, 1))                 # (B, N, 3)
    h = jax.nn.relu(x @ w1t.T + b1.T)
    h = jax.nn.relu(h @ w2t.T + b2.T)
    h = jax.nn.relu(h @ w3t.T + b3.T)
    g = jnp.max(h, axis=1)                             # (B, 1024)
    f = jax.nn.relu(g @ fw1 + fb1)
    f = jax.nn.relu(f @ fw2 + fb2)
    o = f @ fw3 + fb3
    return (o + _IDEN9).reshape(-1, 3, 3)


def stn3d_reference_bf16(x_nc, params):
    """Reference mirroring the kernel's bf16-matmul / f32-accumulate math."""
    (w1t, b1, w2t, b2, w3t, b3, fw1, fb1, fw2, fb2, fw3, fb3) = params
    B, _, N = x_nc.shape
    x = jnp.transpose(x_nc, (0, 2, 1)).reshape(B * N, 3).astype(jnp.bfloat16)
    w1b, w2b, w3b = (w.astype(jnp.bfloat16) for w in (w1t, w2t, w3t))
    h = jnp.maximum(jnp.dot(x, w1b.T, preferred_element_type=jnp.float32)
                    + b1.T, 0.0).astype(jnp.bfloat16)
    h = jnp.maximum(jnp.dot(h, w2b.T, preferred_element_type=jnp.float32)
                    + b2.T, 0.0).astype(jnp.bfloat16)
    h = jnp.maximum(jnp.dot(h, w3b.T, preferred_element_type=jnp.float32)
                    + b3.T, 0.0)
    g = jnp.max(h.reshape(B, N, 1024), axis=1)
    f = jnp.maximum(jnp.dot(g.astype(jnp.bfloat16), fw1.astype(jnp.bfloat16),
                            preferred_element_type=jnp.float32) + fb1, 0.0)
    f = jnp.maximum(jnp.dot(f.astype(jnp.bfloat16), fw2.astype(jnp.bfloat16),
                            preferred_element_type=jnp.float32) + fb2, 0.0)
    o = jnp.dot(f.astype(jnp.bfloat16), fw3.astype(jnp.bfloat16),
                preferred_element_type=jnp.float32) + fb3
    return (o + _IDEN9).reshape(-1, 3, 3)


if __name__ == "__main__":
    key = jax.random.PRNGKey(0)
    kx, kp = jax.random.split(key)

    # Small test shapes; N=500 exercises the replicated-point padding path.
    B, N = 2, 500
    x = jax.random.normal(kx, (B, 3, N), jnp.float32)   # PyTorch NCW layout
    params = init_params(kp)
    prepped = prepare_params(params)                     # one-time host prep

    fwd = jax.jit(functools.partial(stn3d_forward, tn=1024))
    out = jax.block_until_ready(fwd(x, prepped))
    assert out.shape == (B, 3, 3)

    ref_bf16 = stn3d_reference_bf16(x, params)
    ref_f32 = stn3d_reference_f32(x, params)
    assert jnp.allclose(out, ref_bf16, atol=1e-2, rtol=1e-2), \
        "mismatch vs bf16-matched reference"
    assert jnp.allclose(out, ref_f32, atol=5e-2, rtol=5e-2), \
        "mismatch vs f32 reference"

    print("KERNEL_OK")
</pallas_src>

<mosaic_0001>
module attributes {stable_mosaic.version = 11 : i64} {
  func.func @stn3d_conv_kernel(%arg0: i32, %arg1: i32, %arg2: memref<1x3x512xf32, #tpu.memory_space<vmem>>, %arg3: memref<64x3xbf16, #tpu.memory_space<vmem>>, %arg4: memref<64x1xf32, #tpu.memory_space<vmem>>, %arg5: memref<128x64xbf16, #tpu.memory_space<vmem>>, %arg6: memref<128x1xf32, #tpu.memory_space<vmem>>, %arg7: memref<1024x128xbf16, #tpu.memory_space<vmem>>, %arg8: memref<1024x1xf32, #tpu.memory_space<vmem>>, %arg9: memref<1x1024x1xf32, #tpu.memory_space<vmem>>, %arg10: memref<1024x128xf32, #tpu.memory_space<vmem>>) attributes {dimension_semantics = [#tpu.dimension_semantics<parallel>, #tpu.dimension_semantics<arbitrary>], iteration_bounds = array<i64: 2, 1>, scalar_prefetch = 0 : i64, scratch_operands = 1 : i64, tpu.core_type = #tpu.core_type<tc>, window_params = [{transform_indices = @transform_0, window_bounds = array<i64: 1, 3, 512>}, {pipeline_mode = #tpu.pipeline_mode<synchronous>, transform_indices = @transform_1, window_bounds = array<i64: 64, 3>}, {pipeline_mode = #tpu.pipeline_mode<synchronous>, transform_indices = @transform_2, window_bounds = array<i64: 64, 1>}, {pipeline_mode = #tpu.pipeline_mode<synchronous>, transform_indices = @transform_3, window_bounds = array<i64: 128, 64>}, {pipeline_mode = #tpu.pipeline_mode<synchronous>, transform_indices = @transform_4, window_bounds = array<i64: 128, 1>}, {pipeline_mode = #tpu.pipeline_mode<synchronous>, transform_indices = @transform_5, window_bounds = array<i64: 1024, 128>}, {pipeline_mode = #tpu.pipeline_mode<synchronous>, transform_indices = @transform_6, window_bounds = array<i64: 1024, 1>}, {transform_indices = @transform_7, window_bounds = array<i64: 1, 1024, 1>}]} {
    %c0_i32 = arith.constant 0 : i32
    %0 = arith.cmpi eq, %arg1, %c0_i32 : i32
    %1 = arith.extui %0 : i1 to i32
    %c0_i32_0 = arith.constant 0 : i32
    %2 = arith.cmpi ne, %1, %c0_i32_0 : i32
    scf.if %2 {
      %cst_25 = arith.constant 0.000000e+00 : f32
      %40 = vector.broadcast %cst_25 : f32 to vector<1024x128xf32>
      %c0_26 = arith.constant 0 : index
      %c0_27 = arith.constant 0 : index
      %41 = vector.load %arg10[%c0_26, %c0_27] : memref<1024x128xf32, #tpu.memory_space<vmem>>, vector<1024x128xf32>
      tpu.vector_store %arg10[%c0_26, %c0_27], %40 {strides = array<i32>} : memref<1024x128xf32, #tpu.memory_space<vmem>>, vector<1024x128xf32>,
    } else {
    }
    %c0 = arith.constant 0 : index
    %c0_1 = arith.constant 0 : index
    %c0_2 = arith.constant 0 : index
    %3 = vector.load %arg2[%c0, %c0_1, %c0_2] : memref<1x3x512xf32, #tpu.memory_space<vmem>>, vector<1x3x512xf32>
    %4 = vector.shape_cast %3 : vector<1x3x512xf32> to vector<3x512xf32>
    %5 = arith.truncf %4 : vector<3x512xf32> to vector<3x512xbf16>
    %c0_3 = arith.constant 0 : index
    %c0_4 = arith.constant 0 : index
    %6 = vector.load %arg3[%c0_3, %c0_4] : memref<64x3xbf16, #tpu.memory_space<vmem>>, vector<64x3xbf16>
    %cst = arith.constant dense<0.000000e+00> : vector<64x512xf32>
    %7 = tpu.matmul %6, %5, %cst {dimension_numbers = #tpu.dot_dimension_numbers<[1], [0], [0], [1], [0, 0, 1, 1], [], []>} : vector<64x3xbf16>, vector<3x512xbf16>, vector<64x512xf32> -> vector<64x512xf32>
    %c0_5 = arith.constant 0 : index
    %c0_6 = arith.constant 0 : index
    %8 = vector.load %arg4[%c0_5, %c0_6] : memref<64x1xf32, #tpu.memory_space<vmem>>, vector<64x1xf32>
    %9 = vector.broadcast %8 : vector<64x1xf32> to vector<64x512xf32>
    %10 = arith.addf %7, %9 : vector<64x512xf32>
    %cst_7 = arith.constant 0.000000e+00 : f32
    %11 = vector.broadcast %cst_7 : f32 to vector<64x512xf32>
    %12 = arith.maximumf %10, %11 : vector<64x512xf32>
    %13 = arith.truncf %12 : vector<64x512xf32> to vector<64x512xbf16>
    %c0_8 = arith.constant 0 : index
    %c0_9 = arith.constant 0 : index
    %14 = vector.load %arg5[%c0_8, %c0_9] : memref<128x64xbf16, #tpu.memory_space<vmem>>, vector<128x64xbf16>
    %cst_10 = arith.constant dense<0.000000e+00> : vector<128x512xf32>
    %15 = tpu.matmul %14, %13, %cst_10 {dimension_numbers = #tpu.dot_dimension_numbers<[1], [0], [0], [1], [0, 0, 1, 1], [], []>} : vector<128x64xbf16>, vector<64x512xbf16>, vector<128x512xf32> -> vector<128x512xf32>
    %c0_11 = arith.constant 0 : index
    %c0_12 = arith.constant 0 : index
    %16 = vector.load %arg6[%c0_11, %c0_12] : memref<128x1xf32, #tpu.memory_space<vmem>>, vector<128x1xf32>
    %17 = vector.broadcast %16 : vector<128x1xf32> to vector<128x512xf32>
    %18 = arith.addf %15, %17 : vector<128x512xf32>
    %cst_13 = arith.constant 0.000000e+00 : f32
    %19 = vector.broadcast %cst_13 : f32 to vector<128x512xf32>
    %20 = arith.maximumf %18, %19 : vector<128x512xf32>
    %21 = arith.truncf %20 : vector<128x512xf32> to vector<128x512xbf16>
    %c0_14 = arith.constant 0 : index
    %c0_15 = arith.constant 0 : index
    %22 = vector.load %arg7[%c0_14, %c0_15] : memref<1024x128xbf16, #tpu.memory_space<vmem>>, vector<1024x128xbf16>
    %cst_16 = arith.constant dense<0.000000e+00> : vector<1024x512xf32>
    %23 = tpu.matmul %22, %21, %cst_16 {dimension_numbers = #tpu.dot_dimension_numbers<[1], [0], [0], [1], [0, 0, 1, 1], [], []>} : vector<1024x128xbf16>, vector<128x512xbf16>, vector<1024x512xf32> -> vector<1024x512xf32>
    %c0_17 = arith.constant 0 : index
    %c0_18 = arith.constant 0 : index
    %24 = vector.load %arg8[%c0_17, %c0_18] : memref<1024x1xf32, #tpu.memory_space<vmem>>, vector<1024x1xf32>
    %25 = vector.broadcast %24 : vector<1024x1xf32> to vector<1024x512xf32>
    %26 = arith.addf %23, %25 : vector<1024x512xf32>
    %c0_19 = arith.constant 0 : index
    %c0_20 = arith.constant 0 : index
    %27 = vector.load %arg10[%c0_19, %c0_20] : memref<1024x128xf32, #tpu.memory_space<vmem>>, vector<1024x128xf32>
    %28 = vector.extract_strided_slice %26 {offsets = [0, 0], sizes = [1024, 128], strides = [1, 1]} : vector<1024x512xf32> to vector<1024x128xf32>
    %29 = arith.maximumf %27, %28 : vector<1024x128xf32>
    %30 = vector.extract_strided_slice %26 {offsets = [0, 128], sizes = [1024, 128], strides = [1, 1]} : vector<1024x512xf32> to vector<1024x128xf32>
    %31 = arith.maximumf %29, %30 : vector<1024x128xf32>
    %32 = vector.extract_strided_slice %26 {offsets = [0, 256], sizes = [1024, 128], strides = [1, 1]} : vector<1024x512xf32> to vector<1024x128xf32>
    %33 = arith.maximumf %31, %32 : vector<1024x128xf32>
    %34 = vector.extract_strided_slice %26 {offsets = [0, 384], sizes = [1024, 128], strides = [1, 1]} : vector<1024x512xf32> to vector<1024x128xf32>
    %35 = arith.maximumf %33, %34 : vector<1024x128xf32>
    %c0_21 = arith.constant 0 : index
    %c0_22 = arith.constant 0 : index
    %36 = vector.load %arg10[%c0_21, %c0_22] : memref<1024x128xf32, #tpu.memory_space<vmem>>, vector<1024x128xf32>
    tpu.vector_store %arg10[%c0_21, %c0_22], %35 {strides = array<i32>} : memref<1024x128xf32, #tpu.memory_space<vmem>>, vector<1024x128xf32>,
    %c0_i32_23 = arith.constant 0 : i32
    %37 = arith.cmpi eq, %arg1, %c0_i32_23 : i32
    %38 = arith.extui %37 : i1 to i32
    %c0_i32_24 = arith.constant 0 : i32
    %39 = arith.cmpi ne, %38, %c0_i32_24 : i32
    scf.if %39 {
      %cst_25 = arith.constant dense<0xFF800000> : vector<1024xf32>
      %40 = vector.multi_reduction <maximumf>, %35, %cst_25 [1] : vector<1024x128xf32> to vector<1024xf32>
      %41 = vector.shape_cast %40 : vector<1024xf32> to vector<1024x1xf32>
      %c0_26 = arith.constant 0 : index
      %c0_27 = arith.constant 0 : index
      %c0_28 = arith.constant 0 : index
      %42 = vector.load %arg9[%c0_26, %c0_27, %c0_28] : memref<1x1024x1xf32, #tpu.memory_space<vmem>>, vector<1x1024x1xf32>
      %43 = vector.shape_cast %42 : vector<1x1024x1xf32> to vector<1024x1xf32>
      %44 = vector.shape_cast %41 : vector<1024x1xf32> to vector<1x1024x1xf32>
      tpu.vector_store %arg9[%c0_26, %c0_27, %c0_28], %44 {strides = array<i32>} : memref<1x1024x1xf32, #tpu.memory_space<vmem>>, vector<1x1024x1xf32>,
    } else {
    }
    return
  }
  func.func @transform_0(%arg0: i32, %arg1: i32) -> (i32, i32, i32) {
    %c0_i32 = arith.constant 0 : i32
    %c0_i32_0 = arith.constant 0 : i32
    return %arg0, %c0_i32, %arg1 : i32, i32, i32
  }
  func.func @transform_1(%arg0: i32, %arg1: i32) -> (i32, i32) {
    %c0_i32 = arith.constant 0 : i32
    %c0_i32_0 = arith.constant 0 : i32
    %c0_i32_1 = arith.constant 0 : i32
    return %c0_i32, %c0_i32_0 : i32, i32
  }
  func.func @transform_2(%arg0: i32, %arg1: i32) -> (i32, i32) {
    %c0_i32 = arith.constant 0 : i32
    %c0_i32_0 = arith.constant 0 : i32
    %c0_i32_1 = arith.constant 0 : i32
    return %c0_i32, %c0_i32_0 : i32, i32
  }
  func.func @transform_3(%arg0: i32, %arg1: i32) -> (i32, i32) {
    %c0_i32 = arith.constant 0 : i32
    %c0_i32_0 = arith.constant 0 : i32
    %c0_i32_1 = arith.constant 0 : i32
    return %c0_i32, %c0_i32_0 : i32, i32
  }
  func.func @transform_4(%arg0: i32, %arg1: i32) -> (i32, i32) {
    %c0_i32 = arith.constant 0 : i32
    %c0_i32_0 = arith.constant 0 : i32
    %c0_i32_1 = arith.constant 0 : i32
    return %c0_i32, %c0_i32_0 : i32, i32
  }
  func.func @transform_5(%arg0: i32, %arg1: i32) -> (i32, i32) {
    %c0_i32 = arith.constant 0 : i32
    %c0_i32_0 = arith.constant 0 : i32
    %c0_i32_1 = arith.constant 0 : i32
    return %c0_i32, %c0_i32_0 : i32, i32
  }
  func.func @transform_6(%arg0: i32, %arg1: i32) -> (i32, i32) {
    %c0_i32 = arith.constant 0 : i32
    %c0_i32_0 = arith.constant 0 : i32
    %c0_i32_1 = arith.constant 0 : i32
    return %c0_i32, %c0_i32_0 : i32, i32
  }
  func.func @transform_7(%arg0: i32, %arg1: i32) -> (i32, i32, i32) {
    %c0_i32 = arith.constant 0 : i32
    %c0_i32_0 = arith.constant 0 : i32
    %c0_i32_1 = arith.constant 0 : i32
    return %arg0, %c0_i32, %c0_i32_0 : i32, i32, i32
  }
}

module attributes {stable_mosaic.version = 11 : i64} {
  func.func @stn3d_fc_kernel(%arg0: i32, %arg1: memref<2x1024xf32, #tpu.memory_space<vmem>>, %arg2: memref<1024x512xbf16, #tpu.memory_space<vmem>>, %arg3: memref<1x512xf32, #tpu.memory_space<vmem>>, %arg4: memref<512x256xbf16, #tpu.memory_space<vmem>>, %arg5: memref<1x256xf32, #tpu.memory_space<vmem>>, %arg6: memref<256x9xbf16, #tpu.memory_space<vmem>>, %arg7: memref<1x9xf32, #tpu.memory_space<vmem>>, %arg8: memref<2x9xf32, #tpu.memory_space<vmem>>) attributes {dimension_semantics = [#tpu.dimension_semantics<arbitrary>], iteration_bounds = array<i64: 1>, scalar_prefetch = 0 : i64, scratch_operands = 0 : i64, tpu.core_type = #tpu.core_type<tc>, window_params = [{pipeline_mode = #tpu.pipeline_mode<synchronous>, transform_indices = @transform_0, window_bounds = array<i64: 2, 1024>}, {pipeline_mode = #tpu.pipeline_mode<synchronous>, transform_indices = @transform_1, window_bounds = array<i64: 1024, 512>}, {pipeline_mode = #tpu.pipeline_mode<synchronous>, transform_indices = @transform_2, window_bounds = array<i64: 1, 512>}, {pipeline_mode = #tpu.pipeline_mode<synchronous>, transform_indices = @transform_3, window_bounds = array<i64: 512, 256>}, {pipeline_mode = #tpu.pipeline_mode<synchronous>, transform_indices = @transform_4, window_bounds = array<i64: 1, 256>}, {pipeline_mode = #tpu.pipeline_mode<synchronous>, transform_indices = @transform_5, window_bounds = array<i64: 256, 9>}, {pipeline_mode = #tpu.pipeline_mode<synchronous>, transform_indices = @transform_6, window_bounds = array<i64: 1, 9>}, {pipeline_mode = #tpu.pipeline_mode<synchronous>, transform_indices = @transform_7, window_bounds = array<i64: 2, 9>}]} {
    %c0 = arith.constant 0 : index
    %c0_0 = arith.constant 0 : index
    %0 = vector.load %arg1[%c0, %c0_0] : memref<2x1024xf32, #tpu.memory_space<vmem>>, vector<2x1024xf32>
    %1 = arith.truncf %0 : vector<2x1024xf32> to vector<2x1024xbf16>
    %c0_1 = arith.constant 0 : index
    %c0_2 = arith.constant 0 : index
    %2 = vector.load %arg2[%c0_1, %c0_2] : memref<1024x512xbf16, #tpu.memory_space<vmem>>, vector<1024x512xbf16>
    %cst = arith.constant dense<0.000000e+00> : vector<2x512xf32>
    %3 = tpu.matmul %1, %2, %cst {dimension_numbers = #tpu.dot_dimension_numbers<[1], [0], [0], [1], [0, 0, 1, 1], [], []>} : vector<2x1024xbf16>, vector<1024x512xbf16>, vector<2x512xf32> -> vector<2x512xf32>
    %c0_3 = arith.constant 0 : index
    %c0_4 = arith.constant 0 : index
    %4 = vector.load %arg3[%c0_3, %c0_4] : memref<1x512xf32, #tpu.memory_space<vmem>>, vector<1x512xf32>
    %5 = vector.broadcast %4 : vector<1x512xf32> to vector<2x512xf32>
    %6 = arith.addf %3, %5 : vector<2x512xf32>
    %cst_5 = arith.constant 0.000000e+00 : f32
    %7 = vector.broadcast %cst_5 : f32 to vector<2x512xf32>
    %8 = arith.maximumf %6, %7 : vector<2x512xf32>
    %9 = arith.truncf %8 : vector<2x512xf32> to vector<2x512xbf16>
    %c0_6 = arith.constant 0 : index
    %c0_7 = arith.constant 0 : index
    %10 = vector.load %arg4[%c0_6, %c0_7] : memref<512x256xbf16, #tpu.memory_space<vmem>>, vector<512x256xbf16>
    %cst_8 = arith.constant dense<0.000000e+00> : vector<2x256xf32>
    %11 = tpu.matmul %9, %10, %cst_8 {dimension_numbers = #tpu.dot_dimension_numbers<[1], [0], [0], [1], [0, 0, 1, 1], [], []>} : vector<2x512xbf16>, vector<512x256xbf16>, vector<2x256xf32> -> vector<2x256xf32>
    %c0_9 = arith.constant 0 : index
    %c0_10 = arith.constant 0 : index
    %12 = vector.load %arg5[%c0_9, %c0_10] : memref<1x256xf32, #tpu.memory_space<vmem>>, vector<1x256xf32>
    %13 = vector.broadcast %12 : vector<1x256xf32> to vector<2x256xf32>
    %14 = arith.addf %11, %13 : vector<2x256xf32>
    %cst_11 = arith.constant 0.000000e+00 : f32
    %15 = vector.broadcast %cst_11 : f32 to vector<2x256xf32>
    %16 = arith.maximumf %14, %15 : vector<2x256xf32>
    %17 = arith.truncf %16 : vector<2x256xf32> to vector<2x256xbf16>
    %c0_12 = arith.constant 0 : index
    %c0_13 = arith.constant 0 : index
    %18 = vector.load %arg6[%c0_12, %c0_13] : memref<256x9xbf16, #tpu.memory_space<vmem>>, vector<256x9xbf16>
    %cst_14 = arith.constant dense<0.000000e+00> : vector<2x9xf32>
    %19 = tpu.matmul %17, %18, %cst_14 {dimension_numbers = #tpu.dot_dimension_numbers<[1], [0], [0], [1], [0, 0, 1, 1], [], []>} : vector<2x256xbf16>, vector<256x9xbf16>, vector<2x9xf32> -> vector<2x9xf32>
    %c0_15 = arith.constant 0 : index
    %c0_16 = arith.constant 0 : index
    %20 = vector.load %arg7[%c0_15, %c0_16] : memref<1x9xf32, #tpu.memory_space<vmem>>, vector<1x9xf32>
    %21 = vector.broadcast %20 : vector<1x9xf32> to vector<2x9xf32>
    %22 = arith.addf %19, %21 : vector<2x9xf32>
    %c0_17 = arith.constant 0 : index
    %c0_18 = arith.constant 0 : index
    %23 = vector.load %arg8[%c0_17, %c0_18] : memref<2x9xf32, #tpu.memory_space<vmem>>, vector<2x9xf32>
    tpu.vector_store %arg8[%c0_17, %c0_18], %22 {strides = array<i32>} : memref<2x9xf32, #tpu.memory_space<vmem>>, vector<2x9xf32>,
    return
  }
  func.func @transform_0(%arg0: i32) -> (i32, i32) {
    %c0_i32 = arith.constant 0 : i32
    %c0_i32_0 = arith.constant 0 : i32
    %c0_i32_1 = arith.constant 0 : i32
    return %c0_i32, %c0_i32_0 : i32, i32
  }
  func.func @transform_1(%arg0: i32) -> (i32, i32) {
    %c0_i32 = arith.constant 0 : i32
    %c0_i32_0 = arith.constant 0 : i32
    %c0_i32_1 = arith.constant 0 : i32
    return %c0_i32, %c0_i32_0 : i32, i32
  }
  func.func @transform_2(%arg0: i32) -> (i32, i32) {
    %c0_i32 = arith.constant 0 : i32
    %c0_i32_0 = arith.constant 0 : i32
    %c0_i32_1 = arith.constant 0 : i32
    return %c0_i32, %c0_i32_0 : i32, i32
  }
  func.func @transform_3(%arg0: i32) -> (i32, i32) {
    %c0_i32 = arith.constant 0 : i32
    %c0_i32_0 = arith.constant 0 : i32
    %c0_i32_1 = arith.constant 0 : i32
    return %c0_i32, %c0_i32_0 : i32, i32
  }
  func.func @transform_4(%arg0: i32) -> (i32, i32) {
    %c0_i32 = arith.constant 0 : i32
    %c0_i32_0 = arith.constant 0 : i32
    %c0_i32_1 = arith.constant 0 : i32
    return %c0_i32, %c0_i32_0 : i32, i32
  }
  func.func @transform_5(%arg0: i32) -> (i32, i32) {
    %c0_i32 = arith.constant 0 : i32
    %c0_i32_0 = arith.constant 0 : i32
    %c0_i32_1 = arith.constant 0 : i32
    return %c0_i32, %c0_i32_0 : i32, i32
  }
  func.func @transform_6(%arg0: i32) -> (i32, i32) {
    %c0_i32 = arith.constant 0 : i32
    %c0_i32_0 = arith.constant 0 : i32
    %c0_i32_1 = arith.constant 0 : i32
    return %c0_i32, %c0_i32_0 : i32, i32
  }
  func.func @transform_7(%arg0: i32) -> (i32, i32) {
    %c0_i32 = arith.constant 0 : i32
    %c0_i32_0 = arith.constant 0 : i32
    %c0_i32_1 = arith.constant 0 : i32
    return %c0_i32, %c0_i32_0 : i32, i32
  }
}

</mosaic_0001>

<llo_original>
// kernel: stn3d_forward.3
$region0: #{stn3d_forward.3}
  #allocation0 [shape = 'u32[]', space=smem, size = 0x4, offset = 0x4, fixed_abs, tag = 'smem constant byte address 0x4 - core index']
  #allocation1 [shape = 'u32[72,128]{1,0:T(1,128)}', space=vmem, size = 0x9000, scoped, tag = 'internal scratch']
  %s0 = inlined_call_operand.vmem [shape: f32[2,1024], index: 0, kind: input, shape index: {}]
  %s1 = inlined_call_operand.vmem [shape: bf16[1024,512], index: 1, kind: input, shape index: {}]
  %s2 = inlined_call_operand.vmem [shape: f32[1,512], index: 2, kind: input, shape index: {}]
  %s3 = inlined_call_operand.vmem [shape: bf16[512,256], index: 3, kind: input, shape index: {}]
  %s4 = inlined_call_operand.vmem [shape: f32[1,256], index: 4, kind: input, shape index: {}]
  %s5 = inlined_call_operand.vmem [shape: bf16[256,9], index: 5, kind: input, shape index: {}]
  %s6 = inlined_call_operand.vmem [shape: f32[1,9], index: 6, kind: input, shape index: {}]
  %s7 = inlined_call_operand.vmem [shape: f32[2,9], index: 7, kind: output, shape index: {}]
  %s8 = sld [smem:[#allocation0]]
  $region38: #{stn3d_forward.3} parent=0
    _
  %s10 = ssub.s32 1, %s8
  %s11 = scalar_select 0, %s10, %s8
  // Predicated region
  $region2: #{stn3d_forward.3} parent=0 // pred_check
    _
  $region3: #{stn3d_forward.3} parent=0 // pred_check_branch
    %13 = sbr.rel (0) target = $region5
  $region4: #{stn3d_forward.3} parent=0 // pred_region
    _
  $region5: #{stn3d_forward.3} parent=0 // pred_fallthru
    _
  // Predicated region
  $region6: #{stn3d_forward.3} parent=0 // pred_check
    _
  $region7: #{stn3d_forward.3} parent=0 // pred_check_branch
    %15 = sbr.rel (0) target = $region9
  $region8: #{stn3d_forward.3} parent=0 // pred_region
    _
  $region9: #{stn3d_forward.3} parent=0 // pred_fallthru
    _
  // Predicated region
  $region10: #{stn3d_forward.3} parent=0 // pred_check
    _
  $region11: #{stn3d_forward.3} parent=0 // pred_check_branch
    %17 = sbr.rel (0) target = $region13
  $region12: #{stn3d_forward.3} parent=0 // pred_region
    _
  $region13: #{stn3d_forward.3} parent=0 // pred_fallthru
    _
  // Predicated region
  $region14: #{stn3d_forward.3} parent=0 // pred_check
    _
  $region15: #{stn3d_forward.3} parent=0 // pred_check_branch
    %19 = sbr.rel (0) target = $region17
  $region16: #{stn3d_forward.3} parent=0 // pred_region
    _
  $region17: #{stn3d_forward.3} parent=0 // pred_fallthru
    _
  // Predicated region
  $region18: #{stn3d_forward.3} parent=0 // pred_check
    _
  $region19: #{stn3d_forward.3} parent=0 // pred_check_branch
    %21 = sbr.rel (0) target = $region21
  $region20: #{stn3d_forward.3} parent=0 // pred_region
    _
  $region21: #{stn3d_forward.3} parent=0 // pred_fallthru
    _
  // Predicated region
  $region22: #{stn3d_forward.3} parent=0 // pred_check
    _
  $region23: #{stn3d_forward.3} parent=0 // pred_check_branch
    %23 = sbr.rel (0) target = $region25
  $region24: #{stn3d_forward.3} parent=0 // pred_region
    _
  $region25: #{stn3d_forward.3} parent=0 // pred_fallthru
    _
  // Predicated region
  $region26: #{stn3d_forward.3} parent=0 // pred_check
    _
  $region27: #{stn3d_forward.3} parent=0 // pred_check_branch
    %25 = sbr.rel (0) target = $region29
  $region28: #{stn3d_forward.3} parent=0 // pred_region
    _
  $region29: #{stn3d_forward.3} parent=0 // pred_fallthru
    _
  %v26 = vld [vmem:[%s0] sm:$0xff]
  %v27 = vld [vmem:[%s0 + $0x8] sm:$0xff]
  %30 = vst [vmem:[#allocation1] ss:$4 sm:$0xff] %v26
  %s31 = scalar_lea.vmem [#allocation1], 32
  %32 = vst [vmem:[%s31] ss:$4 sm:$0xff] %v27
  %v33 = vld.sshfl [vmem:[#allocation1] sm:$0xff pattern:$0x73625140]
  %v34 = vld.sshfl [vmem:[#allocation1 + $0x8] sm:$0xff pattern:$0x73625140]
  %v35 = vld.sshfl [vmem:[#allocation1 + $0x10] sm:$0xff pattern:$0x73625140]
  %v36 = vld.sshfl [vmem:[#allocation1 + $0x18] sm:$0xff pattern:$0x73625140]
  %v37 = vld.sshfl [vmem:[#allocation1 + $0x20] sm:$0xff pattern:$0x73625140]
  %v38 = vld.sshfl [vmem:[#allocation1 + $0x28] sm:$0xff pattern:$0x73625140]
  %v39 = vld.sshfl [vmem:[#allocation1 + $0x30] sm:$0xff pattern:$0x73625140]
  %v40 = vld.sshfl [vmem:[#allocation1 + $0x38] sm:$0xff pattern:$0x73625140]
  %v49 = vpack.c.bf16 %v33, %v33
  %v50 = vpack.c.bf16 %v34, %v34
  %v51 = vpack.c.bf16 %v35, %v35
  %v52 = vpack.c.bf16 %v36, %v36
  %v53 = vpack.c.bf16 %v37, %v37
  %v54 = vpack.c.bf16 %v38, %v38
  %v55 = vpack.c.bf16 %v39, %v39
  %v56 = vpack.c.bf16 %v40, %v40
  %v57 = vld [vmem:[%s1] sm:$0xff]
  %v58 = vld [vmem:[%s1 + $0x8] sm:$0xff]
  %v59 = vld [vmem:[%s1 + $0x10] sm:$0xff]
  %v60 = vld [vmem:[%s1 + $0x18] sm:$0xff]
  %v61 = vld [vmem:[%s1 + $0x20] sm:$0xff]
  %v62 = vld [vmem:[%s1 + $0x28] sm:$0xff]
  %v63 = vld [vmem:[%s1 + $0x30] sm:$0xff]
  %v64 = vld [vmem:[%s1 + $0x38] sm:$0xff]
  %v65 = vld [vmem:[%s1 + $0x40] sm:$0xff]
  %v66 = vld [vmem:[%s1 + $0x48] sm:$0xff]
  %v67 = vld [vmem:[%s1 + $0x50] sm:$0xff]
  %v68 = vld [vmem:[%s1 + $0x58] sm:$0xff]
  %v69 = vld [vmem:[%s1 + $0x60] sm:$0xff]
  %v70 = vld [vmem:[%s1 + $0x68] sm:$0xff]
  %v71 = vld [vmem:[%s1 + $0x70] sm:$0xff]
  %v72 = vld [vmem:[%s1 + $0x78] sm:$0xff]
  %v73 = vld [vmem:[%s1 + $0x80] sm:$0xff]
  %v74 = vld [vmem:[%s1 + $0x88] sm:$0xff]
  %v75 = vld [vmem:[%s1 + $0x90] sm:$0xff]
  %v76 = vld [vmem:[%s1 + $0x98] sm:$0xff]
  %v77 = vld [vmem:[%s1 + $0xa0] sm:$0xff]
  %v78 = vld [vmem:[%s1 + $0xa8] sm:$0xff]
  %v79 = vld [vmem:[%s1 + $0xb0] sm:$0xff]
  %v80 = vld [vmem:[%s1 + $0xb8] sm:$0xff]
  %v81 = vld [vmem:[%s1 + $0xc0] sm:$0xff]
  %v82 = vld [vmem:[%s1 + $0xc8] sm:$0xff]
  %v83 = vld [vmem:[%s1 + $0xd0] sm:$0xff]
  %v84 = vld [vmem:[%s1 + $0xd8] sm:$0xff]
  %v85 = vld [vmem:[%s1 + $0xe0] sm:$0xff]
  %v86 = vld [vmem:[%s1 + $0xe8] sm:$0xff]
  %v87 = vld [vmem:[%s1 + $0xf0] sm:$0xff]
  %v88 = vld [vmem:[%s1 + $0xf8] sm:$0xff]
  %v89 = vld [vmem:[%s1 + $0x100] sm:$0xff]
  %v90 = vld [vmem:[%s1 + $0x108] sm:$0xff]
  %v91 = vld [vmem:[%s1 + $0x110] sm:$0xff]
  %v92 = vld [vmem:[%s1 + $0x118] sm:$0xff]
  %v93 = vld [vmem:[%s1 + $0x120] sm:$0xff]
  %v94 = vld [vmem:[%s1 + $0x128] sm:$0xff]
  %v95 = vld [vmem:[%s1 + $0x130] sm:$0xff]
  %v96 = vld [vmem:[%s1 + $0x138] sm:$0xff]
  %v97 = vld [vmem:[%s1 + $0x140] sm:$0xff]
  %v98 = vld [vmem:[%s1 + $0x148] sm:$0xff]
  %v99 = vld [vmem:[%s1 + $0x150] sm:$0xff]
  %v100 = vld [vmem:[%s1 + $0x158] sm:$0xff]
  %v101 = vld [vmem:[%s1 + $0x160] sm:$0xff]
  %v102 = vld [vmem:[%s1 + $0x168] sm:$0xff]
  %v103 = vld [vmem:[%s1 + $0x170] sm:$0xff]
  %v104 = vld [vmem:[%s1 + $0x178] sm:$0xff]
  %v105 = vld [vmem:[%s1 + $0x180] sm:$0xff]
  %v106 = vld [vmem:[%s1 + $0x188] sm:$0xff]
  %v107 = vld [vmem:[%s1 + $0x190] sm:$0xff]
  %v108 = vld [vmem:[%s1 + $0x198] sm:$0xff]
  %v109 = vld [vmem:[%s1 + $0x1a0] sm:$0xff]
  %v110 = vld [vmem:[%s1 + $0x1a8] sm:$0xff]
  %v111 = vld [vmem:[%s1 + $0x1b0] sm:$0xff]
  %v112 = vld [vmem:[%s1 + $0x1b8] sm:$0xff]
  %v113 = vld [vmem:[%s1 + $0x1c0] sm:$0xff]
  %v114 = vld [vmem:[%s1 + $0x1c8] sm:$0xff]
  %v115 = vld [vmem:[%s1 + $0x1d0] sm:$0xff]
  %v116 = vld [vmem:[%s1 + $0x1d8] sm:$0xff]
  %v117 = vld [vmem:[%s1 + $0x1e0] sm:$0xff]
  %v118 = vld [vmem:[%s1 + $0x1e8] sm:$0xff]
  %v119 = vld [vmem:[%s1 + $0x1f0] sm:$0xff]
  %v120 = vld [vmem:[%s1 + $0x1f8] sm:$0xff]
  %v121 = vld [vmem:[%s1 + $0x200] sm:$0xff]
  %v122 = vld [vmem:[%s1 + $0x208] sm:$0xff]
  %v123 = vld [vmem:[%s1 + $0x210] sm:$0xff]
  %v124 = vld [vmem:[%s1 + $0x218] sm:$0xff]
  %v125 = vld [vmem:[%s1 + $0x220] sm:$0xff]
  %v126 = vld [vmem:[%s1 + $0x228] sm:$0xff]
  %v127 = vld [vmem:[%s1 + $0x230] sm:$0xff]
  %v128 = vld [vmem:[%s1 + $0x238] sm:$0xff]
  %v129 = vld [vmem:[%s1 + $0x240] sm:$0xff]
  %v130 = vld [vmem:[%s1 + $0x248] sm:$0xff]
  %v131 = vld [vmem:[%s1 + $0x250] sm:$0xff]
  %v132 = vld [vmem:[%s1 + $0x258] sm:$0xff]
  %v133 = vld [vmem:[%s1 + $0x260] sm:$0xff]
  %v134 = vld [vmem:[%s1 + $0x268] sm:$0xff]
  %v135 = vld [vmem:[%s1 + $0x270] sm:$0xff]
  %v136 = vld [vmem:[%s1 + $0x278] sm:$0xff]
  %v137 = vld [vmem:[%s1 + $0x280] sm:$0xff]
  %v138 = vld [vmem:[%s1 + $0x288] sm:$0xff]
  %v139 = vld [vmem:[%s1 + $0x290] sm:$0xff]
  %v140 = vld [vmem:[%s1 + $0x298] sm:$0xff]
  %v141 = vld [vmem:[%s1 + $0x2a0] sm:$0xff]
  %v142 = vld [vmem:[%s1 + $0x2a8] sm:$0xff]
  %v143 = vld [vmem:[%s1 + $0x2b0] sm:$0xff]
  %v144 = vld [vmem:[%s1 + $0x2b8] sm:$0xff]
  %v145 = vld [vmem:[%s1 + $0x2c0] sm:$0xff]
  %v146 = vld [vmem:[%s1 + $0x2c8] sm:$0xff]
  %v147 = vld [vmem:[%s1 + $0x2d0] sm:$0xff]
  %v148 = vld [vmem:[%s1 + $0x2d8] sm:$0xff]
  %v149 = vld [vmem:[%s1 + $0x2e0] sm:$0xff]
  %v150 = vld [vmem:[%s1 + $0x2e8] sm:$0xff]
  %v151 = vld [vmem:[%s1 + $0x2f0] sm:$0xff]
  %v152 = vld [vmem:[%s1 + $0x2f8] sm:$0xff]
  %v153 = vld [vmem:[%s1 + $0x300] sm:$0xff]
  %v154 = vld [vmem:[%s1 + $0x308] sm:$0xff]
  %v155 = vld [vmem:[%s1 + $0x310] sm:$0xff]
  %v156 = vld [vmem:[%s1 + $0x318] sm:$0xff]
  %v157 = vld [vmem:[%s1 + $0x320] sm:$0xff]
  %v158 = vld [vmem:[%s1 + $0x328] sm:$0xff]
  %v159 = vld [vmem:[%s1 + $0x330] sm:$0xff]
  %v160 = vld [vmem:[%s1 + $0x338] sm:$0xff]
  %v161 = vld [vmem:[%s1 + $0x340] sm:$0xff]
  %v162 = vld [vmem:[%s1 + $0x348] sm:$0xff]
  %v163 = vld [vmem:[%s1 + $0x350] sm:$0xff]
  %v164 = vld [vmem:[%s1 + $0x358] sm:$0xff]
  %v165 = vld [vmem:[%s1 + $0x360] sm:$0xff]
  %v166 = vld [vmem:[%s1 + $0x368] sm:$0xff]
  %v167 = vld [vmem:[%s1 + $0x370] sm:$0xff]
  %v168 = vld [vmem:[%s1 + $0x378] sm:$0xff]
  %v169 = vld [vmem:[%s1 + $0x380] sm:$0xff]
  %v170 = vld [vmem:[%s1 + $0x388] sm:$0xff]
  %v171 = vld [vmem:[%s1 + $0x390] sm:$0xff]
  %v172 = vld [vmem:[%s1 + $0x398] sm:$0xff]
  %v173 = vld [vmem:[%s1 + $0x3a0] sm:$0xff]
  %v174 = vld [vmem:[%s1 + $0x3a8] sm:$0xff]
  %v175 = vld [vmem:[%s1 + $0x3b0] sm:$0xff]
  %v176 = vld [vmem:[%s1 + $0x3b8] sm:$0xff]
  %v177 = vld [vmem:[%s1 + $0x3c0] sm:$0xff]
  %v178 = vld [vmem:[%s1 + $0x3c8] sm:$0xff]
  %v179 = vld [vmem:[%s1 + $0x3d0] sm:$0xff]
  %v180 = vld [vmem:[%s1 + $0x3d8] sm:$0xff]
  %v181 = vld [vmem:[%s1 + $0x3e0] sm:$0xff]
  %v182 = vld [vmem:[%s1 + $0x3e8] sm:$0xff]
  %v183 = vld [vmem:[%s1 + $0x3f0] sm:$0xff]
  %v184 = vld [vmem:[%s1 + $0x3f8] sm:$0xff]
  %v185 = vld [vmem:[%s1 + $0x400] sm:$0xff]
  %v186 = vld [vmem:[%s1 + $0x408] sm:$0xff]
  %v187 = vld [vmem:[%s1 + $0x410] sm:$0xff]
  %v188 = vld [vmem:[%s1 + $0x418] sm:$0xff]
  %v189 = vld [vmem:[%s1 + $0x420] sm:$0xff]
  %v190 = vld [vmem:[%s1 + $0x428] sm:$0xff]
  %v191 = vld [vmem:[%s1 + $0x430] sm:$0xff]
  %v192 = vld [vmem:[%s1 + $0x438] sm:$0xff]
  %v193 = vld [vmem:[%s1 + $0x440] sm:$0xff]
  %v194 = vld [vmem:[%s1 + $0x448] sm:$0xff]
  %v195 = vld [vmem:[%s1 + $0x450] sm:$0xff]
  %v196 = vld [vmem:[%s1 + $0x458] sm:$0xff]
  %v197 = vld [vmem:[%s1 + $0x460] sm:$0xff]
  %v198 = vld [vmem:[%s1 + $0x468] sm:$0xff]
  %v199 = vld [vmem:[%s1 + $0x470] sm:$0xff]
  %v200 = vld [vmem:[%s1 + $0x478] sm:$0xff]
  %v201 = vld [vmem:[%s1 + $0x480] sm:$0xff]
  %v202 = vld [vmem:[%s1 + $0x488] sm:$0xff]
  %v203 = vld [vmem:[%s1 + $0x490] sm:$0xff]
  %v204 = vld [vmem:[%s1 + $0x498] sm:$0xff]
  %v205 = vld [vmem:[%s1 + $0x4a0] sm:$0xff]
  %v206 = vld [vmem:[%s1 + $0x4a8] sm:$0xff]
  %v207 = vld [vmem:[%s1 + $0x4b0] sm:$0xff]
  %v208 = vld [vmem:[%s1 + $0x4b8] sm:$0xff]
  %v209 = vld [vmem:[%s1 + $0x4c0] sm:$0xff]
  %v210 = vld [vmem:[%s1 + $0x4c8] sm:$0xff]
  %v211 = vld [vmem:[%s1 + $0x4d0] sm:$0xff]
  %v212 = vld [vmem:[%s1 + $0x4d8] sm:$0xff]
  %v213 = vld [vmem:[%s1 + $0x4e0] sm:$0xff]
  %v214 = vld [vmem:[%s1 + $0x4e8] sm:$0xff]
  %v215 = vld [vmem:[%s1 + $0x4f0] sm:$0xff]
  %v216 = vld [vmem:[%s1 + $0x4f8] sm:$0xff]
  %v217 = vld [vmem:[%s1 + $0x500] sm:$0xff]
  %v218 = vld [vmem:[%s1 + $0x508] sm:$0xff]
  %v219 = vld [vmem:[%s1 + $0x510] sm:$0xff]
  %v220 = vld [vmem:[%s1 + $0x518] sm:$0xff]
  %v221 = vld [vmem:[%s1 + $0x520] sm:$0xff]
  %v222 = vld [vmem:[%s1 + $0x528] sm:$0xff]
  %v223 = vld [vmem:[%s1 + $0x530] sm:$0xff]
  %v224 = vld [vmem:[%s1 + $0x538] sm:$0xff]
  %v225 = vld [vmem:[%s1 + $0x540] sm:$0xff]
  %v226 = vld [vmem:[%s1 + $0x548] sm:$0xff]
  %v227 = vld [vmem:[%s1 + $0x550] sm:$0xff]
  %v228 = vld [vmem:[%s1 + $0x558] sm:$0xff]
  %v229 = vld [vmem:[%s1 + $0x560] sm:$0xff]
  %v230 = vld [vmem:[%s1 + $0x568] sm:$0xff]
  %v231 = vld [vmem:[%s1 + $0x570] sm:$0xff]
  %v232 = vld [vmem:[%s1 + $0x578] sm:$0xff]
  %v233 = vld [vmem:[%s1 + $0x580] sm:$0xff]
  %v234 = vld [vmem:[%s1 + $0x588] sm:$0xff]
  %v235 = vld [vmem:[%s1 + $0x590] sm:$0xff]
  %v236 = vld [vmem:[%s1 + $0x598] sm:$0xff]
  %v237 = vld [vmem:[%s1 + $0x5a0] sm:$0xff]
  %v238 = vld [vmem:[%s1 + $0x5a8] sm:$0xff]
  %v239 = vld [vmem:[%s1 + $0x5b0] sm:$0xff]
  %v240 = vld [vmem:[%s1 + $0x5b8] sm:$0xff]
  %v241 = vld [vmem:[%s1 + $0x5c0] sm:$0xff]
  %v242 = vld [vmem:[%s1 + $0x5c8] sm:$0xff]
  %v243 = vld [vmem:[%s1 + $0x5d0] sm:$0xff]
  %v244 = vld [vmem:[%s1 + $0x5d8] sm:$0xff]
  %v245 = vld [vmem:[%s1 + $0x5e0] sm:$0xff]
  %v246 = vld [vmem:[%s1 + $0x5e8] sm:$0xff]
  %v247 = vld [vmem:[%s1 + $0x5f0] sm:$0xff]
  %v248 = vld [vmem:[%s1 + $0x5f8] sm:$0xff]
  %v249 = vld [vmem:[%s1 + $0x600] sm:$0xff]
  %v250 = vld [vmem:[%s1 + $0x608] sm:$0xff]
  %v251 = vld [vmem:[%s1 + $0x610] sm:$0xff]
  %v252 = vld [vmem:[%s1 + $0x618] sm:$0xff]
  %v253 = vld [vmem:[%s1 + $0x620] sm:$0xff]
  %v254 = vld [vmem:[%s1 + $0x628] sm:$0xff]
  %v255 = vld [vmem:[%s1 + $0x630] sm:$0xff]
  %v256 = vld [vmem:[%s1 + $0x638] sm:$0xff]
  %v257 = vld [vmem:[%s1 + $0x640] sm:$0xff]
  %v258 = vld [vmem:[%s1 + $0x648] sm:$0xff]
  %v259 = vld [vmem:[%s1 + $0x650] sm:$0xff]
  %v260 = vld [vmem:[%s1 + $0x658] sm:$0xff]
  %v261 = vld [vmem:[%s1 + $0x660] sm:$0xff]
  %v262 = vld [vmem:[%s1 + $0x668] sm:$0xff]
  %v263 = vld [vmem:[%s1 + $0x670] sm:$0xff]
  %v264 = vld [vmem:[%s1 + $0x678] sm:$0xff]
  %v265 = vld [vmem:[%s1 + $0x680] sm:$0xff]
  %v266 = vld [vmem:[%s1 + $0x688] sm:$0xff]
  %v267 = vld [vmem:[%s1 + $0x690] sm:$0xff]
  %v268 = vld [vmem:[%s1 + $0x698] sm:$0xff]
  %v269 = vld [vmem:[%s1 + $0x6a0] sm:$0xff]
  %v270 = vld [vmem:[%s1 + $0x6a8] sm:$0xff]
  %v271 = vld [vmem:[%s1 + $0x6b0] sm:$0xff]
  %v272 = vld [vmem:[%s1 + $0x6b8] sm:$0xff]
  %v273 = vld [vmem:[%s1 + $0x6c0] sm:$0xff]
  %v274 = vld [vmem:[%s1 + $0x6c8] sm:$0xff]
  %v275 = vld [vmem:[%s1 + $0x6d0] sm:$0xff]
  %v276 = vld [vmem:[%s1 + $0x6d8] sm:$0xff]
  %v277 = vld [vmem:[%s1 + $0x6e0] sm:$0xff]
  %v278 = vld [vmem:[%s1 + $0x6e8] sm:$0xff]
  %v279 = vld [vmem:[%s1 + $0x6f0] sm:$0xff]
  %v280 = vld [vmem:[%s1 + $0x6f8] sm:$0xff]
  %v281 = vld [vmem:[%s1 + $0x700] sm:$0xff]
  %v282 = vld [vmem:[%s1 + $0x708] sm:$0xff]
  %v283 = vld [vmem:[%s1 + $0x710] sm:$0xff]
  %v284 = vld [vmem:[%s1 + $0x718] sm:$0xff]
  %v285 = vld [vmem:[%s1 + $0x720] sm:$0xff]
  %v286 = vld [vmem:[%s1 + $0x728] sm:$0xff]
  %v287 = vld [vmem:[%s1 + $0x730] sm:$0xff]
  %v288 = vld [vmem:[%s1 + $0x738] sm:$0xff]
  %v289 = vld [vmem:[%s1 + $0x740] sm:$0xff]
  %v290 = vld [vmem:[%s1 + $0x748] sm:$0xff]
  %v291 = vld [vmem:[%s1 + $0x750] sm:$0xff]
  %v292 = vld [vmem:[%s1 + $0x758] sm:$0xff]
  %v293 = vld [vmem:[%s1 + $0x760] sm:$0xff]
  %v294 = vld [vmem:[%s1 + $0x768] sm:$0xff]
  %v295 = vld [vmem:[%s1 + $0x770] sm:$0xff]
  %v296 = vld [vmem:[%s1 + $0x778] sm:$0xff]
  %v297 = vld [vmem:[%s1 + $0x780] sm:$0xff]
  %v298 = vld [vmem:[%s1 + $0x788] sm:$0xff]
  %v299 = vld [vmem:[%s1 + $0x790] sm:$0xff]
  %v300 = vld [vmem:[%s1 + $0x798] sm:$0xff]
  %v301 = vld [vmem:[%s1 + $0x7a0] sm:$0xff]
  %v302 = vld [vmem:[%s1 + $0x7a8] sm:$0xff]
  %v303 = vld [vmem:[%s1 + $0x7b0] sm:$0xff]
  %v304 = vld [vmem:[%s1 + $0x7b8] sm:$0xff]
  %v305 = vld [vmem:[%s1 + $0x7c0] sm:$0xff]
  %v306 = vld [vmem:[%s1 + $0x7c8] sm:$0xff]
  %v307 = vld [vmem:[%s1 + $0x7d0] sm:$0xff]
  %v308 = vld [vmem:[%s1 + $0x7d8] sm:$0xff]
  %v309 = vld [vmem:[%s1 + $0x7e0] sm:$0xff]
  %v310 = vld [vmem:[%s1 + $0x7e8] sm:$0xff]
  %v311 = vld [vmem:[%s1 + $0x7f0] sm:$0xff]
  %v312 = vld [vmem:[%s1 + $0x7f8] sm:$0xff]
  %v313 = vld [vmem:[%s2] sm:$0xf]
  %v315 = vperm.slane %v313, 0
  %v316 = vperm.slane %v313, 1
  %v317 = vperm.slane %v313, 2
  %v318 = vperm.slane %v313, 3
  %v579 = vunpack.c.l.b16 %v57
  %v580 = vunpack.c.h.b16 %v57
  %v581 = vunpack.c.l.b16 %v58
  %v582 = vunpack.c.h.b16 %v58
  %v583 = vunpack.c.l.b16 %v59
  %v584 = vunpack.c.h.b16 %v59
  %v585 = vunpack.c.l.b16 %v60
  %v586 = vunpack.c.h.b16 %v60
  %v587 = vunpack.c.l.b16 %v61
  %v588 = vunpack.c.h.b16 %v61
  %v589 = vunpack.c.l.b16 %v62
  %v590 = vunpack.c.h.b16 %v62
  %v591 = vunpack.c.l.b16 %v63
  %v592 = vunpack.c.h.b16 %v63
  %v593 = vunpack.c.l.b16 %v64
  %v594 = vunpack.c.h.b16 %v64
  %v595 = vunpack.c.l.b16 %v65
  %v596 = vunpack.c.h.b16 %v65
  %v597 = vunpack.c.l.b16 %v66
  %v598 = vunpack.c.h.b16 %v66
  %v599 = vunpack.c.l.b16 %v67
  %v600 = vunpack.c.h.b16 %v67
  %v601 = vunpack.c.l.b16 %v68
  %v602 = vunpack.c.h.b16 %v68
  %v603 = vunpack.c.l.b16 %v69
  %v604 = vunpack.c.h.b16 %v69
  %v605 = vunpack.c.l.b16 %v70
  %v606 = vunpack.c.h.b16 %v70
  %v607 = vunpack.c.l.b16 %v71
  %v608 = vunpack.c.h.b16 %v71
  %v609 = vunpack.c.l.b16 %v72
  %v610 = vunpack.c.h.b16 %v72
  %v611 = vunpack.c.l.b16 %v73
  %v612 = vunpack.c.h.b16 %v73
  %v613 = vunpack.c.l.b16 %v74
  %v614 = vunpack.c.h.b16 %v74
  %v615 = vunpack.c.l.b16 %v75
  %v616 = vunpack.c.h.b16 %v75
  %v617 = vunpack.c.l.b16 %v76
  %v618 = vunpack.c.h.b16 %v76
  %v619 = vunpack.c.l.b16 %v77
  %v620 = vunpack.c.h.b16 %v77
  %v621 = vunpack.c.l.b16 %v78
  %v622 = vunpack.c.h.b16 %v78
  %v623 = vunpack.c.l.b16 %v79
  %v624 = vunpack.c.h.b16 %v79
  %v625 = vunpack.c.l.b16 %v80
  %v626 = vunpack.c.h.b16 %v80
  %v627 = vunpack.c.l.b16 %v81
  %v628 = vunpack.c.h.b16 %v81
  %v629 = vunpack.c.l.b16 %v82
  %v630 = vunpack.c.h.b16 %v82
  %v631 = vunpack.c.l.b16 %v83
  %v632 = vunpack.c.h.b16 %v83
  %v633 = vunpack.c.l.b16 %v84
  %v634 = vunpack.c.h.b16 %v84
  %v635 = vunpack.c.l.b16 %v85
  %v636 = vunpack.c.h.b16 %v85
  %v637 = vunpack.c.l.b16 %v86
  %v638 = vunpack.c.h.b16 %v86
  %v639 = vunpack.c.l.b16 %v87
  %v640 = vunpack.c.h.b16 %v87
  %v641 = vunpack.c.l.b16 %v88
  %v642 = vunpack.c.h.b16 %v88
  %v643 = vunpack.c.l.b16 %v89
  %v644 = vunpack.c.h.b16 %v89
  %v645 = vunpack.c.l.b16 %v90
  %v646 = vunpack.c.h.b16 %v90
  %v647 = vunpack.c.l.b16 %v91
  %v648 = vunpack.c.h.b16 %v91
  %v649 = vunpack.c.l.b16 %v92
  %v650 = vunpack.c.h.b16 %v92
  %v651 = vunpack.c.l.b16 %v93
  %v652 = vunpack.c.h.b16 %v93
  %v653 = vunpack.c.l.b16 %v94
  %v654 = vunpack.c.h.b16 %v94
  %v655 = vunpack.c.l.b16 %v95
  %v656 = vunpack.c.h.b16 %v95
  %v657 = vunpack.c.l.b16 %v96
  %v658 = vunpack.c.h.b16 %v96
  %v659 = vunpack.c.l.b16 %v97
  %v660 = vunpack.c.h.b16 %v97
  %v661 = vunpack.c.l.b16 %v98
  %v662 = vunpack.c.h.b16 %v98
  %v663 = vunpack.c.l.b16 %v99
  %v664 = vunpack.c.h.b16 %v99
  %v665 = vunpack.c.l.b16 %v100
  %v666 = vunpack.c.h.b16 %v100
  %v667 = vunpack.c.l.b16 %v101
  %v668 = vunpack.c.h.b16 %v101
  %v669 = vunpack.c.l.b16 %v102
  %v670 = vunpack.c.h.b16 %v102
  %v671 = vunpack.c.l.b16 %v103
  %v672 = vunpack.c.h.b16 %v103
  %v673 = vunpack.c.l.b16 %v104
  %v674 = vunpack.c.h.b16 %v104
  %v675 = vunpack.c.l.b16 %v105
  %v676 = vunpack.c.h.b16 %v105
  %v677 = vunpack.c.l.b16 %v106
  %v678 = vunpack.c.h.b16 %v106
  %v679 = vunpack.c.l.b16 %v107
  %v680 = vunpack.c.h.b16 %v107
  %v681 = vunpack.c.l.b16 %v108
  %v682 = vunpack.c.h.b16 %v108
  %v683 = vunpack.c.l.b16 %v109
  %v684 = vunpack.c.h.b16 %v109
  %v685 = vunpack.c.l.b16 %v110
  %v686 = vunpack.c.h.b16 %v110
  %v687 = vunpack.c.l.b16 %v111
  %v688 = vunpack.c.h.b16 %v111
  %v689 = vunpack.c.l.b16 %v112
  %v690 = vunpack.c.h.b16 %v112
  %v691 = vunpack.c.l.b16 %v113
  %v692 = vunpack.c.h.b16 %v113
  %v693 = vunpack.c.l.b16 %v114
  %v694 = vunpack.c.h.b16 %v114
  %v695 = vunpack.c.l.b16 %v115
  %v696 = vunpack.c.h.b16 %v115
  %v697 = vunpack.c.l.b16 %v116
  %v698 = vunpack.c.h.b16 %v116
  %v699 = vunpack.c.l.b16 %v117
  %v700 = vunpack.c.h.b16 %v117
  %v701 = vunpack.c.l.b16 %v118
  %v702 = vunpack.c.h.b16 %v118
  %v703 = vunpack.c.l.b16 %v119
  %v704 = vunpack.c.h.b16 %v119
  %v705 = vunpack.c.l.b16 %v120
  %v706 = vunpack.c.h.b16 %v120
  %v707 = vunpack.c.l.b16 %v121
  %v708 = vunpack.c.h.b16 %v121
  %v709 = vunpack.c.l.b16 %v122
  %v710 = vunpack.c.h.b16 %v122
  %v711 = vunpack.c.l.b16 %v123
  %v712 = vunpack.c.h.b16 %v123
  %v713 = vunpack.c.l.b16 %v124
  %v714 = vunpack.c.h.b16 %v124
  %v715 = vunpack.c.l.b16 %v125
  %v716 = vunpack.c.h.b16 %v125
  %v717 = vunpack.c.l.b16 %v126
  %v718 = vunpack.c.h.b16 %v126
  %v719 = vunpack.c.l.b16 %v127
  %v720 = vunpack.c.h.b16 %v127
  %v721 = vunpack.c.l.b16 %v128
  %v722 = vunpack.c.h.b16 %v128
  %v723 = vunpack.c.l.b16 %v129
  %v724 = vunpack.c.h.b16 %v129
  %v725 = vunpack.c.l.b16 %v130
  %v726 = vunpack.c.h.b16 %v130
  %v727 = vunpack.c.l.b16 %v131
  %v728 = vunpack.c.h.b16 %v131
  %v729 = vunpack.c.l.b16 %v132
  %v730 = vunpack.c.h.b16 %v132
  %v731 = vunpack.c.l.b16 %v133
  %v732 = vunpack.c.h.b16 %v133
  %v733 = vunpack.c.l.b16 %v134
  %v734 = vunpack.c.h.b16 %v134
  %v735 = vunpack.c.l.b16 %v135
  %v736 = vunpack.c.h.b16 %v135
  %v737 = vunpack.c.l.b16 %v136
  %v738 = vunpack.c.h.b16 %v136
  %v739 = vunpack.c.l.b16 %v137
  %v740 = vunpack.c.h.b16 %v137
  %v741 = vunpack.c.l.b16 %v138
  %v742 = vunpack.c.h.b16 %v138
  %v743 = vunpack.c.l.b16 %v139
  %v744 = vunpack.c.h.b16 %v139
  %v745 = vunpack.c.l.b16 %v140
  %v746 = vunpack.c.h.b16 %v140
  %v747 = vunpack.c.l.b16 %v141
  %v748 = vunpack.c.h.b16 %v141
  %v749 = vunpack.c.l.b16 %v142
  %v750 = vunpack.c.h.b16 %v142
  %v751 = vunpack.c.l.b16 %v143
  %v752 = vunpack.c.h.b16 %v143
  %v753 = vunpack.c.l.b16 %v144
  %v754 = vunpack.c.h.b16 %v144
  %v755 = vunpack.c.l.b16 %v145
  %v756 = vunpack.c.h.b16 %v145
  %v757 = vunpack.c.l.b16 %v146
  %v758 = vunpack.c.h.b16 %v146
  %v759 = vunpack.c.l.b16 %v147
  %v760 = vunpack.c.h.b16 %v147
  %v761 = vunpack.c.l.b16 %v148
  %v762 = vunpack.c.h.b16 %v148
  %v763 = vunpack.c.l.b16 %v149
  %v764 = vunpack.c.h.b16 %v149
  %v765 = vunpack.c.l.b16 %v150
  %v766 = vunpack.c.h.b16 %v150
  %v767 = vunpack.c.l.b16 %v151
  %v768 = vunpack.c.h.b16 %v151
  %v769 = vunpack.c.l.b16 %v152
  %v770 = vunpack.c.h.b16 %v152
  %v771 = vunpack.c.l.b16 %v153
  %v772 = vunpack.c.h.b16 %v153
  %v773 = vunpack.c.l.b16 %v154
  %v774 = vunpack.c.h.b16 %v154
  %v775 = vunpack.c.l.b16 %v155
  %v776 = vunpack.c.h.b16 %v155
  %v777 = vunpack.c.l.b16 %v156
  %v778 = vunpack.c.h.b16 %v156
  %v779 = vunpack.c.l.b16 %v157
  %v780 = vunpack.c.h.b16 %v157
  %v781 = vunpack.c.l.b16 %v158
  %v782 = vunpack.c.h.b16 %v158
  %v783 = vunpack.c.l.b16 %v159
  %v784 = vunpack.c.h.b16 %v159
  %v785 = vunpack.c.l.b16 %v160
  %v786 = vunpack.c.h.b16 %v160
  %v787 = vunpack.c.l.b16 %v161
  %v788 = vunpack.c.h.b16 %v161
  %v789 = vunpack.c.l.b16 %v162
  %v790 = vunpack.c.h.b16 %v162
  %v791 = vunpack.c.l.b16 %v163
  %v792 = vunpack.c.h.b16 %v163
  %v793 = vunpack.c.l.b16 %v164
  %v794 = vunpack.c.h.b16 %v164
  %v795 = vunpack.c.l.b16 %v165
  %v796 = vunpack.c.h.b16 %v165
  %v797 = vunpack.c.l.b16 %v166
  %v798 = vunpack.c.h.b16 %v166
  %v799 = vunpack.c.l.b16 %v167
  %v800 = vunpack.c.h.b16 %v167
  %v801 = vunpack.c.l.b16 %v168
  %v802 = vunpack.c.h.b16 %v168
  %v803 = vunpack.c.l.b16 %v169
  %v804 = vunpack.c.h.b16 %v169
  %v805 = vunpack.c.l.b16 %v170
  %v806 = vunpack.c.h.b16 %v170
  %v807 = vunpack.c.l.b16 %v171
  %v808 = vunpack.c.h.b16 %v171
  %v809 = vunpack.c.l.b16 %v172
  %v810 = vunpack.c.h.b16 %v172
  %v811 = vunpack.c.l.b16 %v173
  %v812 = vunpack.c.h.b16 %v173
  %v813 = vunpack.c.l.b16 %v174
  %v814 = vunpack.c.h.b16 %v174
  %v815 = vunpack.c.l.b16 %v175
  %v816 = vunpack.c.h.b16 %v175
  %v817 = vunpack.c.l.b16 %v176
  %v818 = vunpack.c.h.b16 %v176
  %v819 = vunpack.c.l.b16 %v177
  %v820 = vunpack.c.h.b16 %v177
  %v821 = vunpack.c.l.b16 %v178
  %v822 = vunpack.c.h.b16 %v178
  %v823 = vunpack.c.l.b16 %v179
  %v824 = vunpack.c.h.b16 %v179
  %v825 = vunpack.c.l.b16 %v180
  %v826 = vunpack.c.h.b16 %v180
  %v827 = vunpack.c.l.b16 %v181
  %v828 = vunpack.c.h.b16 %v181
  %v829 = vunpack.c.l.b16 %v182
  %v830 = vunpack.c.h.b16 %v182
  %v831 = vunpack.c.l.b16 %v183
  %v832 = vunpack.c.h.b16 %v183
  %v833 = vunpack.c.l.b16 %v184
  %v834 = vunpack.c.h.b16 %v184
  %v835 = vunpack.c.l.b16 %v185
  %v836 = vunpack.c.h.b16 %v185
  %v837 = vunpack.c.l.b16 %v186
  %v838 = vunpack.c.h.b16 %v186
  %v839 = vunpack.c.l.b16 %v187
  %v840 = vunpack.c.h.b16 %v187
  %v841 = vunpack.c.l.b16 %v188
  %v842 = vunpack.c.h.b16 %v188
  %v843 = vunpack.c.l.b16 %v189
  %v844 = vunpack.c.h.b16 %v189
  %v845 = vunpack.c.l.b16 %v190
  %v846 = vunpack.c.h.b16 %v190
  %v847 = vunpack.c.l.b16 %v191
  %v848 = vunpack.c.h.b16 %v191
  %v849 = vunpack.c.l.b16 %v192
  %v850 = vunpack.c.h.b16 %v192
  %v851 = vunpack.c.l.b16 %v193
  %v852 = vunpack.c.h.b16 %v193
  %v853 = vunpack.c.l.b16 %v194
  %v854 = vunpack.c.h.b16 %v194
  %v855 = vunpack.c.l.b16 %v195
  %v856 = vunpack.c.h.b16 %v195
  %v857 = vunpack.c.l.b16 %v196
  %v858 = vunpack.c.h.b16 %v196
  %v859 = vunpack.c.l.b16 %v197
  %v860 = vunpack.c.h.b16 %v197
  %v861 = vunpack.c.l.b16 %v198
  %v862 = vunpack.c.h.b16 %v198
  %v863 = vunpack.c.l.b16 %v199
  %v864 = vunpack.c.h.b16 %v199
  %v865 = vunpack.c.l.b16 %v200
  %v866 = vunpack.c.h.b16 %v200
  %v867 = vunpack.c.l.b16 %v201
  %v868 = vunpack.c.h.b16 %v201
  %v869 = vunpack.c.l.b16 %v202
  %v870 = vunpack.c.h.b16 %v202
  %v871 = vunpack.c.l.b16 %v203
  %v872 = vunpack.c.h.b16 %v203
  %v873 = vunpack.c.l.b16 %v204
  %v874 = vunpack.c.h.b16 %v204
  %v875 = vunpack.c.l.b16 %v205
  %v876 = vunpack.c.h.b16 %v205
  %v877 = vunpack.c.l.b16 %v206
  %v878 = vunpack.c.h.b16 %v206
  %v879 = vunpack.c.l.b16 %v207
  %v880 = vunpack.c.h.b16 %v207
  %v881 = vunpack.c.l.b16 %v208
  %v882 = vunpack.c.h.b16 %v208
  %v883 = vunpack.c.l.b16 %v209
  %v884 = vunpack.c.h.b16 %v209
  %v885 = vunpack.c.l.b16 %v210
  %v886 = vunpack.c.h.b16 %v210
  %v887 = vunpack.c.l.b16 %v211
  %v888 = vunpack.c.h.b16 %v211
  %v889 = vunpack.c.l.b16 %v212
  %v890 = vunpack.c.h.b16 %v212
  %v891 = vunpack.c.l.b16 %v213
  %v892 = vunpack.c.h.b16 %v213
  %v893 = vunpack.c.l.b16 %v214
  %v894 = vunpack.c.h.b16 %v214
  %v895 = vunpack.c.l.b16 %v215
  %v896 = vunpack.c.h.b16 %v215
  %v897 = vunpack.c.l.b16 %v216
  %v898 = vunpack.c.h.b16 %v216
  %v899 = vunpack.c.l.b16 %v217
  %v900 = vunpack.c.h.b16 %v217
  %v901 = vunpack.c.l.b16 %v218
  %v902 = vunpack.c.h.b16 %v218
  %v903 = vunpack.c.l.b16 %v219
  %v904 = vunpack.c.h.b16 %v219
  %v905 = vunpack.c.l.b16 %v220
  %v906 = vunpack.c.h.b16 %v220
  %v907 = vunpack.c.l.b16 %v221
  %v908 = vunpack.c.h.b16 %v221
  %v909 = vunpack.c.l.b16 %v222
  %v910 = vunpack.c.h.b16 %v222
  %v911 = vunpack.c.l.b16 %v223
  %v912 = vunpack.c.h.b16 %v223
  %v913 = vunpack.c.l.b16 %v224
  %v914 = vunpack.c.h.b16 %v224
  %v915 = vunpack.c.l.b16 %v225
  %v916 = vunpack.c.h.b16 %v225
  %v917 = vunpack.c.l.b16 %v226
  %v918 = vunpack.c.h.b16 %v226
  %v919 = vunpack.c.l.b16 %v227
  %v920 = vunpack.c.h.b16 %v227
  %v921 = vunpack.c.l.b16 %v228
  %v922 = vunpack.c.h.b16 %v228
  %v923 = vunpack.c.l.b16 %v229
  %v924 = vunpack.c.h.b16 %v229
  %v925 = vunpack.c.l.b16 %v230
  %v926 = vunpack.c.h.b16 %v230
  %v927 = vunpack.c.l.b16 %v231
  %v928 = vunpack.c.h.b16 %v231
  %v929 = vunpack.c.l.b16 %v232
  %v930 = vunpack.c.h.b16 %v232
  %v931 = vunpack.c.l.b16 %v233
  %v932 = vunpack.c.h.b16 %v233
  %v933 = vunpack.c.l.b16 %v234
  %v934 = vunpack.c.h.b16 %v234
  %v935 = vunpack.c.l.b16 %v235
  %v936 = vunpack.c.h.b16 %v235
  %v937 = vunpack.c.l.b16 %v236
  %v938 = vunpack.c.h.b16 %v236
  %v939 = vunpack.c.l.b16 %v237
  %v940 = vunpack.c.h.b16 %v237
  %v941 = vunpack.c.l.b16 %v238
  %v942 = vunpack.c.h.b16 %v238
  %v943 = vunpack.c.l.b16 %v239
  %v944 = vunpack.c.h.b16 %v239
  %v945 = vunpack.c.l.b16 %v240
  %v946 = vunpack.c.h.b16 %v240
  %v947 = vunpack.c.l.b16 %v241
  %v948 = vunpack.c.h.b16 %v241
  %v949 = vunpack.c.l.b16 %v242
  %v950 = vunpack.c.h.b16 %v242
  %v951 = vunpack.c.l.b16 %v243
  %v952 = vunpack.c.h.b16 %v243
  %v953 = vunpack.c.l.b16 %v244
  %v954 = vunpack.c.h.b16 %v244
  %v955 = vunpack.c.l.b16 %v245
  %v956 = vunpack.c.h.b16 %v245
  %v957 = vunpack.c.l.b16 %v246
  %v958 = vunpack.c.h.b16 %v246
  %v959 = vunpack.c.l.b16 %v247
  %v960 = vunpack.c.h.b16 %v247
  %v961 = vunpack.c.l.b16 %v248
  %v962 = vunpack.c.h.b16 %v248
  %v963 = vunpack.c.l.b16 %v249
  %v964 = vunpack.c.h.b16 %v249
  %v965 = vunpack.c.l.b16 %v250
  %v966 = vunpack.c.h.b16 %v250
  %v967 = vunpack.c.l.b16 %v251
  %v968 = vunpack.c.h.b16 %v251
  %v969 = vunpack.c.l.b16 %v252
  %v970 = vunpack.c.h.b16 %v252
  %v971 = vunpack.c.l.b16 %v253
  %v972 = vunpack.c.h.b16 %v253
  %v973 = vunpack.c.l.b16 %v254
  %v974 = vunpack.c.h.b16 %v254
  %v975 = vunpack.c.l.b16 %v255
  %v976 = vunpack.c.h.b16 %v255
  %v977 = vunpack.c.l.b16 %v256
  %v978 = vunpack.c.h.b16 %v256
  %v979 = vunpack.c.l.b16 %v257
  %v980 = vunpack.c.h.b16 %v257
  %v981 = vunpack.c.l.b16 %v258
  %v982 = vunpack.c.h.b16 %v258
  %v983 = vunpack.c.l.b16 %v259
  %v984 = vunpack.c.h.b16 %v259
  %v985 = vunpack.c.l.b16 %v260
  %v986 = vunpack.c.h.b16 %v260
  %v987 = vunpack.c.l.b16 %v261
  %v988 = vunpack.c.h.b16 %v261
  %v989 = vunpack.c.l.b16 %v262
  %v990 = vunpack.c.h.b16 %v262
  %v991 = vunpack.c.l.b16 %v263
  %v992 = vunpack.c.h.b16 %v263
  %v993 = vunpack.c.l.b16 %v264
  %v994 = vunpack.c.h.b16 %v264
  %v995 = vunpack.c.l.b16 %v265
  %v996 = vunpack.c.h.b16 %v265
  %v997 = vunpack.c.l.b16 %v266
  %v998 = vunpack.c.h.b16 %v266
  %v999 = vunpack.c.l.b16 %v267
  %v1000 = vunpack.c.h.b16 %v267
  %v1001 = vunpack.c.l.b16 %v268
  %v1002 = vunpack.c.h.b16 %v268
  %v1003 = vunpack.c.l.b16 %v269
  %v1004 = vunpack.c.h.b16 %v269
  %v1005 = vunpack.c.l.b16 %v270
  %v1006 = vunpack.c.h.b16 %v270
  %v1007 = vunpack.c.l.b16 %v271
  %v1008 = vunpack.c.h.b16 %v271
  %v1009 = vunpack.c.l.b16 %v272
  %v1010 = vunpack.c.h.b16 %v272
  %v1011 = vunpack.c.l.b16 %v273
  %v1012 = vunpack.c.h.b16 %v273
  %v1013 = vunpack.c.l.b16 %v274
  %v1014 = vunpack.c.h.b16 %v274
  %v1015 = vunpack.c.l.b16 %v275
  %v1016 = vunpack.c.h.b16 %v275
  %v1017 = vunpack.c.l.b16 %v276
  %v1018 = vunpack.c.h.b16 %v276
  %v1019 = vunpack.c.l.b16 %v277
  %v1020 = vunpack.c.h.b16 %v277
  %v1021 = vunpack.c.l.b16 %v278
  %v1022 = vunpack.c.h.b16 %v278
  %v1023 = vunpack.c.l.b16 %v279
  %v1024 = vunpack.c.h.b16 %v279
  %v1025 = vunpack.c.l.b16 %v280
  %v1026 = vunpack.c.h.b16 %v280
  %v1027 = vunpack.c.l.b16 %v281
  %v1028 = vunpack.c.h.b16 %v281
  %v1029 = vunpack.c.l.b16 %v282
  %v1030 = vunpack.c.h.b16 %v282
  %v1031 = vunpack.c.l.b16 %v283
  %v1032 = vunpack.c.h.b16 %v283
  %v1033 = vunpack.c.l.b16 %v284
  %v1034 = vunpack.c.h.b16 %v284
  %v1035 = vunpack.c.l.b16 %v285
  %v1036 = vunpack.c.h.b16 %v285
  %v1037 = vunpack.c.l.b16 %v286
  %v1038 = vunpack.c.h.b16 %v286
  %v1039 = vunpack.c.l.b16 %v287
  %v1040 = vunpack.c.h.b16 %v287
  %v1041 = vunpack.c.l.b16 %v288
  %v1042 = vunpack.c.h.b16 %v288
  %v1043 = vunpack.c.l.b16 %v289
  %v1044 = vunpack.c.h.b16 %v289
  %v1045 = vunpack.c.l.b16 %v290
  %v1046 = vunpack.c.h.b16 %v290
  %v1047 = vunpack.c.l.b16 %v291
  %v1048 = vunpack.c.h.b16 %v291
  %v1049 = vunpack.c.l.b16 %v292
  %v1050 = vunpack.c.h.b16 %v292
  %v1051 = vunpack.c.l.b16 %v293
  %v1052 = vunpack.c.h.b16 %v293
  %v1053 = vunpack.c.l.b16 %v294
  %v1054 = vunpack.c.h.b16 %v294
  %v1055 = vunpack.c.l.b16 %v295
  %v1056 = vunpack.c.h.b16 %v295
  %v1057 = vunpack.c.l.b16 %v296
  %v1058 = vunpack.c.h.b16 %v296
  %v1059 = vunpack.c.l.b16 %v297
  %v1060 = vunpack.c.h.b16 %v297
  %v1061 = vunpack.c.l.b16 %v298
  %v1062 = vunpack.c.h.b16 %v298
  %v1063 = vunpack.c.l.b16 %v299
  %v1064 = vunpack.c.h.b16 %v299
  %v1065 = vunpack.c.l.b16 %v300
  %v1066 = vunpack.c.h.b16 %v300
  %v1067 = vunpack.c.l.b16 %v301
  %v1068 = vunpack.c.h.b16 %v301
  %v1069 = vunpack.c.l.b16 %v302
  %v1070 = vunpack.c.h.b16 %v302
  %v1071 = vunpack.c.l.b16 %v303
  %v1072 = vunpack.c.h.b16 %v303
  %v1073 = vunpack.c.l.b16 %v304
  %v1074 = vunpack.c.h.b16 %v304
  %v1075 = vunpack.c.l.b16 %v305
  %v1076 = vunpack.c.h.b16 %v305
  %v1077 = vunpack.c.l.b16 %v306
  %v1078 = vunpack.c.h.b16 %v306
  %v1079 = vunpack.c.l.b16 %v307
  %v1080 = vunpack.c.h.b16 %v307
  %v1081 = vunpack.c.l.b16 %v308
  %v1082 = vunpack.c.h.b16 %v308
  %v1083 = vunpack.c.l.b16 %v309
  %v1084 = vunpack.c.h.b16 %v309
  %v1085 = vunpack.c.l.b16 %v310
  %v1086 = vunpack.c.h.b16 %v310
  %v1087 = vunpack.c.l.b16 %v311
  %v1088 = vunpack.c.h.b16 %v311
  %v1089 = vunpack.c.l.b16 %v312
  %v1090 = vunpack.c.h.b16 %v312
  %v1091 = vpack.c.b16 %v583, %v579
  %v1092 = vpack.c.b16 %v584, %v580
  %v1093 = vpack.c.b16 %v585, %v581
  %v1094 = vpack.c.b16 %v586, %v582
  %v1095 = vpack.c.b16 %v591, %v587
  %v1096 = vpack.c.b16 %v592, %v588
  %v1097 = vpack.c.b16 %v593, %v589
  %v1098 = vpack.c.b16 %v594, %v590
  %v1099 = vpack.c.b16 %v599, %v595
  %v1100 = vpack.c.b16 %v600, %v596
  %v1101 = vpack.c.b16 %v601, %v597
  %v1102 = vpack.c.b16 %v602, %v598
  %v1103 = vpack.c.b16 %v607, %v603
  %v1104 = vpack.c.b16 %v608, %v604
  %v1105 = vpack.c.b16 %v609, %v605
  %v1106 = vpack.c.b16 %v610, %v606
  %v1107 = vpack.c.b16 %v615, %v611
  %v1108 = vpack.c.b16 %v616, %v612
  %v1109 = vpack.c.b16 %v617, %v613
  %v1110 = vpack.c.b16 %v618, %v614
  %v1111 = vpack.c.b16 %v623, %v619
  %v1112 = vpack.c.b16 %v624, %v620
  %v1113 = vpack.c.b16 %v625, %v621
  %v1114 = vpack.c.b16 %v626, %v622
  %v1115 = vpack.c.b16 %v631, %v627
  %v1116 = vpack.c.b16 %v632, %v628
  %v1117 = vpack.c.b16 %v633, %v629
  %v1118 = vpack.c.b16 %v634, %v630
  %v1119 = vpack.c.b16 %v639, %v635
  %v1120 = vpack.c.b16 %v640, %v636
  %v1121 = vpack.c.b16 %v641, %v637
  %v1122 = vpack.c.b16 %v642, %v638
  %v1123 = vpack.c.b16 %v647, %v643
  %v1124 = vpack.c.b16 %v648, %v644
  %v1125 = vpack.c.b16 %v649, %v645
  %v1126 = vpack.c.b16 %v650, %v646
  %v1127 = vpack.c.b16 %v655, %v651
  %v1128 = vpack.c.b16 %v656, %v652
  %v1129 = vpack.c.b16 %v657, %v653
  %v1130 = vpack.c.b16 %v658, %v654
  %v1131 = vpack.c.b16 %v663, %v659
  %v1132 = vpack.c.b16 %v664, %v660
  %v1133 = vpack.c.b16 %v665, %v661
  %v1134 = vpack.c.b16 %v666, %v662
  %v1135 = vpack.c.b16 %v671, %v667
  %v1136 = vpack.c.b16 %v672, %v668
  %v1137 = vpack.c.b16 %v673, %v669
  %v1138 = vpack.c.b16 %v674, %v670
  %v1139 = vpack.c.b16 %v679, %v675
  %v1140 = vpack.c.b16 %v680, %v676
  %v1141 = vpack.c.b16 %v681, %v677
  %v1142 = vpack.c.b16 %v682, %v678
  %v1143 = vpack.c.b16 %v687, %v683
  %v1144 = vpack.c.b16 %v688, %v684
  %v1145 = vpack.c.b16 %v689, %v685
  %v1146 = vpack.c.b16 %v690, %v686
  %v1147 = vpack.c.b16 %v695, %v691
  %v1148 = vpack.c.b16 %v696, %v692
  %v1149 = vpack.c.b16 %v697, %v693
  %v1150 = vpack.c.b16 %v698, %v694
  %v1151 = vpack.c.b16 %v703, %v699
  %v1152 = vpack.c.b16 %v704, %v700
  %v1153 = vpack.c.b16 %v705, %v701
  %v1154 = vpack.c.b16 %v706, %v702
  %v1155 = vpack.c.b16 %v711, %v707
  %v1156 = vpack.c.b16 %v712, %v708
  %v1157 = vpack.c.b16 %v713, %v709
  %v1158 = vpack.c.b16 %v714, %v710
  %v1159 = vpack.c.b16 %v719, %v715
  %v1160 = vpack.c.b16 %v720, %v716
  %v1161 = vpack.c.b16 %v721, %v717
  %v1162 = vpack.c.b16 %v722, %v718
  %v1163 = vpack.c.b16 %v727, %v723
  %v1164 = vpack.c.b16 %v728, %v724
  %v1165 = vpack.c.b16 %v729, %v725
  %v1166 = vpack.c.b16 %v730, %v726
  %v1167 = vpack.c.b16 %v735, %v731
  %v1168 = vpack.c.b16 %v736, %v732
  %v1169 = vpack.c.b16 %v737, %v733
  %v1170 = vpack.c.b16 %v738, %v734
  %v1171 = vpack.c.b16 %v743, %v739
  %v1172 = vpack.c.b16 %v744, %v740
  %v1173 = vpack.c.b16 %v745, %v741
  %v1174 = vpack.c.b16 %v746, %v742
  %v1175 = vpack.c.b16 %v751, %v747
  %v1176 = vpack.c.b16 %v752, %v748
  %v1177 = vpack.c.b16 %v753, %v749
  %v1178 = vpack.c.b16 %v754, %v750
  %v1179 = vpack.c.b16 %v759, %v755
  %v1180 = vpack.c.b16 %v760, %v756
  %v1181 = vpack.c.b16 %v761, %v757
  %v1182 = vpack.c.b16 %v762, %v758
  %v1183 = vpack.c.b16 %v767, %v763
  %v1184 = vpack.c.b16 %v768, %v764
  %v1185 = vpack.c.b16 %v769, %v765
  %v1186 = vpack.c.b16 %v770, %v766
  %v1187 = vpack.c.b16 %v775, %v771
  %v1188 = vpack.c.b16 %v776, %v772
  %v1189 = vpack.c.b16 %v777, %v773
  %v1190 = vpack.c.b16 %v778, %v774
  %v1191 = vpack.c.b16 %v783, %v779
  %v1192 = vpack.c.b16 %v784, %v780
  %v1193 = vpack.c.b16 %v785, %v781
  %v1194 = vpack.c.b16 %v786, %v782
  %v1195 = vpack.c.b16 %v791, %v787
  %v1196 = vpack.c.b16 %v792, %v788
  %v1197 = vpack.c.b16 %v793, %v789
  %v1198 = vpack.c.b16 %v794, %v790
  %v1199 = vpack.c.b16 %v799, %v795
  %v1200 = vpack.c.b16 %v800, %v796
  %v1201 = vpack.c.b16 %v801, %v797
  %v1202 = vpack.c.b16 %v802, %v798
  %v1203 = vpack.c.b16 %v807, %v803
  %v1204 = vpack.c.b16 %v808, %v804
  %v1205 = vpack.c.b16 %v809, %v805
  %v1206 = vpack.c.b16 %v810, %v806
  %v1207 = vpack.c.b16 %v815, %v811
  %v1208 = vpack.c.b16 %v816, %v812
  %v1209 = vpack.c.b16 %v817, %v813
  %v1210 = vpack.c.b16 %v818, %v814
  %v1211 = vpack.c.b16 %v823, %v819
  %v1212 = vpack.c.b16 %v824, %v820
  %v1213 = vpack.c.b16 %v825, %v821
  %v1214 = vpack.c.b16 %v826, %v822
  %v1215 = vpack.c.b16 %v831, %v827
  %v1216 = vpack.c.b16 %v832, %v828
  %v1217 = vpack.c.b16 %v833, %v829
  %v1218 = vpack.c.b16 %v834, %v830
  %v1219 = vpack.c.b16 %v839, %v835
  %v1220 = vpack.c.b16 %v840, %v836
  %v1221 = vpack.c.b16 %v841, %v837
  %v1222 = vpack.c.b16 %v842, %v838
  %v1223 = vpack.c.b16 %v847, %v843
  %v1224 = vpack.c.b16 %v848, %v844
  %v1225 = vpack.c.b16 %v849, %v845
  %v1226 = vpack.c.b16 %v850, %v846
  %v1227 = vpack.c.b16 %v855, %v851
  %v1228 = vpack.c.b16 %v856, %v852
  %v1229 = vpack.c.b16 %v857, %v853
  %v1230 = vpack.c.b16 %v858, %v854
  %v1231 = vpack.c.b16 %v863, %v859
  %v1232 = vpack.c.b16 %v864, %v860
  %v1233 = vpack.c.b16 %v865, %v861
  %v1234 = vpack.c.b16 %v866, %v862
  %v1235 = vpack.c.b16 %v871, %v867
  %v1236 = vpack.c.b16 %v872, %v868
  %v1237 = vpack.c.b16 %v873, %v869
  %v1238 = vpack.c.b16 %v874, %v870
  %v1239 = vpack.c.b16 %v879, %v875
  %v1240 = vpack.c.b16 %v880, %v876
  %v1241 = vpack.c.b16 %v881, %v877
  %v1242 = vpack.c.b16 %v882, %v878
  %v1243 = vpack.c.b16 %v887, %v883
  %v1244 = vpack.c.b16 %v888, %v884
  %v1245 = vpack.c.b16 %v889, %v885
  %v1246 = vpack.c.b16 %v890, %v886
  %v1247 = vpack.c.b16 %v895, %v891
  %v1248 = vpack.c.b16 %v896, %v892
  %v1249 = vpack.c.b16 %v897, %v893
  %v1250 = vpack.c.b16 %v898, %v894
  %v1251 = vpack.c.b16 %v903, %v899
  %v1252 = vpack.c.b16 %v904, %v900
  %v1253 = vpack.c.b16 %v905, %v901
  %v1254 = vpack.c.b16 %v906, %v902
  %v1255 = vpack.c.b16 %v911, %v907
  %v1256 = vpack.c.b16 %v912, %v908
  %v1257 = vpack.c.b16 %v913, %v909
  %v1258 = vpack.c.b16 %v914, %v910
  %v1259 = vpack.c.b16 %v919, %v915
  %v1260 = vpack.c.b16 %v920, %v916
  %v1261 = vpack.c.b16 %v921, %v917
  %v1262 = vpack.c.b16 %v922, %v918
  %v1263 = vpack.c.b16 %v927, %v923
  %v1264 = vpack.c.b16 %v928, %v924
  %v1265 = vpack.c.b16 %v929, %v925
  %v1266 = vpack.c.b16 %v930, %v926
  %v1267 = vpack.c.b16 %v935, %v931
  %v1268 = vpack.c.b16 %v936, %v932
  %v1269 = vpack.c.b16 %v937, %v933
  %v1270 = vpack.c.b16 %v938, %v934
  %v1271 = vpack.c.b16 %v943, %v939
  %v1272 = vpack.c.b16 %v944, %v940
  %v1273 = vpack.c.b16 %v945, %v941
  %v1274 = vpack.c.b16 %v946, %v942
  %v1275 = vpack.c.b16 %v951, %v947
  %v1276 = vpack.c.b16 %v952, %v948
  %v1277 = vpack.c.b16 %v953, %v949
  %v1278 = vpack.c.b16 %v954, %v950
  %v1279 = vpack.c.b16 %v959, %v955
  %v1280 = vpack.c.b16 %v960, %v956
  %v1281 = vpack.c.b16 %v961, %v957
  %v1282 = vpack.c.b16 %v962, %v958
  %v1283 = vpack.c.b16 %v967, %v963
  %v1284 = vpack.c.b16 %v968, %v964
  %v1285 = vpack.c.b16 %v969, %v965
  %v1286 = vpack.c.b16 %v970, %v966
  %v1287 = vpack.c.b16 %v975, %v971
  %v1288 = vpack.c.b16 %v976, %v972
  %v1289 = vpack.c.b16 %v977, %v973
  %v1290 = vpack.c.b16 %v978, %v974
  %v1291 = vpack.c.b16 %v983, %v979
  %v1292 = vpack.c.b16 %v984, %v980
  %v1293 = vpack.c.b16 %v985, %v981
  %v1294 = vpack.c.b16 %v986, %v982
  %v1295 = vpack.c.b16 %v991, %v987
  %v1296 = vpack.c.b16 %v992, %v988
  %v1297 = vpack.c.b16 %v993, %v989
  %v1298 = vpack.c.b16 %v994, %v990
  %v1299 = vpack.c.b16 %v999, %v995
  %v1300 = vpack.c.b16 %v1000, %v996
  %v1301 = vpack.c.b16 %v1001, %v997
  %v1302 = vpack.c.b16 %v1002, %v998
  %v1303 = vpack.c.b16 %v1007, %v1003
  %v1304 = vpack.c.b16 %v1008, %v1004
  %v1305 = vpack.c.b16 %v1009, %v1005
  %v1306 = vpack.c.b16 %v1010, %v1006
  %v1307 = vpack.c.b16 %v1015, %v1011
  %v1308 = vpack.c.b16 %v1016, %v1012
  %v1309 = vpack.c.b16 %v1017, %v1013
  %v1310 = vpack.c.b16 %v1018, %v1014
  %v1311 = vpack.c.b16 %v1023, %v1019
  %v1312 = vpack.c.b16 %v1024, %v1020
  %v1313 = vpack.c.b16 %v1025, %v1021
  %v1314 = vpack.c.b16 %v1026, %v1022
  %v1315 = vpack.c.b16 %v1031, %v1027
  %v1316 = vpack.c.b16 %v1032, %v1028
  %v1317 = vpack.c.b16 %v1033, %v1029
  %v1318 = vpack.c.b16 %v1034, %v1030
  %v1319 = vpack.c.b16 %v1039, %v1035
  %v1320 = vpack.c.b16 %v1040, %v1036
  %v1321 = vpack.c.b16 %v1041, %v1037
  %v1322 = vpack.c.b16 %v1042, %v1038
  %v1323 = vpack.c.b16 %v1047, %v1043
  %v1324 = vpack.c.b16 %v1048, %v1044
  %v1325 = vpack.c.b16 %v1049, %v1045
  %v1326 = vpack.c.b16 %v1050, %v1046
  %v1327 = vpack.c.b16 %v1055, %v1051
  %v1328 = vpack.c.b16 %v1056, %v1052
  %v1329 = vpack.c.b16 %v1057, %v1053
  %v1330 = vpack.c.b16 %v1058, %v1054
  %v1331 = vpack.c.b16 %v1063, %v1059
  %v1332 = vpack.c.b16 %v1064, %v1060
  %v1333 = vpack.c.b16 %v1065, %v1061
  %v1334 = vpack.c.b16 %v1066, %v1062
  %v1335 = vpack.c.b16 %v1071, %v1067
  %v1336 = vpack.c.b16 %v1072, %v1068
  %v1337 = vpack.c.b16 %v1073, %v1069
  %v1338 = vpack.c.b16 %v1074, %v1070
  %v1339 = vpack.c.b16 %v1079, %v1075
  %v1340 = vpack.c.b16 %v1080, %v1076
  %v1341 = vpack.c.b16 %v1081, %v1077
  %v1342 = vpack.c.b16 %v1082, %v1078
  %v1343 = vpack.c.b16 %v1087, %v1083
  %v1344 = vpack.c.b16 %v1088, %v1084
  %v1345 = vpack.c.b16 %v1089, %v1085
  %v1346 = vpack.c.b16 %v1090, %v1086
  %1603 = vmatpush.bf16.msra.mxu0 %v1119
  %1604 = vmatpush.bf16.msra.mxu0 %v1115
  %1605 = vmatpush.bf16.msra.mxu0 %v1111
  %1606 = vmatpush.bf16.msra.mxu0 %v1107
  %1607 = vmatpush.bf16.msra.mxu0 %v1103
  %1608 = vmatpush.bf16.msra.mxu0 %v1099
  %1609 = vmatpush.bf16.msra.mxu0 %v1095
  %1610 = vmatpush.bf16.msra.mxu0 %v1091
  %1611 = vmatmul.bf16.gmra.mxu0 %v49
  %v1612 = vpop.f32.mrf.mxu0
  %v1613 = vadd.f32 %v315, %v1612
  %v1614 = vpop.f32.mrf.mxu0
  %1615 = vdwg.mxu0
  %1616 = vmatpush.bf16.msra.mxu0 %v1151
  %1617 = vmatpush.bf16.msra.mxu0 %v1147
  %1618 = vmatpush.bf16.msra.mxu0 %v1143
  %1619 = vmatpush.bf16.msra.mxu0 %v1139
  %1620 = vmatpush.bf16.msra.mxu0 %v1135
  %1621 = vmatpush.bf16.msra.mxu0 %v1131
  %1622 = vmatpush.bf16.msra.mxu0 %v1127
  %1623 = vmatpush.bf16.msra.mxu0 %v1123
  %1624 = vmatmul.bf16.gmra.mxu0 %v50
  %v1625 = vpop.f32.mrf.mxu0
  %v1626 = vadd.f32 %v1613, %v1625
  %v1627 = vpop.f32.mrf.mxu0
  %1628 = vdwg.mxu0
  %1629 = vmatpush.bf16.msra.mxu0 %v1183
  %1630 = vmatpush.bf16.msra.mxu0 %v1179
  %1631 = vmatpush.bf16.msra.mxu0 %v1175
  %1632 = vmatpush.bf16.msra.mxu0 %v1171
  %1633 = vmatpush.bf16.msra.mxu0 %v1167
  %1634 = vmatpush.bf16.msra.mxu0 %v1163
  %1635 = vmatpush.bf16.msra.mxu0 %v1159
  %1636 = vmatpush.bf16.msra.mxu0 %v1155
  %1637 = vmatmul.bf16.gmra.mxu0 %v51
  %v1638 = vpop.f32.mrf.mxu0
  %v1639 = vadd.f32 %v1626, %v1638
  %v1640 = vpop.f32.mrf.mxu0
  %1641 = vdwg.mxu0
  %1642 = vmatpush.bf16.msra.mxu0 %v1215
  %1643 = vmatpush.bf16.msra.mxu0 %v1211
  %1644 = vmatpush.bf16.msra.mxu0 %v1207
  %1645 = vmatpush.bf16.msra.mxu0 %v1203
  %1646 = vmatpush.bf16.msra.mxu0 %v1199
  %1647 = vmatpush.bf16.msra.mxu0 %v1195
  %1648 = vmatpush.bf16.msra.mxu0 %v1191
  %1649 = vmatpush.bf16.msra.mxu0 %v1187
  %1650 = vmatmul.bf16.gmra.mxu0 %v52
  %v1651 = vpop.f32.mrf.mxu0
  %v1652 = vadd.f32 %v1639, %v1651
  %v1653 = vpop.f32.mrf.mxu0
  %1654 = vdwg.mxu0
  %1655 = vmatpush.bf16.msra.mxu0 %v1247
  %1656 = vmatpush.bf16.msra.mxu0 %v1243
  %1657 = vmatpush.bf16.msra.mxu0 %v1239
  %1658 = vmatpush.bf16.msra.mxu0 %v1235
  %1659 = vmatpush.bf16.msra.mxu0 %v1231
  %1660 = vmatpush.bf16.msra.mxu0 %v1227
  %1661 = vmatpush.bf16.msra.mxu0 %v1223
  %1662 = vmatpush.bf16.msra.mxu0 %v1219
  %1663 = vmatmul.bf16.gmra.mxu0 %v53
  %v1664 = vpop.f32.mrf.mxu0
  %v1665 = vadd.f32 %v1652, %v1664
  %v1666 = vpop.f32.mrf.mxu0
  %1667 = vdwg.mxu0
  %1668 = vmatpush.bf16.msra.mxu0 %v1279
  %1669 = vmatpush.bf16.msra.mxu0 %v1275
  %1670 = vmatpush.bf16.msra.mxu0 %v1271
  %1671 = vmatpush.bf16.msra.mxu0 %v1267
  %1672 = vmatpush.bf16.msra.mxu0 %v1263
  %1673 = vmatpush.bf16.msra.mxu0 %v1259
  %1674 = vmatpush.bf16.msra.mxu0 %v1255
  %1675 = vmatpush.bf16.msra.mxu0 %v1251
  %1676 = vmatmul.bf16.gmra.mxu0 %v54
  %v1677 = vpop.f32.mrf.mxu0
  %v1678 = vadd.f32 %v1665, %v1677
  %v1679 = vpop.f32.mrf.mxu0
  %1680 = vdwg.mxu0
  %1681 = vmatpush.bf16.msra.mxu0 %v1311
  %1682 = vmatpush.bf16.msra.mxu0 %v1307
  %1683 = vmatpush.bf16.msra.mxu0 %v1303
  %1684 = vmatpush.bf16.msra.mxu0 %v1299
  %1685 = vmatpush.bf16.msra.mxu0 %v1295
  %1686 = vmatpush.bf16.msra.mxu0 %v1291
  %1687 = vmatpush.bf16.msra.mxu0 %v1287
  %1688 = vmatpush.bf16.msra.mxu0 %v1283
  %1689 = vmatmul.bf16.gmra.mxu0 %v55
  %v1690 = vpop.f32.mrf.mxu0
  %v1691 = vadd.f32 %v1678, %v1690
  %v1692 = vpop.f32.mrf.mxu0
  %1693 = vdwg.mxu0
  %1694 = vmatpush.bf16.msra.mxu0 %v1343
  %1695 = vmatpush.bf16.msra.mxu0 %v1339
  %1696 = vmatpush.bf16.msra.mxu0 %v1335
  %1697 = vmatpush.bf16.msra.mxu0 %v1331
  %1698 = vmatpush.bf16.msra.mxu0 %v1327
  %1699 = vmatpush.bf16.msra.mxu0 %v1323
  %1700 = vmatpush.bf16.msra.mxu0 %v1319
  %1701 = vmatpush.bf16.msra.mxu0 %v1315
  %1702 = vmatmul.bf16.gmra.mxu0 %v56
  %v1703 = vpop.f32.mrf.mxu0
  %v1704 = vadd.f32 %v1691, %v1703
  %v1705 = vpop.f32.mrf.mxu0
  %1706 = vdwg.mxu0
  %1707 = vmatpush.bf16.msra.mxu0 %v1120
  %1708 = vmatpush.bf16.msra.mxu0 %v1116
  %1709 = vmatpush.bf16.msra.mxu0 %v1112
  %1710 = vmatpush.bf16.msra.mxu0 %v1108
  %1711 = vmatpush.bf16.msra.mxu0 %v1104
  %1712 = vmatpush.bf16.msra.mxu0 %v1100
  %1713 = vmatpush.bf16.msra.mxu0 %v1096
  %1714 = vmatpush.bf16.msra.mxu0 %v1092
  %1715 = vmatmul.bf16.gmra.mxu0 %v49
  %v1716 = vpop.f32.mrf.mxu0
  %v1717 = vadd.f32 %v316, %v1716
  %v1718 = vpop.f32.mrf.mxu0
  %1719 = vdwg.mxu0
  %1720 = vmatpush.bf16.msra.mxu0 %v1152
  %1721 = vmatpush.bf16.msra.mxu0 %v1148
  %1722 = vmatpush.bf16.msra.mxu0 %v1144
  %1723 = vmatpush.bf16.msra.mxu0 %v1140
  %1724 = vmatpush.bf16.msra.mxu0 %v1136
  %1725 = vmatpush.bf16.msra.mxu0 %v1132
  %1726 = vmatpush.bf16.msra.mxu0 %v1128
  %1727 = vmatpush.bf16.msra.mxu0 %v1124
  %1728 = vmatmul.bf16.gmra.mxu0 %v50
  %v1729 = vpop.f32.mrf.mxu0
  %v1730 = vadd.f32 %v1717, %v1729
  %v1731 = vpop.f32.mrf.mxu0
  %1732 = vdwg.mxu0
  %1733 = vmatpush.bf16.msra.mxu0 %v1184
  %1734 = vmatpush.bf16.msra.mxu0 %v1180
  %1735 = vmatpush.bf16.msra.mxu0 %v1176
  %1736 = vmatpush.bf16.msra.mxu0 %v1172
  %1737 = vmatpush.bf16.msra.mxu0 %v1168
  %1738 = vmatpush.bf16.msra.mxu0 %v1164
  %1739 = vmatpush.bf16.msra.mxu0 %v1160
  %1740 = vmatpush.bf16.msra.mxu0 %v1156
  %1741 = vmatmul.bf16.gmra.mxu0 %v51
  %v1742 = vpop.f32.mrf.mxu0
  %v1743 = vadd.f32 %v1730, %v1742
  %v1744 = vpop.f32.mrf.mxu0
  %1745 = vdwg.mxu0
  %1746 = vmatpush.bf16.msra.mxu0 %v1216
  %1747 = vmatpush.bf16.msra.mxu0 %v1212
  %1748 = vmatpush.bf16.msra.mxu0 %v1208
  %1749 = vmatpush.bf16.msra.mxu0 %v1204
  %1750 = vmatpush.bf16.msra.mxu0 %v1200
  %1751 = vmatpush.bf16.msra.mxu0 %v1196
  %1752 = vmatpush.bf16.msra.mxu0 %v1192
  %1753 = vmatpush.bf16.msra.mxu0 %v1188
  %1754 = vmatmul.bf16.gmra.mxu0 %v52
  %v1755 = vpop.f32.mrf.mxu0
  %v1756 = vadd.f32 %v1743, %v1755
  %v1757 = vpop.f32.mrf.mxu0
  %1758 = vdwg.mxu0
  %1759 = vmatpush.bf16.msra.mxu0 %v1248
  %1760 = vmatpush.bf16.msra.mxu0 %v1244
  %1761 = vmatpush.bf16.msra.mxu0 %v1240
  %1762 = vmatpush.bf16.msra.mxu0 %v1236
  %1763 = vmatpush.bf16.msra.mxu0 %v1232
  %1764 = vmatpush.bf16.msra.mxu0 %v1228
  %1765 = vmatpush.bf16.msra.mxu0 %v1224
  %1766 = vmatpush.bf16.msra.mxu0 %v1220
  %1767 = vmatmul.bf16.gmra.mxu0 %v53
  %v1768 = vpop.f32.mrf.mxu0
  %v1769 = vadd.f32 %v1756, %v1768
  %v1770 = vpop.f32.mrf.mxu0
  %1771 = vdwg.mxu0
  %1772 = vmatpush.bf16.msra.mxu0 %v1280
  %1773 = vmatpush.bf16.msra.mxu0 %v1276
  %1774 = vmatpush.bf16.msra.mxu0 %v1272
  %1775 = vmatpush.bf16.msra.mxu0 %v1268
  %1776 = vmatpush.bf16.msra.mxu0 %v1264
  %1777 = vmatpush.bf16.msra.mxu0 %v1260
  %1778 = vmatpush.bf16.msra.mxu0 %v1256
  %1779 = vmatpush.bf16.msra.mxu0 %v1252
  %1780 = vmatmul.bf16.gmra.mxu0 %v54
  %v1781 = vpop.f32.mrf.mxu0
  %v1782 = vadd.f32 %v1769, %v1781
  %v1783 = vpop.f32.mrf.mxu0
  %1784 = vdwg.mxu0
  %1785 = vmatpush.bf16.msra.mxu0 %v1312
  %1786 = vmatpush.bf16.msra.mxu0 %v1308
  %1787 = vmatpush.bf16.msra.mxu0 %v1304
  %1788 = vmatpush.bf16.msra.mxu0 %v1300
  %1789 = vmatpush.bf16.msra.mxu0 %v1296
  %1790 = vmatpush.bf16.msra.mxu0 %v1292
  %1791 = vmatpush.bf16.msra.mxu0 %v1288
  %1792 = vmatpush.bf16.msra.mxu0 %v1284
  %1793 = vmatmul.bf16.gmra.mxu0 %v55
  %v1794 = vpop.f32.mrf.mxu0
  %v1795 = vadd.f32 %v1782, %v1794
  %v1796 = vpop.f32.mrf.mxu0
  %1797 = vdwg.mxu0
  %1798 = vmatpush.bf16.msra.mxu0 %v1344
  %1799 = vmatpush.bf16.msra.mxu0 %v1340
  %1800 = vmatpush.bf16.msra.mxu0 %v1336
  %1801 = vmatpush.bf16.msra.mxu0 %v1332
  %1802 = vmatpush.bf16.msra.mxu0 %v1328
  %1803 = vmatpush.bf16.msra.mxu0 %v1324
  %1804 = vmatpush.bf16.msra.mxu0 %v1320
  %1805 = vmatpush.bf16.msra.mxu0 %v1316
  %1806 = vmatmul.bf16.gmra.mxu0 %v56
  %v1807 = vpop.f32.mrf.mxu0
  %v1808 = vadd.f32 %v1795, %v1807
  %v1809 = vpop.f32.mrf.mxu0
  %1810 = vdwg.mxu0
  %1811 = vmatpush.bf16.msra.mxu0 %v1121
  %1812 = vmatpush.bf16.msra.mxu0 %v1117
  %1813 = vmatpush.bf16.msra.mxu0 %v1113
  %1814 = vmatpush.bf16.msra.mxu0 %v1109
  %1815 = vmatpush.bf16.msra.mxu0 %v1105
  %1816 = vmatpush.bf16.msra.mxu0 %v1101
  %1817 = vmatpush.bf16.msra.mxu0 %v1097
  %1818 = vmatpush.bf16.msra.mxu0 %v1093
  %1819 = vmatmul.bf16.gmra.mxu0 %v49
  %v1820 = vpop.f32.mrf.mxu0
  %v1821 = vadd.f32 %v317, %v1820
  %v1822 = vpop.f32.mrf.mxu0
  %1823 = vdwg.mxu0
  %1824 = vmatpush.bf16.msra.mxu0 %v1153
  %1825 = vmatpush.bf16.msra.mxu0 %v1149
  %1826 = vmatpush.bf16.msra.mxu0 %v1145
  %1827 = vmatpush.bf16.msra.mxu0 %v1141
  %1828 = vmatpush.bf16.msra.mxu0 %v1137
  %1829 = vmatpush.bf16.msra.mxu0 %v1133
  %1830 = vmatpush.bf16.msra.mxu0 %v1129
  %1831 = vmatpush.bf16.msra.mxu0 %v1125
  %1832 = vmatmul.bf16.gmra.mxu0 %v50
  %v1833 = vpop.f32.mrf.mxu0
  %v1834 = vadd.f32 %v1821, %v1833
  %v1835 = vpop.f32.mrf.mxu0
  %1836 = vdwg.mxu0
  %1837 = vmatpush.bf16.msra.mxu0 %v1185
  %1838 = vmatpush.bf16.msra.mxu0 %v1181
  %1839 = vmatpush.bf16.msra.mxu0 %v1177
  %1840 = vmatpush.bf16.msra.mxu0 %v1173
  %1841 = vmatpush.bf16.msra.mxu0 %v1169
  %1842 = vmatpush.bf16.msra.mxu0 %v1165
  %1843 = vmatpush.bf16.msra.mxu0 %v1161
  %1844 = vmatpush.bf16.msra.mxu0 %v1157
  %1845 = vmatmul.bf16.gmra.mxu0 %v51
  %v1846 = vpop.f32.mrf.mxu0
  %v1847 = vadd.f32 %v1834, %v1846
  %v1848 = vpop.f32.mrf.mxu0
  %1849 = vdwg.mxu0
  %1850 = vmatpush.bf16.msra.mxu0 %v1217
  %1851 = vmatpush.bf16.msra.mxu0 %v1213
  %1852 = vmatpush.bf16.msra.mxu0 %v1209
  %1853 = vmatpush.bf16.msra.mxu0 %v1205
  %1854 = vmatpush.bf16.msra.mxu0 %v1201
  %1855 = vmatpush.bf16.msra.mxu0 %v1197
  %1856 = vmatpush.bf16.msra.mxu0 %v1193
  %1857 = vmatpush.bf16.msra.mxu0 %v1189
  %1858 = vmatmul.bf16.gmra.mxu0 %v52
  %v1859 = vpop.f32.mrf.mxu0
  %v1860 = vadd.f32 %v1847, %v1859
  %v1861 = vpop.f32.mrf.mxu0
  %1862 = vdwg.mxu0
  %1863 = vmatpush.bf16.msra.mxu0 %v1249
  %1864 = vmatpush.bf16.msra.mxu0 %v1245
  %1865 = vmatpush.bf16.msra.mxu0 %v1241
  %1866 = vmatpush.bf16.msra.mxu0 %v1237
  %1867 = vmatpush.bf16.msra.mxu0 %v1233
  %1868 = vmatpush.bf16.msra.mxu0 %v1229
  %1869 = vmatpush.bf16.msra.mxu0 %v1225
  %1870 = vmatpush.bf16.msra.mxu0 %v1221
  %1871 = vmatmul.bf16.gmra.mxu0 %v53
  %v1872 = vpop.f32.mrf.mxu0
  %v1873 = vadd.f32 %v1860, %v1872
  %v1874 = vpop.f32.mrf.mxu0
  %1875 = vdwg.mxu0
  %1876 = vmatpush.bf16.msra.mxu0 %v1281
  %1877 = vmatpush.bf16.msra.mxu0 %v1277
  %1878 = vmatpush.bf16.msra.mxu0 %v1273
  %1879 = vmatpush.bf16.msra.mxu0 %v1269
  %1880 = vmatpush.bf16.msra.mxu0 %v1265
  %1881 = vmatpush.bf16.msra.mxu0 %v1261
  %1882 = vmatpush.bf16.msra.mxu0 %v1257
  %1883 = vmatpush.bf16.msra.mxu0 %v1253
  %1884 = vmatmul.bf16.gmra.mxu0 %v54
  %v1885 = vpop.f32.mrf.mxu0
  %v1886 = vadd.f32 %v1873, %v1885
  %v1887 = vpop.f32.mrf.mxu0
  %1888 = vdwg.mxu0
  %1889 = vmatpush.bf16.msra.mxu0 %v1313
  %1890 = vmatpush.bf16.msra.mxu0 %v1309
  %1891 = vmatpush.bf16.msra.mxu0 %v1305
  %1892 = vmatpush.bf16.msra.mxu0 %v1301
  %1893 = vmatpush.bf16.msra.mxu0 %v1297
  %1894 = vmatpush.bf16.msra.mxu0 %v1293
  %1895 = vmatpush.bf16.msra.mxu0 %v1289
  %1896 = vmatpush.bf16.msra.mxu0 %v1285
  %1897 = vmatmul.bf16.gmra.mxu0 %v55
  %v1898 = vpop.f32.mrf.mxu0
  %v1899 = vadd.f32 %v1886, %v1898
  %v1900 = vpop.f32.mrf.mxu0
  %1901 = vdwg.mxu0
  %1902 = vmatpush.bf16.msra.mxu0 %v1345
  %1903 = vmatpush.bf16.msra.mxu0 %v1341
  %1904 = vmatpush.bf16.msra.mxu0 %v1337
  %1905 = vmatpush.bf16.msra.mxu0 %v1333
  %1906 = vmatpush.bf16.msra.mxu0 %v1329
  %1907 = vmatpush.bf16.msra.mxu0 %v1325
  %1908 = vmatpush.bf16.msra.mxu0 %v1321
  %1909 = vmatpush.bf16.msra.mxu0 %v1317
  %1910 = vmatmul.bf16.gmra.mxu0 %v56
  %v1911 = vpop.f32.mrf.mxu0
  %v1912 = vadd.f32 %v1899, %v1911
  %v1913 = vpop.f32.mrf.mxu0
  %1914 = vdwg.mxu0
  %1915 = vmatpush.bf16.msra.mxu0 %v1122
  %1916 = vmatpush.bf16.msra.mxu0 %v1118
  %1917 = vmatpush.bf16.msra.mxu0 %v1114
  %1918 = vmatpush.bf16.msra.mxu0 %v1110
  %1919 = vmatpush.bf16.msra.mxu0 %v1106
  %1920 = vmatpush.bf16.msra.mxu0 %v1102
  %1921 = vmatpush.bf16.msra.mxu0 %v1098
  %1922 = vmatpush.bf16.msra.mxu0 %v1094
  %1923 = vmatmul.bf16.gmra.mxu0 %v49
  %v1924 = vpop.f32.mrf.mxu0
  %v1925 = vadd.f32 %v318, %v1924
  %v1926 = vpop.f32.mrf.mxu0
  %1927 = vdwg.mxu0
  %1928 = vmatpush.bf16.msra.mxu0 %v1154
  %1929 = vmatpush.bf16.msra.mxu0 %v1150
  %1930 = vmatpush.bf16.msra.mxu0 %v1146
  %1931 = vmatpush.bf16.msra.mxu0 %v1142
  %1932 = vmatpush.bf16.msra.mxu0 %v1138
  %1933 = vmatpush.bf16.msra.mxu0 %v1134
  %1934 = vmatpush.bf16.msra.mxu0 %v1130
  %1935 = vmatpush.bf16.msra.mxu0 %v1126
  %1936 = vmatmul.bf16.gmra.mxu0 %v50
  %v1937 = vpop.f32.mrf.mxu0
  %v1938 = vadd.f32 %v1925, %v1937
  %v1939 = vpop.f32.mrf.mxu0
  %1940 = vdwg.mxu0
  %1941 = vmatpush.bf16.msra.mxu0 %v1186
  %1942 = vmatpush.bf16.msra.mxu0 %v1182
  %1943 = vmatpush.bf16.msra.mxu0 %v1178
  %1944 = vmatpush.bf16.msra.mxu0 %v1174
  %1945 = vmatpush.bf16.msra.mxu0 %v1170
  %1946 = vmatpush.bf16.msra.mxu0 %v1166
  %1947 = vmatpush.bf16.msra.mxu0 %v1162
  %1948 = vmatpush.bf16.msra.mxu0 %v1158
  %1949 = vmatmul.bf16.gmra.mxu0 %v51
  %v1950 = vpop.f32.mrf.mxu0
  %v1951 = vadd.f32 %v1938, %v1950
  %v1952 = vpop.f32.mrf.mxu0
  %1953 = vdwg.mxu0
  %1954 = vmatpush.bf16.msra.mxu0 %v1218
  %1955 = vmatpush.bf16.msra.mxu0 %v1214
  %1956 = vmatpush.bf16.msra.mxu0 %v1210
  %1957 = vmatpush.bf16.msra.mxu0 %v1206
  %1958 = vmatpush.bf16.msra.mxu0 %v1202
  %1959 = vmatpush.bf16.msra.mxu0 %v1198
  %1960 = vmatpush.bf16.msra.mxu0 %v1194
  %1961 = vmatpush.bf16.msra.mxu0 %v1190
  %1962 = vmatmul.bf16.gmra.mxu0 %v52
  %v1963 = vpop.f32.mrf.mxu0
  %v1964 = vadd.f32 %v1951, %v1963
  %v1965 = vpop.f32.mrf.mxu0
  %1966 = vdwg.mxu0
  %1967 = vmatpush.bf16.msra.mxu0 %v1250
  %1968 = vmatpush.bf16.msra.mxu0 %v1246
  %1969 = vmatpush.bf16.msra.mxu0 %v1242
  %1970 = vmatpush.bf16.msra.mxu0 %v1238
  %1971 = vmatpush.bf16.msra.mxu0 %v1234
  %1972 = vmatpush.bf16.msra.mxu0 %v1230
  %1973 = vmatpush.bf16.msra.mxu0 %v1226
  %1974 = vmatpush.bf16.msra.mxu0 %v1222
  %1975 = vmatmul.bf16.gmra.mxu0 %v53
  %v1976 = vpop.f32.mrf.mxu0
  %v1977 = vadd.f32 %v1964, %v1976
  %v1978 = vpop.f32.mrf.mxu0
  %1979 = vdwg.mxu0
  %1980 = vmatpush.bf16.msra.mxu0 %v1282
  %1981 = vmatpush.bf16.msra.mxu0 %v1278
  %1982 = vmatpush.bf16.msra.mxu0 %v1274
  %1983 = vmatpush.bf16.msra.mxu0 %v1270
  %1984 = vmatpush.bf16.msra.mxu0 %v1266
  %1985 = vmatpush.bf16.msra.mxu0 %v1262
  %1986 = vmatpush.bf16.msra.mxu0 %v1258
  %1987 = vmatpush.bf16.msra.mxu0 %v1254
  %1988 = vmatmul.bf16.gmra.mxu0 %v54
  %v1989 = vpop.f32.mrf.mxu0
  %v1990 = vadd.f32 %v1977, %v1989
  %v1991 = vpop.f32.mrf.mxu0
  %1992 = vdwg.mxu0
  %1993 = vmatpush.bf16.msra.mxu0 %v1314
  %1994 = vmatpush.bf16.msra.mxu0 %v1310
  %1995 = vmatpush.bf16.msra.mxu0 %v1306
  %1996 = vmatpush.bf16.msra.mxu0 %v1302
  %1997 = vmatpush.bf16.msra.mxu0 %v1298
  %1998 = vmatpush.bf16.msra.mxu0 %v1294
  %1999 = vmatpush.bf16.msra.mxu0 %v1290
  %2000 = vmatpush.bf16.msra.mxu0 %v1286
  %2001 = vmatmul.bf16.gmra.mxu0 %v55
  %v2002 = vpop.f32.mrf.mxu0
  %v2003 = vadd.f32 %v1990, %v2002
  %v2004 = vpop.f32.mrf.mxu0
  %2005 = vdwg.mxu0
  %2006 = vmatpush.bf16.msra.mxu0 %v1346
  %2007 = vmatpush.bf16.msra.mxu0 %v1342
  %2008 = vmatpush.bf16.msra.mxu0 %v1338
  %2009 = vmatpush.bf16.msra.mxu0 %v1334
  %2010 = vmatpush.bf16.msra.mxu0 %v1330
  %2011 = vmatpush.bf16.msra.mxu0 %v1326
  %2012 = vmatpush.bf16.msra.mxu0 %v1322
  %2013 = vmatpush.bf16.msra.mxu0 %v1318
  %2014 = vmatmul.bf16.gmra.mxu0 %v56
  %v2015 = vpop.f32.mrf.mxu0
  %v2016 = vadd.f32 %v2003, %v2015
  %v2017 = vpop.f32.mrf.mxu0
  %2018 = vdwg.mxu0
  %v2019 = vmax.f32 %v1704, 0.0
  %v2020 = vmax.f32 %v1808, 0.0
  %v2021 = vmax.f32 %v1912, 0.0
  %v2022 = vmax.f32 %v2016, 0.0
  %v2023 = vpack.c.bf16 %v2019, %v2019
  %v2024 = vpack.c.bf16 %v2020, %v2020
  %v2025 = vpack.c.bf16 %v2021, %v2021
  %v2026 = vpack.c.bf16 %v2022, %v2022
  %v2027 = vld [vmem:[%s3] sm:$0xff]
  %v2028 = vld [vmem:[%s3 + $0x8] sm:$0xff]
  %v2029 = vld [vmem:[%s3 + $0x10] sm:$0xff]
  %v2030 = vld [vmem:[%s3 + $0x18] sm:$0xff]
  %v2031 = vld [vmem:[%s3 + $0x20] sm:$0xff]
  %v2032 = vld [vmem:[%s3 + $0x28] sm:$0xff]
  %v2033 = vld [vmem:[%s3 + $0x30] sm:$0xff]
  %v2034 = vld [vmem:[%s3 + $0x38] sm:$0xff]
  %v2035 = vld [vmem:[%s3 + $0x40] sm:$0xff]
  %v2036 = vld [vmem:[%s3 + $0x48] sm:$0xff]
  %v2037 = vld [vmem:[%s3 + $0x50] sm:$0xff]
  %v2038 = vld [vmem:[%s3 + $0x58] sm:$0xff]
  %v2039 = vld [vmem:[%s3 + $0x60] sm:$0xff]
  %v2040 = vld [vmem:[%s3 + $0x68] sm:$0xff]
  %v2041 = vld [vmem:[%s3 + $0x70] sm:$0xff]
  %v2042 = vld [vmem:[%s3 + $0x78] sm:$0xff]
  %v2043 = vld [vmem:[%s3 + $0x80] sm:$0xff]
  %v2044 = vld [vmem:[%s3 + $0x88] sm:$0xff]
  %v2045 = vld [vmem:[%s3 + $0x90] sm:$0xff]
  %v2046 = vld [vmem:[%s3 + $0x98] sm:$0xff]
  %v2047 = vld [vmem:[%s3 + $0xa0] sm:$0xff]
  %v2048 = vld [vmem:[%s3 + $0xa8] sm:$0xff]
  %v2049 = vld [vmem:[%s3 + $0xb0] sm:$0xff]
  %v2050 = vld [vmem:[%s3 + $0xb8] sm:$0xff]
  %v2051 = vld [vmem:[%s3 + $0xc0] sm:$0xff]
  %v2052 = vld [vmem:[%s3 + $0xc8] sm:$0xff]
  %v2053 = vld [vmem:[%s3 + $0xd0] sm:$0xff]
  %v2054 = vld [vmem:[%s3 + $0xd8] sm:$0xff]
  %v2055 = vld [vmem:[%s3 + $0xe0] sm:$0xff]
  %v2056 = vld [vmem:[%s3 + $0xe8] sm:$0xff]
  %v2057 = vld [vmem:[%s3 + $0xf0] sm:$0xff]
  %v2058 = vld [vmem:[%s3 + $0xf8] sm:$0xff]
  %v2059 = vld [vmem:[%s3 + $0x100] sm:$0xff]
  %v2060 = vld [vmem:[%s3 + $0x108] sm:$0xff]
  %v2061 = vld [vmem:[%s3 + $0x110] sm:$0xff]
  %v2062 = vld [vmem:[%s3 + $0x118] sm:$0xff]
  %v2063 = vld [vmem:[%s3 + $0x120] sm:$0xff]
  %v2064 = vld [vmem:[%s3 + $0x128] sm:$0xff]
  %v2065 = vld [vmem:[%s3 + $0x130] sm:$0xff]
  %v2066 = vld [vmem:[%s3 + $0x138] sm:$0xff]
  %v2067 = vld [vmem:[%s3 + $0x140] sm:$0xff]
  %v2068 = vld [vmem:[%s3 + $0x148] sm:$0xff]
  %v2069 = vld [vmem:[%s3 + $0x150] sm:$0xff]
  %v2070 = vld [vmem:[%s3 + $0x158] sm:$0xff]
  %v2071 = vld [vmem:[%s3 + $0x160] sm:$0xff]
  %v2072 = vld [vmem:[%s3 + $0x168] sm:$0xff]
  %v2073 = vld [vmem:[%s3 + $0x170] sm:$0xff]
  %v2074 = vld [vmem:[%s3 + $0x178] sm:$0xff]
  %v2075 = vld [vmem:[%s3 + $0x180] sm:$0xff]
  %v2076 = vld [vmem:[%s3 + $0x188] sm:$0xff]
  %v2077 = vld [vmem:[%s3 + $0x190] sm:$0xff]
  %v2078 = vld [vmem:[%s3 + $0x198] sm:$0xff]
  %v2079 = vld [vmem:[%s3 + $0x1a0] sm:$0xff]
  %v2080 = vld [vmem:[%s3 + $0x1a8] sm:$0xff]
  %v2081 = vld [vmem:[%s3 + $0x1b0] sm:$0xff]
  %v2082 = vld [vmem:[%s3 + $0x1b8] sm:$0xff]
  %v2083 = vld [vmem:[%s3 + $0x1c0] sm:$0xff]
  %v2084 = vld [vmem:[%s3 + $0x1c8] sm:$0xff]
  %v2085 = vld [vmem:[%s3 + $0x1d0] sm:$0xff]
  %v2086 = vld [vmem:[%s3 + $0x1d8] sm:$0xff]
  %v2087 = vld [vmem:[%s3 + $0x1e0] sm:$0xff]
  %v2088 = vld [vmem:[%s3 + $0x1e8] sm:$0xff]
  %v2089 = vld [vmem:[%s3 + $0x1f0] sm:$0xff]
  %v2090 = vld [vmem:[%s3 + $0x1f8] sm:$0xff]
  %v2091 = vld [vmem:[%s4] sm:$0x3]
  %v2093 = vperm.slane %v2091, 0
  %v2094 = vperm.slane %v2091, 1
  %v2161 = vunpack.c.l.b16 %v2027
  %v2162 = vunpack.c.h.b16 %v2027
  %v2163 = vunpack.c.l.b16 %v2028
  %v2164 = vunpack.c.h.b16 %v2028
  %v2165 = vunpack.c.l.b16 %v2029
  %v2166 = vunpack.c.h.b16 %v2029
  %v2167 = vunpack.c.l.b16 %v2030
  %v2168 = vunpack.c.h.b16 %v2030
  %v2169 = vunpack.c.l.b16 %v2031
  %v2170 = vunpack.c.h.b16 %v2031
  %v2171 = vunpack.c.l.b16 %v2032
  %v2172 = vunpack.c.h.b16 %v2032
  %v2173 = vunpack.c.l.b16 %v2033
  %v2174 = vunpack.c.h.b16 %v2033
  %v2175 = vunpack.c.l.b16 %v2034
  %v2176 = vunpack.c.h.b16 %v2034
  %v2177 = vunpack.c.l.b16 %v2035
  %v2178 = vunpack.c.h.b16 %v2035
  %v2179 = vunpack.c.l.b16 %v2036
  %v2180 = vunpack.c.h.b16 %v2036
  %v2181 = vunpack.c.l.b16 %v2037
  %v2182 = vunpack.c.h.b16 %v2037
  %v2183 = vunpack.c.l.b16 %v2038
  %v2184 = vunpack.c.h.b16 %v2038
  %v2185 = vunpack.c.l.b16 %v2039
  %v2186 = vunpack.c.h.b16 %v2039
  %v2187 = vunpack.c.l.b16 %v2040
  %v2188 = vunpack.c.h.b16 %v2040
  %v2189 = vunpack.c.l.b16 %v2041
  %v2190 = vunpack.c.h.b16 %v2041
  %v2191 = vunpack.c.l.b16 %v2042
  %v2192 = vunpack.c.h.b16 %v2042
  %v2193 = vunpack.c.l.b16 %v2043
  %v2194 = vunpack.c.h.b16 %v2043
  %v2195 = vunpack.c.l.b16 %v2044
  %v2196 = vunpack.c.h.b16 %v2044
  %v2197 = vunpack.c.l.b16 %v2045
  %v2198 = vunpack.c.h.b16 %v2045
  %v2199 = vunpack.c.l.b16 %v2046
  %v2200 = vunpack.c.h.b16 %v2046
  %v2201 = vunpack.c.l.b16 %v2047
  %v2202 = vunpack.c.h.b16 %v2047
  %v2203 = vunpack.c.l.b16 %v2048
  %v2204 = vunpack.c.h.b16 %v2048
  %v2205 = vunpack.c.l.b16 %v2049
  %v2206 = vunpack.c.h.b16 %v2049
  %v2207 = vunpack.c.l.b16 %v2050
  %v2208 = vunpack.c.h.b16 %v2050
  %v2209 = vunpack.c.l.b16 %v2051
  %v2210 = vunpack.c.h.b16 %v2051
  %v2211 = vunpack.c.l.b16 %v2052
  %v2212 = vunpack.c.h.b16 %v2052
  %v2213 = vunpack.c.l.b16 %v2053
  %v2214 = vunpack.c.h.b16 %v2053
  %v2215 = vunpack.c.l.b16 %v2054
  %v2216 = vunpack.c.h.b16 %v2054
  %v2217 = vunpack.c.l.b16 %v2055
  %v2218 = vunpack.c.h.b16 %v2055
  %v2219 = vunpack.c.l.b16 %v2056
  %v2220 = vunpack.c.h.b16 %v2056
  %v2221 = vunpack.c.l.b16 %v2057
  %v2222 = vunpack.c.h.b16 %v2057
  %v2223 = vunpack.c.l.b16 %v2058
  %v2224 = vunpack.c.h.b16 %v2058
  %v2225 = vunpack.c.l.b16 %v2059
  %v2226 = vunpack.c.h.b16 %v2059
  %v2227 = vunpack.c.l.b16 %v2060
  %v2228 = vunpack.c.h.b16 %v2060
  %v2229 = vunpack.c.l.b16 %v2061
  %v2230 = vunpack.c.h.b16 %v2061
  %v2231 = vunpack.c.l.b16 %v2062
  %v2232 = vunpack.c.h.b16 %v2062
  %v2233 = vunpack.c.l.b16 %v2063
  %v2234 = vunpack.c.h.b16 %v2063
  %v2235 = vunpack.c.l.b16 %v2064
  %v2236 = vunpack.c.h.b16 %v2064
  %v2237 = vunpack.c.l.b16 %v2065
  %v2238 = vunpack.c.h.b16 %v2065
  %v2239 = vunpack.c.l.b16 %v2066
  %v2240 = vunpack.c.h.b16 %v2066
  %v2241 = vunpack.c.l.b16 %v2067
  %v2242 = vunpack.c.h.b16 %v2067
  %v2243 = vunpack.c.l.b16 %v2068
  %v2244 = vunpack.c.h.b16 %v2068
  %v2245 = vunpack.c.l.b16 %v2069
  %v2246 = vunpack.c.h.b16 %v2069
  %v2247 = vunpack.c.l.b16 %v2070
  %v2248 = vunpack.c.h.b16 %v2070
  %v2249 = vunpack.c.l.b16 %v2071
  %v2250 = vunpack.c.h.b16 %v2071
  %v2251 = vunpack.c.l.b16 %v2072
  %v2252 = vunpack.c.h.b16 %v2072
  %v2253 = vunpack.c.l.b16 %v2073
  %v2254 = vunpack.c.h.b16 %v2073
  %v2255 = vunpack.c.l.b16 %v2074
  %v2256 = vunpack.c.h.b16 %v2074
  %v2257 = vunpack.c.l.b16 %v2075
  %v2258 = vunpack.c.h.b16 %v2075
  %v2259 = vunpack.c.l.b16 %v2076
  %v2260 = vunpack.c.h.b16 %v2076
  %v2261 = vunpack.c.l.b16 %v2077
  %v2262 = vunpack.c.h.b16 %v2077
  %v2263 = vunpack.c.l.b16 %v2078
  %v2264 = vunpack.c.h.b16 %v2078
  %v2265 = vunpack.c.l.b16 %v2079
  %v2266 = vunpack.c.h.b16 %v2079
  %v2267 = vunpack.c.l.b16 %v2080
  %v2268 = vunpack.c.h.b16 %v2080
  %v2269 = vunpack.c.l.b16 %v2081
  %v2270 = vunpack.c.h.b16 %v2081
  %v2271 = vunpack.c.l.b16 %v2082
  %v2272 = vunpack.c.h.b16 %v2082
  %v2273 = vunpack.c.l.b16 %v2083
  %v2274 = vunpack.c.h.b16 %v2083
  %v2275 = vunpack.c.l.b16 %v2084
  %v2276 = vunpack.c.h.b16 %v2084
  %v2277 = vunpack.c.l.b16 %v2085
  %v2278 = vunpack.c.h.b16 %v2085
  %v2279 = vunpack.c.l.b16 %v2086
  %v2280 = vunpack.c.h.b16 %v2086
  %v2281 = vunpack.c.l.b16 %v2087
  %v2282 = vunpack.c.h.b16 %v2087
  %v2283 = vunpack.c.l.b16 %v2088
  %v2284 = vunpack.c.h.b16 %v2088
  %v2285 = vunpack.c.l.b16 %v2089
  %v2286 = vunpack.c.h.b16 %v2089
  %v2287 = vunpack.c.l.b16 %v2090
  %v2288 = vunpack.c.h.b16 %v2090
  %v2289 = vpack.c.b16 %v2163, %v2161
  %v2290 = vpack.c.b16 %v2164, %v2162
  %v2291 = vpack.c.b16 %v2167, %v2165
  %v2292 = vpack.c.b16 %v2168, %v2166
  %v2293 = vpack.c.b16 %v2171, %v2169
  %v2294 = vpack.c.b16 %v2172, %v2170
  %v2295 = vpack.c.b16 %v2175, %v2173
  %v2296 = vpack.c.b16 %v2176, %v2174
  %v2297 = vpack.c.b16 %v2179, %v2177
  %v2298 = vpack.c.b16 %v2180, %v2178
  %v2299 = vpack.c.b16 %v2183, %v2181
  %v2300 = vpack.c.b16 %v2184, %v2182
  %v2301 = vpack.c.b16 %v2187, %v2185
  %v2302 = vpack.c.b16 %v2188, %v2186
  %v2303 = vpack.c.b16 %v2191, %v2189
  %v2304 = vpack.c.b16 %v2192, %v2190
  %v2305 = vpack.c.b16 %v2195, %v2193
  %v2306 = vpack.c.b16 %v2196, %v2194
  %v2307 = vpack.c.b16 %v2199, %v2197
  %v2308 = vpack.c.b16 %v2200, %v2198
  %v2309 = vpack.c.b16 %v2203, %v2201
  %v2310 = vpack.c.b16 %v2204, %v2202
  %v2311 = vpack.c.b16 %v2207, %v2205
  %v2312 = vpack.c.b16 %v2208, %v2206
  %v2313 = vpack.c.b16 %v2211, %v2209
  %v2314 = vpack.c.b16 %v2212, %v2210
  %v2315 = vpack.c.b16 %v2215, %v2213
  %v2316 = vpack.c.b16 %v2216, %v2214
  %v2317 = vpack.c.b16 %v2219, %v2217
  %v2318 = vpack.c.b16 %v2220, %v2218
  %v2319 = vpack.c.b16 %v2223, %v2221
  %v2320 = vpack.c.b16 %v2224, %v2222
  %v2321 = vpack.c.b16 %v2227, %v2225
  %v2322 = vpack.c.b16 %v2228, %v2226
  %v2323 = vpack.c.b16 %v2231, %v2229
  %v2324 = vpack.c.b16 %v2232, %v2230
  %v2325 = vpack.c.b16 %v2235, %v2233
  %v2326 = vpack.c.b16 %v2236, %v2234
  %v2327 = vpack.c.b16 %v2239, %v2237
  %v2328 = vpack.c.b16 %v2240, %v2238
  %v2329 = vpack.c.b16 %v2243, %v2241
  %v2330 = vpack.c.b16 %v2244, %v2242
  %v2331 = vpack.c.b16 %v2247, %v2245
  %v2332 = vpack.c.b16 %v2248, %v2246
  %v2333 = vpack.c.b16 %v2251, %v2249
  %v2334 = vpack.c.b16 %v2252, %v2250
  %v2335 = vpack.c.b16 %v2255, %v2253
  %v2336 = vpack.c.b16 %v2256, %v2254
  %v2337 = vpack.c.b16 %v2259, %v2257
  %v2338 = vpack.c.b16 %v2260, %v2258
  %v2339 = vpack.c.b16 %v2263, %v2261
  %v2340 = vpack.c.b16 %v2264, %v2262
  %v2341 = vpack.c.b16 %v2267, %v2265
  %v2342 = vpack.c.b16 %v2268, %v2266
  %v2343 = vpack.c.b16 %v2271, %v2269
  %v2344 = vpack.c.b16 %v2272, %v2270
  %v2345 = vpack.c.b16 %v2275, %v2273
  %v2346 = vpack.c.b16 %v2276, %v2274
  %v2347 = vpack.c.b16 %v2279, %v2277
  %v2348 = vpack.c.b16 %v2280, %v2278
  %v2349 = vpack.c.b16 %v2283, %v2281
  %v2350 = vpack.c.b16 %v2284, %v2282
  %v2351 = vpack.c.b16 %v2287, %v2285
  %v2352 = vpack.c.b16 %v2288, %v2286
  %2417 = vmatpush.bf16.msra.mxu0 %v2303
  %2418 = vmatpush.bf16.msra.mxu0 %v2301
  %2419 = vmatpush.bf16.msra.mxu0 %v2299
  %2420 = vmatpush.bf16.msra.mxu0 %v2297
  %2421 = vmatpush.bf16.msra.mxu0 %v2295
  %2422 = vmatpush.bf16.msra.mxu0 %v2293
  %2423 = vmatpush.bf16.msra.mxu0 %v2291
  %2424 = vmatpush.bf16.msra.mxu0 %v2289
  %2425 = vmatmul.bf16.gmra.mxu0 %v2023
  %v2426 = vpop.f32.mrf.mxu0
  %v2427 = vadd.f32 %v2093, %v2426
  %v2428 = vpop.f32.mrf.mxu0
  %2429 = vdwg.mxu0
  %2430 = vmatpush.bf16.msra.mxu0 %v2319
  %2431 = vmatpush.bf16.msra.mxu0 %v2317
  %2432 = vmatpush.bf16.msra.mxu0 %v2315
  %2433 = vmatpush.bf16.msra.mxu0 %v2313
  %2434 = vmatpush.bf16.msra.mxu0 %v2311
  %2435 = vmatpush.bf16.msra.mxu0 %v2309
  %2436 = vmatpush.bf16.msra.mxu0 %v2307
  %2437 = vmatpush.bf16.msra.mxu0 %v2305
  %2438 = vmatmul.bf16.gmra.mxu0 %v2024
  %v2439 = vpop.f32.mrf.mxu0
  %v2440 = vadd.f32 %v2427, %v2439
  %v2441 = vpop.f32.mrf.mxu0
  %2442 = vdwg.mxu0
  %2443 = vmatpush.bf16.msra.mxu0 %v2335
  %2444 = vmatpush.bf16.msra.mxu0 %v2333
  %2445 = vmatpush.bf16.msra.mxu0 %v2331
  %2446 = vmatpush.bf16.msra.mxu0 %v2329
  %2447 = vmatpush.bf16.msra.mxu0 %v2327
  %2448 = vmatpush.bf16.msra.mxu0 %v2325
  %2449 = vmatpush.bf16.msra.mxu0 %v2323
  %2450 = vmatpush.bf16.msra.mxu0 %v2321
  %2451 = vmatmul.bf16.gmra.mxu0 %v2025
  %v2452 = vpop.f32.mrf.mxu0
  %v2453 = vadd.f32 %v2440, %v2452
  %v2454 = vpop.f32.mrf.mxu0
  %2455 = vdwg.mxu0
  %2456 = vmatpush.bf16.msra.mxu0 %v2351
  %2457 = vmatpush.bf16.msra.mxu0 %v2349
  %2458 = vmatpush.bf16.msra.mxu0 %v2347
  %2459 = vmatpush.bf16.msra.mxu0 %v2345
  %2460 = vmatpush.bf16.msra.mxu0 %v2343
  %2461 = vmatpush.bf16.msra.mxu0 %v2341
  %2462 = vmatpush.bf16.msra.mxu0 %v2339
  %2463 = vmatpush.bf16.msra.mxu0 %v2337
  %2464 = vmatmul.bf16.gmra.mxu0 %v2026
  %v2465 = vpop.f32.mrf.mxu0
  %v2466 = vadd.f32 %v2453, %v2465
  %v2467 = vpop.f32.mrf.mxu0
  %2468 = vdwg.mxu0
  %2469 = vmatpush.bf16.msra.mxu0 %v2304
  %2470 = vmatpush.bf16.msra.mxu0 %v2302
  %2471 = vmatpush.bf16.msra.mxu0 %v2300
  %2472 = vmatpush.bf16.msra.mxu0 %v2298
  %2473 = vmatpush.bf16.msra.mxu0 %v2296
  %2474 = vmatpush.bf16.msra.mxu0 %v2294
  %2475 = vmatpush.bf16.msra.mxu0 %v2292
  %2476 = vmatpush.bf16.msra.mxu0 %v2290
  %2477 = vmatmul.bf16.gmra.mxu0 %v2023
  %v2478 = vpop.f32.mrf.mxu0
  %v2479 = vadd.f32 %v2094, %v2478
  %v2480 = vpop.f32.mrf.mxu0
  %2481 = vdwg.mxu0
  %2482 = vmatpush.bf16.msra.mxu0 %v2320
  %2483 = vmatpush.bf16.msra.mxu0 %v2318
  %2484 = vmatpush.bf16.msra.mxu0 %v2316
  %2485 = vmatpush.bf16.msra.mxu0 %v2314
  %2486 = vmatpush.bf16.msra.mxu0 %v2312
  %2487 = vmatpush.bf16.msra.mxu0 %v2310
  %2488 = vmatpush.bf16.msra.mxu0 %v2308
  %2489 = vmatpush.bf16.msra.mxu0 %v2306
  %2490 = vmatmul.bf16.gmra.mxu0 %v2024
  %v2491 = vpop.f32.mrf.mxu0
  %v2492 = vadd.f32 %v2479, %v2491
  %v2493 = vpop.f32.mrf.mxu0
  %2494 = vdwg.mxu0
  %2495 = vmatpush.bf16.msra.mxu0 %v2336
  %2496 = vmatpush.bf16.msra.mxu0 %v2334
  %2497 = vmatpush.bf16.msra.mxu0 %v2332
  %2498 = vmatpush.bf16.msra.mxu0 %v2330
  %2499 = vmatpush.bf16.msra.mxu0 %v2328
  %2500 = vmatpush.bf16.msra.mxu0 %v2326
  %2501 = vmatpush.bf16.msra.mxu0 %v2324
  %2502 = vmatpush.bf16.msra.mxu0 %v2322
  %2503 = vmatmul.bf16.gmra.mxu0 %v2025
  %v2504 = vpop.f32.mrf.mxu0
  %v2505 = vadd.f32 %v2492, %v2504
  %v2506 = vpop.f32.mrf.mxu0
  %2507 = vdwg.mxu0
  %2508 = vmatpush.bf16.msra.mxu0 %v2352
  %2509 = vmatpush.bf16.msra.mxu0 %v2350
  %2510 = vmatpush.bf16.msra.mxu0 %v2348
  %2511 = vmatpush.bf16.msra.mxu0 %v2346
  %2512 = vmatpush.bf16.msra.mxu0 %v2344
  %2513 = vmatpush.bf16.msra.mxu0 %v2342
  %2514 = vmatpush.bf16.msra.mxu0 %v2340
  %2515 = vmatpush.bf16.msra.mxu0 %v2338
  %2516 = vmatmul.bf16.gmra.mxu0 %v2026
  %v2517 = vpop.f32.mrf.mxu0
  %v2518 = vadd.f32 %v2505, %v2517
  %v2519 = vpop.f32.mrf.mxu0
  %2520 = vdwg.mxu0
  %v2521 = vmax.f32 %v2466, 0.0
  %v2522 = vmax.f32 %v2518, 0.0
  %v2523 = vpack.c.bf16 %v2521, %v2521
  %v2524 = vpack.c.bf16 %v2522, %v2522
  %v2525 = vld [vmem:[%s5] sm:$0xf]
  %v2526 = vld [vmem:[%s5 + $0x4] sm:$0xf]
  %v2527 = vld [vmem:[%s5 + $0x8] sm:$0xf]
  %v2528 = vld [vmem:[%s5 + $0xc] sm:$0xf]
  %v2529 = vld [vmem:[%s5 + $0x10] sm:$0xf]
  %v2530 = vld [vmem:[%s5 + $0x14] sm:$0xf]
  %v2531 = vld [vmem:[%s5 + $0x18] sm:$0xf]
  %v2532 = vld [vmem:[%s5 + $0x1c] sm:$0xf]
  %v2533 = vld [vmem:[%s5 + $0x20] sm:$0xf]
  %v2534 = vld [vmem:[%s5 + $0x24] sm:$0xf]
  %v2535 = vld [vmem:[%s5 + $0x28] sm:$0xf]
  %v2536 = vld [vmem:[%s5 + $0x2c] sm:$0xf]
  %v2537 = vld [vmem:[%s5 + $0x30] sm:$0xf]
  %v2538 = vld [vmem:[%s5 + $0x34] sm:$0xf]
  %v2539 = vld [vmem:[%s5 + $0x38] sm:$0xf]
  %v2540 = vld [vmem:[%s5 + $0x3c] sm:$0xf]
  %v2541 = vld [vmem:[%s5 + $0x40] sm:$0xf]
  %v2542 = vld [vmem:[%s5 + $0x44] sm:$0xf]
  %v2543 = vld [vmem:[%s5 + $0x48] sm:$0xf]
  %v2544 = vld [vmem:[%s5 + $0x4c] sm:$0xf]
  %v2545 = vld [vmem:[%s5 + $0x50] sm:$0xf]
  %v2546 = vld [vmem:[%s5 + $0x54] sm:$0xf]
  %v2547 = vld [vmem:[%s5 + $0x58] sm:$0xf]
  %v2548 = vld [vmem:[%s5 + $0x5c] sm:$0xf]
  %v2549 = vld [vmem:[%s5 + $0x60] sm:$0xf]
  %v2550 = vld [vmem:[%s5 + $0x64] sm:$0xf]
  %v2551 = vld [vmem:[%s5 + $0x68] sm:$0xf]
  %v2552 = vld [vmem:[%s5 + $0x6c] sm:$0xf]
  %v2553 = vld [vmem:[%s5 + $0x70] sm:$0xf]
  %v2554 = vld [vmem:[%s5 + $0x74] sm:$0xf]
  %v2555 = vld [vmem:[%s5 + $0x78] sm:$0xf]
  %v2556 = vld [vmem:[%s5 + $0x7c] sm:$0xf]
  %v2557 = vld [vmem:[%s6] sm:$0x1]
  %v2559 = vperm.slane %v2557, 0
  %v2593 = vunpack.c.l.b16 %v2525
  %v2594 = vunpack.c.l.b16 %v2526
  %v2595 = vunpack.c.l.b16 %v2527
  %v2596 = vunpack.c.l.b16 %v2528
  %v2597 = vunpack.c.l.b16 %v2529
  %v2598 = vunpack.c.l.b16 %v2530
  %v2599 = vunpack.c.l.b16 %v2531
  %v2600 = vunpack.c.l.b16 %v2532
  %v2601 = vunpack.c.l.b16 %v2533
  %v2602 = vunpack.c.l.b16 %v2534
  %v2603 = vunpack.c.l.b16 %v2535
  %v2604 = vunpack.c.l.b16 %v2536
  %v2605 = vunpack.c.l.b16 %v2537
  %v2606 = vunpack.c.l.b16 %v2538
  %v2607 = vunpack.c.l.b16 %v2539
  %v2608 = vunpack.c.l.b16 %v2540
  %v2609 = vunpack.c.l.b16 %v2541
  %v2610 = vunpack.c.l.b16 %v2542
  %v2611 = vunpack.c.l.b16 %v2543
  %v2612 = vunpack.c.l.b16 %v2544
  %v2613 = vunpack.c.l.b16 %v2545
  %v2614 = vunpack.c.l.b16 %v2546
  %v2615 = vunpack.c.l.b16 %v2547
  %v2616 = vunpack.c.l.b16 %v2548
  %v2617 = vunpack.c.l.b16 %v2549
  %v2618 = vunpack.c.l.b16 %v2550
  %v2619 = vunpack.c.l.b16 %v2551
  %v2620 = vunpack.c.l.b16 %v2552
  %v2621 = vunpack.c.l.b16 %v2553
  %v2622 = vunpack.c.l.b16 %v2554
  %v2623 = vunpack.c.l.b16 %v2555
  %v2624 = vunpack.c.l.b16 %v2556
  %v2625 = vpack.c.b16 %v2594, %v2593
  %v2626 = vpack.c.b16 %v2596, %v2595
  %v2627 = vpack.c.b16 %v2598, %v2597
  %v2628 = vpack.c.b16 %v2600, %v2599
  %v2629 = vpack.c.b16 %v2602, %v2601
  %v2630 = vpack.c.b16 %v2604, %v2603
  %v2631 = vpack.c.b16 %v2606, %v2605
  %v2632 = vpack.c.b16 %v2608, %v2607
  %v2633 = vpack.c.b16 %v2610, %v2609
  %v2634 = vpack.c.b16 %v2612, %v2611
  %v2635 = vpack.c.b16 %v2614, %v2613
  %v2636 = vpack.c.b16 %v2616, %v2615
  %v2637 = vpack.c.b16 %v2618, %v2617
  %v2638 = vpack.c.b16 %v2620, %v2619
  %v2639 = vpack.c.b16 %v2622, %v2621
  %v2640 = vpack.c.b16 %v2624, %v2623
  %2657 = vmatpush.bf16.msra.mxu0 %v2632
  %2658 = vmatpush.bf16.msra.mxu0 %v2631
  %2659 = vmatpush.bf16.msra.mxu0 %v2630
  %2660 = vmatpush.bf16.msra.mxu0 %v2629
  %2661 = vmatpush.bf16.msra.mxu0 %v2628
  %2662 = vmatpush.bf16.msra.mxu0 %v2627
  %2663 = vmatpush.bf16.msra.mxu0 %v2626
  %2664 = vmatpush.bf16.msra.mxu0 %v2625
  %2665 = vmatmul.bf16.gmra.mxu0 %v2523
  %v2666 = vpop.f32.mrf.mxu0
  %v2667 = vadd.f32 %v2559, %v2666
  %v2668 = vpop.f32.mrf.mxu0
  %2669 = vdwg.mxu0
  %2670 = vmatpush.bf16.msra.mxu0 %v2640
  %2671 = vmatpush.bf16.msra.mxu0 %v2639
  %2672 = vmatpush.bf16.msra.mxu0 %v2638
  %2673 = vmatpush.bf16.msra.mxu0 %v2637
  %2674 = vmatpush.bf16.msra.mxu0 %v2636
  %2675 = vmatpush.bf16.msra.mxu0 %v2635
  %2676 = vmatpush.bf16.msra.mxu0 %v2634
  %2677 = vmatpush.bf16.msra.mxu0 %v2633
  %2678 = vmatmul.bf16.gmra.mxu0 %v2524
  %v2679 = vpop.f32.mrf.mxu0
  %v2680 = vadd.f32 %v2667, %v2679
  %v2681 = vpop.f32.mrf.mxu0
  %2682 = vdwg.mxu0
  %vm2683 = vcmask 66560
  %2684 = vst.msk [vmem:[%s7] sm:$0x3] %vm2683, %v2680
  // Predicated region
  $region30: #{stn3d_forward.3} parent=0 // pred_check
    _
  $region31: #{stn3d_forward.3} parent=0 // pred_check_branch
    %2686 = sbr.rel (0) target = $region33
  $region32: #{stn3d_forward.3} parent=0 // pred_region
    _
  $region33: #{stn3d_forward.3} parent=0 // pred_fallthru
    _
  // Predicated region
  $region34: #{stn3d_forward.3} parent=0 // pred_check
    _
  $region35: #{stn3d_forward.3} parent=0 // pred_check_branch
    %2688 = sbr.rel (0) target = $region37
  $region36: #{stn3d_forward.3} parent=0 // pred_region
    _
  $region37: #{stn3d_forward.3} parent=0 // pred_fallthru
    _

// kernel: stn3d_forward.2
$region0: #{stn3d_forward.2}
  #allocation0 [shape = 'u32[]', space=smem, size = 0x4, offset = 0x4, fixed_abs, tag = 'smem constant byte address 0x4 - core index']
  #allocation1 [shape = 'u32[72,128]{1,0:T(1,128)}', space=vmem, size = 0x9000, scoped, tag = 'internal scratch']
  #allocation2 [shape = 'f32[1024,128]{1,0:T(8,128)}', space=vmem, size = 0x80000, scoped, tag = 'scratch operand']
  %s0 = inlined_call_operand.vmem [shape: f32[2,3,512], index: 0, kind: input, shape index: {}]
  %s1 = inlined_call_operand.vmem [shape: bf16[64,3], index: 1, kind: input, shape index: {}]
  %s2 = inlined_call_operand.vmem [shape: f32[64,1], index: 2, kind: input, shape index: {}]
  %s3 = inlined_call_operand.vmem [shape: bf16[128,64], index: 3, kind: input, shape index: {}]
  %s4 = inlined_call_operand.vmem [shape: f32[128,1], index: 4, kind: input, shape index: {}]
  %s5 = inlined_call_operand.vmem [shape: bf16[1024,128], index: 5, kind: input, shape index: {}]
  %s6 = inlined_call_operand.vmem [shape: f32[1024,1], index: 6, kind: input, shape index: {}]
  %s7 = inlined_call_operand.vmem [shape: f32[2,1024,1], index: 7, kind: output, shape index: {}]
  %s8 = sld [smem:[#allocation0]]
  $region69: #{stn3d_forward.2} parent=0
    _
  %s10 = ssub.s32 1, %s8
  %s11 = scalar_select 0, %s10, %s8
  loop: start=0, step=1, limit=4
  $region2: #{stn3d_forward.2} parent=0 // loop_pre_header
    _
  $region3: #{stn3d_forward.2} parent=0 // loop_header
    %s13 = sphi 0, %s17
    %p14 = scmp.ge.s32.totalorder %s13, 4
    %s20 = sphi 0, %s32
    %s21 = sphi 0, %s28
    %s22 = sphi 0, %s20
    %s23 = sphi 0, %s21
    %s24 = sphi 0, %s22
    %s25 = sphi 0, %s23
    %s37 = sphi 0, %s39
    %s40 = sphi 0, %s37
    %s41 = sphi 0, %s40
    %s57 = sphi 0, %s41
    %s61 = sphi 0, %s61
    %s63 = sphi 0, %s61
    %s64 = sphi 0, %s63
    %s78 = sphi 0, %s64
    %s82 = sphi 0, %s82
    %s84 = sphi 0, %s82
    %s85 = sphi 0, %s84
    %s99 = sphi 0, %s85
    %s103 = sphi 0, %s103
    %s105 = sphi 0, %s103
    %s106 = sphi 0, %s105
    %s120 = sphi 0, %s106
    %s124 = sphi 0, %s124
    %s126 = sphi 0, %s124
    %s127 = sphi 0, %s126
    %s141 = sphi 0, %s127
    %s145 = sphi 0, %s145
    %s147 = sphi 0, %s145
    %s148 = sphi 0, %s147
    %s162 = sphi 0, %s148
    %s166 = sphi 0, %s166
    %s168 = sphi 0, %s166
    %s169 = sphi 0, %s168
    %s183 = sphi 0, %s169
    %s189 = sphi 0, %s191
    %s192 = sphi 0, %s189
    %s193 = sphi 0, %s192
    %s209 = sphi 0, %s193
  $region4: #{stn3d_forward.2} parent=0 // loop_header_branch
    %16 = sbr.rel (%p14) target = $region8
  $region5: #{stn3d_forward.2} parent=0 // loop_body
    %s18 = ssub.s32 %s13, 1
    %s19 = ssub.s32 %s13, 2
    %s26 = sadd.s32 1, %s21
    %p27 = scmp.ge.s32.totalorder %s26, 1
    %s28 = scalar_select %p27, 0, %s26
    %s29 = sadd.s32 1, %s20
    %s30 = scalar_select %p27, %s29, %s20
    %p31 = scmp.ge.s32.totalorder %s30, 2
    %s32 = scalar_select %p31, 0, %s30
    %s33 = ssub.s32 %s20, %s32
    %s34 = ssub.s32 %s21, %s28
    %s35 = sor.u32 %s33, %s34
    %p36 = scmp.eq.s32.totalorder %s35, 0
    %s38 = sadd.s32 %s37, 1
    %s39 = scalar_select %p36, %s37, %s38
    %p42 = pneg %p36
    %p43 = scmp.eq.s32.totalorder %s13, 1
    %p44 = por %p42, %p43
    %p45 = scmp.ne.s32.totalorder %s37, %s40
    %p46 = scmp.eq.s32.totalorder %s13, 0
    %p47 = por %p45, %p46
    %p48 = scmp.ne.s32.totalorder %s37, %s40
    %p49 = scmp.eq.s32.totalorder %s18, 1
    %p50 = por %p48, %p49
    %p51 = scmp.ne.s32.totalorder %s40, %s41
    %p52 = scmp.eq.s32.totalorder %s18, 0
    %p53 = por %p51, %p52
    %p54 = scmp.ne.s32.totalorder %s40, %s41
    %p55 = scmp.eq.s32.totalorder %s19, 1
    %p56 = por %p54, %p55
    %p58 = scmp.ne.s32.totalorder %s41, %s57
    %p59 = scmp.eq.s32.totalorder %s19, 0
    %p60 = por %p58, %p59
    %s62 = sadd.s32 %s61, 1
    %p65 = scmp.eq.s32.totalorder %s13, 1
    %p66 = scmp.ne.s32.totalorder %s61, %s63
    %p67 = scmp.eq.s32.totalorder %s13, 0
    %p68 = por %p66, %p67
    %p69 = scmp.ne.s32.totalorder %s61, %s63
    %p70 = scmp.eq.s32.totalorder %s18, 1
    %p71 = por %p69, %p70
    %p72 = scmp.ne.s32.totalorder %s63, %s64
    %p73 = scmp.eq.s32.totalorder %s18, 0
    %p74 = por %p72, %p73
    %p75 = scmp.ne.s32.totalorder %s63, %s64
    %p76 = scmp.eq.s32.totalorder %s19, 1
    %p77 = por %p75, %p76
    %p79 = scmp.ne.s32.totalorder %s64, %s78
    %p80 = scmp.eq.s32.totalorder %s19, 0
    %p81 = por %p79, %p80
    %s83 = sadd.s32 %s82, 1
    %p86 = scmp.eq.s32.totalorder %s13, 1
    %p87 = scmp.ne.s32.totalorder %s82, %s84
    %p88 = scmp.eq.s32.totalorder %s13, 0
    %p89 = por %p87, %p88
    %p90 = scmp.ne.s32.totalorder %s82, %s84
    %p91 = scmp.eq.s32.totalorder %s18, 1
    %p92 = por %p90, %p91
    %p93 = scmp.ne.s32.totalorder %s84, %s85
    %p94 = scmp.eq.s32.totalorder %s18, 0
    %p95 = por %p93, %p94
    %p96 = scmp.ne.s32.totalorder %s84, %s85
    %p97 = scmp.eq.s32.totalorder %s19, 1
    %p98 = por %p96, %p97
    %p100 = scmp.ne.s32.totalorder %s85, %s99
    %p101 = scmp.eq.s32.totalorder %s19, 0
    %p102 = por %p100, %p101
    %s104 = sadd.s32 %s103, 1
    %p107 = scmp.eq.s32.totalorder %s13, 1
    %p108 = scmp.ne.s32.totalorder %s103, %s105
    %p109 = scmp.eq.s32.totalorder %s13, 0
    %p110 = por %p108, %p109
    %p111 = scmp.ne.s32.totalorder %s103, %s105
    %p112 = scmp.eq.s32.totalorder %s18, 1
    %p113 = por %p111, %p112
    %p114 = scmp.ne.s32.totalorder %s105, %s106
    %p115 = scmp.eq.s32.totalorder %s18, 0
    %p116 = por %p114, %p115
    %p117 = scmp.ne.s32.totalorder %s105, %s106
    %p118 = scmp.eq.s32.totalorder %s19, 1
    %p119 = por %p117, %p118
    %p121 = scmp.ne.s32.totalorder %s106, %s120
    %p122 = scmp.eq.s32.totalorder %s19, 0
    %p123 = por %p121, %p122
    %s125 = sadd.s32 %s124, 1
    %p128 = scmp.eq.s32.totalorder %s13, 1
    %p129 = scmp.ne.s32.totalorder %s124, %s126
    %p130 = scmp.eq.s32.totalorder %s13, 0
    %p131 = por %p129, %p130
    %p132 = scmp.ne.s32.totalorder %s124, %s126
    %p133 = scmp.eq.s32.totalorder %s18, 1
    %p134 = por %p132, %p133
    %p135 = scmp.ne.s32.totalorder %s126, %s127
    %p136 = scmp.eq.s32.totalorder %s18, 0
    %p137 = por %p135, %p136
    %p138 = scmp.ne.s32.totalorder %s126, %s127
    %p139 = scmp.eq.s32.totalorder %s19, 1
    %p140 = por %p138, %p139
    %p142 = scmp.ne.s32.totalorder %s127, %s141
    %p143 = scmp.eq.s32.totalorder %s19, 0
    %p144 = por %p142, %p143
    %s146 = sadd.s32 %s145, 1
    %p149 = scmp.eq.s32.totalorder %s13, 1
    %p150 = scmp.ne.s32.totalorder %s145, %s147
    %p151 = scmp.eq.s32.totalorder %s13, 0
    %p152 = por %p150, %p151
    %p153 = scmp.ne.s32.totalorder %s145, %s147
    %p154 = scmp.eq.s32.totalorder %s18, 1
    %p155 = por %p153, %p154
    %p156 = scmp.ne.s32.totalorder %s147, %s148
    %p157 = scmp.eq.s32.totalorder %s18, 0
    %p158 = por %p156, %p157
    %p159 = scmp.ne.s32.totalorder %s147, %s148
    %p160 = scmp.eq.s32.totalorder %s19, 1
    %p161 = por %p159, %p160
    %p163 = scmp.ne.s32.totalorder %s148, %s162
    %p164 = scmp.eq.s32.totalorder %s19, 0
    %p165 = por %p163, %p164
    %s167 = sadd.s32 %s166, 1
    %p170 = scmp.eq.s32.totalorder %s13, 1
    %p171 = scmp.ne.s32.totalorder %s166, %s168
    %p172 = scmp.eq.s32.totalorder %s13, 0
    %p173 = por %p171, %p172
    %p174 = scmp.ne.s32.totalorder %s166, %s168
    %p175 = scmp.eq.s32.totalorder %s18, 1
    %p176 = por %p174, %p175
    %p177 = scmp.ne.s32.totalorder %s168, %s169
    %p178 = scmp.eq.s32.totalorder %s18, 0
    %p179 = por %p177, %p178
    %p180 = scmp.ne.s32.totalorder %s168, %s169
    %p181 = scmp.eq.s32.totalorder %s19, 1
    %p182 = por %p180, %p181
    %p184 = scmp.ne.s32.totalorder %s169, %s183
    %p185 = scmp.eq.s32.totalorder %s19, 0
    %p186 = por %p184, %p185
    %s187 = ssub.s32 %s20, %s32
    %p188 = scmp.eq.s32.totalorder %s187, 0
    %s190 = sadd.s32 %s189, 1
    %s191 = scalar_select %p188, %s189, %s190
    %p194 = pneg %p188
    %p195 = scmp.eq.s32.totalorder %s13, 1
    %p196 = por %p194, %p195
    %p197 = scmp.ne.s32.totalorder %s189, %s192
    %p198 = scmp.eq.s32.totalorder %s13, 0
    %p199 = por %p197, %p198
    %p200 = scmp.ne.s32.totalorder %s189, %s192
    %p201 = scmp.eq.s32.totalorder %s18, 1
    %p202 = por %p200, %p201
    %p203 = scmp.ne.s32.totalorder %s192, %s193
    %p204 = scmp.eq.s32.totalorder %s18, 0
    %p205 = por %p203, %p204
    %p206 = scmp.ne.s32.totalorder %s192, %s193
    %p207 = scmp.eq.s32.totalorder %s19, 1
    %p208 = por %p206, %p207
    %p210 = scmp.ne.s32.totalorder %s193, %s209
    %p211 = scmp.eq.s32.totalorder %s19, 0
    %p212 = por %p210, %p211
    %p213 = scmp.le.s32.totalorder 1, %s13
    %p214 = scmp.lt.s32.totalorder %s13, 3
    %p215 = pnand %p213, %p214
    %p216 = pneg %p215
    // Predicated region
    $region9: #{stn3d_forward.2} parent=5 // pred_check
      _
    $region10: #{stn3d_forward.2} parent=5 // pred_check_branch
      %218 = sbr.rel (%p215) target = $region12
    $region11: #{stn3d_forward.2} parent=5 // pred_region
      %s219 = ssub.s32 %s13, 1
      // Predicated region
      $region13: #{stn3d_forward.2} parent=11 // pred_check
        %p220 = pneg %p74
      $region14: #{stn3d_forward.2} parent=11 // pred_check_branch
        %222 = sbr.rel (%p220) target = $region16
      $region15: #{stn3d_forward.2} parent=11 // pred_region
        _
      $region16: #{stn3d_forward.2} parent=11 // pred_fallthru
        _
      // Predicated region
      $region17: #{stn3d_forward.2} parent=11 // pred_check
        %p223 = pneg %p95
      $region18: #{stn3d_forward.2} parent=11 // pred_check_branch
        %225 = sbr.rel (%p223) target = $region20
      $region19: #{stn3d_forward.2} parent=11 // pred_region
        _
      $region20: #{stn3d_forward.2} parent=11 // pred_fallthru
        _
      // Predicated region
      $region21: #{stn3d_forward.2} parent=11 // pred_check
        %p226 = pneg %p116
      $region22: #{stn3d_forward.2} parent=11 // pred_check_branch
        %228 = sbr.rel (%p226) target = $region24
      $region23: #{stn3d_forward.2} parent=11 // pred_region
        _
      $region24: #{stn3d_forward.2} parent=11 // pred_fallthru
        _
      // Predicated region
      $region25: #{stn3d_forward.2} parent=11 // pred_check
        %p229 = pneg %p137
      $region26: #{stn3d_forward.2} parent=11 // pred_check_branch
        %231 = sbr.rel (%p229) target = $region28
      $region27: #{stn3d_forward.2} parent=11 // pred_region
        _
      $region28: #{stn3d_forward.2} parent=11 // pred_fallthru
        _
      // Predicated region
      $region29: #{stn3d_forward.2} parent=11 // pred_check
        %p232 = pneg %p158
      $region30: #{stn3d_forward.2} parent=11 // pred_check_branch
        %234 = sbr.rel (%p232) target = $region32
      $region31: #{stn3d_forward.2} parent=11 // pred_region
        _
      $region32: #{stn3d_forward.2} parent=11 // pred_fallthru
        _
      // Predicated region
      $region33: #{stn3d_forward.2} parent=11 // pred_check
        %p235 = pneg %p179
      $region34: #{stn3d_forward.2} parent=11 // pred_check_branch
        %237 = sbr.rel (%p235) target = $region36
      $region35: #{stn3d_forward.2} parent=11 // pred_region
        _
      $region36: #{stn3d_forward.2} parent=11 // pred_fallthru
        _
    $region12: #{stn3d_forward.2} parent=5 // pred_fallthru
      _
    %p238 = scmp.lt.s32.totalorder %s13, 2
    // Predicated region
    $region37: #{stn3d_forward.2} parent=5 // pred_check
      %p239 = pneg %p238
    $region38: #{stn3d_forward.2} parent=5 // pred_check_branch
      %241 = sbr.rel (%p239) target = $region40
    $region39: #{stn3d_forward.2} parent=5 // pred_region
      // Predicated region
      $region41: #{stn3d_forward.2} parent=39 // pred_check
        %p242 = pneg %p47
      $region42: #{stn3d_forward.2} parent=39 // pred_check_branch
        %244 = sbr.rel (%p242) target = $region44
      $region43: #{stn3d_forward.2} parent=39 // pred_region
        %s245 = smul.u32 4, %s21
        %p246 = scmp.lt.s32.totalorder %s20, 1
        %s247 = scalar_select %p246, %s20, 1
        %p248 = scmp.lt.s32.totalorder %s245, 3
        %s249 = scalar_select %p248, %s245, 3
        %s250 = smul.addr %s247, 4
        %s251 = sadd.s32 %s249, %s250
        %s252 = smul.addr %s251, 4
        %s253 = scalar_lea.vmem %s0, %s252
        %s254 = smul.u32 4, %s21
      $region44: #{stn3d_forward.2} parent=39 // pred_fallthru
        _
    $region40: #{stn3d_forward.2} parent=5 // pred_fallthru
      _
    %p255 = scmp.le.s32.totalorder 1, %s13
    %p256 = scmp.lt.s32.totalorder %s13, 3
    %p257 = pnand %p255, %p256
    %p258 = pneg %p257
    // Predicated region
    $region45: #{stn3d_forward.2} parent=5 // pred_check
      _
    $region46: #{stn3d_forward.2} parent=5 // pred_check_branch
      %260 = sbr.rel (%p257) target = $region48
    $region47: #{stn3d_forward.2} parent=5 // pred_region
      %s261 = ssub.s32 %s13, 1
      %s262 = smul.u32 4, %s23
      %p263 = scmp.lt.s32.totalorder %s22, 1
      %s264 = scalar_select %p263, %s22, 1
      %p265 = scmp.lt.s32.totalorder %s262, 3
      %s266 = scalar_select %p265, %s262, 3
      %s267 = smul.addr %s264, 4
      %s268 = sadd.s32 %s266, %s267
      %s269 = smul.addr %s268, 4
      %s270 = scalar_lea.vmem %s0, %s269
      %p271 = pneg %p53
      %p272 = pneg %p50
      %p273 = pneg %p74
      %p274 = pneg %p71
      %p275 = pneg %p95
      %p276 = pneg %p92
      %p277 = pneg %p116
      %p278 = pneg %p113
      %p279 = pneg %p137
      %p280 = pneg %p134
      %p281 = pneg %p158
      %p282 = pneg %p155
      %p283 = pneg %p179
      %p284 = pneg %p176
      %p285 = pneg %p205
      %p286 = pneg %p202
      %p287 = scmp.lt.s32.totalorder %s22, 1
      %s288 = scalar_select %p287, %s22, 1
      %s289 = smul.addr %s288, 128
      %s290 = smul.addr %s289, 8
      %s291 = scalar_lea.vmem %s7, %s290
      %s292 = smul.u32 4, %s23
      %p293 = scmp.lt.s32.totalorder %s22, 1
      %s294 = scalar_select %p293, %s22, 1
      %p295 = scmp.lt.s32.totalorder %s292, 3
      %s296 = scalar_select %p295, %s292, 3
      %s297 = smul.addr %s294, 4
      %s298 = sadd.s32 %s296, %s297
      %s299 = smul.addr %s298, 4
      %s300 = scalar_lea.vmem %s0, %s299
      %s301 = smul.u32 4, %s23
      %p302 = scmp.lt.s32.totalorder %s22, 1
      %s303 = scalar_select %p302, %s22, 1
      %s304 = smul.addr %s303, 128
      %s305 = smul.addr %s304, 8
      %s306 = scalar_lea.vmem %s7, %s305
      %p308 = scmp.eq.s32.totalorder %s23, 0
      // Predicated region
      $region49: #{stn3d_forward.2} parent=47 // pred_check
        %p309 = pneg %p308
      $region50: #{stn3d_forward.2} parent=47 // pred_check_branch
        %311 = sbr.rel (%p309) target = $region52
      $region51: #{stn3d_forward.2} parent=47 // pred_region
        %312 = vst [vmem:[#allocation2] sm:$0xff] 0.0
        %313 = vst [vmem:[#allocation2 + $0x8] sm:$0xff] 0.0
        %314 = vst [vmem:[#allocation2 + $0x10] sm:$0xff] 0.0
        %315 = vst [vmem:[#allocation2 + $0x18] sm:$0xff] 0.0
        %316 = vst [vmem:[#allocation2 + $0x20] sm:$0xff] 0.0
        %317 = vst [vmem:[#allocation2 + $0x28] sm:$0xff] 0.0
        %318 = vst [vmem:[#allocation2 + $0x30] sm:$0xff] 0.0
        %319 = vst [vmem:[#allocation2 + $0x38] sm:$0xff] 0.0
        %320 = vst [vmem:[#allocation2 + $0x40] sm:$0xff] 0.0
        %321 = vst [vmem:[#allocation2 + $0x48] sm:$0xff] 0.0
        %322 = vst [vmem:[#allocation2 + $0x50] sm:$0xff] 0.0
        %323 = vst [vmem:[#allocation2 + $0x58] sm:$0xff] 0.0
        %324 = vst [vmem:[#allocation2 + $0x60] sm:$0xff] 0.0
        %325 = vst [vmem:[#allocation2 + $0x68] sm:$0xff] 0.0
        %326 = vst [vmem:[#allocation2 + $0x70] sm:$0xff] 0.0
        %327 = vst [vmem:[#allocation2 + $0x78] sm:$0xff] 0.0
        %328 = vst [vmem:[#allocation2 + $0x80] sm:$0xff] 0.0
        %329 = vst [vmem:[#allocation2 + $0x88] sm:$0xff] 0.0
        %330 = vst [vmem:[#allocation2 + $0x90] sm:$0xff] 0.0
        %331 = vst [vmem:[#allocation2 + $0x98] sm:$0xff] 0.0
        %332 = vst [vmem:[#allocation2 + $0xa0] sm:$0xff] 0.0
        %333 = vst [vmem:[#allocation2 + $0xa8] sm:$0xff] 0.0
        %334 = vst [vmem:[#allocation2 + $0xb0] sm:$0xff] 0.0
        %335 = vst [vmem:[#allocation2 + $0xb8] sm:$0xff] 0.0
        %336 = vst [vmem:[#allocation2 + $0xc0] sm:$0xff] 0.0
        %337 = vst [vmem:[#allocation2 + $0xc8] sm:$0xff] 0.0
        %338 = vst [vmem:[#allocation2 + $0xd0] sm:$0xff] 0.0
        %339 = vst [vmem:[#allocation2 + $0xd8] sm:$0xff] 0.0
        %340 = vst [vmem:[#allocation2 + $0xe0] sm:$0xff] 0.0
        %341 = vst [vmem:[#allocation2 + $0xe8] sm:$0xff] 0.0
        %342 = vst [vmem:[#allocation2 + $0xf0] sm:$0xff] 0.0
        %343 = vst [vmem:[#allocation2 + $0xf8] sm:$0xff] 0.0
        %344 = vst [vmem:[#allocation2 + $0x100] sm:$0xff] 0.0
        %345 = vst [vmem:[#allocation2 + $0x108] sm:$0xff] 0.0
        %346 = vst [vmem:[#allocation2 + $0x110] sm:$0xff] 0.0
        %347 = vst [vmem:[#allocation2 + $0x118] sm:$0xff] 0.0
        %348 = vst [vmem:[#allocation2 + $0x120] sm:$0xff] 0.0
        %349 = vst [vmem:[#allocation2 + $0x128] sm:$0xff] 0.0
        %350 = vst [vmem:[#allocation2 + $0x130] sm:$0xff] 0.0
        %351 = vst [vmem:[#allocation2 + $0x138] sm:$0xff] 0.0
        %352 = vst [vmem:[#allocation2 + $0x140] sm:$0xff] 0.0
        %353 = vst [vmem:[#allocation2 + $0x148] sm:$0xff] 0.0
        %354 = vst [vmem:[#allocation2 + $0x150] sm:$0xff] 0.0
        %355 = vst [vmem:[#allocation2 + $0x158] sm:$0xff] 0.0
        %356 = vst [vmem:[#allocation2 + $0x160] sm:$0xff] 0.0
        %357 = vst [vmem:[#allocation2 + $0x168] sm:$0xff] 0.0
        %358 = vst [vmem:[#allocation2 + $0x170] sm:$0xff] 0.0
        %359 = vst [vmem:[#allocation2 + $0x178] sm:$0xff] 0.0
        %360 = vst [vmem:[#allocation2 + $0x180] sm:$0xff] 0.0
        %361 = vst [vmem:[#allocation2 + $0x188] sm:$0xff] 0.0
        %362 = vst [vmem:[#allocation2 + $0x190] sm:$0xff] 0.0
        %363 = vst [vmem:[#allocation2 + $0x198] sm:$0xff] 0.0
        %364 = vst [vmem:[#allocation2 + $0x1a0] sm:$0xff] 0.0
        %365 = vst [vmem:[#allocation2 + $0x1a8] sm:$0xff] 0.0
        %366 = vst [vmem:[#allocation2 + $0x1b0] sm:$0xff] 0.0
        %367 = vst [vmem:[#allocation2 + $0x1b8] sm:$0xff] 0.0
        %368 = vst [vmem:[#allocation2 + $0x1c0] sm:$0xff] 0.0
        %369 = vst [vmem:[#allocation2 + $0x1c8] sm:$0xff] 0.0
        %370 = vst [vmem:[#allocation2 + $0x1d0] sm:$0xff] 0.0
        %371 = vst [vmem:[#allocation2 + $0x1d8] sm:$0xff] 0.0
        %372 = vst [vmem:[#allocation2 + $0x1e0] sm:$0xff] 0.0
        %373 = vst [vmem:[#allocation2 + $0x1e8] sm:$0xff] 0.0
        %374 = vst [vmem:[#allocation2 + $0x1f0] sm:$0xff] 0.0
        %375 = vst [vmem:[#allocation2 + $0x1f8] sm:$0xff] 0.0
        %376 = vst [vmem:[#allocation2 + $0x200] sm:$0xff] 0.0
        %377 = vst [vmem:[#allocation2 + $0x208] sm:$0xff] 0.0
        %378 = vst [vmem:[#allocation2 + $0x210] sm:$0xff] 0.0
        %379 = vst [vmem:[#allocation2 + $0x218] sm:$0xff] 0.0
        %380 = vst [vmem:[#allocation2 + $0x220] sm:$0xff] 0.0
        %381 = vst [vmem:[#allocation2 + $0x228] sm:$0xff] 0.0
        %382 = vst [vmem:[#allocation2 + $0x230] sm:$0xff] 0.0
        %383 = vst [vmem:[#allocation2 + $0x238] sm:$0xff] 0.0
        %384 = vst [vmem:[#allocation2 + $0x240] sm:$0xff] 0.0
        %385 = vst [vmem:[#allocation2 + $0x248] sm:$0xff] 0.0
        %386 = vst [vmem:[#allocation2 + $0x250] sm:$0xff] 0.0
        %387 = vst [vmem:[#allocation2 + $0x258] sm:$0xff] 0.0
        %388 = vst [vmem:[#allocation2 + $0x260] sm:$0xff] 0.0
        %389 = vst [vmem:[#allocation2 + $0x268] sm:$0xff] 0.0
        %390 = vst [vmem:[#allocation2 + $0x270] sm:$0xff] 0.0
        %391 = vst [vmem:[#allocation2 + $0x278] sm:$0xff] 0.0
        %392 = vst [vmem:[#allocation2 + $0x280] sm:$0xff] 0.0
        %393 = vst [vmem:[#allocation2 + $0x288] sm:$0xff] 0.0
        %394 = vst [vmem:[#allocation2 + $0x290] sm:$0xff] 0.0
        %395 = vst [vmem:[#allocation2 + $0x298] sm:$0xff] 0.0
        %396 = vst [vmem:[#allocation2 + $0x2a0] sm:$0xff] 0.0
        %397 = vst [vmem:[#allocation2 + $0x2a8] sm:$0xff] 0.0
        %398 = vst [vmem:[#allocation2 + $0x2b0] sm:$0xff] 0.0
        %399 = vst [vmem:[#allocation2 + $0x2b8] sm:$0xff] 0.0
        %400 = vst [vmem:[#allocation2 + $0x2c0] sm:$0xff] 0.0
        %401 = vst [vmem:[#allocation2 + $0x2c8] sm:$0xff] 0.0
        %402 = vst [vmem:[#allocation2 + $0x2d0] sm:$0xff] 0.0
        %403 = vst [vmem:[#allocation2 + $0x2d8] sm:$0xff] 0.0
        %404 = vst [vmem:[#allocation2 + $0x2e0] sm:$0xff] 0.0
        %405 = vst [vmem:[#allocation2 + $0x2e8] sm:$0xff] 0.0
        %406 = vst [vmem:[#allocation2 + $0x2f0] sm:$0xff] 0.0
        %407 = vst [vmem:[#allocation2 + $0x2f8] sm:$0xff] 0.0
        %408 = vst [vmem:[#allocation2 + $0x300] sm:$0xff] 0.0
        %409 = vst [vmem:[#allocation2 + $0x308] sm:$0xff] 0.0
        %410 = vst [vmem:[#allocation2 + $0x310] sm:$0xff] 0.0
        %411 = vst [vmem:[#allocation2 + $0x318] sm:$0xff] 0.0
        %412 = vst [vmem:[#allocation2 + $0x320] sm:$0xff] 0.0
        %413 = vst [vmem:[#allocation2 + $0x328] sm:$0xff] 0.0
        %414 = vst [vmem:[#allocation2 + $0x330] sm:$0xff] 0.0
        %415 = vst [vmem:[#allocation2 + $0x338] sm:$0xff] 0.0
        %416 = vst [vmem:[#allocation2 + $0x340] sm:$0xff] 0.0
        %417 = vst [vmem:[#allocation2 + $0x348] sm:$0xff] 0.0
        %418 = vst [vmem:[#allocation2 + $0x350] sm:$0xff] 0.0
        %419 = vst [vmem:[#allocation2 + $0x358] sm:$0xff] 0.0
        %420 = vst [vmem:[#allocation2 + $0x360] sm:$0xff] 0.0
        %421 = vst [vmem:[#allocation2 + $0x368] sm:$0xff] 0.0
        %422 = vst [vmem:[#allocation2 + $0x370] sm:$0xff] 0.0
        %423 = vst [vmem:[#allocation2 + $0x378] sm:$0xff] 0.0
        %424 = vst [vmem:[#allocation2 + $0x380] sm:$0xff] 0.0
        %425 = vst [vmem:[#allocation2 + $0x388] sm:$0xff] 0.0
        %426 = vst [vmem:[#allocation2 + $0x390] sm:$0xff] 0.0
        %427 = vst [vmem:[#allocation2 + $0x398] sm:$0xff] 0.0
        %428 = vst [vmem:[#allocation2 + $0x3a0] sm:$0xff] 0.0
        %429 = vst [vmem:[#allocation2 + $0x3a8] sm:$0xff] 0.0
        %430 = vst [vmem:[#allocation2 + $0x3b0] sm:$0xff] 0.0
        %431 = vst [vmem:[#allocation2 + $0x3b8] sm:$0xff] 0.0
        %432 = vst [vmem:[#allocation2 + $0x3c0] sm:$0xff] 0.0
        %433 = vst [vmem:[#allocation2 + $0x3c8] sm:$0xff] 0.0
        %434 = vst [vmem:[#allocation2 + $0x3d0] sm:$0xff] 0.0
        %435 = vst [vmem:[#allocation2 + $0x3d8] sm:$0xff] 0.0
        %436 = vst [vmem:[#allocation2 + $0x3e0] sm:$0xff] 0.0
        %437 = vst [vmem:[#allocation2 + $0x3e8] sm:$0xff] 0.0
        %438 = vst [vmem:[#allocation2 + $0x3f0] sm:$0xff] 0.0
        %439 = vst [vmem:[#allocation2 + $0x3f8] sm:$0xff] 0.0
      $region52: #{stn3d_forward.2} parent=47 // pred_fallthru
        _
      %v440 = vld [vmem:[%s300] sm:$0x77]
      %v441 = vld [vmem:[%s300 + $0x8] sm:$0x77]
      %444 = vst [vmem:[#allocation1] ss:$2 sm:$0xff] %v440
      %s445 = scalar_lea.vmem [#allocation1], 16
      %446 = vst [vmem:[%s445] ss:$2 sm:$0xff] %v441
      %v447 = vld.sshfl [vmem:[#allocation1] sm:$0xff pattern:$0x75316420]
      %v448 = vld.sshfl [vmem:[#allocation1 + $0x8] sm:$0xff pattern:$0x75316420]
      %v449 = vld.sshfl [vmem:[#allocation1 + $0x10] sm:$0xff pattern:$0x75316420]
      %v450 = vld.sshfl [vmem:[#allocation1 + $0x18] sm:$0xff pattern:$0x75316420]
      %v455 = vpack.c.bf16 %v447, %v447
      %v456 = vpack.c.bf16 %v448, %v448
      %v457 = vpack.c.bf16 %v449, %v449
      %v458 = vpack.c.bf16 %v450, %v450
      %v459 = vld [vmem:[%s1] sm:$0xf]
      %v460 = vld [vmem:[%s1 + $0x4] sm:$0xf]
      %v461 = vld [vmem:[%s1 + $0x8] sm:$0xf]
      %v462 = vld [vmem:[%s1 + $0xc] sm:$0xf]
      %v463 = vld [vmem:[%s1 + $0x10] sm:$0xf]
      %v464 = vld [vmem:[%s1 + $0x14] sm:$0xf]
      %v465 = vld [vmem:[%s1 + $0x18] sm:$0xf]
      %v466 = vld [vmem:[%s1 + $0x1c] sm:$0xf]
      %v467 = vld [vmem:[%s2] sm:$0xff]
      %v468 = vld [vmem:[%s2 + $0x8] sm:$0xff]
      %v469 = vld [vmem:[%s2 + $0x10] sm:$0xff]
      %v470 = vld [vmem:[%s2 + $0x18] sm:$0xff]
      %v471 = vld [vmem:[%s2 + $0x20] sm:$0xff]
      %v472 = vld [vmem:[%s2 + $0x28] sm:$0xff]
      %v473 = vld [vmem:[%s2 + $0x30] sm:$0xff]
      %v474 = vld [vmem:[%s2 + $0x38] sm:$0xff]
      %476 = vset.pattern.permute.xlu0 0
      %477 = vperm.xlu0 %476, %v467
      %v478 = vpop.permute.xlu0 %477
      %481 = vset.pattern.permute.xlu0 0
      %482 = vperm.xlu0 %481, %v468
      %v483 = vpop.permute.xlu0 %482
      %486 = vset.pattern.permute.xlu0 0
      %487 = vperm.xlu0 %486, %v469
      %v488 = vpop.permute.xlu0 %487
      %491 = vset.pattern.permute.xlu0 0
      %492 = vperm.xlu0 %491, %v470
      %v493 = vpop.permute.xlu0 %492
      %496 = vset.pattern.permute.xlu0 0
      %497 = vperm.xlu0 %496, %v471
      %v498 = vpop.permute.xlu0 %497
      %501 = vset.pattern.permute.xlu0 0
      %502 = vperm.xlu0 %501, %v472
      %v503 = vpop.permute.xlu0 %502
      %506 = vset.pattern.permute.xlu0 0
      %507 = vperm.xlu0 %506, %v473
      %v508 = vpop.permute.xlu0 %507
      %511 = vset.pattern.permute.xlu0 0
      %512 = vperm.xlu0 %511, %v474
      %v513 = vpop.permute.xlu0 %512
      %v523 = vunpack.c.l.b16 %v459
      %v524 = vunpack.c.l.b16 %v460
      %v525 = vunpack.c.l.b16 %v461
      %v526 = vunpack.c.l.b16 %v462
      %v527 = vunpack.c.l.b16 %v463
      %v528 = vunpack.c.l.b16 %v464
      %v529 = vunpack.c.l.b16 %v465
      %v530 = vunpack.c.l.b16 %v466
      %v531 = vpack.c.b16 %v524, %v523
      %v532 = vpack.c.b16 %v526, %v525
      %v533 = vpack.c.b16 %v528, %v527
      %v534 = vpack.c.b16 %v530, %v529
      %vm535 = vcmask 23552
      %v537 = vsel %vm535, %v531, 0
      %v540 = vsel %vm535, %v532, 0
      %v543 = vsel %vm535, %v533, 0
      %v546 = vsel %vm535, %v534, 0
      %vm548 = vcmask 1040384
      %vm549 = vcmask 1041408
      %v550 = vsel %vm548, 4294967295, 65535
      %v551 = vsel %vm549, %v550, 0
      %v553 = vand.u32 %v455, %v551
      %v556 = vand.u32 %v456, %v551
      %v559 = vand.u32 %v457, %v551
      %v562 = vand.u32 %v458, %v551
      %564 = vmatpush.bf16.msra.mxu0 0
      %565 = vmatpush.bf16.msra.mxu0 0
      %566 = vmatpush.bf16.msra.mxu0 0
      %567 = vmatpush.bf16.msra.mxu0 0
      %568 = vmatpush.bf16.msra.mxu0 0
      %569 = vmatpush.bf16.msra.mxu0 0
      %570 = vmatpush.bf16.msra.mxu0 0
      %571 = vmatpush.bf16.msra.mxu0 %v553
      %572 = vmatmul.bf16.gmra.mxu0 %v537
      %v573 = vpop.f32.mrf.mxu0
      %v574 = vadd.f32 %v478, %v573
      %v575 = vpop.f32.mrf.mxu0
      %v576 = vadd.f32 %v483, %v575
      %577 = vmatmul.bf16.gmra.mxu0 %v540
      %v578 = vpop.f32.mrf.mxu0
      %v579 = vadd.f32 %v488, %v578
      %v580 = vpop.f32.mrf.mxu0
      %v581 = vadd.f32 %v493, %v580
      %582 = vmatmul.bf16.gmra.mxu0 %v543
      %v583 = vpop.f32.mrf.mxu0
      %v584 = vadd.f32 %v498, %v583
      %v585 = vpop.f32.mrf.mxu0
      %v586 = vadd.f32 %v503, %v585
      %587 = vmatmul.bf16.gmra.mxu0 %v546
      %v588 = vpop.f32.mrf.mxu0
      %v589 = vadd.f32 %v508, %v588
      %v590 = vpop.f32.mrf.mxu0
      %v591 = vadd.f32 %v513, %v590
      %592 = vdwg.mxu0
      %593 = vmatpush.bf16.msra.mxu0 0
      %594 = vmatpush.bf16.msra.mxu0 0
      %595 = vmatpush.bf16.msra.mxu0 0
      %596 = vmatpush.bf16.msra.mxu0 0
      %597 = vmatpush.bf16.msra.mxu0 0
      %598 = vmatpush.bf16.msra.mxu0 0
      %599 = vmatpush.bf16.msra.mxu0 0
      %600 = vmatpush.bf16.msra.mxu0 %v556
      %601 = vmatmul.bf16.gmra.mxu0 %v537
      %v602 = vpop.f32.mrf.mxu0
      %v603 = vadd.f32 %v478, %v602
      %v604 = vpop.f32.mrf.mxu0
      %v605 = vadd.f32 %v483, %v604
      %606 = vmatmul.bf16.gmra.mxu0 %v540
      %v607 = vpop.f32.mrf.mxu0
      %v608 = vadd.f32 %v488, %v607
      %v609 = vpop.f32.mrf.mxu0
      %v610 = vadd.f32 %v493, %v609
      %611 = vmatmul.bf16.gmra.mxu0 %v543
      %v612 = vpop.f32.mrf.mxu0
      %v613 = vadd.f32 %v498, %v612
      %v614 = vpop.f32.mrf.mxu0
      %v615 = vadd.f32 %v503, %v614
      %616 = vmatmul.bf16.gmra.mxu0 %v546
      %v617 = vpop.f32.mrf.mxu0
      %v618 = vadd.f32 %v508, %v617
      %v619 = vpop.f32.mrf.mxu0
      %v620 = vadd.f32 %v513, %v619
      %621 = vdwg.mxu0
      %622 = vmatpush.bf16.msra.mxu0 0
      %623 = vmatpush.bf16.msra.mxu0 0
      %624 = vmatpush.bf16.msra.mxu0 0
      %625 = vmatpush.bf16.msra.mxu0 0
      %626 = vmatpush.bf16.msra.mxu0 0
      %627 = vmatpush.bf16.msra.mxu0 0
      %628 = vmatpush.bf16.msra.mxu0 0
      %629 = vmatpush.bf16.msra.mxu0 %v559
      %630 = vmatmul.bf16.gmra.mxu0 %v537
      %v631 = vpop.f32.mrf.mxu0
      %v632 = vadd.f32 %v478, %v631
      %v633 = vpop.f32.mrf.mxu0
      %v634 = vadd.f32 %v483, %v633
      %635 = vmatmul.bf16.gmra.mxu0 %v540
      %v636 = vpop.f32.mrf.mxu0
      %v637 = vadd.f32 %v488, %v636
      %v638 = vpop.f32.mrf.mxu0
      %v639 = vadd.f32 %v493, %v638
      %640 = vmatmul.bf16.gmra.mxu0 %v543
      %v641 = vpop.f32.mrf.mxu0
      %v642 = vadd.f32 %v498, %v641
      %v643 = vpop.f32.mrf.mxu0
      %v644 = vadd.f32 %v503, %v643
      %645 = vmatmul.bf16.gmra.mxu0 %v546
      %v646 = vpop.f32.mrf.mxu0
      %v647 = vadd.f32 %v508, %v646
      %v648 = vpop.f32.mrf.mxu0
      %v649 = vadd.f32 %v513, %v648
      %650 = vdwg.mxu0
      %651 = vmatpush.bf16.msra.mxu0 0
      %652 = vmatpush.bf16.msra.mxu0 0
      %653 = vmatpush.bf16.msra.mxu0 0
      %654 = vmatpush.bf16.msra.mxu0 0
      %655 = vmatpush.bf16.msra.mxu0 0
      %656 = vmatpush.bf16.msra.mxu0 0
      %657 = vmatpush.bf16.msra.mxu0 0
      %658 = vmatpush.bf16.msra.mxu0 %v562
      %659 = vmatmul.bf16.gmra.mxu0 %v537
      %v660 = vpop.f32.mrf.mxu0
      %v661 = vadd.f32 %v478, %v660
      %v662 = vpop.f32.mrf.mxu0
      %v663 = vadd.f32 %v483, %v662
      %664 = vmatmul.bf16.gmra.mxu0 %v540
      %v665 = vpop.f32.mrf.mxu0
      %v666 = vadd.f32 %v488, %v665
      %v667 = vpop.f32.mrf.mxu0
      %v668 = vadd.f32 %v493, %v667
      %669 = vmatmul.bf16.gmra.mxu0 %v543
      %v670 = vpop.f32.mrf.mxu0
      %v671 = vadd.f32 %v498, %v670
      %v672 = vpop.f32.mrf.mxu0
      %v673 = vadd.f32 %v503, %v672
      %674 = vmatmul.bf16.gmra.mxu0 %v546
      %v675 = vpop.f32.mrf.mxu0
      %v676 = vadd.f32 %v508, %v675
      %v677 = vpop.f32.mrf.mxu0
      %v678 = vadd.f32 %v513, %v677
      %679 = vdwg.mxu0
      %v680 = vmax.f32 %v574, 0.0
      %v681 = vmax.f32 %v603, 0.0
      %v682 = vmax.f32 %v632, 0.0
      %v683 = vmax.f32 %v661, 0.0
      %v684 = vmax.f32 %v576, 0.0
      %v685 = vmax.f32 %v605, 0.0
      %v686 = vmax.f32 %v634, 0.0
      %v687 = vmax.f32 %v663, 0.0
      %v688 = vmax.f32 %v579, 0.0
      %v689 = vmax.f32 %v608, 0.0
      %v690 = vmax.f32 %v637, 0.0
      %v691 = vmax.f32 %v666, 0.0
      %v692 = vmax.f32 %v581, 0.0
      %v693 = vmax.f32 %v610, 0.0
      %v694 = vmax.f32 %v639, 0.0
      %v695 = vmax.f32 %v668, 0.0
      %v696 = vmax.f32 %v584, 0.0
      %v697 = vmax.f32 %v613, 0.0
      %v698 = vmax.f32 %v642, 0.0
      %v699 = vmax.f32 %v671, 0.0
      %v700 = vmax.f32 %v586, 0.0
      %v701 = vmax.f32 %v615, 0.0
      %v702 = vmax.f32 %v644, 0.0
      %v703 = vmax.f32 %v673, 0.0
      %v704 = vmax.f32 %v589, 0.0
      %v705 = vmax.f32 %v618, 0.0
      %v706 = vmax.f32 %v647, 0.0
      %v707 = vmax.f32 %v676, 0.0
      %v708 = vmax.f32 %v591, 0.0
      %v709 = vmax.f32 %v620, 0.0
      %v710 = vmax.f32 %v649, 0.0
      %v711 = vmax.f32 %v678, 0.0
      %v712 = vpack.c.bf16 %v684, %v680
      %v713 = vpack.c.bf16 %v685, %v681
      %v714 = vpack.c.bf16 %v686, %v682
      %v715 = vpack.c.bf16 %v687, %v683
      %v716 = vpack.c.bf16 %v692, %v688
      %v717 = vpack.c.bf16 %v693, %v689
      %v718 = vpack.c.bf16 %v694, %v690
      %v719 = vpack.c.bf16 %v695, %v691
      %v720 = vpack.c.bf16 %v700, %v696
      %v721 = vpack.c.bf16 %v701, %v697
      %v722 = vpack.c.bf16 %v702, %v698
      %v723 = vpack.c.bf16 %v703, %v699
      %v724 = vpack.c.bf16 %v708, %v704
      %v725 = vpack.c.bf16 %v709, %v705
      %v726 = vpack.c.bf16 %v710, %v706
      %v727 = vpack.c.bf16 %v711, %v707
      %v728 = vld [vmem:[%s3] sm:$0xf]
      %v729 = vld [vmem:[%s3 + $0x4] sm:$0xf]
      %v730 = vld [vmem:[%s3 + $0x8] sm:$0xf]
      %v731 = vld [vmem:[%s3 + $0xc] sm:$0xf]
      %v732 = vld [vmem:[%s3 + $0x10] sm:$0xf]
      %v733 = vld [vmem:[%s3 + $0x14] sm:$0xf]
      %v734 = vld [vmem:[%s3 + $0x18] sm:$0xf]
      %v735 = vld [vmem:[%s3 + $0x1c] sm:$0xf]
      %v736 = vld [vmem:[%s3 + $0x20] sm:$0xf]
      %v737 = vld [vmem:[%s3 + $0x24] sm:$0xf]
      %v738 = vld [vmem:[%s3 + $0x28] sm:$0xf]
      %v739 = vld [vmem:[%s3 + $0x2c] sm:$0xf]
      %v740 = vld [vmem:[%s3 + $0x30] sm:$0xf]
      %v741 = vld [vmem:[%s3 + $0x34] sm:$0xf]
      %v742 = vld [vmem:[%s3 + $0x38] sm:$0xf]
      %v743 = vld [vmem:[%s3 + $0x3c] sm:$0xf]
      %v744 = vld [vmem:[%s4] sm:$0xff]
      %v745 = vld [vmem:[%s4 + $0x8] sm:$0xff]
      %v746 = vld [vmem:[%s4 + $0x10] sm:$0xff]
      %v747 = vld [vmem:[%s4 + $0x18] sm:$0xff]
      %v748 = vld [vmem:[%s4 + $0x20] sm:$0xff]
      %v749 = vld [vmem:[%s4 + $0x28] sm:$0xff]
      %v750 = vld [vmem:[%s4 + $0x30] sm:$0xff]
      %v751 = vld [vmem:[%s4 + $0x38] sm:$0xff]
      %v752 = vld [vmem:[%s4 + $0x40] sm:$0xff]
      %v753 = vld [vmem:[%s4 + $0x48] sm:$0xff]
      %v754 = vld [vmem:[%s4 + $0x50] sm:$0xff]
      %v755 = vld [vmem:[%s4 + $0x58] sm:$0xff]
      %v756 = vld [vmem:[%s4 + $0x60] sm:$0xff]
      %v757 = vld [vmem:[%s4 + $0x68] sm:$0xff]
      %v758 = vld [vmem:[%s4 + $0x70] sm:$0xff]
      %v759 = vld [vmem:[%s4 + $0x78] sm:$0xff]
      %761 = vset.pattern.permute.xlu0 0
      %762 = vperm.xlu0 %761, %v744
      %v763 = vpop.permute.xlu0 %762
      %766 = vset.pattern.permute.xlu0 0
      %767 = vperm.xlu0 %766, %v745
      %v768 = vpop.permute.xlu0 %767
      %771 = vset.pattern.permute.xlu0 0
      %772 = vperm.xlu0 %771, %v746
      %v773 = vpop.permute.xlu0 %772
      %776 = vset.pattern.permute.xlu0 0
      %777 = vperm.xlu0 %776, %v747
      %v778 = vpop.permute.xlu0 %777
      %781 = vset.pattern.permute.xlu0 0
      %782 = vperm.xlu0 %781, %v748
      %v783 = vpop.permute.xlu0 %782
      %786 = vset.pattern.permute.xlu0 0
      %787 = vperm.xlu0 %786, %v749
      %v788 = vpop.permute.xlu0 %787
      %791 = vset.pattern.permute.xlu0 0
      %792 = vperm.xlu0 %791, %v750
      %v793 = vpop.permute.xlu0 %792
      %796 = vset.pattern.permute.xlu0 0
      %797 = vperm.xlu0 %796, %v751
      %v798 = vpop.permute.xlu0 %797
      %801 = vset.pattern.permute.xlu0 0
      %802 = vperm.xlu0 %801, %v752
      %v803 = vpop.permute.xlu0 %802
      %806 = vset.pattern.permute.xlu0 0
      %807 = vperm.xlu0 %806, %v753
      %v808 = vpop.permute.xlu0 %807
      %811 = vset.pattern.permute.xlu0 0
      %812 = vperm.xlu0 %811, %v754
      %v813 = vpop.permute.xlu0 %812
      %816 = vset.pattern.permute.xlu0 0
      %817 = vperm.xlu0 %816, %v755
      %v818 = vpop.permute.xlu0 %817
      %821 = vset.pattern.permute.xlu0 0
      %822 = vperm.xlu0 %821, %v756
      %v823 = vpop.permute.xlu0 %822
      %826 = vset.pattern.permute.xlu0 0
      %827 = vperm.xlu0 %826, %v757
      %v828 = vpop.permute.xlu0 %827
      %831 = vset.pattern.permute.xlu0 0
      %832 = vperm.xlu0 %831, %v758
      %v833 = vpop.permute.xlu0 %832
      %836 = vset.pattern.permute.xlu0 0
      %837 = vperm.xlu0 %836, %v759
      %v838 = vpop.permute.xlu0 %837
      %v856 = vunpack.c.l.b16 %v728
      %v857 = vunpack.c.l.b16 %v729
      %v858 = vunpack.c.l.b16 %v730
      %v859 = vunpack.c.l.b16 %v731
      %v860 = vunpack.c.l.b16 %v732
      %v861 = vunpack.c.l.b16 %v733
      %v862 = vunpack.c.l.b16 %v734
      %v863 = vunpack.c.l.b16 %v735
      %v864 = vunpack.c.l.b16 %v736
      %v865 = vunpack.c.l.b16 %v737
      %v866 = vunpack.c.l.b16 %v738
      %v867 = vunpack.c.l.b16 %v739
      %v868 = vunpack.c.l.b16 %v740
      %v869 = vunpack.c.l.b16 %v741
      %v870 = vunpack.c.l.b16 %v742
      %v871 = vunpack.c.l.b16 %v743
      %v872 = vpack.c.b16 %v857, %v856
      %v873 = vpack.c.b16 %v859, %v858
      %v874 = vpack.c.b16 %v861, %v860
      %v875 = vpack.c.b16 %v863, %v862
      %v876 = vpack.c.b16 %v865, %v864
      %v877 = vpack.c.b16 %v867, %v866
      %v878 = vpack.c.b16 %v869, %v868
      %v879 = vpack.c.b16 %v871, %v870
      %vm880 = vcmask 523264
      %v882 = vsel %vm880, %v872, 0
      %v885 = vsel %vm880, %v873, 0
      %v888 = vsel %vm880, %v874, 0
      %v891 = vsel %vm880, %v875, 0
      %v894 = vsel %vm880, %v876, 0
      %v897 = vsel %vm880, %v877, 0
      %v900 = vsel %vm880, %v878, 0
      %v903 = vsel %vm880, %v879, 0
      %905 = vmatpush.bf16.msra.mxu0 0
      %906 = vmatpush.bf16.msra.mxu0 0
      %907 = vmatpush.bf16.msra.mxu0 0
      %908 = vmatpush.bf16.msra.mxu0 0
      %909 = vmatpush.bf16.msra.mxu0 %v724
      %910 = vmatpush.bf16.msra.mxu0 %v720
      %911 = vmatpush.bf16.msra.mxu0 %v716
      %912 = vmatpush.bf16.msra.mxu0 %v712
      %913 = vmatmul.bf16.gmra.mxu0 %v882
      %v914 = vpop.f32.mrf.mxu0
      %v915 = vadd.f32 %v763, %v914
      %v916 = vpop.f32.mrf.mxu0
      %v917 = vadd.f32 %v768, %v916
      %918 = vmatmul.bf16.gmra.mxu0 %v885
      %v919 = vpop.f32.mrf.mxu0
      %v920 = vadd.f32 %v773, %v919
      %v921 = vpop.f32.mrf.mxu0
      %v922 = vadd.f32 %v778, %v921
      %923 = vmatmul.bf16.gmra.mxu0 %v888
      %v924 = vpop.f32.mrf.mxu0
      %v925 = vadd.f32 %v783, %v924
      %v926 = vpop.f32.mrf.mxu0
      %v927 = vadd.f32 %v788, %v926
      %928 = vmatmul.bf16.gmra.mxu0 %v891
      %v929 = vpop.f32.mrf.mxu0
      %v930 = vadd.f32 %v793, %v929
      %v931 = vpop.f32.mrf.mxu0
      %v932 = vadd.f32 %v798, %v931
      %933 = vmatmul.bf16.gmra.mxu0 %v894
      %v934 = vpop.f32.mrf.mxu0
      %v935 = vadd.f32 %v803, %v934
      %v936 = vpop.f32.mrf.mxu0
      %v937 = vadd.f32 %v808, %v936
      %938 = vmatmul.bf16.gmra.mxu0 %v897
      %v939 = vpop.f32.mrf.mxu0
      %v940 = vadd.f32 %v813, %v939
      %v941 = vpop.f32.mrf.mxu0
      %v942 = vadd.f32 %v818, %v941
      %943 = vmatmul.bf16.gmra.mxu0 %v900
      %v944 = vpop.f32.mrf.mxu0
      %v945 = vadd.f32 %v823, %v944
      %v946 = vpop.f32.mrf.mxu0
      %v947 = vadd.f32 %v828, %v946
      %948 = vmatmul.bf16.gmra.mxu0 %v903
      %v949 = vpop.f32.mrf.mxu0
      %v950 = vadd.f32 %v833, %v949
      %v951 = vpop.f32.mrf.mxu0
      %v952 = vadd.f32 %v838, %v951
      %953 = vdwg.mxu0
      %954 = vmatpush.bf16.msra.mxu0 0
      %955 = vmatpush.bf16.msra.mxu0 0
      %956 = vmatpush.bf16.msra.mxu0 0
      %957 = vmatpush.bf16.msra.mxu0 0
      %958 = vmatpush.bf16.msra.mxu0 %v725
      %959 = vmatpush.bf16.msra.mxu0 %v721
      %960 = vmatpush.bf16.msra.mxu0 %v717
      %961 = vmatpush.bf16.msra.mxu0 %v713
      %962 = vmatmul.bf16.gmra.mxu0 %v882
      %v963 = vpop.f32.mrf.mxu0
      %v964 = vadd.f32 %v763, %v963
      %v965 = vpop.f32.mrf.mxu0
      %v966 = vadd.f32 %v768, %v965
      %967 = vmatmul.bf16.gmra.mxu0 %v885
      %v968 = vpop.f32.mrf.mxu0
      %v969 = vadd.f32 %v773, %v968
      %v970 = vpop.f32.mrf.mxu0
      %v971 = vadd.f32 %v778, %v970
      %972 = vmatmul.bf16.gmra.mxu0 %v888
      %v973 = vpop.f32.mrf.mxu0
      %v974 = vadd.f32 %v783, %v973
      %v975 = vpop.f32.mrf.mxu0
      %v976 = vadd.f32 %v788, %v975
      %977 = vmatmul.bf16.gmra.mxu0 %v891
      %v978 = vpop.f32.mrf.mxu0
      %v979 = vadd.f32 %v793, %v978
      %v980 = vpop.f32.mrf.mxu0
      %v981 = vadd.f32 %v798, %v980
      %982 = vmatmul.bf16.gmra.mxu0 %v894
      %v983 = vpop.f32.mrf.mxu0
      %v984 = vadd.f32 %v803, %v983
      %v985 = vpop.f32.mrf.mxu0
      %v986 = vadd.f32 %v808, %v985
      %987 = vmatmul.bf16.gmra.mxu0 %v897
      %v988 = vpop.f32.mrf.mxu0
      %v989 = vadd.f32 %v813, %v988
      %v990 = vpop.f32.mrf.mxu0
      %v991 = vadd.f32 %v818, %v990
      %992 = vmatmul.bf16.gmra.mxu0 %v900
      %v993 = vpop.f32.mrf.mxu0
      %v994 = vadd.f32 %v823, %v993
      %v995 = vpop.f32.mrf.mxu0
      %v996 = vadd.f32 %v828, %v995
      %997 = vmatmul.bf16.gmra.mxu0 %v903
      %v998 = vpop.f32.mrf.mxu0
      %v999 = vadd.f32 %v833, %v998
      %v1000 = vpop.f32.mrf.mxu0
      %v1001 = vadd.f32 %v838, %v1000
      %1002 = vdwg.mxu0
      %1003 = vmatpush.bf16.msra.mxu0 0
      %1004 = vmatpush.bf16.msra.mxu0 0
      %1005 = vmatpush.bf16.msra.mxu0 0
      %1006 = vmatpush.bf16.msra.mxu0 0
      %1007 = vmatpush.bf16.msra.mxu0 %v726
      %1008 = vmatpush.bf16.msra.mxu0 %v722
      %1009 = vmatpush.bf16.msra.mxu0 %v718
      %1010 = vmatpush.bf16.msra.mxu0 %v714
      %1011 = vmatmul.bf16.gmra.mxu0 %v882
      %v1012 = vpop.f32.mrf.mxu0
      %v1013 = vadd.f32 %v763, %v1012
      %v1014 = vpop.f32.mrf.mxu0
      %v1015 = vadd.f32 %v768, %v1014
      %1016 = vmatmul.bf16.gmra.mxu0 %v885
      %v1017 = vpop.f32.mrf.mxu0
      %v1018 = vadd.f32 %v773, %v1017
      %v1019 = vpop.f32.mrf.mxu0
      %v1020 = vadd.f32 %v778, %v1019
      %1021 = vmatmul.bf16.gmra.mxu0 %v888
      %v1022 = vpop.f32.mrf.mxu0
      %v1023 = vadd.f32 %v783, %v1022
      %v1024 = vpop.f32.mrf.mxu0
      %v1025 = vadd.f32 %v788, %v1024
      %1026 = vmatmul.bf16.gmra.mxu0 %v891
      %v1027 = vpop.f32.mrf.mxu0
      %v1028 = vadd.f32 %v793, %v1027
      %v1029 = vpop.f32.mrf.mxu0
      %v1030 = vadd.f32 %v798, %v1029
      %1031 = vmatmul.bf16.gmra.mxu0 %v894
      %v1032 = vpop.f32.mrf.mxu0
      %v1033 = vadd.f32 %v803, %v1032
      %v1034 = vpop.f32.mrf.mxu0
      %v1035 = vadd.f32 %v808, %v1034
      %1036 = vmatmul.bf16.gmra.mxu0 %v897
      %v1037 = vpop.f32.mrf.mxu0
      %v1038 = vadd.f32 %v813, %v1037
      %v1039 = vpop.f32.mrf.mxu0
      %v1040 = vadd.f32 %v818, %v1039
      %1041 = vmatmul.bf16.gmra.mxu0 %v900
      %v1042 = vpop.f32.mrf.mxu0
      %v1043 = vadd.f32 %v823, %v1042
      %v1044 = vpop.f32.mrf.mxu0
      %v1045 = vadd.f32 %v828, %v1044
      %1046 = vmatmul.bf16.gmra.mxu0 %v903
      %v1047 = vpop.f32.mrf.mxu0
      %v1048 = vadd.f32 %v833, %v1047
      %v1049 = vpop.f32.mrf.mxu0
      %v1050 = vadd.f32 %v838, %v1049
      %1051 = vdwg.mxu0
      %1052 = vmatpush.bf16.msra.mxu0 0
      %1053 = vmatpush.bf16.msra.mxu0 0
      %1054 = vmatpush.bf16.msra.mxu0 0
      %1055 = vmatpush.bf16.msra.mxu0 0
      %1056 = vmatpush.bf16.msra.mxu0 %v727
      %1057 = vmatpush.bf16.msra.mxu0 %v723
      %1058 = vmatpush.bf16.msra.mxu0 %v719
      %1059 = vmatpush.bf16.msra.mxu0 %v715
      %1060 = vmatmul.bf16.gmra.mxu0 %v882
      %v1061 = vpop.f32.mrf.mxu0
      %v1062 = vadd.f32 %v763, %v1061
      %v1063 = vpop.f32.mrf.mxu0
      %v1064 = vadd.f32 %v768, %v1063
      %1065 = vmatmul.bf16.gmra.mxu0 %v885
      %v1066 = vpop.f32.mrf.mxu0
      %v1067 = vadd.f32 %v773, %v1066
      %v1068 = vpop.f32.mrf.mxu0
      %v1069 = vadd.f32 %v778, %v1068
      %1070 = vmatmul.bf16.gmra.mxu0 %v888
      %v1071 = vpop.f32.mrf.mxu0
      %v1072 = vadd.f32 %v783, %v1071
      %v1073 = vpop.f32.mrf.mxu0
      %v1074 = vadd.f32 %v788, %v1073
      %1075 = vmatmul.bf16.gmra.mxu0 %v891
      %v1076 = vpop.f32.mrf.mxu0
      %v1077 = vadd.f32 %v793, %v1076
      %v1078 = vpop.f32.mrf.mxu0
      %v1079 = vadd.f32 %v798, %v1078
      %1080 = vmatmul.bf16.gmra.mxu0 %v894
      %v1081 = vpop.f32.mrf.mxu0
      %v1082 = vadd.f32 %v803, %v1081
      %v1083 = vpop.f32.mrf.mxu0
      %v1084 = vadd.f32 %v808, %v1083
      %1085 = vmatmul.bf16.gmra.mxu0 %v897
      %v1086 = vpop.f32.mrf.mxu0
      %v1087 = vadd.f32 %v813, %v1086
      %v1088 = vpop.f32.mrf.mxu0
      %v1089 = vadd.f32 %v818, %v1088
      %1090 = vmatmul.bf16.gmra.mxu0 %v900
      %v1091 = vpop.f32.mrf.mxu0
      %v1092 = vadd.f32 %v823, %v1091
      %v1093 = vpop.f32.mrf.mxu0
      %v1094 = vadd.f32 %v828, %v1093
      %1095 = vmatmul.bf16.gmra.mxu0 %v903
      %v1096 = vpop.f32.mrf.mxu0
      %v1097 = vadd.f32 %v833, %v1096
      %v1098 = vpop.f32.mrf.mxu0
      %v1099 = vadd.f32 %v838, %v1098
      %1100 = vdwg.mxu0
      %v1101 = vmax.f32 %v915, 0.0
      %v1102 = vmax.f32 %v964, 0.0
      %v1103 = vmax.f32 %v1013, 0.0
      %v1104 = vmax.f32 %v1062, 0.0
      %v1105 = vmax.f32 %v917, 0.0
      %v1106 = vmax.f32 %v966, 0.0
      %v1107 = vmax.f32 %v1015, 0.0
      %v1108 = vmax.f32 %v1064, 0.0
      %v1109 = vmax.f32 %v920, 0.0
      %v1110 = vmax.f32 %v969, 0.0
      %v1111 = vmax.f32 %v1018, 0.0
      %v1112 = vmax.f32 %v1067, 0.0
      %v1113 = vmax.f32 %v922, 0.0
      %v1114 = vmax.f32 %v971, 0.0
      %v1115 = vmax.f32 %v1020, 0.0
      %v1116 = vmax.f32 %v1069, 0.0
      %v1117 = vmax.f32 %v925, 0.0
      %v1118 = vmax.f32 %v974, 0.0
      %v1119 = vmax.f32 %v1023, 0.0
      %v1120 = vmax.f32 %v1072, 0.0
      %v1121 = vmax.f32 %v927, 0.0
      %v1122 = vmax.f32 %v976, 0.0
      %v1123 = vmax.f32 %v1025, 0.0
      %v1124 = vmax.f32 %v1074, 0.0
      %v1125 = vmax.f32 %v930, 0.0
      %v1126 = vmax.f32 %v979, 0.0
      %v1127 = vmax.f32 %v1028, 0.0
      %v1128 = vmax.f32 %v1077, 0.0
      %v1129 = vmax.f32 %v932, 0.0
      %v1130 = vmax.f32 %v981, 0.0
      %v1131 = vmax.f32 %v1030, 0.0
      %v1132 = vmax.f32 %v1079, 0.0
      %v1133 = vmax.f32 %v935, 0.0
      %v1134 = vmax.f32 %v984, 0.0
      %v1135 = vmax.f32 %v1033, 0.0
      %v1136 = vmax.f32 %v1082, 0.0
      %v1137 = vmax.f32 %v937, 0.0
      %v1138 = vmax.f32 %v986, 0.0
      %v1139 = vmax.f32 %v1035, 0.0
      %v1140 = vmax.f32 %v1084, 0.0
      %v1141 = vmax.f32 %v940, 0.0
      %v1142 = vmax.f32 %v989, 0.0
      %v1143 = vmax.f32 %v1038, 0.0
      %v1144 = vmax.f32 %v1087, 0.0
      %v1145 = vmax.f32 %v942, 0.0
      %v1146 = vmax.f32 %v991, 0.0
      %v1147 = vmax.f32 %v1040, 0.0
      %v1148 = vmax.f32 %v1089, 0.0
      %v1149 = vmax.f32 %v945, 0.0
      %v1150 = vmax.f32 %v994, 0.0
      %v1151 = vmax.f32 %v1043, 0.0
      %v1152 = vmax.f32 %v1092, 0.0
      %v1153 = vmax.f32 %v947, 0.0
      %v1154 = vmax.f32 %v996, 0.0
      %v1155 = vmax.f32 %v1045, 0.0
      %v1156 = vmax.f32 %v1094, 0.0
      %v1157 = vmax.f32 %v950, 0.0
      %v1158 = vmax.f32 %v999, 0.0
      %v1159 = vmax.f32 %v1048, 0.0
      %v1160 = vmax.f32 %v1097, 0.0
      %v1161 = vmax.f32 %v952, 0.0
      %v1162 = vmax.f32 %v1001, 0.0
      %v1163 = vmax.f32 %v1050, 0.0
      %v1164 = vmax.f32 %v1099, 0.0
      %v1165 = vpack.c.bf16 %v1105, %v1101
      %v1166 = vpack.c.bf16 %v1106, %v1102
      %v1167 = vpack.c.bf16 %v1107, %v1103
      %v1168 = vpack.c.bf16 %v1108, %v1104
      %v1169 = vpack.c.bf16 %v1113, %v1109
      %v1170 = vpack.c.bf16 %v1114, %v1110
      %v1171 = vpack.c.bf16 %v1115, %v1111
      %v1172 = vpack.c.bf16 %v1116, %v1112
      %v1173 = vpack.c.bf16 %v1121, %v1117
      %v1174 = vpack.c.bf16 %v1122, %v1118
      %v1175 = vpack.c.bf16 %v1123, %v1119
      %v1176 = vpack.c.bf16 %v1124, %v1120
      %v1177 = vpack.c.bf16 %v1129, %v1125
      %v1178 = vpack.c.bf16 %v1130, %v1126
      %v1179 = vpack.c.bf16 %v1131, %v1127
      %v1180 = vpack.c.bf16 %v1132, %v1128
      %v1181 = vpack.c.bf16 %v1137, %v1133
      %v1182 = vpack.c.bf16 %v1138, %v1134
      %v1183 = vpack.c.bf16 %v1139, %v1135
      %v1184 = vpack.c.bf16 %v1140, %v1136
      %v1185 = vpack.c.bf16 %v1145, %v1141
      %v1186 = vpack.c.bf16 %v1146, %v1142
      %v1187 = vpack.c.bf16 %v1147, %v1143
      %v1188 = vpack.c.bf16 %v1148, %v1144
      %v1189 = vpack.c.bf16 %v1153, %v1149
      %v1190 = vpack.c.bf16 %v1154, %v1150
      %v1191 = vpack.c.bf16 %v1155, %v1151
      %v1192 = vpack.c.bf16 %v1156, %v1152
      %v1193 = vpack.c.bf16 %v1161, %v1157
      %v1194 = vpack.c.bf16 %v1162, %v1158
      %v1195 = vpack.c.bf16 %v1163, %v1159
      %v1196 = vpack.c.bf16 %v1164, %v1160
      %v1197 = vld [vmem:[%s5] sm:$0xf]
      %v1198 = vld [vmem:[%s5 + $0x4] sm:$0xf]
      %v1199 = vld [vmem:[%s5 + $0x8] sm:$0xf]
      %v1200 = vld [vmem:[%s5 + $0xc] sm:$0xf]
      %v1201 = vld [vmem:[%s5 + $0x10] sm:$0xf]
      %v1202 = vld [vmem:[%s5 + $0x14] sm:$0xf]
      %v1203 = vld [vmem:[%s5 + $0x18] sm:$0xf]
      %v1204 = vld [vmem:[%s5 + $0x1c] sm:$0xf]
      %v1205 = vld [vmem:[%s5 + $0x20] sm:$0xf]
      %v1206 = vld [vmem:[%s5 + $0x24] sm:$0xf]
      %v1207 = vld [vmem:[%s5 + $0x28] sm:$0xf]
      %v1208 = vld [vmem:[%s5 + $0x2c] sm:$0xf]
      %v1209 = vld [vmem:[%s5 + $0x30] sm:$0xf]
      %v1210 = vld [vmem:[%s5 + $0x34] sm:$0xf]
      %v1211 = vld [vmem:[%s5 + $0x38] sm:$0xf]
      %v1212 = vld [vmem:[%s5 + $0x3c] sm:$0xf]
      %v1213 = vld [vmem:[%s5 + $0x40] sm:$0xf]
      %v1214 = vld [vmem:[%s5 + $0x44] sm:$0xf]
      %v1215 = vld [vmem:[%s5 + $0x48] sm:$0xf]
      %v1216 = vld [vmem:[%s5 + $0x4c] sm:$0xf]
      %v1217 = vld [vmem:[%s5 + $0x50] sm:$0xf]
      %v1218 = vld [vmem:[%s5 + $0x54] sm:$0xf]
      %v1219 = vld [vmem:[%s5 + $0x58] sm:$0xf]
      %v1220 = vld [vmem:[%s5 + $0x5c] sm:$0xf]
      %v1221 = vld [vmem:[%s5 + $0x60] sm:$0xf]
      %v1222 = vld [vmem:[%s5 + $0x64] sm:$0xf]
      %v1223 = vld [vmem:[%s5 + $0x68] sm:$0xf]
      %v1224 = vld [vmem:[%s5 + $0x6c] sm:$0xf]
      %v1225 = vld [vmem:[%s5 + $0x70] sm:$0xf]
      %v1226 = vld [vmem:[%s5 + $0x74] sm:$0xf]
      %v1227 = vld [vmem:[%s5 + $0x78] sm:$0xf]
      %v1228 = vld [vmem:[%s5 + $0x7c] sm:$0xf]
      %v1229 = vld [vmem:[%s5 + $0x80] sm:$0xf]
      %v1230 = vld [vmem:[%s5 + $0x84] sm:$0xf]
      %v1231 = vld [vmem:[%s5 + $0x88] sm:$0xf]
      %v1232 = vld [vmem:[%s5 + $0x8c] sm:$0xf]
      %v1233 = vld [vmem:[%s5 + $0x90] sm:$0xf]
      %v1234 = vld [vmem:[%s5 + $0x94] sm:$0xf]
      %v1235 = vld [vmem:[%s5 + $0x98] sm:$0xf]
      %v1236 = vld [vmem:[%s5 + $0x9c] sm:$0xf]
      %v1237 = vld [vmem:[%s5 + $0xa0] sm:$0xf]
      %v1238 = vld [vmem:[%s5 + $0xa4] sm:$0xf]
      %v1239 = vld [vmem:[%s5 + $0xa8] sm:$0xf]
      %v1240 = vld [vmem:[%s5 + $0xac] sm:$0xf]
      %v1241 = vld [vmem:[%s5 + $0xb0] sm:$0xf]
      %v1242 = vld [vmem:[%s5 + $0xb4] sm:$0xf]
      %v1243 = vld [vmem:[%s5 + $0xb8] sm:$0xf]
      %v1244 = vld [vmem:[%s5 + $0xbc] sm:$0xf]
      %v1245 = vld [vmem:[%s5 + $0xc0] sm:$0xf]
      %v1246 = vld [vmem:[%s5 + $0xc4] sm:$0xf]
      %v1247 = vld [vmem:[%s5 + $0xc8] sm:$0xf]
      %v1248 = vld [vmem:[%s5 + $0xcc] sm:$0xf]
      %v1249 = vld [vmem:[%s5 + $0xd0] sm:$0xf]
      %v1250 = vld [vmem:[%s5 + $0xd4] sm:$0xf]
      %v1251 = vld [vmem:[%s5 + $0xd8] sm:$0xf]
      %v1252 = vld [vmem:[%s5 + $0xdc] sm:$0xf]
      %v1253 = vld [vmem:[%s5 + $0xe0] sm:$0xf]
      %v1254 = vld [vmem:[%s5 + $0xe4] sm:$0xf]
      %v1255 = vld [vmem:[%s5 + $0xe8] sm:$0xf]
      %v1256 = vld [vmem:[%s5 + $0xec] sm:$0xf]
      %v1257 = vld [vmem:[%s5 + $0xf0] sm:$0xf]
      %v1258 = vld [vmem:[%s5 + $0xf4] sm:$0xf]
      %v1259 = vld [vmem:[%s5 + $0xf8] sm:$0xf]
      %v1260 = vld [vmem:[%s5 + $0xfc] sm:$0xf]
      %v1261 = vld [vmem:[%s5 + $0x100] sm:$0xf]
      %v1262 = vld [vmem:[%s5 + $0x104] sm:$0xf]
      %v1263 = vld [vmem:[%s5 + $0x108] sm:$0xf]
      %v1264 = vld [vmem:[%s5 + $0x10c] sm:$0xf]
      %v1265 = vld [vmem:[%s5 + $0x110] sm:$0xf]
      %v1266 = vld [vmem:[%s5 + $0x114] sm:$0xf]
      %v1267 = vld [vmem:[%s5 + $0x118] sm:$0xf]
      %v1268 = vld [vmem:[%s5 + $0x11c] sm:$0xf]
      %v1269 = vld [vmem:[%s5 + $0x120] sm:$0xf]
      %v1270 = vld [vmem:[%s5 + $0x124] sm:$0xf]
      %v1271 = vld [vmem:[%s5 + $0x128] sm:$0xf]
      %v1272 = vld [vmem:[%s5 + $0x12c] sm:$0xf]
      %v1273 = vld [vmem:[%s5 + $0x130] sm:$0xf]
      %v1274 = vld [vmem:[%s5 + $0x134] sm:$0xf]
      %v1275 = vld [vmem:[%s5 + $0x138] sm:$0xf]
      %v1276 = vld [vmem:[%s5 + $0x13c] sm:$0xf]
      %v1277 = vld [vmem:[%s5 + $0x140] sm:$0xf]
      %v1278 = vld [vmem:[%s5 + $0x144] sm:$0xf]
      %v1279 = vld [vmem:[%s5 + $0x148] sm:$0xf]
      %v1280 = vld [vmem:[%s5 + $0x14c] sm:$0xf]
      %v1281 = vld [vmem:[%s5 + $0x150] sm:$0xf]
      %v1282 = vld [vmem:[%s5 + $0x154] sm:$0xf]
      %v1283 = vld [vmem:[%s5 + $0x158] sm:$0xf]
      %v1284 = vld [vmem:[%s5 + $0x15c] sm:$0xf]
      %v1285 = vld [vmem:[%s5 + $0x160] sm:$0xf]
      %v1286 = vld [vmem:[%s5 + $0x164] sm:$0xf]
      %v1287 = vld [vmem:[%s5 + $0x168] sm:$0xf]
      %v1288 = vld [vmem:[%s5 + $0x16c] sm:$0xf]
      %v1289 = vld [vmem:[%s5 + $0x170] sm:$0xf]
      %v1290 = vld [vmem:[%s5 + $0x174] sm:$0xf]
      %v1291 = vld [vmem:[%s5 + $0x178] sm:$0xf]
      %v1292 = vld [vmem:[%s5 + $0x17c] sm:$0xf]
      %v1293 = vld [vmem:[%s5 + $0x180] sm:$0xf]
      %v1294 = vld [vmem:[%s5 + $0x184] sm:$0xf]
      %v1295 = vld [vmem:[%s5 + $0x188] sm:$0xf]
      %v1296 = vld [vmem:[%s5 + $0x18c] sm:$0xf]
      %v1297 = vld [vmem:[%s5 + $0x190] sm:$0xf]
      %v1298 = vld [vmem:[%s5 + $0x194] sm:$0xf]
      %v1299 = vld [vmem:[%s5 + $0x198] sm:$0xf]
      %v1300 = vld [vmem:[%s5 + $0x19c] sm:$0xf]
      %v1301 = vld [vmem:[%s5 + $0x1a0] sm:$0xf]
      %v1302 = vld [vmem:[%s5 + $0x1a4] sm:$0xf]
      %v1303 = vld [vmem:[%s5 + $0x1a8] sm:$0xf]
      %v1304 = vld [vmem:[%s5 + $0x1ac] sm:$0xf]
      %v1305 = vld [vmem:[%s5 + $0x1b0] sm:$0xf]
      %v1306 = vld [vmem:[%s5 + $0x1b4] sm:$0xf]
      %v1307 = vld [vmem:[%s5 + $0x1b8] sm:$0xf]
      %v1308 = vld [vmem:[%s5 + $0x1bc] sm:$0xf]
      %v1309 = vld [vmem:[%s5 + $0x1c0] sm:$0xf]
      %v1310 = vld [vmem:[%s5 + $0x1c4] sm:$0xf]
      %v1311 = vld [vmem:[%s5 + $0x1c8] sm:$0xf]
      %v1312 = vld [vmem:[%s5 + $0x1cc] sm:$0xf]
      %v1313 = vld [vmem:[%s5 + $0x1d0] sm:$0xf]
      %v1314 = vld [vmem:[%s5 + $0x1d4] sm:$0xf]
      %v1315 = vld [vmem:[%s5 + $0x1d8] sm:$0xf]
      %v1316 = vld [vmem:[%s5 + $0x1dc] sm:$0xf]
      %v1317 = vld [vmem:[%s5 + $0x1e0] sm:$0xf]
      %v1318 = vld [vmem:[%s5 + $0x1e4] sm:$0xf]
      %v1319 = vld [vmem:[%s5 + $0x1e8] sm:$0xf]
      %v1320 = vld [vmem:[%s5 + $0x1ec] sm:$0xf]
      %v1321 = vld [vmem:[%s5 + $0x1f0] sm:$0xf]
      %v1322 = vld [vmem:[%s5 + $0x1f4] sm:$0xf]
      %v1323 = vld [vmem:[%s5 + $0x1f8] sm:$0xf]
      %v1324 = vld [vmem:[%s5 + $0x1fc] sm:$0xf]
      %v1325 = vld [vmem:[%s6] sm:$0xff]
      %v1326 = vld [vmem:[%s6 + $0x8] sm:$0xff]
      %v1327 = vld [vmem:[%s6 + $0x10] sm:$0xff]
      %v1328 = vld [vmem:[%s6 + $0x18] sm:$0xff]
      %v1329 = vld [vmem:[%s6 + $0x20] sm:$0xff]
      %v1330 = vld [vmem:[%s6 + $0x28] sm:$0xff]
      %v1331 = vld [vmem:[%s6 + $0x30] sm:$0xff]
      %v1332 = vld [vmem:[%s6 + $0x38] sm:$0xff]
      %v1333 = vld [vmem:[%s6 + $0x40] sm:$0xff]
      %v1334 = vld [vmem:[%s6 + $0x48] sm:$0xff]
      %v1335 = vld [vmem:[%s6 + $0x50] sm:$0xff]
      %v1336 = vld [vmem:[%s6 + $0x58] sm:$0xff]
      %v1337 = vld [vmem:[%s6 + $0x60] sm:$0xff]
      %v1338 = vld [vmem:[%s6 + $0x68] sm:$0xff]
      %v1339 = vld [vmem:[%s6 + $0x70] sm:$0xff]
      %v1340 = vld [vmem:[%s6 + $0x78] sm:$0xff]
      %v1341 = vld [vmem:[%s6 + $0x80] sm:$0xff]
      %v1342 = vld [vmem:[%s6 + $0x88] sm:$0xff]
      %v1343 = vld [vmem:[%s6 + $0x90] sm:$0xff]
      %v1344 = vld [vmem:[%s6 + $0x98] sm:$0xff]
      %v1345 = vld [vmem:[%s6 + $0xa0] sm:$0xff]
      %v1346 = vld [vmem:[%s6 + $0xa8] sm:$0xff]
      %v1347 = vld [vmem:[%s6 + $0xb0] sm:$0xff]
      %v1348 = vld [vmem:[%s6 + $0xb8] sm:$0xff]
      %v1349 = vld [vmem:[%s6 + $0xc0] sm:$0xff]
      %v1350 = vld [vmem:[%s6 + $0xc8] sm:$0xff]
      %v1351 = vld [vmem:[%s6 + $0xd0] sm:$0xff]
      %v1352 = vld [vmem:[%s6 + $0xd8] sm:$0xff]
      %v1353 = vld [vmem:[%s6 + $0xe0] sm:$0xff]
      %v1354 = vld [vmem:[%s6 + $0xe8] sm:$0xff]
      %v1355 = vld [vmem:[%s6 + $0xf0] sm:$0xff]
      %v1356 = vld [vmem:[%s6 + $0xf8] sm:$0xff]
      %v1357 = vld [vmem:[%s6 + $0x100] sm:$0xff]
      %v1358 = vld [vmem:[%s6 + $0x108] sm:$0xff]
      %v1359 = vld [vmem:[%s6 + $0x110] sm:$0xff]
      %v1360 = vld [vmem:[%s6 + $0x118] sm:$0xff]
      %v1361 = vld [vmem:[%s6 + $0x120] sm:$0xff]
      %v1362 = vld [vmem:[%s6 + $0x128] sm:$0xff]
      %v1363 = vld [vmem:[%s6 + $0x130] sm:$0xff]
      %v1364 = vld [vmem:[%s6 + $0x138] sm:$0xff]
      %v1365 = vld [vmem:[%s6 + $0x140] sm:$0xff]
      %v1366 = vld [vmem:[%s6 + $0x148] sm:$0xff]
      %v1367 = vld [vmem:[%s6 + $0x150] sm:$0xff]
      %v1368 = vld [vmem:[%s6 + $0x158] sm:$0xff]
      %v1369 = vld [vmem:[%s6 + $0x160] sm:$0xff]
      %v1370 = vld [vmem:[%s6 + $0x168] sm:$0xff]
      %v1371 = vld [vmem:[%s6 + $0x170] sm:$0xff]
      %v1372 = vld [vmem:[%s6 + $0x178] sm:$0xff]
      %v1373 = vld [vmem:[%s6 + $0x180] sm:$0xff]
      %v1374 = vld [vmem:[%s6 + $0x188] sm:$0xff]
      %v1375 = vld [vmem:[%s6 + $0x190] sm:$0xff]
      %v1376 = vld [vmem:[%s6 + $0x198] sm:$0xff]
      %v1377 = vld [vmem:[%s6 + $0x1a0] sm:$0xff]
      %v1378 = vld [vmem:[%s6 + $0x1a8] sm:$0xff]
      %v1379 = vld [vmem:[%s6 + $0x1b0] sm:$0xff]
      %v1380 = vld [vmem:[%s6 + $0x1b8] sm:$0xff]
      %v1381 = vld [vmem:[%s6 + $0x1c0] sm:$0xff]
      %v1382 = vld [vmem:[%s6 + $0x1c8] sm:$0xff]
      %v1383 = vld [vmem:[%s6 + $0x1d0] sm:$0xff]
      %v1384 = vld [vmem:[%s6 + $0x1d8] sm:$0xff]
      %v1385 = vld [vmem:[%s6 + $0x1e0] sm:$0xff]
      %v1386 = vld [vmem:[%s6 + $0x1e8] sm:$0xff]
      %v1387 = vld [vmem:[%s6 + $0x1f0] sm:$0xff]
      %v1388 = vld [vmem:[%s6 + $0x1f8] sm:$0xff]
      %v1389 = vld [vmem:[%s6 + $0x200] sm:$0xff]
      %v1390 = vld [vmem:[%s6 + $0x208] sm:$0xff]
      %v1391 = vld [vmem:[%s6 + $0x210] sm:$0xff]
      %v1392 = vld [vmem:[%s6 + $0x218] sm:$0xff]
      %v1393 = vld [vmem:[%s6 + $0x220] sm:$0xff]
      %v1394 = vld [vmem:[%s6 + $0x228] sm:$0xff]
      %v1395 = vld [vmem:[%s6 + $0x230] sm:$0xff]
      %v1396 = vld [vmem:[%s6 + $0x238] sm:$0xff]
      %v1397 = vld [vmem:[%s6 + $0x240] sm:$0xff]
      %v1398 = vld [vmem:[%s6 + $0x248] sm:$0xff]
      %v1399 = vld [vmem:[%s6 + $0x250] sm:$0xff]
      %v1400 = vld [vmem:[%s6 + $0x258] sm:$0xff]
      %v1401 = vld [vmem:[%s6 + $0x260] sm:$0xff]
      %v1402 = vld [vmem:[%s6 + $0x268] sm:$0xff]
      %v1403 = vld [vmem:[%s6 + $0x270] sm:$0xff]
      %v1404 = vld [vmem:[%s6 + $0x278] sm:$0xff]
      %v1405 = vld [vmem:[%s6 + $0x280] sm:$0xff]
      %v1406 = vld [vmem:[%s6 + $0x288] sm:$0xff]
      %v1407 = vld [vmem:[%s6 + $0x290] sm:$0xff]
      %v1408 = vld [vmem:[%s6 + $0x298] sm:$0xff]
      %v1409 = vld [vmem:[%s6 + $0x2a0] sm:$0xff]
      %v1410 = vld [vmem:[%s6 + $0x2a8] sm:$0xff]
      %v1411 = vld [vmem:[%s6 + $0x2b0] sm:$0xff]
      %v1412 = vld [vmem:[%s6 + $0x2b8] sm:$0xff]
      %v1413 = vld [vmem:[%s6 + $0x2c0] sm:$0xff]
      %v1414 = vld [vmem:[%s6 + $0x2c8] sm:$0xff]
      %v1415 = vld [vmem:[%s6 + $0x2d0] sm:$0xff]
      %v1416 = vld [vmem:[%s6 + $0x2d8] sm:$0xff]
      %v1417 = vld [vmem:[%s6 + $0x2e0] sm:$0xff]
      %v1418 = vld [vmem:[%s6 + $0x2e8] sm:$0xff]
      %v1419 = vld [vmem:[%s6 + $0x2f0] sm:$0xff]
      %v1420 = vld [vmem:[%s6 + $0x2f8] sm:$0xff]
      %v1421 = vld [vmem:[%s6 + $0x300] sm:$0xff]
      %v1422 = vld [vmem:[%s6 + $0x308] sm:$0xff]
      %v1423 = vld [vmem:[%s6 + $0x310] sm:$0xff]
      %v1424 = vld [vmem:[%s6 + $0x318] sm:$0xff]
      %v1425 = vld [vmem:[%s6 + $0x320] sm:$0xff]
      %v1426 = vld [vmem:[%s6 + $0x328] sm:$0xff]
      %v1427 = vld [vmem:[%s6 + $0x330] sm:$0xff]
      %v1428 = vld [vmem:[%s6 + $0x338] sm:$0xff]
      %v1429 = vld [vmem:[%s6 + $0x340] sm:$0xff]
      %v1430 = vld [vmem:[%s6 + $0x348] sm:$0xff]
      %v1431 = vld [vmem:[%s6 + $0x350] sm:$0xff]
      %v1432 = vld [vmem:[%s6 + $0x358] sm:$0xff]
      %v1433 = vld [vmem:[%s6 + $0x360] sm:$0xff]
      %v1434 = vld [vmem:[%s6 + $0x368] sm:$0xff]
      %v1435 = vld [vmem:[%s6 + $0x370] sm:$0xff]
      %v1436 = vld [vmem:[%s6 + $0x378] sm:$0xff]
      %v1437 = vld [vmem:[%s6 + $0x380] sm:$0xff]
      %v1438 = vld [vmem:[%s6 + $0x388] sm:$0xff]
      %v1439 = vld [vmem:[%s6 + $0x390] sm:$0xff]
      %v1440 = vld [vmem:[%s6 + $0x398] sm:$0xff]
      %v1441 = vld [vmem:[%s6 + $0x3a0] sm:$0xff]
      %v1442 = vld [vmem:[%s6 + $0x3a8] sm:$0xff]
      %v1443 = vld [vmem:[%s6 + $0x3b0] sm:$0xff]
      %v1444 = vld [vmem:[%s6 + $0x3b8] sm:$0xff]
      %v1445 = vld [vmem:[%s6 + $0x3c0] sm:$0xff]
      %v1446 = vld [vmem:[%s6 + $0x3c8] sm:$0xff]
      %v1447 = vld [vmem:[%s6 + $0x3d0] sm:$0xff]
      %v1448 = vld [vmem:[%s6 + $0x3d8] sm:$0xff]
      %v1449 = vld [vmem:[%s6 + $0x3e0] sm:$0xff]
      %v1450 = vld [vmem:[%s6 + $0x3e8] sm:$0xff]
      %v1451 = vld [vmem:[%s6 + $0x3f0] sm:$0xff]
      %v1452 = vld [vmem:[%s6 + $0x3f8] sm:$0xff]
      %1454 = vset.pattern.permute.xlu0 0
      %1455 = vperm.xlu0 %1454, %v1325
      %v1456 = vpop.permute.xlu0 %1455
      %1459 = vset.pattern.permute.xlu0 0
      %1460 = vperm.xlu0 %1459, %v1326
      %v1461 = vpop.permute.xlu0 %1460
      %1464 = vset.pattern.permute.xlu0 0
      %1465 = vperm.xlu0 %1464, %v1327
      %v1466 = vpop.permute.xlu0 %1465
      %1469 = vset.pattern.permute.xlu0 0
      %1470 = vperm.xlu0 %1469, %v1328
      %v1471 = vpop.permute.xlu0 %1470
      %1474 = vset.pattern.permute.xlu0 0
      %1475 = vperm.xlu0 %1474, %v1329
      %v1476 = vpop.permute.xlu0 %1475
      %1479 = vset.pattern.permute.xlu0 0
      %1480 = vperm.xlu0 %1479, %v1330
      %v1481 = vpop.permute.xlu0 %1480
      %1484 = vset.pattern.permute.xlu0 0
      %1485 = vperm.xlu0 %1484, %v1331
      %v1486 = vpop.permute.xlu0 %1485
      %1489 = vset.pattern.permute.xlu0 0
      %1490 = vperm.xlu0 %1489, %v1332
      %v1491 = vpop.permute.xlu0 %1490
      %1494 = vset.pattern.permute.xlu0 0
      %1495 = vperm.xlu0 %1494, %v1333
      %v1496 = vpop.permute.xlu0 %1495
      %1499 = vset.pattern.permute.xlu0 0
      %1500 = vperm.xlu0 %1499, %v1334
      %v1501 = vpop.permute.xlu0 %1500
      %1504 = vset.pattern.permute.xlu0 0
      %1505 = vperm.xlu0 %1504, %v1335
      %v1506 = vpop.permute.xlu0 %1505
      %1509 = vset.pattern.permute.xlu0 0
      %1510 = vperm.xlu0 %1509, %v1336
      %v1511 = vpop.permute.xlu0 %1510
      %1514 = vset.pattern.permute.xlu0 0
      %1515 = vperm.xlu0 %1514, %v1337
      %v1516 = vpop.permute.xlu0 %1515
      %1519 = vset.pattern.permute.xlu0 0
      %1520 = vperm.xlu0 %1519, %v1338
      %v1521 = vpop.permute.xlu0 %1520
      %1524 = vset.pattern.permute.xlu0 0
      %1525 = vperm.xlu0 %1524, %v1339
      %v1526 = vpop.permute.xlu0 %1525
      %1529 = vset.pattern.permute.xlu0 0
      %1530 = vperm.xlu0 %1529, %v1340
      %v1531 = vpop.permute.xlu0 %1530
      %1534 = vset.pattern.permute.xlu0 0
      %1535 = vperm.xlu0 %1534, %v1341
      %v1536 = vpop.permute.xlu0 %1535
      %1539 = vset.pattern.permute.xlu0 0
      %1540 = vperm.xlu0 %1539, %v1342
      %v1541 = vpop.permute.xlu0 %1540
      %1544 = vset.pattern.permute.xlu0 0
      %1545 = vperm.xlu0 %1544, %v1343
      %v1546 = vpop.permute.xlu0 %1545
      %1549 = vset.pattern.permute.xlu0 0
      %1550 = vperm.xlu0 %1549, %v1344
      %v1551 = vpop.permute.xlu0 %1550
      %1554 = vset.pattern.permute.xlu0 0
      %1555 = vperm.xlu0 %1554, %v1345
      %v1556 = vpop.permute.xlu0 %1555
      %1559 = vset.pattern.permute.xlu0 0
      %1560 = vperm.xlu0 %1559, %v1346
      %v1561 = vpop.permute.xlu0 %1560
      %1564 = vset.pattern.permute.xlu0 0
      %1565 = vperm.xlu0 %1564, %v1347
      %v1566 = vpop.permute.xlu0 %1565
      %1569 = vset.pattern.permute.xlu0 0
      %1570 = vperm.xlu0 %1569, %v1348
      %v1571 = vpop.permute.xlu0 %1570
      %1574 = vset.pattern.permute.xlu0 0
      %1575 = vperm.xlu0 %1574, %v1349
      %v1576 = vpop.permute.xlu0 %1575
      %1579 = vset.pattern.permute.xlu0 0
      %1580 = vperm.xlu0 %1579, %v1350
      %v1581 = vpop.permute.xlu0 %1580
      %1584 = vset.pattern.permute.xlu0 0
      %1585 = vperm.xlu0 %1584, %v1351
      %v1586 = vpop.permute.xlu0 %1585
      %1589 = vset.pattern.permute.xlu0 0
      %1590 = vperm.xlu0 %1589, %v1352
      %v1591 = vpop.permute.xlu0 %1590
      %1594 = vset.pattern.permute.xlu0 0
      %1595 = vperm.xlu0 %1594, %v1353
      %v1596 = vpop.permute.xlu0 %1595
      %1599 = vset.pattern.permute.xlu0 0
      %1600 = vperm.xlu0 %1599, %v1354
      %v1601 = vpop.permute.xlu0 %1600
      %1604 = vset.pattern.permute.xlu0 0
      %1605 = vperm.xlu0 %1604, %v1355
      %v1606 = vpop.permute.xlu0 %1605
      %1609 = vset.pattern.permute.xlu0 0
      %1610 = vperm.xlu0 %1609, %v1356
      %v1611 = vpop.permute.xlu0 %1610
      %1614 = vset.pattern.permute.xlu0 0
      %1615 = vperm.xlu0 %1614, %v1357
      %v1616 = vpop.permute.xlu0 %1615
      %1619 = vset.pattern.permute.xlu0 0
      %1620 = vperm.xlu0 %1619, %v1358
      %v1621 = vpop.permute.xlu0 %1620
      %1624 = vset.pattern.permute.xlu0 0
      %1625 = vperm.xlu0 %1624, %v1359
      %v1626 = vpop.permute.xlu0 %1625
      %1629 = vset.pattern.permute.xlu0 0
      %1630 = vperm.xlu0 %1629, %v1360
      %v1631 = vpop.permute.xlu0 %1630
      %1634 = vset.pattern.permute.xlu0 0
      %1635 = vperm.xlu0 %1634, %v1361
      %v1636 = vpop.permute.xlu0 %1635
      %1639 = vset.pattern.permute.xlu0 0
      %1640 = vperm.xlu0 %1639, %v1362
      %v1641 = vpop.permute.xlu0 %1640
      %1644 = vset.pattern.permute.xlu0 0
      %1645 = vperm.xlu0 %1644, %v1363
      %v1646 = vpop.permute.xlu0 %1645
      %1649 = vset.pattern.permute.xlu0 0
      %1650 = vperm.xlu0 %1649, %v1364
      %v1651 = vpop.permute.xlu0 %1650
      %1654 = vset.pattern.permute.xlu0 0
      %1655 = vperm.xlu0 %1654, %v1365
      %v1656 = vpop.permute.xlu0 %1655
      %1659 = vset.pattern.permute.xlu0 0
      %1660 = vperm.xlu0 %1659, %v1366
      %v1661 = vpop.permute.xlu0 %1660
      %1664 = vset.pattern.permute.xlu0 0
      %1665 = vperm.xlu0 %1664, %v1367
      %v1666 = vpop.permute.xlu0 %1665
      %1669 = vset.pattern.permute.xlu0 0
      %1670 = vperm.xlu0 %1669, %v1368
      %v1671 = vpop.permute.xlu0 %1670
      %1674 = vset.pattern.permute.xlu0 0
      %1675 = vperm.xlu0 %1674, %v1369
      %v1676 = vpop.permute.xlu0 %1675
      %1679 = vset.pattern.permute.xlu0 0
      %1680 = vperm.xlu0 %1679, %v1370
      %v1681 = vpop.permute.xlu0 %1680
      %1684 = vset.pattern.permute.xlu0 0
      %1685 = vperm.xlu0 %1684, %v1371
      %v1686 = vpop.permute.xlu0 %1685
      %1689 = vset.pattern.permute.xlu0 0
      %1690 = vperm.xlu0 %1689, %v1372
      %v1691 = vpop.permute.xlu0 %1690
      %1694 = vset.pattern.permute.xlu0 0
      %1695 = vperm.xlu0 %1694, %v1373
      %v1696 = vpop.permute.xlu0 %1695
      %1699 = vset.pattern.permute.xlu0 0
      %1700 = vperm.xlu0 %1699, %v1374
      %v1701 = vpop.permute.xlu0 %1700
      %1704 = vset.pattern.permute.xlu0 0
      %1705 = vperm.xlu0 %1704, %v1375
      %v1706 = vpop.permute.xlu0 %1705
      %1709 = vset.pattern.permute.xlu0 0
      %1710 = vperm.xlu0 %1709, %v1376
      %v1711 = vpop.permute.xlu0 %1710
      %1714 = vset.pattern.permute.xlu0 0
      %1715 = vperm.xlu0 %1714, %v1377
      %v1716 = vpop.permute.xlu0 %1715
      %1719 = vset.pattern.permute.xlu0 0
      %1720 = vperm.xlu0 %1719, %v1378
      %v1721 = vpop.permute.xlu0 %1720
      %1724 = vset.pattern.permute.xlu0 0
      %1725 = vperm.xlu0 %1724, %v1379
      %v1726 = vpop.permute.xlu0 %1725
      %1729 = vset.pattern.permute.xlu0 0
      %1730 = vperm.xlu0 %1729, %v1380
      %v1731 = vpop.permute.xlu0 %1730
      %1734 = vset.pattern.permute.xlu0 0
      %1735 = vperm.xlu0 %1734, %v1381
      %v1736 = vpop.permute.xlu0 %1735
      %1739 = vset.pattern.permute.xlu0 0
      %1740 = vperm.xlu0 %1739, %v1382
      %v1741 = vpop.permute.xlu0 %1740
      %1744 = vset.pattern.permute.xlu0 0
      %1745 = vperm.xlu0 %1744, %v1383
      %v1746 = vpop.permute.xlu0 %1745
      %1749 = vset.pattern.permute.xlu0 0
      %1750 = vperm.xlu0 %1749, %v1384
      %v1751 = vpop.permute.xlu0 %1750
      %1754 = vset.pattern.permute.xlu0 0
      %1755 = vperm.xlu0 %1754, %v1385
      %v1756 = vpop.permute.xlu0 %1755
      %1759 = vset.pattern.permute.xlu0 0
      %1760 = vperm.xlu0 %1759, %v1386
      %v1761 = vpop.permute.xlu0 %1760
      %1764 = vset.pattern.permute.xlu0 0
      %1765 = vperm.xlu0 %1764, %v1387
      %v1766 = vpop.permute.xlu0 %1765
      %1769 = vset.pattern.permute.xlu0 0
      %1770 = vperm.xlu0 %1769, %v1388
      %v1771 = vpop.permute.xlu0 %1770
      %1774 = vset.pattern.permute.xlu0 0
      %1775 = vperm.xlu0 %1774, %v1389
      %v1776 = vpop.permute.xlu0 %1775
      %1779 = vset.pattern.permute.xlu0 0
      %1780 = vperm.xlu0 %1779, %v1390
      %v1781 = vpop.permute.xlu0 %1780
      %1784 = vset.pattern.permute.xlu0 0
      %1785 = vperm.xlu0 %1784, %v1391
      %v1786 = vpop.permute.xlu0 %1785
      %1789 = vset.pattern.permute.xlu0 0
      %1790 = vperm.xlu0 %1789, %v1392
      %v1791 = vpop.permute.xlu0 %1790
      %1794 = vset.pattern.permute.xlu0 0
      %1795 = vperm.xlu0 %1794, %v1393
      %v1796 = vpop.permute.xlu0 %1795
      %1799 = vset.pattern.permute.xlu0 0
      %1800 = vperm.xlu0 %1799, %v1394
      %v1801 = vpop.permute.xlu0 %1800
      %1804 = vset.pattern.permute.xlu0 0
      %1805 = vperm.xlu0 %1804, %v1395
      %v1806 = vpop.permute.xlu0 %1805
      %1809 = vset.pattern.permute.xlu0 0
      %1810 = vperm.xlu0 %1809, %v1396
      %v1811 = vpop.permute.xlu0 %1810
      %1814 = vset.pattern.permute.xlu0 0
      %1815 = vperm.xlu0 %1814, %v1397
      %v1816 = vpop.permute.xlu0 %1815
      %1819 = vset.pattern.permute.xlu0 0
      %1820 = vperm.xlu0 %1819, %v1398
      %v1821 = vpop.permute.xlu0 %1820
      %1824 = vset.pattern.permute.xlu0 0
      %1825 = vperm.xlu0 %1824, %v1399
      %v1826 = vpop.permute.xlu0 %1825
      %1829 = vset.pattern.permute.xlu0 0
      %1830 = vperm.xlu0 %1829, %v1400
      %v1831 = vpop.permute.xlu0 %1830
      %1834 = vset.pattern.permute.xlu0 0
      %1835 = vperm.xlu0 %1834, %v1401
      %v1836 = vpop.permute.xlu0 %1835
      %1839 = vset.pattern.permute.xlu0 0
      %1840 = vperm.xlu0 %1839, %v1402
      %v1841 = vpop.permute.xlu0 %1840
      %1844 = vset.pattern.permute.xlu0 0
      %1845 = vperm.xlu0 %1844, %v1403
      %v1846 = vpop.permute.xlu0 %1845
      %1849 = vset.pattern.permute.xlu0 0
      %1850 = vperm.xlu0 %1849, %v1404
      %v1851 = vpop.permute.xlu0 %1850
      %1854 = vset.pattern.permute.xlu0 0
      %1855 = vperm.xlu0 %1854, %v1405
      %v1856 = vpop.permute.xlu0 %1855
      %1859 = vset.pattern.permute.xlu0 0
      %1860 = vperm.xlu0 %1859, %v1406
      %v1861 = vpop.permute.xlu0 %1860
      %1864 = vset.pattern.permute.xlu0 0
      %1865 = vperm.xlu0 %1864, %v1407
      %v1866 = vpop.permute.xlu0 %1865
      %1869 = vset.pattern.permute.xlu0 0
      %1870 = vperm.xlu0 %1869, %v1408
      %v1871 = vpop.permute.xlu0 %1870
      %1874 = vset.pattern.permute.xlu0 0
      %1875 = vperm.xlu0 %1874, %v1409
      %v1876 = vpop.permute.xlu0 %1875
      %1879 = vset.pattern.permute.xlu0 0
      %1880 = vperm.xlu0 %1879, %v1410
      %v1881 = vpop.permute.xlu0 %1880
      %1884 = vset.pattern.permute.xlu0 0
      %1885 = vperm.xlu0 %1884, %v1411
      %v1886 = vpop.permute.xlu0 %1885
      %1889 = vset.pattern.permute.xlu0 0
      %1890 = vperm.xlu0 %1889, %v1412
      %v1891 = vpop.permute.xlu0 %1890
      %1894 = vset.pattern.permute.xlu0 0
      %1895 = vperm.xlu0 %1894, %v1413
      %v1896 = vpop.permute.xlu0 %1895
      %1899 = vset.pattern.permute.xlu0 0
      %1900 = vperm.xlu0 %1899, %v1414
      %v1901 = vpop.permute.xlu0 %1900
      %1904 = vset.pattern.permute.xlu0 0
      %1905 = vperm.xlu0 %1904, %v1415
      %v1906 = vpop.permute.xlu0 %1905
      %1909 = vset.pattern.permute.xlu0 0
      %1910 = vperm.xlu0 %1909, %v1416
      %v1911 = vpop.permute.xlu0 %1910
      %1914 = vset.pattern.permute.xlu0 0
      %1915 = vperm.xlu0 %1914, %v1417
      %v1916 = vpop.permute.xlu0 %1915
      %1919 = vset.pattern.permute.xlu0 0
      %1920 = vperm.xlu0 %1919, %v1418
      %v1921 = vpop.permute.xlu0 %1920
      %1924 = vset.pattern.permute.xlu0 0
      %1925 = vperm.xlu0 %1924, %v1419
      %v1926 = vpop.permute.xlu0 %1925
      %1929 = vset.pattern.permute.xlu0 0
      %1930 = vperm.xlu0 %1929, %v1420
      %v1931 = vpop.permute.xlu0 %1930
      %1934 = vset.pattern.permute.xlu0 0
      %1935 = vperm.xlu0 %1934, %v1421
      %v1936 = vpop.permute.xlu0 %1935
      %1939 = vset.pattern.permute.xlu0 0
      %1940 = vperm.xlu0 %1939, %v1422
      %v1941 = vpop.permute.xlu0 %1940
      %1944 = vset.pattern.permute.xlu0 0
      %1945 = vperm.xlu0 %1944, %v1423
      %v1946 = vpop.permute.xlu0 %1945
      %1949 = vset.pattern.permute.xlu0 0
      %1950 = vperm.xlu0 %1949, %v1424
      %v1951 = vpop.permute.xlu0 %1950
      %1954 = vset.pattern.permute.xlu0 0
      %1955 = vperm.xlu0 %1954, %v1425
      %v1956 = vpop.permute.xlu0 %1955
      %1959 = vset.pattern.permute.xlu0 0
      %1960 = vperm.xlu0 %1959, %v1426
      %v1961 = vpop.permute.xlu0 %1960
      %1964 = vset.pattern.permute.xlu0 0
      %1965 = vperm.xlu0 %1964, %v1427
      %v1966 = vpop.permute.xlu0 %1965
      %1969 = vset.pattern.permute.xlu0 0
      %1970 = vperm.xlu0 %1969, %v1428
      %v1971 = vpop.permute.xlu0 %1970
      %1974 = vset.pattern.permute.xlu0 0
      %1975 = vperm.xlu0 %1974, %v1429
      %v1976 = vpop.permute.xlu0 %1975
      %1979 = vset.pattern.permute.xlu0 0
      %1980 = vperm.xlu0 %1979, %v1430
      %v1981 = vpop.permute.xlu0 %1980
      %1984 = vset.pattern.permute.xlu0 0
      %1985 = vperm.xlu0 %1984, %v1431
      %v1986 = vpop.permute.xlu0 %1985
      %1989 = vset.pattern.permute.xlu0 0
      %1990 = vperm.xlu0 %1989, %v1432
      %v1991 = vpop.permute.xlu0 %1990
      %1994 = vset.pattern.permute.xlu0 0
      %1995 = vperm.xlu0 %1994, %v1433
      %v1996 = vpop.permute.xlu0 %1995
      %1999 = vset.pattern.permute.xlu0 0
      %2000 = vperm.xlu0 %1999, %v1434
      %v2001 = vpop.permute.xlu0 %2000
      %2004 = vset.pattern.permute.xlu0 0
      %2005 = vperm.xlu0 %2004, %v1435
      %v2006 = vpop.permute.xlu0 %2005
      %2009 = vset.pattern.permute.xlu0 0
      %2010 = vperm.xlu0 %2009, %v1436
      %v2011 = vpop.permute.xlu0 %2010
      %2014 = vset.pattern.permute.xlu0 0
      %2015 = vperm.xlu0 %2014, %v1437
      %v2016 = vpop.permute.xlu0 %2015
      %2019 = vset.pattern.permute.xlu0 0
      %2020 = vperm.xlu0 %2019, %v1438
      %v2021 = vpop.permute.xlu0 %2020
      %2024 = vset.pattern.permute.xlu0 0
      %2025 = vperm.xlu0 %2024, %v1439
      %v2026 = vpop.permute.xlu0 %2025
      %2029 = vset.pattern.permute.xlu0 0
      %2030 = vperm.xlu0 %2029, %v1440
      %v2031 = vpop.permute.xlu0 %2030
      %2034 = vset.pattern.permute.xlu0 0
      %2035 = vperm.xlu0 %2034, %v1441
      %v2036 = vpop.permute.xlu0 %2035
      %2039 = vset.pattern.permute.xlu0 0
      %2040 = vperm.xlu0 %2039, %v1442
      %v2041 = vpop.permute.xlu0 %2040
      %2044 = vset.pattern.permute.xlu0 0
      %2045 = vperm.xlu0 %2044, %v1443
      %v2046 = vpop.permute.xlu0 %2045
      %2049 = vset.pattern.permute.xlu0 0
      %2050 = vperm.xlu0 %2049, %v1444
      %v2051 = vpop.permute.xlu0 %2050
      %2054 = vset.pattern.permute.xlu0 0
      %2055 = vperm.xlu0 %2054, %v1445
      %v2056 = vpop.permute.xlu0 %2055
      %2059 = vset.pattern.permute.xlu0 0
      %2060 = vperm.xlu0 %2059, %v1446
      %v2061 = vpop.permute.xlu0 %2060
      %2064 = vset.pattern.permute.xlu0 0
      %2065 = vperm.xlu0 %2064, %v1447
      %v2066 = vpop.permute.xlu0 %2065
      %2069 = vset.pattern.permute.xlu0 0
      %2070 = vperm.xlu0 %2069, %v1448
      %v2071 = vpop.permute.xlu0 %2070
      %2074 = vset.pattern.permute.xlu0 0
      %2075 = vperm.xlu0 %2074, %v1449
      %v2076 = vpop.permute.xlu0 %2075
      %2079 = vset.pattern.permute.xlu0 0
      %2080 = vperm.xlu0 %2079, %v1450
      %v2081 = vpop.permute.xlu0 %2080
      %2084 = vset.pattern.permute.xlu0 0
      %2085 = vperm.xlu0 %2084, %v1451
      %v2086 = vpop.permute.xlu0 %2085
      %2089 = vset.pattern.permute.xlu0 0
      %2090 = vperm.xlu0 %2089, %v1452
      %v2091 = vpop.permute.xlu0 %2090
      %v2221 = vunpack.c.l.b16 %v1197
      %v2222 = vunpack.c.l.b16 %v1198
      %v2223 = vunpack.c.l.b16 %v1199
      %v2224 = vunpack.c.l.b16 %v1200
      %v2225 = vunpack.c.l.b16 %v1201
      %v2226 = vunpack.c.l.b16 %v1202
      %v2227 = vunpack.c.l.b16 %v1203
      %v2228 = vunpack.c.l.b16 %v1204
      %v2229 = vunpack.c.l.b16 %v1205
      %v2230 = vunpack.c.l.b16 %v1206
      %v2231 = vunpack.c.l.b16 %v1207
      %v2232 = vunpack.c.l.b16 %v1208
      %v2233 = vunpack.c.l.b16 %v1209
      %v2234 = vunpack.c.l.b16 %v1210
      %v2235 = vunpack.c.l.b16 %v1211
      %v2236 = vunpack.c.l.b16 %v1212
      %v2237 = vunpack.c.l.b16 %v1213
      %v2238 = vunpack.c.l.b16 %v1214
      %v2239 = vunpack.c.l.b16 %v1215
      %v2240 = vunpack.c.l.b16 %v1216
      %v2241 = vunpack.c.l.b16 %v1217
      %v2242 = vunpack.c.l.b16 %v1218
      %v2243 = vunpack.c.l.b16 %v1219
      %v2244 = vunpack.c.l.b16 %v1220
      %v2245 = vunpack.c.l.b16 %v1221
      %v2246 = vunpack.c.l.b16 %v1222
      %v2247 = vunpack.c.l.b16 %v1223
      %v2248 = vunpack.c.l.b16 %v1224
      %v2249 = vunpack.c.l.b16 %v1225
      %v2250 = vunpack.c.l.b16 %v1226
      %v2251 = vunpack.c.l.b16 %v1227
      %v2252 = vunpack.c.l.b16 %v1228
      %v2253 = vunpack.c.l.b16 %v1229
      %v2254 = vunpack.c.l.b16 %v1230
      %v2255 = vunpack.c.l.b16 %v1231
      %v2256 = vunpack.c.l.b16 %v1232
      %v2257 = vunpack.c.l.b16 %v1233
      %v2258 = vunpack.c.l.b16 %v1234
      %v2259 = vunpack.c.l.b16 %v1235
      %v2260 = vunpack.c.l.b16 %v1236
      %v2261 = vunpack.c.l.b16 %v1237
      %v2262 = vunpack.c.l.b16 %v1238
      %v2263 = vunpack.c.l.b16 %v1239
      %v2264 = vunpack.c.l.b16 %v1240
      %v2265 = vunpack.c.l.b16 %v1241
      %v2266 = vunpack.c.l.b16 %v1242
      %v2267 = vunpack.c.l.b16 %v1243
      %v2268 = vunpack.c.l.b16 %v1244
      %v2269 = vunpack.c.l.b16 %v1245
      %v2270 = vunpack.c.l.b16 %v1246
      %v2271 = vunpack.c.l.b16 %v1247
      %v2272 = vunpack.c.l.b16 %v1248
      %v2273 = vunpack.c.l.b16 %v1249
      %v2274 = vunpack.c.l.b16 %v1250
      %v2275 = vunpack.c.l.b16 %v1251
      %v2276 = vunpack.c.l.b16 %v1252
      %v2277 = vunpack.c.l.b16 %v1253
      %v2278 = vunpack.c.l.b16 %v1254
      %v2279 = vunpack.c.l.b16 %v1255
      %v2280 = vunpack.c.l.b16 %v1256
      %v2281 = vunpack.c.l.b16 %v1257
      %v2282 = vunpack.c.l.b16 %v1258
      %v2283 = vunpack.c.l.b16 %v1259
      %v2284 = vunpack.c.l.b16 %v1260
      %v2285 = vunpack.c.l.b16 %v1261
      %v2286 = vunpack.c.l.b16 %v1262
      %v2287 = vunpack.c.l.b16 %v1263
      %v2288 = vunpack.c.l.b16 %v1264
      %v2289 = vunpack.c.l.b16 %v1265
      %v2290 = vunpack.c.l.b16 %v1266
      %v2291 = vunpack.c.l.b16 %v1267
      %v2292 = vunpack.c.l.b16 %v1268
      %v2293 = vunpack.c.l.b16 %v1269
      %v2294 = vunpack.c.l.b16 %v1270
      %v2295 = vunpack.c.l.b16 %v1271
      %v2296 = vunpack.c.l.b16 %v1272
      %v2297 = vunpack.c.l.b16 %v1273
      %v2298 = vunpack.c.l.b16 %v1274
      %v2299 = vunpack.c.l.b16 %v1275
      %v2300 = vunpack.c.l.b16 %v1276
      %v2301 = vunpack.c.l.b16 %v1277
      %v2302 = vunpack.c.l.b16 %v1278
      %v2303 = vunpack.c.l.b16 %v1279
      %v2304 = vunpack.c.l.b16 %v1280
      %v2305 = vunpack.c.l.b16 %v1281
      %v2306 = vunpack.c.l.b16 %v1282
      %v2307 = vunpack.c.l.b16 %v1283
      %v2308 = vunpack.c.l.b16 %v1284
      %v2309 = vunpack.c.l.b16 %v1285
      %v2310 = vunpack.c.l.b16 %v1286
      %v2311 = vunpack.c.l.b16 %v1287
      %v2312 = vunpack.c.l.b16 %v1288
      %v2313 = vunpack.c.l.b16 %v1289
      %v2314 = vunpack.c.l.b16 %v1290
      %v2315 = vunpack.c.l.b16 %v1291
      %v2316 = vunpack.c.l.b16 %v1292
      %v2317 = vunpack.c.l.b16 %v1293
      %v2318 = vunpack.c.l.b16 %v1294
      %v2319 = vunpack.c.l.b16 %v1295
      %v2320 = vunpack.c.l.b16 %v1296
      %v2321 = vunpack.c.l.b16 %v1297
      %v2322 = vunpack.c.l.b16 %v1298
      %v2323 = vunpack.c.l.b16 %v1299
      %v2324 = vunpack.c.l.b16 %v1300
      %v2325 = vunpack.c.l.b16 %v1301
      %v2326 = vunpack.c.l.b16 %v1302
      %v2327 = vunpack.c.l.b16 %v1303
      %v2328 = vunpack.c.l.b16 %v1304
      %v2329 = vunpack.c.l.b16 %v1305
      %v2330 = vunpack.c.l.b16 %v1306
      %v2331 = vunpack.c.l.b16 %v1307
      %v2332 = vunpack.c.l.b16 %v1308
      %v2333 = vunpack.c.l.b16 %v1309
      %v2334 = vunpack.c.l.b16 %v1310
      %v2335 = vunpack.c.l.b16 %v1311
      %v2336 = vunpack.c.l.b16 %v1312
      %v2337 = vunpack.c.l.b16 %v1313
      %v2338 = vunpack.c.l.b16 %v1314
      %v2339 = vunpack.c.l.b16 %v1315
      %v2340 = vunpack.c.l.b16 %v1316
      %v2341 = vunpack.c.l.b16 %v1317
      %v2342 = vunpack.c.l.b16 %v1318
      %v2343 = vunpack.c.l.b16 %v1319
      %v2344 = vunpack.c.l.b16 %v1320
      %v2345 = vunpack.c.l.b16 %v1321
      %v2346 = vunpack.c.l.b16 %v1322
      %v2347 = vunpack.c.l.b16 %v1323
      %v2348 = vunpack.c.l.b16 %v1324
      %v2349 = vpack.c.b16 %v2222, %v2221
      %v2350 = vpack.c.b16 %v2224, %v2223
      %v2351 = vpack.c.b16 %v2226, %v2225
      %v2352 = vpack.c.b16 %v2228, %v2227
      %v2353 = vpack.c.b16 %v2230, %v2229
      %v2354 = vpack.c.b16 %v2232, %v2231
      %v2355 = vpack.c.b16 %v2234, %v2233
      %v2356 = vpack.c.b16 %v2236, %v2235
      %v2357 = vpack.c.b16 %v2238, %v2237
      %v2358 = vpack.c.b16 %v2240, %v2239
      %v2359 = vpack.c.b16 %v2242, %v2241
      %v2360 = vpack.c.b16 %v2244, %v2243
      %v2361 = vpack.c.b16 %v2246, %v2245
      %v2362 = vpack.c.b16 %v2248, %v2247
      %v2363 = vpack.c.b16 %v2250, %v2249
      %v2364 = vpack.c.b16 %v2252, %v2251
      %v2365 = vpack.c.b16 %v2254, %v2253
      %v2366 = vpack.c.b16 %v2256, %v2255
      %v2367 = vpack.c.b16 %v2258, %v2257
      %v2368 = vpack.c.b16 %v2260, %v2259
      %v2369 = vpack.c.b16 %v2262, %v2261
      %v2370 = vpack.c.b16 %v2264, %v2263
      %v2371 = vpack.c.b16 %v2266, %v2265
      %v2372 = vpack.c.b16 %v2268, %v2267
      %v2373 = vpack.c.b16 %v2270, %v2269
      %v2374 = vpack.c.b16 %v2272, %v2271
      %v2375 = vpack.c.b16 %v2274, %v2273
      %v2376 = vpack.c.b16 %v2276, %v2275
      %v2377 = vpack.c.b16 %v2278, %v2277
      %v2378 = vpack.c.b16 %v2280, %v2279
      %v2379 = vpack.c.b16 %v2282, %v2281
      %v2380 = vpack.c.b16 %v2284, %v2283
      %v2381 = vpack.c.b16 %v2286, %v2285
      %v2382 = vpack.c.b16 %v2288, %v2287
      %v2383 = vpack.c.b16 %v2290, %v2289
      %v2384 = vpack.c.b16 %v2292, %v2291
      %v2385 = vpack.c.b16 %v2294, %v2293
      %v2386 = vpack.c.b16 %v2296, %v2295
      %v2387 = vpack.c.b16 %v2298, %v2297
      %v2388 = vpack.c.b16 %v2300, %v2299
      %v2389 = vpack.c.b16 %v2302, %v2301
      %v2390 = vpack.c.b16 %v2304, %v2303
      %v2391 = vpack.c.b16 %v2306, %v2305
      %v2392 = vpack.c.b16 %v2308, %v2307
      %v2393 = vpack.c.b16 %v2310, %v2309
      %v2394 = vpack.c.b16 %v2312, %v2311
      %v2395 = vpack.c.b16 %v2314, %v2313
      %v2396 = vpack.c.b16 %v2316, %v2315
      %v2397 = vpack.c.b16 %v2318, %v2317
      %v2398 = vpack.c.b16 %v2320, %v2319
      %v2399 = vpack.c.b16 %v2322, %v2321
      %v2400 = vpack.c.b16 %v2324, %v2323
      %v2401 = vpack.c.b16 %v2326, %v2325
      %v2402 = vpack.c.b16 %v2328, %v2327
      %v2403 = vpack.c.b16 %v2330, %v2329
      %v2404 = vpack.c.b16 %v2332, %v2331
      %v2405 = vpack.c.b16 %v2334, %v2333
      %v2406 = vpack.c.b16 %v2336, %v2335
      %v2407 = vpack.c.b16 %v2338, %v2337
      %v2408 = vpack.c.b16 %v2340, %v2339
      %v2409 = vpack.c.b16 %v2342, %v2341
      %v2410 = vpack.c.b16 %v2344, %v2343
      %v2411 = vpack.c.b16 %v2346, %v2345
      %v2412 = vpack.c.b16 %v2348, %v2347
      %2477 = vmatpush.bf16.msra.mxu0 %v1193
      %2478 = vmatpush.bf16.msra.mxu0 %v1189
      %2479 = vmatpush.bf16.msra.mxu0 %v1185
      %2480 = vmatpush.bf16.msra.mxu0 %v1181
      %2481 = vmatpush.bf16.msra.mxu0 %v1177
      %2482 = vmatpush.bf16.msra.mxu0 %v1173
      %2483 = vmatpush.bf16.msra.mxu0 %v1169
      %2484 = vmatpush.bf16.msra.mxu0 %v1165
      %2485 = vmatmul.bf16.gmra.mxu0 %v2349
      %v2486 = vpop.f32.mrf.mxu0
      %v2487 = vadd.f32 %v1456, %v2486
      %v2488 = vpop.f32.mrf.mxu0
      %v2489 = vadd.f32 %v1461, %v2488
      %2490 = vmatmul.bf16.gmra.mxu0 %v2350
      %v2491 = vpop.f32.mrf.mxu0
      %v2492 = vadd.f32 %v1466, %v2491
      %v2493 = vpop.f32.mrf.mxu0
      %v2494 = vadd.f32 %v1471, %v2493
      %2495 = vmatmul.bf16.gmra.mxu0 %v2351
      %v2496 = vpop.f32.mrf.mxu0
      %v2497 = vadd.f32 %v1476, %v2496
      %v2498 = vpop.f32.mrf.mxu0
      %v2499 = vadd.f32 %v1481, %v2498
      %2500 = vmatmul.bf16.gmra.mxu0 %v2352
      %v2501 = vpop.f32.mrf.mxu0
      %v2502 = vadd.f32 %v1486, %v2501
      %v2503 = vpop.f32.mrf.mxu0
      %v2504 = vadd.f32 %v1491, %v2503
      %2505 = vmatmul.bf16.gmra.mxu0 %v2353
      %v2506 = vpop.f32.mrf.mxu0
      %v2507 = vadd.f32 %v1496, %v2506
      %v2508 = vpop.f32.mrf.mxu0
      %v2509 = vadd.f32 %v1501, %v2508
      %2510 = vmatmul.bf16.gmra.mxu0 %v2354
      %v2511 = vpop.f32.mrf.mxu0
      %v2512 = vadd.f32 %v1506, %v2511
      %v2513 = vpop.f32.mrf.mxu0
      %v2514 = vadd.f32 %v1511, %v2513
      %2515 = vmatmul.bf16.gmra.mxu0 %v2355
      %v2516 = vpop.f32.mrf.mxu0
      %v2517 = vadd.f32 %v1516, %v2516
      %v2518 = vpop.f32.mrf.mxu0
      %v2519 = vadd.f32 %v1521, %v2518
      %2520 = vmatmul.bf16.gmra.mxu0 %v2356
      %v2521 = vpop.f32.mrf.mxu0
      %v2522 = vadd.f32 %v1526, %v2521
      %v2523 = vpop.f32.mrf.mxu0
      %v2524 = vadd.f32 %v1531, %v2523
      %2525 = vmatmul.bf16.gmra.mxu0 %v2357
      %v2526 = vpop.f32.mrf.mxu0
      %v2527 = vadd.f32 %v1536, %v2526
      %v2528 = vpop.f32.mrf.mxu0
      %v2529 = vadd.f32 %v1541, %v2528
      %2530 = vmatmul.bf16.gmra.mxu0 %v2358
      %v2531 = vpop.f32.mrf.mxu0
      %v2532 = vadd.f32 %v1546, %v2531
      %v2533 = vpop.f32.mrf.mxu0
      %v2534 = vadd.f32 %v1551, %v2533
      %2535 = vmatmul.bf16.gmra.mxu0 %v2359
      %v2536 = vpop.f32.mrf.mxu0
      %v2537 = vadd.f32 %v1556, %v2536
      %v2538 = vpop.f32.mrf.mxu0
      %v2539 = vadd.f32 %v1561, %v2538
      %2540 = vmatmul.bf16.gmra.mxu0 %v2360
      %v2541 = vpop.f32.mrf.mxu0
      %v2542 = vadd.f32 %v1566, %v2541
      %v2543 = vpop.f32.mrf.mxu0
      %v2544 = vadd.f32 %v1571, %v2543
      %2545 = vmatmul.bf16.gmra.mxu0 %v2361
      %v2546 = vpop.f32.mrf.mxu0
      %v2547 = vadd.f32 %v1576, %v2546
      %v2548 = vpop.f32.mrf.mxu0
      %v2549 = vadd.f32 %v1581, %v2548
      %2550 = vmatmul.bf16.gmra.mxu0 %v2362
      %v2551 = vpop.f32.mrf.mxu0
      %v2552 = vadd.f32 %v1586, %v2551
      %v2553 = vpop.f32.mrf.mxu0
      %v2554 = vadd.f32 %v1591, %v2553
      %2555 = vmatmul.bf16.gmra.mxu0 %v2363
      %v2556 = vpop.f32.mrf.mxu0
      %v2557 = vadd.f32 %v1596, %v2556
      %v2558 = vpop.f32.mrf.mxu0
      %v2559 = vadd.f32 %v1601, %v2558
      %2560 = vmatmul.bf16.gmra.mxu0 %v2364
      %v2561 = vpop.f32.mrf.mxu0
      %v2562 = vadd.f32 %v1606, %v2561
      %v2563 = vpop.f32.mrf.mxu0
      %v2564 = vadd.f32 %v1611, %v2563
      %2565 = vmatmul.bf16.gmra.mxu0 %v2365
      %v2566 = vpop.f32.mrf.mxu0
      %v2567 = vadd.f32 %v1616, %v2566
      %v2568 = vpop.f32.mrf.mxu0
      %v2569 = vadd.f32 %v1621, %v2568
      %2570 = vmatmul.bf16.gmra.mxu0 %v2366
      %v2571 = vpop.f32.mrf.mxu0
      %v2572 = vadd.f32 %v1626, %v2571
      %v2573 = vpop.f32.mrf.mxu0
      %v2574 = vadd.f32 %v1631, %v2573
      %2575 = vmatmul.bf16.gmra.mxu0 %v2367
      %v2576 = vpop.f32.mrf.mxu0
      %v2577 = vadd.f32 %v1636, %v2576
      %v2578 = vpop.f32.mrf.mxu0
      %v2579 = vadd.f32 %v1641, %v2578
      %2580 = vmatmul.bf16.gmra.mxu0 %v2368
      %v2581 = vpop.f32.mrf.mxu0
      %v2582 = vadd.f32 %v1646, %v2581
      %v2583 = vpop.f32.mrf.mxu0
      %v2584 = vadd.f32 %v1651, %v2583
      %2585 = vmatmul.bf16.gmra.mxu0 %v2369
      %v2586 = vpop.f32.mrf.mxu0
      %v2587 = vadd.f32 %v1656, %v2586
      %v2588 = vpop.f32.mrf.mxu0
      %v2589 = vadd.f32 %v1661, %v2588
      %2590 = vmatmul.bf16.gmra.mxu0 %v2370
      %v2591 = vpop.f32.mrf.mxu0
      %v2592 = vadd.f32 %v1666, %v2591
      %v2593 = vpop.f32.mrf.mxu0
      %v2594 = vadd.f32 %v1671, %v2593
      %2595 = vmatmul.bf16.gmra.mxu0 %v2371
      %v2596 = vpop.f32.mrf.mxu0
      %v2597 = vadd.f32 %v1676, %v2596
      %v2598 = vpop.f32.mrf.mxu0
      %v2599 = vadd.f32 %v1681, %v2598
      %2600 = vmatmul.bf16.gmra.mxu0 %v2372
      %v2601 = vpop.f32.mrf.mxu0
      %v2602 = vadd.f32 %v1686, %v2601
      %v2603 = vpop.f32.mrf.mxu0
      %v2604 = vadd.f32 %v1691, %v2603
      %2605 = vmatmul.bf16.gmra.mxu0 %v2373
      %v2606 = vpop.f32.mrf.mxu0
      %v2607 = vadd.f32 %v1696, %v2606
      %v2608 = vpop.f32.mrf.mxu0
      %v2609 = vadd.f32 %v1701, %v2608
      %2610 = vmatmul.bf16.gmra.mxu0 %v2374
      %v2611 = vpop.f32.mrf.mxu0
      %v2612 = vadd.f32 %v1706, %v2611
      %v2613 = vpop.f32.mrf.mxu0
      %v2614 = vadd.f32 %v1711, %v2613
      %2615 = vmatmul.bf16.gmra.mxu0 %v2375
      %v2616 = vpop.f32.mrf.mxu0
      %v2617 = vadd.f32 %v1716, %v2616
      %v2618 = vpop.f32.mrf.mxu0
      %v2619 = vadd.f32 %v1721, %v2618
      %2620 = vmatmul.bf16.gmra.mxu0 %v2376
      %v2621 = vpop.f32.mrf.mxu0
      %v2622 = vadd.f32 %v1726, %v2621
      %v2623 = vpop.f32.mrf.mxu0
      %v2624 = vadd.f32 %v1731, %v2623
      %2625 = vmatmul.bf16.gmra.mxu0 %v2377
      %v2626 = vpop.f32.mrf.mxu0
      %v2627 = vadd.f32 %v1736, %v2626
      %v2628 = vpop.f32.mrf.mxu0
      %v2629 = vadd.f32 %v1741, %v2628
      %2630 = vmatmul.bf16.gmra.mxu0 %v2378
      %v2631 = vpop.f32.mrf.mxu0
      %v2632 = vadd.f32 %v1746, %v2631
      %v2633 = vpop.f32.mrf.mxu0
      %v2634 = vadd.f32 %v1751, %v2633
      %2635 = vmatmul.bf16.gmra.mxu0 %v2379
      %v2636 = vpop.f32.mrf.mxu0
      %v2637 = vadd.f32 %v1756, %v2636
      %v2638 = vpop.f32.mrf.mxu0
      %v2639 = vadd.f32 %v1761, %v2638
      %2640 = vmatmul.bf16.gmra.mxu0 %v2380
      %v2641 = vpop.f32.mrf.mxu0
      %v2642 = vadd.f32 %v1766, %v2641
      %v2643 = vpop.f32.mrf.mxu0
      %v2644 = vadd.f32 %v1771, %v2643
      %2645 = vmatmul.bf16.gmra.mxu0 %v2381
      %v2646 = vpop.f32.mrf.mxu0
      %v2647 = vadd.f32 %v1776, %v2646
      %v2648 = vpop.f32.mrf.mxu0
      %v2649 = vadd.f32 %v1781, %v2648
      %2650 = vmatmul.bf16.gmra.mxu0 %v2382
      %v2651 = vpop.f32.mrf.mxu0
      %v2652 = vadd.f32 %v1786, %v2651
      %v2653 = vpop.f32.mrf.mxu0
      %v2654 = vadd.f32 %v1791, %v2653
      %2655 = vmatmul.bf16.gmra.mxu0 %v2383
      %v2656 = vpop.f32.mrf.mxu0
      %v2657 = vadd.f32 %v1796, %v2656
      %v2658 = vpop.f32.mrf.mxu0
      %v2659 = vadd.f32 %v1801, %v2658
      %2660 = vmatmul.bf16.gmra.mxu0 %v2384
      %v2661 = vpop.f32.mrf.mxu0
      %v2662 = vadd.f32 %v1806, %v2661
      %v2663 = vpop.f32.mrf.mxu0
      %v2664 = vadd.f32 %v1811, %v2663
      %2665 = vmatmul.bf16.gmra.mxu0 %v2385
      %v2666 = vpop.f32.mrf.mxu0
      %v2667 = vadd.f32 %v1816, %v2666
      %v2668 = vpop.f32.mrf.mxu0
      %v2669 = vadd.f32 %v1821, %v2668
      %2670 = vmatmul.bf16.gmra.mxu0 %v2386
      %v2671 = vpop.f32.mrf.mxu0
      %v2672 = vadd.f32 %v1826, %v2671
      %v2673 = vpop.f32.mrf.mxu0
      %v2674 = vadd.f32 %v1831, %v2673
      %2675 = vmatmul.bf16.gmra.mxu0 %v2387
      %v2676 = vpop.f32.mrf.mxu0
      %v2677 = vadd.f32 %v1836, %v2676
      %v2678 = vpop.f32.mrf.mxu0
      %v2679 = vadd.f32 %v1841, %v2678
      %2680 = vmatmul.bf16.gmra.mxu0 %v2388
      %v2681 = vpop.f32.mrf.mxu0
      %v2682 = vadd.f32 %v1846, %v2681
      %v2683 = vpop.f32.mrf.mxu0
      %v2684 = vadd.f32 %v1851, %v2683
      %2685 = vmatmul.bf16.gmra.mxu0 %v2389
      %v2686 = vpop.f32.mrf.mxu0
      %v2687 = vadd.f32 %v1856, %v2686
      %v2688 = vpop.f32.mrf.mxu0
      %v2689 = vadd.f32 %v1861, %v2688
      %2690 = vmatmul.bf16.gmra.mxu0 %v2390
      %v2691 = vpop.f32.mrf.mxu0
      %v2692 = vadd.f32 %v1866, %v2691
      %v2693 = vpop.f32.mrf.mxu0
      %v2694 = vadd.f32 %v1871, %v2693
      %2695 = vmatmul.bf16.gmra.mxu0 %v2391
      %v2696 = vpop.f32.mrf.mxu0
      %v2697 = vadd.f32 %v1876, %v2696
      %v2698 = vpop.f32.mrf.mxu0
      %v2699 = vadd.f32 %v1881, %v2698
      %2700 = vmatmul.bf16.gmra.mxu0 %v2392
      %v2701 = vpop.f32.mrf.mxu0
      %v2702 = vadd.f32 %v1886, %v2701
      %v2703 = vpop.f32.mrf.mxu0
      %v2704 = vadd.f32 %v1891, %v2703
      %2705 = vmatmul.bf16.gmra.mxu0 %v2393
      %v2706 = vpop.f32.mrf.mxu0
      %v2707 = vadd.f32 %v1896, %v2706
      %v2708 = vpop.f32.mrf.mxu0
      %v2709 = vadd.f32 %v1901, %v2708
      %2710 = vmatmul.bf16.gmra.mxu0 %v2394
      %v2711 = vpop.f32.mrf.mxu0
      %v2712 = vadd.f32 %v1906, %v2711
      %v2713 = vpop.f32.mrf.mxu0
      %v2714 = vadd.f32 %v1911, %v2713
      %2715 = vmatmul.bf16.gmra.mxu0 %v2395
      %v2716 = vpop.f32.mrf.mxu0
      %v2717 = vadd.f32 %v1916, %v2716
      %v2718 = vpop.f32.mrf.mxu0
      %v2719 = vadd.f32 %v1921, %v2718
      %2720 = vmatmul.bf16.gmra.mxu0 %v2396
      %v2721 = vpop.f32.mrf.mxu0
      %v2722 = vadd.f32 %v1926, %v2721
      %v2723 = vpop.f32.mrf.mxu0
      %v2724 = vadd.f32 %v1931, %v2723
      %2725 = vmatmul.bf16.gmra.mxu0 %v2397
      %v2726 = vpop.f32.mrf.mxu0
      %v2727 = vadd.f32 %v1936, %v2726
      %v2728 = vpop.f32.mrf.mxu0
      %v2729 = vadd.f32 %v1941, %v2728
      %2730 = vmatmul.bf16.gmra.mxu0 %v2398
      %v2731 = vpop.f32.mrf.mxu0
      %v2732 = vadd.f32 %v1946, %v2731
      %v2733 = vpop.f32.mrf.mxu0
      %v2734 = vadd.f32 %v1951, %v2733
      %2735 = vmatmul.bf16.gmra.mxu0 %v2399
      %v2736 = vpop.f32.mrf.mxu0
      %v2737 = vadd.f32 %v1956, %v2736
      %v2738 = vpop.f32.mrf.mxu0
      %v2739 = vadd.f32 %v1961, %v2738
      %2740 = vmatmul.bf16.gmra.mxu0 %v2400
      %v2741 = vpop.f32.mrf.mxu0
      %v2742 = vadd.f32 %v1966, %v2741
      %v2743 = vpop.f32.mrf.mxu0
      %v2744 = vadd.f32 %v1971, %v2743
      %2745 = vmatmul.bf16.gmra.mxu0 %v2401
      %v2746 = vpop.f32.mrf.mxu0
      %v2747 = vadd.f32 %v1976, %v2746
      %v2748 = vpop.f32.mrf.mxu0
      %v2749 = vadd.f32 %v1981, %v2748
      %2750 = vmatmul.bf16.gmra.mxu0 %v2402
      %v2751 = vpop.f32.mrf.mxu0
      %v2752 = vadd.f32 %v1986, %v2751
      %v2753 = vpop.f32.mrf.mxu0
      %v2754 = vadd.f32 %v1991, %v2753
      %2755 = vmatmul.bf16.gmra.mxu0 %v2403
      %v2756 = vpop.f32.mrf.mxu0
      %v2757 = vadd.f32 %v1996, %v2756
      %v2758 = vpop.f32.mrf.mxu0
      %v2759 = vadd.f32 %v2001, %v2758
      %2760 = vmatmul.bf16.gmra.mxu0 %v2404
      %v2761 = vpop.f32.mrf.mxu0
      %v2762 = vadd.f32 %v2006, %v2761
      %v2763 = vpop.f32.mrf.mxu0
      %v2764 = vadd.f32 %v2011, %v2763
      %2765 = vmatmul.bf16.gmra.mxu0 %v2405
      %v2766 = vpop.f32.mrf.mxu0
      %v2767 = vadd.f32 %v2016, %v2766
      %v2768 = vpop.f32.mrf.mxu0
      %v2769 = vadd.f32 %v2021, %v2768
      %2770 = vmatmul.bf16.gmra.mxu0 %v2406
      %v2771 = vpop.f32.mrf.mxu0
      %v2772 = vadd.f32 %v2026, %v2771
      %v2773 = vpop.f32.mrf.mxu0
      %v2774 = vadd.f32 %v2031, %v2773
      %2775 = vmatmul.bf16.gmra.mxu0 %v2407
      %v2776 = vpop.f32.mrf.mxu0
      %v2777 = vadd.f32 %v2036, %v2776
      %v2778 = vpop.f32.mrf.mxu0
      %v2779 = vadd.f32 %v2041, %v2778
      %2780 = vmatmul.bf16.gmra.mxu0 %v2408
      %v2781 = vpop.f32.mrf.mxu0
      %v2782 = vadd.f32 %v2046, %v2781
      %v2783 = vpop.f32.mrf.mxu0
      %v2784 = vadd.f32 %v2051, %v2783
      %2785 = vmatmul.bf16.gmra.mxu0 %v2409
      %v2786 = vpop.f32.mrf.mxu0
      %v2787 = vadd.f32 %v2056, %v2786
      %v2788 = vpop.f32.mrf.mxu0
      %v2789 = vadd.f32 %v2061, %v2788
      %2790 = vmatmul.bf16.gmra.mxu0 %v2410
      %v2791 = vpop.f32.mrf.mxu0
      %v2792 = vadd.f32 %v2066, %v2791
      %v2793 = vpop.f32.mrf.mxu0
      %v2794 = vadd.f32 %v2071, %v2793
      %2795 = vmatmul.bf16.gmra.mxu0 %v2411
      %v2796 = vpop.f32.mrf.mxu0
      %v2797 = vadd.f32 %v2076, %v2796
      %v2798 = vpop.f32.mrf.mxu0
      %v2799 = vadd.f32 %v2081, %v2798
      %2800 = vmatmul.bf16.gmra.mxu0 %v2412
      %v2801 = vpop.f32.mrf.mxu0
      %v2802 = vadd.f32 %v2086, %v2801
      %v2803 = vpop.f32.mrf.mxu0
      %v2804 = vadd.f32 %v2091, %v2803
      %2805 = vdwg.mxu0
      %2806 = vmatpush.bf16.msra.mxu0 %v1194
      %2807 = vmatpush.bf16.msra.mxu0 %v1190
      %2808 = vmatpush.bf16.msra.mxu0 %v1186
      %2809 = vmatpush.bf16.msra.mxu0 %v1182
      %2810 = vmatpush.bf16.msra.mxu0 %v1178
      %2811 = vmatpush.bf16.msra.mxu0 %v1174
      %2812 = vmatpush.bf16.msra.mxu0 %v1170
      %2813 = vmatpush.bf16.msra.mxu0 %v1166
      %2814 = vmatmul.bf16.gmra.mxu0 %v2349
      %v2815 = vpop.f32.mrf.mxu0
      %v2816 = vadd.f32 %v1456, %v2815
      %v2817 = vpop.f32.mrf.mxu0
      %v2818 = vadd.f32 %v1461, %v2817
      %2819 = vmatmul.bf16.gmra.mxu0 %v2350
      %v2820 = vpop.f32.mrf.mxu0
      %v2821 = vadd.f32 %v1466, %v2820
      %v2822 = vpop.f32.mrf.mxu0
      %v2823 = vadd.f32 %v1471, %v2822
      %2824 = vmatmul.bf16.gmra.mxu0 %v2351
      %v2825 = vpop.f32.mrf.mxu0
      %v2826 = vadd.f32 %v1476, %v2825
      %v2827 = vpop.f32.mrf.mxu0
      %v2828 = vadd.f32 %v1481, %v2827
      %2829 = vmatmul.bf16.gmra.mxu0 %v2352
      %v2830 = vpop.f32.mrf.mxu0
      %v2831 = vadd.f32 %v1486, %v2830
      %v2832 = vpop.f32.mrf.mxu0
      %v2833 = vadd.f32 %v1491, %v2832
      %2834 = vmatmul.bf16.gmra.mxu0 %v2353
      %v2835 = vpop.f32.mrf.mxu0
      %v2836 = vadd.f32 %v1496, %v2835
      %v2837 = vpop.f32.mrf.mxu0
      %v2838 = vadd.f32 %v1501, %v2837
      %2839 = vmatmul.bf16.gmra.mxu0 %v2354
      %v2840 = vpop.f32.mrf.mxu0
      %v2841 = vadd.f32 %v1506, %v2840
      %v2842 = vpop.f32.mrf.mxu0
      %v2843 = vadd.f32 %v1511, %v2842
      %2844 = vmatmul.bf16.gmra.mxu0 %v2355
      %v2845 = vpop.f32.mrf.mxu0
      %v2846 = vadd.f32 %v1516, %v2845
      %v2847 = vpop.f32.mrf.mxu0
      %v2848 = vadd.f32 %v1521, %v2847
      %2849 = vmatmul.bf16.gmra.mxu0 %v2356
      %v2850 = vpop.f32.mrf.mxu0
      %v2851 = vadd.f32 %v1526, %v2850
      %v2852 = vpop.f32.mrf.mxu0
      %v2853 = vadd.f32 %v1531, %v2852
      %2854 = vmatmul.bf16.gmra.mxu0 %v2357
      %v2855 = vpop.f32.mrf.mxu0
      %v2856 = vadd.f32 %v1536, %v2855
      %v2857 = vpop.f32.mrf.mxu0
      %v2858 = vadd.f32 %v1541, %v2857
      %2859 = vmatmul.bf16.gmra.mxu0 %v2358
      %v2860 = vpop.f32.mrf.mxu0
      %v2861 = vadd.f32 %v1546, %v2860
      %v2862 = vpop.f32.mrf.mxu0
      %v2863 = vadd.f32 %v1551, %v2862
      %2864 = vmatmul.bf16.gmra.mxu0 %v2359
      %v2865 = vpop.f32.mrf.mxu0
      %v2866 = vadd.f32 %v1556, %v2865
      %v2867 = vpop.f32.mrf.mxu0
      %v2868 = vadd.f32 %v1561, %v2867
      %2869 = vmatmul.bf16.gmra.mxu0 %v2360
      %v2870 = vpop.f32.mrf.mxu0
      %v2871 = vadd.f32 %v1566, %v2870
      %v2872 = vpop.f32.mrf.mxu0
      %v2873 = vadd.f32 %v1571, %v2872
      %2874 = vmatmul.bf16.gmra.mxu0 %v2361
      %v2875 = vpop.f32.mrf.mxu0
      %v2876 = vadd.f32 %v1576, %v2875
      %v2877 = vpop.f32.mrf.mxu0
      %v2878 = vadd.f32 %v1581, %v2877
      %2879 = vmatmul.bf16.gmra.mxu0 %v2362
      %v2880 = vpop.f32.mrf.mxu0
      %v2881 = vadd.f32 %v1586, %v2880
      %v2882 = vpop.f32.mrf.mxu0
      %v2883 = vadd.f32 %v1591, %v2882
      %2884 = vmatmul.bf16.gmra.mxu0 %v2363
      %v2885 = vpop.f32.mrf.mxu0
      %v2886 = vadd.f32 %v1596, %v2885
      %v2887 = vpop.f32.mrf.mxu0
      %v2888 = vadd.f32 %v1601, %v2887
      %2889 = vmatmul.bf16.gmra.mxu0 %v2364
      %v2890 = vpop.f32.mrf.mxu0
      %v2891 = vadd.f32 %v1606, %v2890
      %v2892 = vpop.f32.mrf.mxu0
      %v2893 = vadd.f32 %v1611, %v2892
      %2894 = vmatmul.bf16.gmra.mxu0 %v2365
      %v2895 = vpop.f32.mrf.mxu0
      %v2896 = vadd.f32 %v1616, %v2895
      %v2897 = vpop.f32.mrf.mxu0
      %v2898 = vadd.f32 %v1621, %v2897
      %2899 = vmatmul.bf16.gmra.mxu0 %v2366
      %v2900 = vpop.f32.mrf.mxu0
      %v2901 = vadd.f32 %v1626, %v2900
      %v2902 = vpop.f32.mrf.mxu0
      %v2903 = vadd.f32 %v1631, %v2902
      %2904 = vmatmul.bf16.gmra.mxu0 %v2367
      %v2905 = vpop.f32.mrf.mxu0
      %v2906 = vadd.f32 %v1636, %v2905
      %v2907 = vpop.f32.mrf.mxu0
      %v2908 = vadd.f32 %v1641, %v2907
      %2909 = vmatmul.bf16.gmra.mxu0 %v2368
      %v2910 = vpop.f32.mrf.mxu0
      %v2911 = vadd.f32 %v1646, %v2910
      %v2912 = vpop.f32.mrf.mxu0
      %v2913 = vadd.f32 %v1651, %v2912
      %2914 = vmatmul.bf16.gmra.mxu0 %v2369
      %v2915 = vpop.f32.mrf.mxu0
      %v2916 = vadd.f32 %v1656, %v2915
      %v2917 = vpop.f32.mrf.mxu0
      %v2918 = vadd.f32 %v1661, %v2917
      %2919 = vmatmul.bf16.gmra.mxu0 %v2370
      %v2920 = vpop.f32.mrf.mxu0
      %v2921 = vadd.f32 %v1666, %v2920
      %v2922 = vpop.f32.mrf.mxu0
      %v2923 = vadd.f32 %v1671, %v2922
      %2924 = vmatmul.bf16.gmra.mxu0 %v2371
      %v2925 = vpop.f32.mrf.mxu0
      %v2926 = vadd.f32 %v1676, %v2925
      %v2927 = vpop.f32.mrf.mxu0
      %v2928 = vadd.f32 %v1681, %v2927
      %2929 = vmatmul.bf16.gmra.mxu0 %v2372
      %v2930 = vpop.f32.mrf.mxu0
      %v2931 = vadd.f32 %v1686, %v2930
      %v2932 = vpop.f32.mrf.mxu0
      %v2933 = vadd.f32 %v1691, %v2932
      %2934 = vmatmul.bf16.gmra.mxu0 %v2373
      %v2935 = vpop.f32.mrf.mxu0
      %v2936 = vadd.f32 %v1696, %v2935
      %v2937 = vpop.f32.mrf.mxu0
      %v2938 = vadd.f32 %v1701, %v2937
      %2939 = vmatmul.bf16.gmra.mxu0 %v2374
      %v2940 = vpop.f32.mrf.mxu0
      %v2941 = vadd.f32 %v1706, %v2940
      %v2942 = vpop.f32.mrf.mxu0
      %v2943 = vadd.f32 %v1711, %v2942
      %2944 = vmatmul.bf16.gmra.mxu0 %v2375
      %v2945 = vpop.f32.mrf.mxu0
      %v2946 = vadd.f32 %v1716, %v2945
      %v2947 = vpop.f32.mrf.mxu0
      %v2948 = vadd.f32 %v1721, %v2947
      %2949 = vmatmul.bf16.gmra.mxu0 %v2376
      %v2950 = vpop.f32.mrf.mxu0
      %v2951 = vadd.f32 %v1726, %v2950
      %v2952 = vpop.f32.mrf.mxu0
      %v2953 = vadd.f32 %v1731, %v2952
      %2954 = vmatmul.bf16.gmra.mxu0 %v2377
      %v2955 = vpop.f32.mrf.mxu0
      %v2956 = vadd.f32 %v1736, %v2955
      %v2957 = vpop.f32.mrf.mxu0
      %v2958 = vadd.f32 %v1741, %v2957
      %2959 = vmatmul.bf16.gmra.mxu0 %v2378
      %v2960 = vpop.f32.mrf.mxu0
      %v2961 = vadd.f32 %v1746, %v2960
      %v2962 = vpop.f32.mrf.mxu0
      %v2963 = vadd.f32 %v1751, %v2962
      %2964 = vmatmul.bf16.gmra.mxu0 %v2379
      %v2965 = vpop.f32.mrf.mxu0
      %v2966 = vadd.f32 %v1756, %v2965
      %v2967 = vpop.f32.mrf.mxu0
      %v2968 = vadd.f32 %v1761, %v2967
      %2969 = vmatmul.bf16.gmra.mxu0 %v2380
      %v2970 = vpop.f32.mrf.mxu0
      %v2971 = vadd.f32 %v1766, %v2970
      %v2972 = vpop.f32.mrf.mxu0
      %v2973 = vadd.f32 %v1771, %v2972
      %2974 = vmatmul.bf16.gmra.mxu0 %v2381
      %v2975 = vpop.f32.mrf.mxu0
      %v2976 = vadd.f32 %v1776, %v2975
      %v2977 = vpop.f32.mrf.mxu0
      %v2978 = vadd.f32 %v1781, %v2977
      %2979 = vmatmul.bf16.gmra.mxu0 %v2382
      %v2980 = vpop.f32.mrf.mxu0
      %v2981 = vadd.f32 %v1786, %v2980
      %v2982 = vpop.f32.mrf.mxu0
      %v2983 = vadd.f32 %v1791, %v2982
      %2984 = vmatmul.bf16.gmra.mxu0 %v2383
      %v2985 = vpop.f32.mrf.mxu0
      %v2986 = vadd.f32 %v1796, %v2985
      %v2987 = vpop.f32.mrf.mxu0
      %v2988 = vadd.f32 %v1801, %v2987
      %2989 = vmatmul.bf16.gmra.mxu0 %v2384
      %v2990 = vpop.f32.mrf.mxu0
      %v2991 = vadd.f32 %v1806, %v2990
      %v2992 = vpop.f32.mrf.mxu0
      %v2993 = vadd.f32 %v1811, %v2992
      %2994 = vmatmul.bf16.gmra.mxu0 %v2385
      %v2995 = vpop.f32.mrf.mxu0
      %v2996 = vadd.f32 %v1816, %v2995
      %v2997 = vpop.f32.mrf.mxu0
      %v2998 = vadd.f32 %v1821, %v2997
      %2999 = vmatmul.bf16.gmra.mxu0 %v2386
      %v3000 = vpop.f32.mrf.mxu0
      %v3001 = vadd.f32 %v1826, %v3000
      %v3002 = vpop.f32.mrf.mxu0
      %v3003 = vadd.f32 %v1831, %v3002
      %3004 = vmatmul.bf16.gmra.mxu0 %v2387
      %v3005 = vpop.f32.mrf.mxu0
      %v3006 = vadd.f32 %v1836, %v3005
      %v3007 = vpop.f32.mrf.mxu0
      %v3008 = vadd.f32 %v1841, %v3007
      %3009 = vmatmul.bf16.gmra.mxu0 %v2388
      %v3010 = vpop.f32.mrf.mxu0
      %v3011 = vadd.f32 %v1846, %v3010
      %v3012 = vpop.f32.mrf.mxu0
      %v3013 = vadd.f32 %v1851, %v3012
      %3014 = vmatmul.bf16.gmra.mxu0 %v2389
      %v3015 = vpop.f32.mrf.mxu0
      %v3016 = vadd.f32 %v1856, %v3015
      %v3017 = vpop.f32.mrf.mxu0
      %v3018 = vadd.f32 %v1861, %v3017
      %3019 = vmatmul.bf16.gmra.mxu0 %v2390
      %v3020 = vpop.f32.mrf.mxu0
      %v3021 = vadd.f32 %v1866, %v3020
      %v3022 = vpop.f32.mrf.mxu0
      %v3023 = vadd.f32 %v1871, %v3022
      %3024 = vmatmul.bf16.gmra.mxu0 %v2391
      %v3025 = vpop.f32.mrf.mxu0
      %v3026 = vadd.f32 %v1876, %v3025
      %v3027 = vpop.f32.mrf.mxu0
      %v3028 = vadd.f32 %v1881, %v3027
      %3029 = vmatmul.bf16.gmra.mxu0 %v2392
      %v3030 = vpop.f32.mrf.mxu0
      %v3031 = vadd.f32 %v1886, %v3030
      %v3032 = vpop.f32.mrf.mxu0
      %v3033 = vadd.f32 %v1891, %v3032
      %3034 = vmatmul.bf16.gmra.mxu0 %v2393
      %v3035 = vpop.f32.mrf.mxu0
      %v3036 = vadd.f32 %v1896, %v3035
      %v3037 = vpop.f32.mrf.mxu0
      %v3038 = vadd.f32 %v1901, %v3037
      %3039 = vmatmul.bf16.gmra.mxu0 %v2394
      %v3040 = vpop.f32.mrf.mxu0
      %v3041 = vadd.f32 %v1906, %v3040
      %v3042 = vpop.f32.mrf.mxu0
      %v3043 = vadd.f32 %v1911, %v3042
      %3044 = vmatmul.bf16.gmra.mxu0 %v2395
      %v3045 = vpop.f32.mrf.mxu0
      %v3046 = vadd.f32 %v1916, %v3045
      %v3047 = vpop.f32.mrf.mxu0
      %v3048 = vadd.f32 %v1921, %v3047
      %3049 = vmatmul.bf16.gmra.mxu0 %v2396
      %v3050 = vpop.f32.mrf.mxu0
      %v3051 = vadd.f32 %v1926, %v3050
      %v3052 = vpop.f32.mrf.mxu0
      %v3053 = vadd.f32 %v1931, %v3052
      %3054 = vmatmul.bf16.gmra.mxu0 %v2397
      %v3055 = vpop.f32.mrf.mxu0
      %v3056 = vadd.f32 %v1936, %v3055
      %v3057 = vpop.f32.mrf.mxu0
      %v3058 = vadd.f32 %v1941, %v3057
      %3059 = vmatmul.bf16.gmra.mxu0 %v2398
      %v3060 = vpop.f32.mrf.mxu0
      %v3061 = vadd.f32 %v1946, %v3060
      %v3062 = vpop.f32.mrf.mxu0
      %v3063 = vadd.f32 %v1951, %v3062
      %3064 = vmatmul.bf16.gmra.mxu0 %v2399
      %v3065 = vpop.f32.mrf.mxu0
      %v3066 = vadd.f32 %v1956, %v3065
      %v3067 = vpop.f32.mrf.mxu0
      %v3068 = vadd.f32 %v1961, %v3067
      %3069 = vmatmul.bf16.gmra.mxu0 %v2400
      %v3070 = vpop.f32.mrf.mxu0
      %v3071 = vadd.f32 %v1966, %v3070
      %v3072 = vpop.f32.mrf.mxu0
      %v3073 = vadd.f32 %v1971, %v3072
      %3074 = vmatmul.bf16.gmra.mxu0 %v2401
      %v3075 = vpop.f32.mrf.mxu0
      %v3076 = vadd.f32 %v1976, %v3075
      %v3077 = vpop.f32.mrf.mxu0
      %v3078 = vadd.f32 %v1981, %v3077
      %3079 = vmatmul.bf16.gmra.mxu0 %v2402
      %v3080 = vpop.f32.mrf.mxu0
      %v3081 = vadd.f32 %v1986, %v3080
      %v3082 = vpop.f32.mrf.mxu0
      %v3083 = vadd.f32 %v1991, %v3082
      %3084 = vmatmul.bf16.gmra.mxu0 %v2403
      %v3085 = vpop.f32.mrf.mxu0
      %v3086 = vadd.f32 %v1996, %v3085
      %v3087 = vpop.f32.mrf.mxu0
      %v3088 = vadd.f32 %v2001, %v3087
      %3089 = vmatmul.bf16.gmra.mxu0 %v2404
      %v3090 = vpop.f32.mrf.mxu0
      %v3091 = vadd.f32 %v2006, %v3090
      %v3092 = vpop.f32.mrf.mxu0
      %v3093 = vadd.f32 %v2011, %v3092
      %3094 = vmatmul.bf16.gmra.mxu0 %v2405
      %v3095 = vpop.f32.mrf.mxu0
      %v3096 = vadd.f32 %v2016, %v3095
      %v3097 = vpop.f32.mrf.mxu0
      %v3098 = vadd.f32 %v2021, %v3097
      %3099 = vmatmul.bf16.gmra.mxu0 %v2406
      %v3100 = vpop.f32.mrf.mxu0
      %v3101 = vadd.f32 %v2026, %v3100
      %v3102 = vpop.f32.mrf.mxu0
      %v3103 = vadd.f32 %v2031, %v3102
      %3104 = vmatmul.bf16.gmra.mxu0 %v2407
      %v3105 = vpop.f32.mrf.mxu0
      %v3106 = vadd.f32 %v2036, %v3105
      %v3107 = vpop.f32.mrf.mxu0
      %v3108 = vadd.f32 %v2041, %v3107
      %3109 = vmatmul.bf16.gmra.mxu0 %v2408
      %v3110 = vpop.f32.mrf.mxu0
      %v3111 = vadd.f32 %v2046, %v3110
      %v3112 = vpop.f32.mrf.mxu0
      %v3113 = vadd.f32 %v2051, %v3112
      %3114 = vmatmul.bf16.gmra.mxu0 %v2409
      %v3115 = vpop.f32.mrf.mxu0
      %v3116 = vadd.f32 %v2056, %v3115
      %v3117 = vpop.f32.mrf.mxu0
      %v3118 = vadd.f32 %v2061, %v3117
      %3119 = vmatmul.bf16.gmra.mxu0 %v2410
      %v3120 = vpop.f32.mrf.mxu0
      %v3121 = vadd.f32 %v2066, %v3120
      %v3122 = vpop.f32.mrf.mxu0
      %v3123 = vadd.f32 %v2071, %v3122
      %3124 = vmatmul.bf16.gmra.mxu0 %v2411
      %v3125 = vpop.f32.mrf.mxu0
      %v3126 = vadd.f32 %v2076, %v3125
      %v3127 = vpop.f32.mrf.mxu0
      %v3128 = vadd.f32 %v2081, %v3127
      %3129 = vmatmul.bf16.gmra.mxu0 %v2412
      %v3130 = vpop.f32.mrf.mxu0
      %v3131 = vadd.f32 %v2086, %v3130
      %v3132 = vpop.f32.mrf.mxu0
      %v3133 = vadd.f32 %v2091, %v3132
      %3134 = vdwg.mxu0
      %3135 = vmatpush.bf16.msra.mxu0 %v1195
      %3136 = vmatpush.bf16.msra.mxu0 %v1191
      %3137 = vmatpush.bf16.msra.mxu0 %v1187
      %3138 = vmatpush.bf16.msra.mxu0 %v1183
      %3139 = vmatpush.bf16.msra.mxu0 %v1179
      %3140 = vmatpush.bf16.msra.mxu0 %v1175
      %3141 = vmatpush.bf16.msra.mxu0 %v1171
      %3142 = vmatpush.bf16.msra.mxu0 %v1167
      %3143 = vmatmul.bf16.gmra.mxu0 %v2349
      %v3144 = vpop.f32.mrf.mxu0
      %v3145 = vadd.f32 %v1456, %v3144
      %v3146 = vpop.f32.mrf.mxu0
      %v3147 = vadd.f32 %v1461, %v3146
      %3148 = vmatmul.bf16.gmra.mxu0 %v2350
      %v3149 = vpop.f32.mrf.mxu0
      %v3150 = vadd.f32 %v1466, %v3149
      %v3151 = vpop.f32.mrf.mxu0
      %v3152 = vadd.f32 %v1471, %v3151
      %3153 = vmatmul.bf16.gmra.mxu0 %v2351
      %v3154 = vpop.f32.mrf.mxu0
      %v3155 = vadd.f32 %v1476, %v3154
      %v3156 = vpop.f32.mrf.mxu0
      %v3157 = vadd.f32 %v1481, %v3156
      %3158 = vmatmul.bf16.gmra.mxu0 %v2352
      %v3159 = vpop.f32.mrf.mxu0
      %v3160 = vadd.f32 %v1486, %v3159
      %v3161 = vpop.f32.mrf.mxu0
      %v3162 = vadd.f32 %v1491, %v3161
      %3163 = vmatmul.bf16.gmra.mxu0 %v2353
      %v3164 = vpop.f32.mrf.mxu0
      %v3165 = vadd.f32 %v1496, %v3164
      %v3166 = vpop.f32.mrf.mxu0
      %v3167 = vadd.f32 %v1501, %v3166
      %3168 = vmatmul.bf16.gmra.mxu0 %v2354
      %v3169 = vpop.f32.mrf.mxu0
      %v3170 = vadd.f32 %v1506, %v3169
      %v3171 = vpop.f32.mrf.mxu0
      %v3172 = vadd.f32 %v1511, %v3171
      %3173 = vmatmul.bf16.gmra.mxu0 %v2355
      %v3174 = vpop.f32.mrf.mxu0
      %v3175 = vadd.f32 %v1516, %v3174
      %v3176 = vpop.f32.mrf.mxu0
      %v3177 = vadd.f32 %v1521, %v3176
      %3178 = vmatmul.bf16.gmra.mxu0 %v2356
      %v3179 = vpop.f32.mrf.mxu0
      %v3180 = vadd.f32 %v1526, %v3179
      %v3181 = vpop.f32.mrf.mxu0
      %v3182 = vadd.f32 %v1531, %v3181
      %3183 = vmatmul.bf16.gmra.mxu0 %v2357
      %v3184 = vpop.f32.mrf.mxu0
      %v3185 = vadd.f32 %v1536, %v3184
      %v3186 = vpop.f32.mrf.mxu0
      %v3187 = vadd.f32 %v1541, %v3186
      %3188 = vmatmul.bf16.gmra.mxu0 %v2358
      %v3189 = vpop.f32.mrf.mxu0
      %v3190 = vadd.f32 %v1546, %v3189
      %v3191 = vpop.f32.mrf.mxu0
      %v3192 = vadd.f32 %v1551, %v3191
      %3193 = vmatmul.bf16.gmra.mxu0 %v2359
      %v3194 = vpop.f32.mrf.mxu0
      %v3195 = vadd.f32 %v1556, %v3194
      %v3196 = vpop.f32.mrf.mxu0
      %v3197 = vadd.f32 %v1561, %v3196
      %3198 = vmatmul.bf16.gmra.mxu0 %v2360
      %v3199 = vpop.f32.mrf.mxu0
      %v3200 = vadd.f32 %v1566, %v3199
      %v3201 = vpop.f32.mrf.mxu0
      %v3202 = vadd.f32 %v1571, %v3201
      %3203 = vmatmul.bf16.gmra.mxu0 %v2361
      %v3204 = vpop.f32.mrf.mxu0
      %v3205 = vadd.f32 %v1576, %v3204
      %v3206 = vpop.f32.mrf.mxu0
      %v3207 = vadd.f32 %v1581, %v3206
      %3208 = vmatmul.bf16.gmra.mxu0 %v2362
      %v3209 = vpop.f32.mrf.mxu0
      %v3210 = vadd.f32 %v1586, %v3209
      %v3211 = vpop.f32.mrf.mxu0
      %v3212 = vadd.f32 %v1591, %v3211
      %3213 = vmatmul.bf16.gmra.mxu0 %v2363
      %v3214 = vpop.f32.mrf.mxu0
      %v3215 = vadd.f32 %v1596, %v3214
      %v3216 = vpop.f32.mrf.mxu0
      %v3217 = vadd.f32 %v1601, %v3216
      %3218 = vmatmul.bf16.gmra.mxu0 %v2364
      %v3219 = vpop.f32.mrf.mxu0
      %v3220 = vadd.f32 %v1606, %v3219
      %v3221 = vpop.f32.mrf.mxu0
      %v3222 = vadd.f32 %v1611, %v3221
      %3223 = vmatmul.bf16.gmra.mxu0 %v2365
      %v3224 = vpop.f32.mrf.mxu0
      %v3225 = vadd.f32 %v1616, %v3224
      %v3226 = vpop.f32.mrf.mxu0
      %v3227 = vadd.f32 %v1621, %v3226
      %3228 = vmatmul.bf16.gmra.mxu0 %v2366
      %v3229 = vpop.f32.mrf.mxu0
      %v3230 = vadd.f32 %v1626, %v3229
      %v3231 = vpop.f32.mrf.mxu0
      %v3232 = vadd.f32 %v1631, %v3231
      %3233 = vmatmul.bf16.gmra.mxu0 %v2367
      %v3234 = vpop.f32.mrf.mxu0
      %v3235 = vadd.f32 %v1636, %v3234
      %v3236 = vpop.f32.mrf.mxu0
      %v3237 = vadd.f32 %v1641, %v3236
      %3238 = vmatmul.bf16.gmra.mxu0 %v2368
      %v3239 = vpop.f32.mrf.mxu0
      %v3240 = vadd.f32 %v1646, %v3239
      %v3241 = vpop.f32.mrf.mxu0
      %v3242 = vadd.f32 %v1651, %v3241
      %3243 = vmatmul.bf16.gmra.mxu0 %v2369
      %v3244 = vpop.f32.mrf.mxu0
      %v3245 = vadd.f32 %v1656, %v3244
      %v3246 = vpop.f32.mrf.mxu0
      %v3247 = vadd.f32 %v1661, %v3246
      %3248 = vmatmul.bf16.gmra.mxu0 %v2370
      %v3249 = vpop.f32.mrf.mxu0
      %v3250 = vadd.f32 %v1666, %v3249
      %v3251 = vpop.f32.mrf.mxu0
      %v3252 = vadd.f32 %v1671, %v3251
      %3253 = vmatmul.bf16.gmra.mxu0 %v2371
      %v3254 = vpop.f32.mrf.mxu0
      %v3255 = vadd.f32 %v1676, %v3254
      %v3256 = vpop.f32.mrf.mxu0
      %v3257 = vadd.f32 %v1681, %v3256
      %3258 = vmatmul.bf16.gmra.mxu0 %v2372
      %v3259 = vpop.f32.mrf.mxu0
      %v3260 = vadd.f32 %v1686, %v3259
      %v3261 = vpop.f32.mrf.mxu0
      %v3262 = vadd.f32 %v1691, %v3261
      %3263 = vmatmul.bf16.gmra.mxu0 %v2373
      %v3264 = vpop.f32.mrf.mxu0
      %v3265 = vadd.f32 %v1696, %v3264
      %v3266 = vpop.f32.mrf.mxu0
      %v3267 = vadd.f32 %v1701, %v3266
      %3268 = vmatmul.bf16.gmra.mxu0 %v2374
      %v3269 = vpop.f32.mrf.mxu0
      %v3270 = vadd.f32 %v1706, %v3269
      %v3271 = vpop.f32.mrf.mxu0
      %v3272 = vadd.f32 %v1711, %v3271
      %3273 = vmatmul.bf16.gmra.mxu0 %v2375
      %v3274 = vpop.f32.mrf.mxu0
      %v3275 = vadd.f32 %v1716, %v3274
      %v3276 = vpop.f32.mrf.mxu0
      %v3277 = vadd.f32 %v1721, %v3276
      %3278 = vmatmul.bf16.gmra.mxu0 %v2376
      %v3279 = vpop.f32.mrf.mxu0
      %v3280 = vadd.f32 %v1726, %v3279
      %v3281 = vpop.f32.mrf.mxu0
      %v3282 = vadd.f32 %v1731, %v3281
      %3283 = vmatmul.bf16.gmra.mxu0 %v2377
      %v3284 = vpop.f32.mrf.mxu0
      %v3285 = vadd.f32 %v1736, %v3284
      %v3286 = vpop.f32.mrf.mxu0
      %v3287 = vadd.f32 %v1741, %v3286
      %3288 = vmatmul.bf16.gmra.mxu0 %v2378
      %v3289 = vpop.f32.mrf.mxu0
      %v3290 = vadd.f32 %v1746, %v3289
      %v3291 = vpop.f32.mrf.mxu0
      %v3292 = vadd.f32 %v1751, %v3291
      %3293 = vmatmul.bf16.gmra.mxu0 %v2379
      %v3294 = vpop.f32.mrf.mxu0
      %v3295 = vadd.f32 %v1756, %v3294
      %v3296 = vpop.f32.mrf.mxu0
      %v3297 = vadd.f32 %v1761, %v3296
      %3298 = vmatmul.bf16.gmra.mxu0 %v2380
      %v3299 = vpop.f32.mrf.mxu0
      %v3300 = vadd.f32 %v1766, %v3299
      %v3301 = vpop.f32.mrf.mxu0
      %v3302 = vadd.f32 %v1771, %v3301
      %3303 = vmatmul.bf16.gmra.mxu0 %v2381
      %v3304 = vpop.f32.mrf.mxu0
      %v3305 = vadd.f32 %v1776, %v3304
      %v3306 = vpop.f32.mrf.mxu0
      %v3307 = vadd.f32 %v1781, %v3306
      %3308 = vmatmul.bf16.gmra.mxu0 %v2382
      %v3309 = vpop.f32.mrf.mxu0
      %v3310 = vadd.f32 %v1786, %v3309
      %v3311 = vpop.f32.mrf.mxu0
      %v3312 = vadd.f32 %v1791, %v3311
      %3313 = vmatmul.bf16.gmra.mxu0 %v2383
      %v3314 = vpop.f32.mrf.mxu0
      %v3315 = vadd.f32 %v1796, %v3314
      %v3316 = vpop.f32.mrf.mxu0
      %v3317 = vadd.f32 %v1801, %v3316
      %3318 = vmatmul.bf16.gmra.mxu0 %v2384
      %v3319 = vpop.f32.mrf.mxu0
      %v3320 = vadd.f32 %v1806, %v3319
      %v3321 = vpop.f32.mrf.mxu0
      %v3322 = vadd.f32 %v1811, %v3321
      %3323 = vmatmul.bf16.gmra.mxu0 %v2385
      %v3324 = vpop.f32.mrf.mxu0
      %v3325 = vadd.f32 %v1816, %v3324
      %v3326 = vpop.f32.mrf.mxu0
      %v3327 = vadd.f32 %v1821, %v3326
      %3328 = vmatmul.bf16.gmra.mxu0 %v2386
      %v3329 = vpop.f32.mrf.mxu0
      %v3330 = vadd.f32 %v1826, %v3329
      %v3331 = vpop.f32.mrf.mxu0
      %v3332 = vadd.f32 %v1831, %v3331
      %3333 = vmatmul.bf16.gmra.mxu0 %v2387
      %v3334 = vpop.f32.mrf.mxu0
      %v3335 = vadd.f32 %v1836, %v3334
      %v3336 = vpop.f32.mrf.mxu0
      %v3337 = vadd.f32 %v1841, %v3336
      %3338 = vmatmul.bf16.gmra.mxu0 %v2388
      %v3339 = vpop.f32.mrf.mxu0
      %v3340 = vadd.f32 %v1846, %v3339
      %v3341 = vpop.f32.mrf.mxu0
      %v3342 = vadd.f32 %v1851, %v3341
      %3343 = vmatmul.bf16.gmra.mxu0 %v2389
      %v3344 = vpop.f32.mrf.mxu0
      %v3345 = vadd.f32 %v1856, %v3344
      %v3346 = vpop.f32.mrf.mxu0
      %v3347 = vadd.f32 %v1861, %v3346
      %3348 = vmatmul.bf16.gmra.mxu0 %v2390
      %v3349 = vpop.f32.mrf.mxu0
      %v3350 = vadd.f32 %v1866, %v3349
      %v3351 = vpop.f32.mrf.mxu0
      %v3352 = vadd.f32 %v1871, %v3351
      %3353 = vmatmul.bf16.gmra.mxu0 %v2391
      %v3354 = vpop.f32.mrf.mxu0
      %v3355 = vadd.f32 %v1876, %v3354
      %v3356 = vpop.f32.mrf.mxu0
      %v3357 = vadd.f32 %v1881, %v3356
      %3358 = vmatmul.bf16.gmra.mxu0 %v2392
      %v3359 = vpop.f32.mrf.mxu0
      %v3360 = vadd.f32 %v1886, %v3359
      %v3361 = vpop.f32.mrf.mxu0
      %v3362 = vadd.f32 %v1891, %v3361
      %3363 = vmatmul.bf16.gmra.mxu0 %v2393
      %v3364 = vpop.f32.mrf.mxu0
      %v3365 = vadd.f32 %v1896, %v3364
      %v3366 = vpop.f32.mrf.mxu0
      %v3367 = vadd.f32 %v1901, %v3366
      %3368 = vmatmul.bf16.gmra.mxu0 %v2394
      %v3369 = vpop.f32.mrf.mxu0
      %v3370 = vadd.f32 %v1906, %v3369
      %v3371 = vpop.f32.mrf.mxu0
      %v3372 = vadd.f32 %v1911, %v3371
      %3373 = vmatmul.bf16.gmra.mxu0 %v2395
      %v3374 = vpop.f32.mrf.mxu0
      %v3375 = vadd.f32 %v1916, %v3374
      %v3376 = vpop.f32.mrf.mxu0
      %v3377 = vadd.f32 %v1921, %v3376
      %3378 = vmatmul.bf16.gmra.mxu0 %v2396
      %v3379 = vpop.f32.mrf.mxu0
      %v3380 = vadd.f32 %v1926, %v3379
      %v3381 = vpop.f32.mrf.mxu0
      %v3382 = vadd.f32 %v1931, %v3381
      %3383 = vmatmul.bf16.gmra.mxu0 %v2397
      %v3384 = vpop.f32.mrf.mxu0
      %v3385 = vadd.f32 %v1936, %v3384
      %v3386 = vpop.f32.mrf.mxu0
      %v3387 = vadd.f32 %v1941, %v3386
      %3388 = vmatmul.bf16.gmra.mxu0 %v2398
      %v3389 = vpop.f32.mrf.mxu0
      %v3390 = vadd.f32 %v1946, %v3389
      %v3391 = vpop.f32.mrf.mxu0
      %v3392 = vadd.f32 %v1951, %v3391
      %3393 = vmatmul.bf16.gmra.mxu0 %v2399
      %v3394 = vpop.f32.mrf.mxu0
      %v3395 = vadd.f32 %v1956, %v3394
      %v3396 = vpop.f32.mrf.mxu0
      %v3397 = vadd.f32 %v1961, %v3396
      %3398 = vmatmul.bf16.gmra.mxu0 %v2400
      %v3399 = vpop.f32.mrf.mxu0
      %v3400 = vadd.f32 %v1966, %v3399
      %v3401 = vpop.f32.mrf.mxu0
      %v3402 = vadd.f32 %v1971, %v3401
      %3403 = vmatmul.bf16.gmra.mxu0 %v2401
      %v3404 = vpop.f32.mrf.mxu0
      %v3405 = vadd.f32 %v1976, %v3404
      %v3406 = vpop.f32.mrf.mxu0
      %v3407 = vadd.f32 %v1981, %v3406
      %3408 = vmatmul.bf16.gmra.mxu0 %v2402
      %v3409 = vpop.f32.mrf.mxu0
      %v3410 = vadd.f32 %v1986, %v3409
      %v3411 = vpop.f32.mrf.mxu0
      %v3412 = vadd.f32 %v1991, %v3411
      %3413 = vmatmul.bf16.gmra.mxu0 %v2403
      %v3414 = vpop.f32.mrf.mxu0
      %v3415 = vadd.f32 %v1996, %v3414
      %v3416 = vpop.f32.mrf.mxu0
      %v3417 = vadd.f32 %v2001, %v3416
      %3418 = vmatmul.bf16.gmra.mxu0 %v2404
      %v3419 = vpop.f32.mrf.mxu0
      %v3420 = vadd.f32 %v2006, %v3419
      %v3421 = vpop.f32.mrf.mxu0
      %v3422 = vadd.f32 %v2011, %v3421
      %3423 = vmatmul.bf16.gmra.mxu0 %v2405
      %v3424 = vpop.f32.mrf.mxu0
      %v3425 = vadd.f32 %v2016, %v3424
      %v3426 = vpop.f32.mrf.mxu0
      %v3427 = vadd.f32 %v2021, %v3426
      %3428 = vmatmul.bf16.gmra.mxu0 %v2406
      %v3429 = vpop.f32.mrf.mxu0
      %v3430 = vadd.f32 %v2026, %v3429
      %v3431 = vpop.f32.mrf.mxu0
      %v3432 = vadd.f32 %v2031, %v3431
      %3433 = vmatmul.bf16.gmra.mxu0 %v2407
      %v3434 = vpop.f32.mrf.mxu0
      %v3435 = vadd.f32 %v2036, %v3434
      %v3436 = vpop.f32.mrf.mxu0
      %v3437 = vadd.f32 %v2041, %v3436
      %3438 = vmatmul.bf16.gmra.mxu0 %v2408
      %v3439 = vpop.f32.mrf.mxu0
      %v3440 = vadd.f32 %v2046, %v3439
      %v3441 = vpop.f32.mrf.mxu0
      %v3442 = vadd.f32 %v2051, %v3441
      %3443 = vmatmul.bf16.gmra.mxu0 %v2409
      %v3444 = vpop.f32.mrf.mxu0
      %v3445 = vadd.f32 %v2056, %v3444
      %v3446 = vpop.f32.mrf.mxu0
      %v3447 = vadd.f32 %v2061, %v3446
      %3448 = vmatmul.bf16.gmra.mxu0 %v2410
      %v3449 = vpop.f32.mrf.mxu0
      %v3450 = vadd.f32 %v2066, %v3449
      %v3451 = vpop.f32.mrf.mxu0
      %v3452 = vadd.f32 %v2071, %v3451
      %3453 = vmatmul.bf16.gmra.mxu0 %v2411
      %v3454 = vpop.f32.mrf.mxu0
      %v3455 = vadd.f32 %v2076, %v3454
      %v3456 = vpop.f32.mrf.mxu0
      %v3457 = vadd.f32 %v2081, %v3456
      %3458 = vmatmul.bf16.gmra.mxu0 %v2412
      %v3459 = vpop.f32.mrf.mxu0
      %v3460 = vadd.f32 %v2086, %v3459
      %v3461 = vpop.f32.mrf.mxu0
      %v3462 = vadd.f32 %v2091, %v3461
      %3463 = vdwg.mxu0
      %3464 = vmatpush.bf16.msra.mxu0 %v1196
      %3465 = vmatpush.bf16.msra.mxu0 %v1192
      %3466 = vmatpush.bf16.msra.mxu0 %v1188
      %3467 = vmatpush.bf16.msra.mxu0 %v1184
      %3468 = vmatpush.bf16.msra.mxu0 %v1180
      %3469 = vmatpush.bf16.msra.mxu0 %v1176
      %3470 = vmatpush.bf16.msra.mxu0 %v1172
      %3471 = vmatpush.bf16.msra.mxu0 %v1168
      %3472 = vmatmul.bf16.gmra.mxu0 %v2349
      %v3473 = vpop.f32.mrf.mxu0
      %v3474 = vadd.f32 %v1456, %v3473
      %v3475 = vpop.f32.mrf.mxu0
      %v3476 = vadd.f32 %v1461, %v3475
      %3477 = vmatmul.bf16.gmra.mxu0 %v2350
      %v3478 = vpop.f32.mrf.mxu0
      %v3479 = vadd.f32 %v1466, %v3478
      %v3480 = vpop.f32.mrf.mxu0
      %v3481 = vadd.f32 %v1471, %v3480
      %3482 = vmatmul.bf16.gmra.mxu0 %v2351
      %v3483 = vpop.f32.mrf.mxu0
      %v3484 = vadd.f32 %v1476, %v3483
      %v3485 = vpop.f32.mrf.mxu0
      %v3486 = vadd.f32 %v1481, %v3485
      %3487 = vmatmul.bf16.gmra.mxu0 %v2352
      %v3488 = vpop.f32.mrf.mxu0
      %v3489 = vadd.f32 %v1486, %v3488
      %v3490 = vpop.f32.mrf.mxu0
      %v3491 = vadd.f32 %v1491, %v3490
      %3492 = vmatmul.bf16.gmra.mxu0 %v2353
      %v3493 = vpop.f32.mrf.mxu0
      %v3494 = vadd.f32 %v1496, %v3493
      %v3495 = vpop.f32.mrf.mxu0
      %v3496 = vadd.f32 %v1501, %v3495
      %3497 = vmatmul.bf16.gmra.mxu0 %v2354
      %v3498 = vpop.f32.mrf.mxu0
      %v3499 = vadd.f32 %v1506, %v3498
      %v3500 = vpop.f32.mrf.mxu0
      %v3501 = vadd.f32 %v1511, %v3500
      %3502 = vmatmul.bf16.gmra.mxu0 %v2355
      %v3503 = vpop.f32.mrf.mxu0
      %v3504 = vadd.f32 %v1516, %v3503
      %v3505 = vpop.f32.mrf.mxu0
      %v3506 = vadd.f32 %v1521, %v3505
      %3507 = vmatmul.bf16.gmra.mxu0 %v2356
      %v3508 = vpop.f32.mrf.mxu0
      %v3509 = vadd.f32 %v1526, %v3508
      %v3510 = vpop.f32.mrf.mxu0
      %v3511 = vadd.f32 %v1531, %v3510
      %3512 = vmatmul.bf16.gmra.mxu0 %v2357
      %v3513 = vpop.f32.mrf.mxu0
      %v3514 = vadd.f32 %v1536, %v3513
      %v3515 = vpop.f32.mrf.mxu0
      %v3516 = vadd.f32 %v1541, %v3515
      %3517 = vmatmul.bf16.gmra.mxu0 %v2358
      %v3518 = vpop.f32.mrf.mxu0
      %v3519 = vadd.f32 %v1546, %v3518
      %v3520 = vpop.f32.mrf.mxu0
      %v3521 = vadd.f32 %v1551, %v3520
      %3522 = vmatmul.bf16.gmra.mxu0 %v2359
      %v3523 = vpop.f32.mrf.mxu0
      %v3524 = vadd.f32 %v1556, %v3523
      %v3525 = vpop.f32.mrf.mxu0
      %v3526 = vadd.f32 %v1561, %v3525
      %3527 = vmatmul.bf16.gmra.mxu0 %v2360
      %v3528 = vpop.f32.mrf.mxu0
      %v3529 = vadd.f32 %v1566, %v3528
      %v3530 = vpop.f32.mrf.mxu0
      %v3531 = vadd.f32 %v1571, %v3530
      %3532 = vmatmul.bf16.gmra.mxu0 %v2361
      %v3533 = vpop.f32.mrf.mxu0
      %v3534 = vadd.f32 %v1576, %v3533
      %v3535 = vpop.f32.mrf.mxu0
      %v3536 = vadd.f32 %v1581, %v3535
      %3537 = vmatmul.bf16.gmra.mxu0 %v2362
      %v3538 = vpop.f32.mrf.mxu0
      %v3539 = vadd.f32 %v1586, %v3538
      %v3540 = vpop.f32.mrf.mxu0
      %v3541 = vadd.f32 %v1591, %v3540
      %3542 = vmatmul.bf16.gmra.mxu0 %v2363
      %v3543 = vpop.f32.mrf.mxu0
      %v3544 = vadd.f32 %v1596, %v3543
      %v3545 = vpop.f32.mrf.mxu0
      %v3546 = vadd.f32 %v1601, %v3545
      %3547 = vmatmul.bf16.gmra.mxu0 %v2364
      %v3548 = vpop.f32.mrf.mxu0
      %v3549 = vadd.f32 %v1606, %v3548
      %v3550 = vpop.f32.mrf.mxu0
      %v3551 = vadd.f32 %v1611, %v3550
      %3552 = vmatmul.bf16.gmra.mxu0 %v2365
      %v3553 = vpop.f32.mrf.mxu0
      %v3554 = vadd.f32 %v1616, %v3553
      %v3555 = vpop.f32.mrf.mxu0
      %v3556 = vadd.f32 %v1621, %v3555
      %3557 = vmatmul.bf16.gmra.mxu0 %v2366
      %v3558 = vpop.f32.mrf.mxu0
      %v3559 = vadd.f32 %v1626, %v3558
      %v3560 = vpop.f32.mrf.mxu0
      %v3561 = vadd.f32 %v1631, %v3560
      %3562 = vmatmul.bf16.gmra.mxu0 %v2367
      %v3563 = vpop.f32.mrf.mxu0
      %v3564 = vadd.f32 %v1636, %v3563
      %v3565 = vpop.f32.mrf.mxu0
      %v3566 = vadd.f32 %v1641, %v3565
      %3567 = vmatmul.bf16.gmra.mxu0 %v2368
      %v3568 = vpop.f32.mrf.mxu0
      %v3569 = vadd.f32 %v1646, %v3568
      %v3570 = vpop.f32.mrf.mxu0
      %v3571 = vadd.f32 %v1651, %v3570
      %3572 = vmatmul.bf16.gmra.mxu0 %v2369
      %v3573 = vpop.f32.mrf.mxu0
      %v3574 = vadd.f32 %v1656, %v3573
      %v3575 = vpop.f32.mrf.mxu0
      %v3576 = vadd.f32 %v1661, %v3575
      %3577 = vmatmul.bf16.gmra.mxu0 %v2370
      %v3578 = vpop.f32.mrf.mxu0
      %v3579 = vadd.f32 %v1666, %v3578
      %v3580 = vpop.f32.mrf.mxu0
      %v3581 = vadd.f32 %v1671, %v3580
      %3582 = vmatmul.bf16.gmra.mxu0 %v2371
      %v3583 = vpop.f32.mrf.mxu0
      %v3584 = vadd.f32 %v1676, %v3583
      %v3585 = vpop.f32.mrf.mxu0
      %v3586 = vadd.f32 %v1681, %v3585
      %3587 = vmatmul.bf16.gmra.mxu0 %v2372
      %v3588 = vpop.f32.mrf.mxu0
      %v3589 = vadd.f32 %v1686, %v3588
      %v3590 = vpop.f32.mrf.mxu0
      %v3591 = vadd.f32 %v1691, %v3590
      %3592 = vmatmul.bf16.gmra.mxu0 %v2373
      %v3593 = vpop.f32.mrf.mxu0
      %v3594 = vadd.f32 %v1696, %v3593
      %v3595 = vpop.f32.mrf.mxu0
      %v3596 = vadd.f32 %v1701, %v3595
      %3597 = vmatmul.bf16.gmra.mxu0 %v2374
      %v3598 = vpop.f32.mrf.mxu0
      %v3599 = vadd.f32 %v1706, %v3598
      %v3600 = vpop.f32.mrf.mxu0
      %v3601 = vadd.f32 %v1711, %v3600
      %3602 = vmatmul.bf16.gmra.mxu0 %v2375
      %v3603 = vpop.f32.mrf.mxu0
      %v3604 = vadd.f32 %v1716, %v3603
      %v3605 = vpop.f32.mrf.mxu0
      %v3606 = vadd.f32 %v1721, %v3605
      %3607 = vmatmul.bf16.gmra.mxu0 %v2376
      %v3608 = vpop.f32.mrf.mxu0
      %v3609 = vadd.f32 %v1726, %v3608
      %v3610 = vpop.f32.mrf.mxu0
      %v3611 = vadd.f32 %v1731, %v3610
      %3612 = vmatmul.bf16.gmra.mxu0 %v2377
      %v3613 = vpop.f32.mrf.mxu0
      %v3614 = vadd.f32 %v1736, %v3613
      %v3615 = vpop.f32.mrf.mxu0
      %v3616 = vadd.f32 %v1741, %v3615
      %3617 = vmatmul.bf16.gmra.mxu0 %v2378
      %v3618 = vpop.f32.mrf.mxu0
      %v3619 = vadd.f32 %v1746, %v3618
      %v3620 = vpop.f32.mrf.mxu0
      %v3621 = vadd.f32 %v1751, %v3620
      %3622 = vmatmul.bf16.gmra.mxu0 %v2379
      %v3623 = vpop.f32.mrf.mxu0
      %v3624 = vadd.f32 %v1756, %v3623
      %v3625 = vpop.f32.mrf.mxu0
      %v3626 = vadd.f32 %v1761, %v3625
      %3627 = vmatmul.bf16.gmra.mxu0 %v2380
      %v3628 = vpop.f32.mrf.mxu0
      %v3629 = vadd.f32 %v1766, %v3628
      %v3630 = vpop.f32.mrf.mxu0
      %v3631 = vadd.f32 %v1771, %v3630
      %3632 = vmatmul.bf16.gmra.mxu0 %v2381
      %v3633 = vpop.f32.mrf.mxu0
      %v3634 = vadd.f32 %v1776, %v3633
      %v3635 = vpop.f32.mrf.mxu0
      %v3636 = vadd.f32 %v1781, %v3635
      %3637 = vmatmul.bf16.gmra.mxu0 %v2382
      %v3638 = vpop.f32.mrf.mxu0
      %v3639 = vadd.f32 %v1786, %v3638
      %v3640 = vpop.f32.mrf.mxu0
      %v3641 = vadd.f32 %v1791, %v3640
      %3642 = vmatmul.bf16.gmra.mxu0 %v2383
      %v3643 = vpop.f32.mrf.mxu0
      %v3644 = vadd.f32 %v1796, %v3643
      %v3645 = vpop.f32.mrf.mxu0
      %v3646 = vadd.f32 %v1801, %v3645
      %3647 = vmatmul.bf16.gmra.mxu0 %v2384
      %v3648 = vpop.f32.mrf.mxu0
      %v3649 = vadd.f32 %v1806, %v3648
      %v3650 = vpop.f32.mrf.mxu0
      %v3651 = vadd.f32 %v1811, %v3650
      %3652 = vmatmul.bf16.gmra.mxu0 %v2385
      %v3653 = vpop.f32.mrf.mxu0
      %v3654 = vadd.f32 %v1816, %v3653
      %v3655 = vpop.f32.mrf.mxu0
      %v3656 = vadd.f32 %v1821, %v3655
      %3657 = vmatmul.bf16.gmra.mxu0 %v2386
      %v3658 = vpop.f32.mrf.mxu0
      %v3659 = vadd.f32 %v1826, %v3658
      %v3660 = vpop.f32.mrf.mxu0
      %v3661 = vadd.f32 %v1831, %v3660
      %3662 = vmatmul.bf16.gmra.mxu0 %v2387
      %v3663 = vpop.f32.mrf.mxu0
      %v3664 = vadd.f32 %v1836, %v3663
      %v3665 = vpop.f32.mrf.mxu0
      %v3666 = vadd.f32 %v1841, %v3665
      %3667 = vmatmul.bf16.gmra.mxu0 %v2388
      %v3668 = vpop.f32.mrf.mxu0
      %v3669 = vadd.f32 %v1846, %v3668
      %v3670 = vpop.f32.mrf.mxu0
      %v3671 = vadd.f32 %v1851, %v3670
      %3672 = vmatmul.bf16.gmra.mxu0 %v2389
      %v3673 = vpop.f32.mrf.mxu0
      %v3674 = vadd.f32 %v1856, %v3673
      %v3675 = vpop.f32.mrf.mxu0
      %v3676 = vadd.f32 %v1861, %v3675
      %3677 = vmatmul.bf16.gmra.mxu0 %v2390
      %v3678 = vpop.f32.mrf.mxu0
      %v3679 = vadd.f32 %v1866, %v3678
      %v3680 = vpop.f32.mrf.mxu0
      %v3681 = vadd.f32 %v1871, %v3680
      %3682 = vmatmul.bf16.gmra.mxu0 %v2391
      %v3683 = vpop.f32.mrf.mxu0
      %v3684 = vadd.f32 %v1876, %v3683
      %v3685 = vpop.f32.mrf.mxu0
      %v3686 = vadd.f32 %v1881, %v3685
      %3687 = vmatmul.bf16.gmra.mxu0 %v2392
      %v3688 = vpop.f32.mrf.mxu0
      %v3689 = vadd.f32 %v1886, %v3688
      %v3690 = vpop.f32.mrf.mxu0
      %v3691 = vadd.f32 %v1891, %v3690
      %3692 = vmatmul.bf16.gmra.mxu0 %v2393
      %v3693 = vpop.f32.mrf.mxu0
      %v3694 = vadd.f32 %v1896, %v3693
      %v3695 = vpop.f32.mrf.mxu0
      %v3696 = vadd.f32 %v1901, %v3695
      %3697 = vmatmul.bf16.gmra.mxu0 %v2394
      %v3698 = vpop.f32.mrf.mxu0
      %v3699 = vadd.f32 %v1906, %v3698
      %v3700 = vpop.f32.mrf.mxu0
      %v3701 = vadd.f32 %v1911, %v3700
      %3702 = vmatmul.bf16.gmra.mxu0 %v2395
      %v3703 = vpop.f32.mrf.mxu0
      %v3704 = vadd.f32 %v1916, %v3703
      %v3705 = vpop.f32.mrf.mxu0
      %v3706 = vadd.f32 %v1921, %v3705
      %3707 = vmatmul.bf16.gmra.mxu0 %v2396
      %v3708 = vpop.f32.mrf.mxu0
      %v3709 = vadd.f32 %v1926, %v3708
      %v3710 = vpop.f32.mrf.mxu0
      %v3711 = vadd.f32 %v1931, %v3710
      %3712 = vmatmul.bf16.gmra.mxu0 %v2397
      %v3713 = vpop.f32.mrf.mxu0
      %v3714 = vadd.f32 %v1936, %v3713
      %v3715 = vpop.f32.mrf.mxu0
      %v3716 = vadd.f32 %v1941, %v3715
      %3717 = vmatmul.bf16.gmra.mxu0 %v2398
      %v3718 = vpop.f32.mrf.mxu0
      %v3719 = vadd.f32 %v1946, %v3718
      %v3720 = vpop.f32.mrf.mxu0
      %v3721 = vadd.f32 %v1951, %v3720
      %3722 = vmatmul.bf16.gmra.mxu0 %v2399
      %v3723 = vpop.f32.mrf.mxu0
      %v3724 = vadd.f32 %v1956, %v3723
      %v3725 = vpop.f32.mrf.mxu0
      %v3726 = vadd.f32 %v1961, %v3725
      %3727 = vmatmul.bf16.gmra.mxu0 %v2400
      %v3728 = vpop.f32.mrf.mxu0
      %v3729 = vadd.f32 %v1966, %v3728
      %v3730 = vpop.f32.mrf.mxu0
      %v3731 = vadd.f32 %v1971, %v3730
      %3732 = vmatmul.bf16.gmra.mxu0 %v2401
      %v3733 = vpop.f32.mrf.mxu0
      %v3734 = vadd.f32 %v1976, %v3733
      %v3735 = vpop.f32.mrf.mxu0
      %v3736 = vadd.f32 %v1981, %v3735
      %3737 = vmatmul.bf16.gmra.mxu0 %v2402
      %v3738 = vpop.f32.mrf.mxu0
      %v3739 = vadd.f32 %v1986, %v3738
      %v3740 = vpop.f32.mrf.mxu0
      %v3741 = vadd.f32 %v1991, %v3740
      %3742 = vmatmul.bf16.gmra.mxu0 %v2403
      %v3743 = vpop.f32.mrf.mxu0
      %v3744 = vadd.f32 %v1996, %v3743
      %v3745 = vpop.f32.mrf.mxu0
      %v3746 = vadd.f32 %v2001, %v3745
      %3747 = vmatmul.bf16.gmra.mxu0 %v2404
      %v3748 = vpop.f32.mrf.mxu0
      %v3749 = vadd.f32 %v2006, %v3748
      %v3750 = vpop.f32.mrf.mxu0
      %v3751 = vadd.f32 %v2011, %v3750
      %3752 = vmatmul.bf16.gmra.mxu0 %v2405
      %v3753 = vpop.f32.mrf.mxu0
      %v3754 = vadd.f32 %v2016, %v3753
      %v3755 = vpop.f32.mrf.mxu0
      %v3756 = vadd.f32 %v2021, %v3755
      %3757 = vmatmul.bf16.gmra.mxu0 %v2406
      %v3758 = vpop.f32.mrf.mxu0
      %v3759 = vadd.f32 %v2026, %v3758
      %v3760 = vpop.f32.mrf.mxu0
      %v3761 = vadd.f32 %v2031, %v3760
      %3762 = vmatmul.bf16.gmra.mxu0 %v2407
      %v3763 = vpop.f32.mrf.mxu0
      %v3764 = vadd.f32 %v2036, %v3763
      %v3765 = vpop.f32.mrf.mxu0
      %v3766 = vadd.f32 %v2041, %v3765
      %3767 = vmatmul.bf16.gmra.mxu0 %v2408
      %v3768 = vpop.f32.mrf.mxu0
      %v3769 = vadd.f32 %v2046, %v3768
      %v3770 = vpop.f32.mrf.mxu0
      %v3771 = vadd.f32 %v2051, %v3770
      %3772 = vmatmul.bf16.gmra.mxu0 %v2409
      %v3773 = vpop.f32.mrf.mxu0
      %v3774 = vadd.f32 %v2056, %v3773
      %v3775 = vpop.f32.mrf.mxu0
      %v3776 = vadd.f32 %v2061, %v3775
      %3777 = vmatmul.bf16.gmra.mxu0 %v2410
      %v3778 = vpop.f32.mrf.mxu0
      %v3779 = vadd.f32 %v2066, %v3778
      %v3780 = vpop.f32.mrf.mxu0
      %v3781 = vadd.f32 %v2071, %v3780
      %3782 = vmatmul.bf16.gmra.mxu0 %v2411
      %v3783 = vpop.f32.mrf.mxu0
      %v3784 = vadd.f32 %v2076, %v3783
      %v3785 = vpop.f32.mrf.mxu0
      %v3786 = vadd.f32 %v2081, %v3785
      %3787 = vmatmul.bf16.gmra.mxu0 %v2412
      %v3788 = vpop.f32.mrf.mxu0
      %v3789 = vadd.f32 %v2086, %v3788
      %v3790 = vpop.f32.mrf.mxu0
      %v3791 = vadd.f32 %v2091, %v3790
      %3792 = vdwg.mxu0
      %v3793 = vld [vmem:[#allocation2] sm:$0xff]
      %v3794 = vld [vmem:[#allocation2 + $0x8] sm:$0xff]
      %v3795 = vld [vmem:[#allocation2 + $0x10] sm:$0xff]
      %v3796 = vld [vmem:[#allocation2 + $0x18] sm:$0xff]
      %v3797 = vld [vmem:[#allocation2 + $0x20] sm:$0xff]
      %v3798 = vld [vmem:[#allocation2 + $0x28] sm:$0xff]
      %v3799 = vld [vmem:[#allocation2 + $0x30] sm:$0xff]
      %v3800 = vld [vmem:[#allocation2 + $0x38] sm:$0xff]
      %v3801 = vld [vmem:[#allocation2 + $0x40] sm:$0xff]
      %v3802 = vld [vmem:[#allocation2 + $0x48] sm:$0xff]
      %v3803 = vld [vmem:[#allocation2 + $0x50] sm:$0xff]
      %v3804 = vld [vmem:[#allocation2 + $0x58] sm:$0xff]
      %v3805 = vld [vmem:[#allocation2 + $0x60] sm:$0xff]
      %v3806 = vld [vmem:[#allocation2 + $0x68] sm:$0xff]
      %v3807 = vld [vmem:[#allocation2 + $0x70] sm:$0xff]
      %v3808 = vld [vmem:[#allocation2 + $0x78] sm:$0xff]
      %v3809 = vld [vmem:[#allocation2 + $0x80] sm:$0xff]
      %v3810 = vld [vmem:[#allocation2 + $0x88] sm:$0xff]
      %v3811 = vld [vmem:[#allocation2 + $0x90] sm:$0xff]
      %v3812 = vld [vmem:[#allocation2 + $0x98] sm:$0xff]
      %v3813 = vld [vmem:[#allocation2 + $0xa0] sm:$0xff]
      %v3814 = vld [vmem:[#allocation2 + $0xa8] sm:$0xff]
      %v3815 = vld [vmem:[#allocation2 + $0xb0] sm:$0xff]
      %v3816 = vld [vmem:[#allocation2 + $0xb8] sm:$0xff]
      %v3817 = vld [vmem:[#allocation2 + $0xc0] sm:$0xff]
      %v3818 = vld [vmem:[#allocation2 + $0xc8] sm:$0xff]
      %v3819 = vld [vmem:[#allocation2 + $0xd0] sm:$0xff]
      %v3820 = vld [vmem:[#allocation2 + $0xd8] sm:$0xff]
      %v3821 = vld [vmem:[#allocation2 + $0xe0] sm:$0xff]
      %v3822 = vld [vmem:[#allocation2 + $0xe8] sm:$0xff]
      %v3823 = vld [vmem:[#allocation2 + $0xf0] sm:$0xff]
      %v3824 = vld [vmem:[#allocation2 + $0xf8] sm:$0xff]
      %v3825 = vld [vmem:[#allocation2 + $0x100] sm:$0xff]
      %v3826 = vld [vmem:[#allocation2 + $0x108] sm:$0xff]
      %v3827 = vld [vmem:[#allocation2 + $0x110] sm:$0xff]
      %v3828 = vld [vmem:[#allocation2 + $0x118] sm:$0xff]
      %v3829 = vld [vmem:[#allocation2 + $0x120] sm:$0xff]
      %v3830 = vld [vmem:[#allocation2 + $0x128] sm:$0xff]
      %v3831 = vld [vmem:[#allocation2 + $0x130] sm:$0xff]
      %v3832 = vld [vmem:[#allocation2 + $0x138] sm:$0xff]
      %v3833 = vld [vmem:[#allocation2 + $0x140] sm:$0xff]
      %v3834 = vld [vmem:[#allocation2 + $0x148] sm:$0xff]
      %v3835 = vld [vmem:[#allocation2 + $0x150] sm:$0xff]
      %v3836 = vld [vmem:[#allocation2 + $0x158] sm:$0xff]
      %v3837 = vld [vmem:[#allocation2 + $0x160] sm:$0xff]
      %v3838 = vld [vmem:[#allocation2 + $0x168] sm:$0xff]
      %v3839 = vld [vmem:[#allocation2 + $0x170] sm:$0xff]
      %v3840 = vld [vmem:[#allocation2 + $0x178] sm:$0xff]
      %v3841 = vld [vmem:[#allocation2 + $0x180] sm:$0xff]
      %v3842 = vld [vmem:[#allocation2 + $0x188] sm:$0xff]
      %v3843 = vld [vmem:[#allocation2 + $0x190] sm:$0xff]
      %v3844 = vld [vmem:[#allocation2 + $0x198] sm:$0xff]
      %v3845 = vld [vmem:[#allocation2 + $0x1a0] sm:$0xff]
      %v3846 = vld [vmem:[#allocation2 + $0x1a8] sm:$0xff]
      %v3847 = vld [vmem:[#allocation2 + $0x1b0] sm:$0xff]
      %v3848 = vld [vmem:[#allocation2 + $0x1b8] sm:$0xff]
      %v3849 = vld [vmem:[#allocation2 + $0x1c0] sm:$0xff]
      %v3850 = vld [vmem:[#allocation2 + $0x1c8] sm:$0xff]
      %v3851 = vld [vmem:[#allocation2 + $0x1d0] sm:$0xff]
      %v3852 = vld [vmem:[#allocation2 + $0x1d8] sm:$0xff]
      %v3853 = vld [vmem:[#allocation2 + $0x1e0] sm:$0xff]
      %v3854 = vld [vmem:[#allocation2 + $0x1e8] sm:$0xff]
      %v3855 = vld [vmem:[#allocation2 + $0x1f0] sm:$0xff]
      %v3856 = vld [vmem:[#allocation2 + $0x1f8] sm:$0xff]
      %v3857 = vld [vmem:[#allocation2 + $0x200] sm:$0xff]
      %v3858 = vld [vmem:[#allocation2 + $0x208] sm:$0xff]
      %v3859 = vld [vmem:[#allocation2 + $0x210] sm:$0xff]
      %v3860 = vld [vmem:[#allocation2 + $0x218] sm:$0xff]
      %v3861 = vld [vmem:[#allocation2 + $0x220] sm:$0xff]
      %v3862 = vld [vmem:[#allocation2 + $0x228] sm:$0xff]
      %v3863 = vld [vmem:[#allocation2 + $0x230] sm:$0xff]
      %v3864 = vld [vmem:[#allocation2 + $0x238] sm:$0xff]
      %v3865 = vld [vmem:[#allocation2 + $0x240] sm:$0xff]
      %v3866 = vld [vmem:[#allocation2 + $0x248] sm:$0xff]
      %v3867 = vld [vmem:[#allocation2 + $0x250] sm:$0xff]
      %v3868 = vld [vmem:[#allocation2 + $0x258] sm:$0xff]
      %v3869 = vld [vmem:[#allocation2 + $0x260] sm:$0xff]
      %v3870 = vld [vmem:[#allocation2 + $0x268] sm:$0xff]
      %v3871 = vld [vmem:[#allocation2 + $0x270] sm:$0xff]
      %v3872 = vld [vmem:[#allocation2 + $0x278] sm:$0xff]
      %v3873 = vld [vmem:[#allocation2 + $0x280] sm:$0xff]
      %v3874 = vld [vmem:[#allocation2 + $0x288] sm:$0xff]
      %v3875 = vld [vmem:[#allocation2 + $0x290] sm:$0xff]
      %v3876 = vld [vmem:[#allocation2 + $0x298] sm:$0xff]
      %v3877 = vld [vmem:[#allocation2 + $0x2a0] sm:$0xff]
      %v3878 = vld [vmem:[#allocation2 + $0x2a8] sm:$0xff]
      %v3879 = vld [vmem:[#allocation2 + $0x2b0] sm:$0xff]
      %v3880 = vld [vmem:[#allocation2 + $0x2b8] sm:$0xff]
      %v3881 = vld [vmem:[#allocation2 + $0x2c0] sm:$0xff]
      %v3882 = vld [vmem:[#allocation2 + $0x2c8] sm:$0xff]
      %v3883 = vld [vmem:[#allocation2 + $0x2d0] sm:$0xff]
      %v3884 = vld [vmem:[#allocation2 + $0x2d8] sm:$0xff]
      %v3885 = vld [vmem:[#allocation2 + $0x2e0] sm:$0xff]
      %v3886 = vld [vmem:[#allocation2 + $0x2e8] sm:$0xff]
      %v3887 = vld [vmem:[#allocation2 + $0x2f0] sm:$0xff]
      %v3888 = vld [vmem:[#allocation2 + $0x2f8] sm:$0xff]
      %v3889 = vld [vmem:[#allocation2 + $0x300] sm:$0xff]
      %v3890 = vld [vmem:[#allocation2 + $0x308] sm:$0xff]
      %v3891 = vld [vmem:[#allocation2 + $0x310] sm:$0xff]
      %v3892 = vld [vmem:[#allocation2 + $0x318] sm:$0xff]
      %v3893 = vld [vmem:[#allocation2 + $0x320] sm:$0xff]
      %v3894 = vld [vmem:[#allocation2 + $0x328] sm:$0xff]
      %v3895 = vld [vmem:[#allocation2 + $0x330] sm:$0xff]
      %v3896 = vld [vmem:[#allocation2 + $0x338] sm:$0xff]
      %v3897 = vld [vmem:[#allocation2 + $0x340] sm:$0xff]
      %v3898 = vld [vmem:[#allocation2 + $0x348] sm:$0xff]
      %v3899 = vld [vmem:[#allocation2 + $0x350] sm:$0xff]
      %v3900 = vld [vmem:[#allocation2 + $0x358] sm:$0xff]
      %v3901 = vld [vmem:[#allocation2 + $0x360] sm:$0xff]
      %v3902 = vld [vmem:[#allocation2 + $0x368] sm:$0xff]
      %v3903 = vld [vmem:[#allocation2 + $0x370] sm:$0xff]
      %v3904 = vld [vmem:[#allocation2 + $0x378] sm:$0xff]
      %v3905 = vld [vmem:[#allocation2 + $0x380] sm:$0xff]
      %v3906 = vld [vmem:[#allocation2 + $0x388] sm:$0xff]
      %v3907 = vld [vmem:[#allocation2 + $0x390] sm:$0xff]
      %v3908 = vld [vmem:[#allocation2 + $0x398] sm:$0xff]
      %v3909 = vld [vmem:[#allocation2 + $0x3a0] sm:$0xff]
      %v3910 = vld [vmem:[#allocation2 + $0x3a8] sm:$0xff]
      %v3911 = vld [vmem:[#allocation2 + $0x3b0] sm:$0xff]
      %v3912 = vld [vmem:[#allocation2 + $0x3b8] sm:$0xff]
      %v3913 = vld [vmem:[#allocation2 + $0x3c0] sm:$0xff]
      %v3914 = vld [vmem:[#allocation2 + $0x3c8] sm:$0xff]
      %v3915 = vld [vmem:[#allocation2 + $0x3d0] sm:$0xff]
      %v3916 = vld [vmem:[#allocation2 + $0x3d8] sm:$0xff]
      %v3917 = vld [vmem:[#allocation2 + $0x3e0] sm:$0xff]
      %v3918 = vld [vmem:[#allocation2 + $0x3e8] sm:$0xff]
      %v3919 = vld [vmem:[#allocation2 + $0x3f0] sm:$0xff]
      %v3920 = vld [vmem:[#allocation2 + $0x3f8] sm:$0xff]
      %v3921 = vmax.f32 %v3793, %v2487
      %v3922 = vmax.f32 %v3794, %v2489
      %v3923 = vmax.f32 %v3795, %v2492
      %v3924 = vmax.f32 %v3796, %v2494
      %v3925 = vmax.f32 %v3797, %v2497
      %v3926 = vmax.f32 %v3798, %v2499
      %v3927 = vmax.f32 %v3799, %v2502
      %v3928 = vmax.f32 %v3800, %v2504
      %v3929 = vmax.f32 %v3801, %v2507
      %v3930 = vmax.f32 %v3802, %v2509
      %v3931 = vmax.f32 %v3803, %v2512
      %v3932 = vmax.f32 %v3804, %v2514
      %v3933 = vmax.f32 %v3805, %v2517
      %v3934 = vmax.f32 %v3806, %v2519
      %v3935 = vmax.f32 %v3807, %v2522
      %v3936 = vmax.f32 %v3808, %v2524
      %v3937 = vmax.f32 %v3809, %v2527
      %v3938 = vmax.f32 %v3810, %v2529
      %v3939 = vmax.f32 %v3811, %v2532
      %v3940 = vmax.f32 %v3812, %v2534
      %v3941 = vmax.f32 %v3813, %v2537
      %v3942 = vmax.f32 %v3814, %v2539
      %v3943 = vmax.f32 %v3815, %v2542
      %v3944 = vmax.f32 %v3816, %v2544
      %v3945 = vmax.f32 %v3817, %v2547
      %v3946 = vmax.f32 %v3818, %v2549
      %v3947 = vmax.f32 %v3819, %v2552
      %v3948 = vmax.f32 %v3820, %v2554
      %v3949 = vmax.f32 %v3821, %v2557
      %v3950 = vmax.f32 %v3822, %v2559
      %v3951 = vmax.f32 %v3823, %v2562
      %v3952 = vmax.f32 %v3824, %v2564
      %v3953 = vmax.f32 %v3825, %v2567
      %v3954 = vmax.f32 %v3826, %v2569
      %v3955 = vmax.f32 %v3827, %v2572
      %v3956 = vmax.f32 %v3828, %v2574
      %v3957 = vmax.f32 %v3829, %v2577
      %v3958 = vmax.f32 %v3830, %v2579
      %v3959 = vmax.f32 %v3831, %v2582
      %v3960 = vmax.f32 %v3832, %v2584
      %v3961 = vmax.f32 %v3833, %v2587
      %v3962 = vmax.f32 %v3834, %v2589
      %v3963 = vmax.f32 %v3835, %v2592
      %v3964 = vmax.f32 %v3836, %v2594
      %v3965 = vmax.f32 %v3837, %v2597
      %v3966 = vmax.f32 %v3838, %v2599
      %v3967 = vmax.f32 %v3839, %v2602
      %v3968 = vmax.f32 %v3840, %v2604
      %v3969 = vmax.f32 %v3841, %v2607
      %v3970 = vmax.f32 %v3842, %v2609
      %v3971 = vmax.f32 %v3843, %v2612
      %v3972 = vmax.f32 %v3844, %v2614
      %v3973 = vmax.f32 %v3845, %v2617
      %v3974 = vmax.f32 %v3846, %v2619
      %v3975 = vmax.f32 %v3847, %v2622
      %v3976 = vmax.f32 %v3848, %v2624
      %v3977 = vmax.f32 %v3849, %v2627
      %v3978 = vmax.f32 %v3850, %v2629
      %v3979 = vmax.f32 %v3851, %v2632
      %v3980 = vmax.f32 %v3852, %v2634
      %v3981 = vmax.f32 %v3853, %v2637
      %v3982 = vmax.f32 %v3854, %v2639
      %v3983 = vmax.f32 %v3855, %v2642
      %v3984 = vmax.f32 %v3856, %v2644
      %v3985 = vmax.f32 %v3857, %v2647
      %v3986 = vmax.f32 %v3858, %v2649
      %v3987 = vmax.f32 %v3859, %v2652
      %v3988 = vmax.f32 %v3860, %v2654
      %v3989 = vmax.f32 %v3861, %v2657
      %v3990 = vmax.f32 %v3862, %v2659
      %v3991 = vmax.f32 %v3863, %v2662
      %v3992 = vmax.f32 %v3864, %v2664
      %v3993 = vmax.f32 %v3865, %v2667
      %v3994 = vmax.f32 %v3866, %v2669
      %v3995 = vmax.f32 %v3867, %v2672
      %v3996 = vmax.f32 %v3868, %v2674
      %v3997 = vmax.f32 %v3869, %v2677
      %v3998 = vmax.f32 %v3870, %v2679
      %v3999 = vmax.f32 %v3871, %v2682
      %v4000 = vmax.f32 %v3872, %v2684
      %v4001 = vmax.f32 %v3873, %v2687
      %v4002 = vmax.f32 %v3874, %v2689
      %v4003 = vmax.f32 %v3875, %v2692
      %v4004 = vmax.f32 %v3876, %v2694
      %v4005 = vmax.f32 %v3877, %v2697
      %v4006 = vmax.f32 %v3878, %v2699
      %v4007 = vmax.f32 %v3879, %v2702
      %v4008 = vmax.f32 %v3880, %v2704
      %v4009 = vmax.f32 %v3881, %v2707
      %v4010 = vmax.f32 %v3882, %v2709
      %v4011 = vmax.f32 %v3883, %v2712
      %v4012 = vmax.f32 %v3884, %v2714
      %v4013 = vmax.f32 %v3885, %v2717
      %v4014 = vmax.f32 %v3886, %v2719
      %v4015 = vmax.f32 %v3887, %v2722
      %v4016 = vmax.f32 %v3888, %v2724
      %v4017 = vmax.f32 %v3889, %v2727
      %v4018 = vmax.f32 %v3890, %v2729
      %v4019 = vmax.f32 %v3891, %v2732
      %v4020 = vmax.f32 %v3892, %v2734
      %v4021 = vmax.f32 %v3893, %v2737
      %v4022 = vmax.f32 %v3894, %v2739
      %v4023 = vmax.f32 %v3895, %v2742
      %v4024 = vmax.f32 %v3896, %v2744
      %v4025 = vmax.f32 %v3897, %v2747
      %v4026 = vmax.f32 %v3898, %v2749
      %v4027 = vmax.f32 %v3899, %v2752
      %v4028 = vmax.f32 %v3900, %v2754
      %v4029 = vmax.f32 %v3901, %v2757
      %v4030 = vmax.f32 %v3902, %v2759
      %v4031 = vmax.f32 %v3903, %v2762
      %v4032 = vmax.f32 %v3904, %v2764
      %v4033 = vmax.f32 %v3905, %v2767
      %v4034 = vmax.f32 %v3906, %v2769
      %v4035 = vmax.f32 %v3907, %v2772
      %v4036 = vmax.f32 %v3908, %v2774
      %v4037 = vmax.f32 %v3909, %v2777
      %v4038 = vmax.f32 %v3910, %v2779
      %v4039 = vmax.f32 %v3911, %v2782
      %v4040 = vmax.f32 %v3912, %v2784
      %v4041 = vmax.f32 %v3913, %v2787
      %v4042 = vmax.f32 %v3914, %v2789
      %v4043 = vmax.f32 %v3915, %v2792
      %v4044 = vmax.f32 %v3916, %v2794
      %v4045 = vmax.f32 %v3917, %v2797
      %v4046 = vmax.f32 %v3918, %v2799
      %v4047 = vmax.f32 %v3919, %v2802
      %v4048 = vmax.f32 %v3920, %v2804
      %v4049 = vmax.f32 %v3921, %v2816
      %v4050 = vmax.f32 %v3922, %v2818
      %v4051 = vmax.f32 %v3923, %v2821
      %v4052 = vmax.f32 %v3924, %v2823
      %v4053 = vmax.f32 %v3925, %v2826
      %v4054 = vmax.f32 %v3926, %v2828
      %v4055 = vmax.f32 %v3927, %v2831
      %v4056 = vmax.f32 %v3928, %v2833
      %v4057 = vmax.f32 %v3929, %v2836
      %v4058 = vmax.f32 %v3930, %v2838
      %v4059 = vmax.f32 %v3931, %v2841
      %v4060 = vmax.f32 %v3932, %v2843
      %v4061 = vmax.f32 %v3933, %v2846
      %v4062 = vmax.f32 %v3934, %v2848
      %v4063 = vmax.f32 %v3935, %v2851
      %v4064 = vmax.f32 %v3936, %v2853
      %v4065 = vmax.f32 %v3937, %v2856
      %v4066 = vmax.f32 %v3938, %v2858
      %v4067 = vmax.f32 %v3939, %v2861
      %v4068 = vmax.f32 %v3940, %v2863
      %v4069 = vmax.f32 %v3941, %v2866
      %v4070 = vmax.f32 %v3942, %v2868
      %v4071 = vmax.f32 %v3943, %v2871
      %v4072 = vmax.f32 %v3944, %v2873
      %v4073 = vmax.f32 %v3945, %v2876
      %v4074 = vmax.f32 %v3946, %v2878
      %v4075 = vmax.f32 %v3947, %v2881
      %v4076 = vmax.f32 %v3948, %v2883
      %v4077 = vmax.f32 %v3949, %v2886
      %v4078 = vmax.f32 %v3950, %v2888
      %v4079 = vmax.f32 %v3951, %v2891
      %v4080 = vmax.f32 %v3952, %v2893
      %v4081 = vmax.f32 %v3953, %v2896
      %v4082 = vmax.f32 %v3954, %v2898
      %v4083 = vmax.f32 %v3955, %v2901
      %v4084 = vmax.f32 %v3956, %v2903
      %v4085 = vmax.f32 %v3957, %v2906
      %v4086 = vmax.f32 %v3958, %v2908
      %v4087 = vmax.f32 %v3959, %v2911
      %v4088 = vmax.f32 %v3960, %v2913
      %v4089 = vmax.f32 %v3961, %v2916
      %v4090 = vmax.f32 %v3962, %v2918
      %v4091 = vmax.f32 %v3963, %v2921
      %v4092 = vmax.f32 %v3964, %v2923
      %v4093 = vmax.f32 %v3965, %v2926
      %v4094 = vmax.f32 %v3966, %v2928
      %v4095 = vmax.f32 %v3967, %v2931
      %v4096 = vmax.f32 %v3968, %v2933
      %v4097 = vmax.f32 %v3969, %v2936
      %v4098 = vmax.f32 %v3970, %v2938
      %v4099 = vmax.f32 %v3971, %v2941
      %v4100 = vmax.f32 %v3972, %v2943
      %v4101 = vmax.f32 %v3973, %v2946
      %v4102 = vmax.f32 %v3974, %v2948
      %v4103 = vmax.f32 %v3975, %v2951
      %v4104 = vmax.f32 %v3976, %v2953
      %v4105 = vmax.f32 %v3977, %v2956
      %v4106 = vmax.f32 %v3978, %v2958
      %v4107 = vmax.f32 %v3979, %v2961
      %v4108 = vmax.f32 %v3980, %v2963
      %v4109 = vmax.f32 %v3981, %v2966
      %v4110 = vmax.f32 %v3982, %v2968
      %v4111 = vmax.f32 %v3983, %v2971
      %v4112 = vmax.f32 %v3984, %v2973
      %v4113 = vmax.f32 %v3985, %v2976
      %v4114 = vmax.f32 %v3986, %v2978
      %v4115 = vmax.f32 %v3987, %v2981
      %v4116 = vmax.f32 %v3988, %v2983
      %v4117 = vmax.f32 %v3989, %v2986
      %v4118 = vmax.f32 %v3990, %v2988
      %v4119 = vmax.f32 %v3991, %v2991
      %v4120 = vmax.f32 %v3992, %v2993
      %v4121 = vmax.f32 %v3993, %v2996
      %v4122 = vmax.f32 %v3994, %v2998
      %v4123 = vmax.f32 %v3995, %v3001
      %v4124 = vmax.f32 %v3996, %v3003
      %v4125 = vmax.f32 %v3997, %v3006
      %v4126 = vmax.f32 %v3998, %v3008
      %v4127 = vmax.f32 %v3999, %v3011
      %v4128 = vmax.f32 %v4000, %v3013
      %v4129 = vmax.f32 %v4001, %v3016
      %v4130 = vmax.f32 %v4002, %v3018
      %v4131 = vmax.f32 %v4003, %v3021
      %v4132 = vmax.f32 %v4004, %v3023
      %v4133 = vmax.f32 %v4005, %v3026
      %v4134 = vmax.f32 %v4006, %v3028
      %v4135 = vmax.f32 %v4007, %v3031
      %v4136 = vmax.f32 %v4008, %v3033
      %v4137 = vmax.f32 %v4009, %v3036
      %v4138 = vmax.f32 %v4010, %v3038
      %v4139 = vmax.f32 %v4011, %v3041
      %v4140 = vmax.f32 %v4012, %v3043
      %v4141 = vmax.f32 %v4013, %v3046
      %v4142 = vmax.f32 %v4014, %v3048
      %v4143 = vmax.f32 %v4015, %v3051
      %v4144 = vmax.f32 %v4016, %v3053
      %v4145 = vmax.f32 %v4017, %v3056
      %v4146 = vmax.f32 %v4018, %v3058
      %v4147 = vmax.f32 %v4019, %v3061
      %v4148 = vmax.f32 %v4020, %v3063
      %v4149 = vmax.f32 %v4021, %v3066
      %v4150 = vmax.f32 %v4022, %v3068
      %v4151 = vmax.f32 %v4023, %v3071
      %v4152 = vmax.f32 %v4024, %v3073
      %v4153 = vmax.f32 %v4025, %v3076
      %v4154 = vmax.f32 %v4026, %v3078
      %v4155 = vmax.f32 %v4027, %v3081
      %v4156 = vmax.f32 %v4028, %v3083
      %v4157 = vmax.f32 %v4029, %v3086
      %v4158 = vmax.f32 %v4030, %v3088
      %v4159 = vmax.f32 %v4031, %v3091
      %v4160 = vmax.f32 %v4032, %v3093
      %v4161 = vmax.f32 %v4033, %v3096
      %v4162 = vmax.f32 %v4034, %v3098
      %v4163 = vmax.f32 %v4035, %v3101
      %v4164 = vmax.f32 %v4036, %v3103
      %v4165 = vmax.f32 %v4037, %v3106
      %v4166 = vmax.f32 %v4038, %v3108
      %v4167 = vmax.f32 %v4039, %v3111
      %v4168 = vmax.f32 %v4040, %v3113
      %v4169 = vmax.f32 %v4041, %v3116
      %v4170 = vmax.f32 %v4042, %v3118
      %v4171 = vmax.f32 %v4043, %v3121
      %v4172 = vmax.f32 %v4044, %v3123
      %v4173 = vmax.f32 %v4045, %v3126
      %v4174 = vmax.f32 %v4046, %v3128
      %v4175 = vmax.f32 %v4047, %v3131
      %v4176 = vmax.f32 %v4048, %v3133
      %v4177 = vmax.f32 %v4049, %v3145
      %v4178 = vmax.f32 %v4050, %v3147
      %v4179 = vmax.f32 %v4051, %v3150
      %v4180 = vmax.f32 %v4052, %v3152
      %v4181 = vmax.f32 %v4053, %v3155
      %v4182 = vmax.f32 %v4054, %v3157
      %v4183 = vmax.f32 %v4055, %v3160
      %v4184 = vmax.f32 %v4056, %v3162
      %v4185 = vmax.f32 %v4057, %v3165
      %v4186 = vmax.f32 %v4058, %v3167
      %v4187 = vmax.f32 %v4059, %v3170
      %v4188 = vmax.f32 %v4060, %v3172
      %v4189 = vmax.f32 %v4061, %v3175
      %v4190 = vmax.f32 %v4062, %v3177
      %v4191 = vmax.f32 %v4063, %v3180
      %v4192 = vmax.f32 %v4064, %v3182
      %v4193 = vmax.f32 %v4065, %v3185
      %v4194 = vmax.f32 %v4066, %v3187
      %v4195 = vmax.f32 %v4067, %v3190
      %v4196 = vmax.f32 %v4068, %v3192
      %v4197 = vmax.f32 %v4069, %v3195
      %v4198 = vmax.f32 %v4070, %v3197
      %v4199 = vmax.f32 %v4071, %v3200
      %v4200 = vmax.f32 %v4072, %v3202
      %v4201 = vmax.f32 %v4073, %v3205
      %v4202 = vmax.f32 %v4074, %v3207
      %v4203 = vmax.f32 %v4075, %v3210
      %v4204 = vmax.f32 %v4076, %v3212
      %v4205 = vmax.f32 %v4077, %v3215
      %v4206 = vmax.f32 %v4078, %v3217
      %v4207 = vmax.f32 %v4079, %v3220
      %v4208 = vmax.f32 %v4080, %v3222
      %v4209 = vmax.f32 %v4081, %v3225
      %v4210 = vmax.f32 %v4082, %v3227
      %v4211 = vmax.f32 %v4083, %v3230
      %v4212 = vmax.f32 %v4084, %v3232
      %v4213 = vmax.f32 %v4085, %v3235
      %v4214 = vmax.f32 %v4086, %v3237
      %v4215 = vmax.f32 %v4087, %v3240
      %v4216 = vmax.f32 %v4088, %v3242
      %v4217 = vmax.f32 %v4089, %v3245
      %v4218 = vmax.f32 %v4090, %v3247
      %v4219 = vmax.f32 %v4091, %v3250
      %v4220 = vmax.f32 %v4092, %v3252
      %v4221 = vmax.f32 %v4093, %v3255
      %v4222 = vmax.f32 %v4094, %v3257
      %v4223 = vmax.f32 %v4095, %v3260
      %v4224 = vmax.f32 %v4096, %v3262
      %v4225 = vmax.f32 %v4097, %v3265
      %v4226 = vmax.f32 %v4098, %v3267
      %v4227 = vmax.f32 %v4099, %v3270
      %v4228 = vmax.f32 %v4100, %v3272
      %v4229 = vmax.f32 %v4101, %v3275
      %v4230 = vmax.f32 %v4102, %v3277
      %v4231 = vmax.f32 %v4103, %v3280
      %v4232 = vmax.f32 %v4104, %v3282
      %v4233 = vmax.f32 %v4105, %v3285
      %v4234 = vmax.f32 %v4106, %v3287
      %v4235 = vmax.f32 %v4107, %v3290
      %v4236 = vmax.f32 %v4108, %v3292
      %v4237 = vmax.f32 %v4109, %v3295
      %v4238 = vmax.f32 %v4110, %v3297
      %v4239 = vmax.f32 %v4111, %v3300
      %v4240 = vmax.f32 %v4112, %v3302
      %v4241 = vmax.f32 %v4113, %v3305
      %v4242 = vmax.f32 %v4114, %v3307
      %v4243 = vmax.f32 %v4115, %v3310
      %v4244 = vmax.f32 %v4116, %v3312
      %v4245 = vmax.f32 %v4117, %v3315
      %v4246 = vmax.f32 %v4118, %v3317
      %v4247 = vmax.f32 %v4119, %v3320
      %v4248 = vmax.f32 %v4120, %v3322
      %v4249 = vmax.f32 %v4121, %v3325
      %v4250 = vmax.f32 %v4122, %v3327
      %v4251 = vmax.f32 %v4123, %v3330
      %v4252 = vmax.f32 %v4124, %v3332
      %v4253 = vmax.f32 %v4125, %v3335
      %v4254 = vmax.f32 %v4126, %v3337
      %v4255 = vmax.f32 %v4127, %v3340
      %v4256 = vmax.f32 %v4128, %v3342
      %v4257 = vmax.f32 %v4129, %v3345
      %v4258 = vmax.f32 %v4130, %v3347
      %v4259 = vmax.f32 %v4131, %v3350
      %v4260 = vmax.f32 %v4132, %v3352
      %v4261 = vmax.f32 %v4133, %v3355
      %v4262 = vmax.f32 %v4134, %v3357
      %v4263 = vmax.f32 %v4135, %v3360
      %v4264 = vmax.f32 %v4136, %v3362
      %v4265 = vmax.f32 %v4137, %v3365
      %v4266 = vmax.f32 %v4138, %v3367
      %v4267 = vmax.f32 %v4139, %v3370
      %v4268 = vmax.f32 %v4140, %v3372
      %v4269 = vmax.f32 %v4141, %v3375
      %v4270 = vmax.f32 %v4142, %v3377
      %v4271 = vmax.f32 %v4143, %v3380
      %v4272 = vmax.f32 %v4144, %v3382
      %v4273 = vmax.f32 %v4145, %v3385
      %v4274 = vmax.f32 %v4146, %v3387
      %v4275 = vmax.f32 %v4147, %v3390
      %v4276 = vmax.f32 %v4148, %v3392
      %v4277 = vmax.f32 %v4149, %v3395
      %v4278 = vmax.f32 %v4150, %v3397
      %v4279 = vmax.f32 %v4151, %v3400
      %v4280 = vmax.f32 %v4152, %v3402
      %v4281 = vmax.f32 %v4153, %v3405
      %v4282 = vmax.f32 %v4154, %v3407
      %v4283 = vmax.f32 %v4155, %v3410
      %v4284 = vmax.f32 %v4156, %v3412
      %v4285 = vmax.f32 %v4157, %v3415
      %v4286 = vmax.f32 %v4158, %v3417
      %v4287 = vmax.f32 %v4159, %v3420
      %v4288 = vmax.f32 %v4160, %v3422
      %v4289 = vmax.f32 %v4161, %v3425
      %v4290 = vmax.f32 %v4162, %v3427
      %v4291 = vmax.f32 %v4163, %v3430
      %v4292 = vmax.f32 %v4164, %v3432
      %v4293 = vmax.f32 %v4165, %v3435
      %v4294 = vmax.f32 %v4166, %v3437
      %v4295 = vmax.f32 %v4167, %v3440
      %v4296 = vmax.f32 %v4168, %v3442
      %v4297 = vmax.f32 %v4169, %v3445
      %v4298 = vmax.f32 %v4170, %v3447
      %v4299 = vmax.f32 %v4171, %v3450
      %v4300 = vmax.f32 %v4172, %v3452
      %v4301 = vmax.f32 %v4173, %v3455
      %v4302 = vmax.f32 %v4174, %v3457
      %v4303 = vmax.f32 %v4175, %v3460
      %v4304 = vmax.f32 %v4176, %v3462
      %v4305 = vmax.f32 %v4177, %v3474
      %v4306 = vmax.f32 %v4178, %v3476
      %v4307 = vmax.f32 %v4179, %v3479
      %v4308 = vmax.f32 %v4180, %v3481
      %v4309 = vmax.f32 %v4181, %v3484
      %v4310 = vmax.f32 %v4182, %v3486
      %v4311 = vmax.f32 %v4183, %v3489
      %v4312 = vmax.f32 %v4184, %v3491
      %v4313 = vmax.f32 %v4185, %v3494
      %v4314 = vmax.f32 %v4186, %v3496
      %v4315 = vmax.f32 %v4187, %v3499
      %v4316 = vmax.f32 %v4188, %v3501
      %v4317 = vmax.f32 %v4189, %v3504
      %v4318 = vmax.f32 %v4190, %v3506
      %v4319 = vmax.f32 %v4191, %v3509
      %v4320 = vmax.f32 %v4192, %v3511
      %v4321 = vmax.f32 %v4193, %v3514
      %v4322 = vmax.f32 %v4194, %v3516
      %v4323 = vmax.f32 %v4195, %v3519
      %v4324 = vmax.f32 %v4196, %v3521
      %v4325 = vmax.f32 %v4197, %v3524
      %v4326 = vmax.f32 %v4198, %v3526
      %v4327 = vmax.f32 %v4199, %v3529
      %v4328 = vmax.f32 %v4200, %v3531
      %v4329 = vmax.f32 %v4201, %v3534
      %v4330 = vmax.f32 %v4202, %v3536
      %v4331 = vmax.f32 %v4203, %v3539
      %v4332 = vmax.f32 %v4204, %v3541
      %v4333 = vmax.f32 %v4205, %v3544
      %v4334 = vmax.f32 %v4206, %v3546
      %v4335 = vmax.f32 %v4207, %v3549
      %v4336 = vmax.f32 %v4208, %v3551
      %v4337 = vmax.f32 %v4209, %v3554
      %v4338 = vmax.f32 %v4210, %v3556
      %v4339 = vmax.f32 %v4211, %v3559
      %v4340 = vmax.f32 %v4212, %v3561
      %v4341 = vmax.f32 %v4213, %v3564
      %v4342 = vmax.f32 %v4214, %v3566
      %v4343 = vmax.f32 %v4215, %v3569
      %v4344 = vmax.f32 %v4216, %v3571
      %v4345 = vmax.f32 %v4217, %v3574
      %v4346 = vmax.f32 %v4218, %v3576
      %v4347 = vmax.f32 %v4219, %v3579
      %v4348 = vmax.f32 %v4220, %v3581
      %v4349 = vmax.f32 %v4221, %v3584
      %v4350 = vmax.f32 %v4222, %v3586
      %v4351 = vmax.f32 %v4223, %v3589
      %v4352 = vmax.f32 %v4224, %v3591
      %v4353 = vmax.f32 %v4225, %v3594
      %v4354 = vmax.f32 %v4226, %v3596
      %v4355 = vmax.f32 %v4227, %v3599
      %v4356 = vmax.f32 %v4228, %v3601
      %v4357 = vmax.f32 %v4229, %v3604
      %v4358 = vmax.f32 %v4230, %v3606
      %v4359 = vmax.f32 %v4231, %v3609
      %v4360 = vmax.f32 %v4232, %v3611
      %v4361 = vmax.f32 %v4233, %v3614
      %v4362 = vmax.f32 %v4234, %v3616
      %v4363 = vmax.f32 %v4235, %v3619
      %v4364 = vmax.f32 %v4236, %v3621
      %v4365 = vmax.f32 %v4237, %v3624
      %v4366 = vmax.f32 %v4238, %v3626
      %v4367 = vmax.f32 %v4239, %v3629
      %v4368 = vmax.f32 %v4240, %v3631
      %v4369 = vmax.f32 %v4241, %v3634
      %v4370 = vmax.f32 %v4242, %v3636
      %v4371 = vmax.f32 %v4243, %v3639
      %v4372 = vmax.f32 %v4244, %v3641
      %v4373 = vmax.f32 %v4245, %v3644
      %v4374 = vmax.f32 %v4246, %v3646
      %v4375 = vmax.f32 %v4247, %v3649
      %v4376 = vmax.f32 %v4248, %v3651
      %v4377 = vmax.f32 %v4249, %v3654
      %v4378 = vmax.f32 %v4250, %v3656
      %v4379 = vmax.f32 %v4251, %v3659
      %v4380 = vmax.f32 %v4252, %v3661
      %v4381 = vmax.f32 %v4253, %v3664
      %v4382 = vmax.f32 %v4254, %v3666
      %v4383 = vmax.f32 %v4255, %v3669
      %v4384 = vmax.f32 %v4256, %v3671
      %v4385 = vmax.f32 %v4257, %v3674
      %v4386 = vmax.f32 %v4258, %v3676
      %v4387 = vmax.f32 %v4259, %v3679
      %v4388 = vmax.f32 %v4260, %v3681
      %v4389 = vmax.f32 %v4261, %v3684
      %v4390 = vmax.f32 %v4262, %v3686
      %v4391 = vmax.f32 %v4263, %v3689
      %v4392 = vmax.f32 %v4264, %v3691
      %v4393 = vmax.f32 %v4265, %v3694
      %v4394 = vmax.f32 %v4266, %v3696
      %v4395 = vmax.f32 %v4267, %v3699
      %v4396 = vmax.f32 %v4268, %v3701
      %v4397 = vmax.f32 %v4269, %v3704
      %v4398 = vmax.f32 %v4270, %v3706
      %v4399 = vmax.f32 %v4271, %v3709
      %v4400 = vmax.f32 %v4272, %v3711
      %v4401 = vmax.f32 %v4273, %v3714
      %v4402 = vmax.f32 %v4274, %v3716
      %v4403 = vmax.f32 %v4275, %v3719
      %v4404 = vmax.f32 %v4276, %v3721
      %v4405 = vmax.f32 %v4277, %v3724
      %v4406 = vmax.f32 %v4278, %v3726
      %v4407 = vmax.f32 %v4279, %v3729
      %v4408 = vmax.f32 %v4280, %v3731
      %v4409 = vmax.f32 %v4281, %v3734
      %v4410 = vmax.f32 %v4282, %v3736
      %v4411 = vmax.f32 %v4283, %v3739
      %v4412 = vmax.f32 %v4284, %v3741
      %v4413 = vmax.f32 %v4285, %v3744
      %v4414 = vmax.f32 %v4286, %v3746
      %v4415 = vmax.f32 %v4287, %v3749
      %v4416 = vmax.f32 %v4288, %v3751
      %v4417 = vmax.f32 %v4289, %v3754
      %v4418 = vmax.f32 %v4290, %v3756
      %v4419 = vmax.f32 %v4291, %v3759
      %v4420 = vmax.f32 %v4292, %v3761
      %v4421 = vmax.f32 %v4293, %v3764
      %v4422 = vmax.f32 %v4294, %v3766
      %v4423 = vmax.f32 %v4295, %v3769
      %v4424 = vmax.f32 %v4296, %v3771
      %v4425 = vmax.f32 %v4297, %v3774
      %v4426 = vmax.f32 %v4298, %v3776
      %v4427 = vmax.f32 %v4299, %v3779
      %v4428 = vmax.f32 %v4300, %v3781
      %v4429 = vmax.f32 %v4301, %v3784
      %v4430 = vmax.f32 %v4302, %v3786
      %v4431 = vmax.f32 %v4303, %v3789
      %v4432 = vmax.f32 %v4304, %v3791
      %4433 = vst [vmem:[#allocation2] sm:$0xff] %v4305
      %4434 = vst [vmem:[#allocation2 + $0x8] sm:$0xff] %v4306
      %4435 = vst [vmem:[#allocation2 + $0x10] sm:$0xff] %v4307
      %4436 = vst [vmem:[#allocation2 + $0x18] sm:$0xff] %v4308
      %4437 = vst [vmem:[#allocation2 + $0x20] sm:$0xff] %v4309
      %4438 = vst [vmem:[#allocation2 + $0x28] sm:$0xff] %v4310
      %4439 = vst [vmem:[#allocation2 + $0x30] sm:$0xff] %v4311
      %4440 = vst [vmem:[#allocation2 + $0x38] sm:$0xff] %v4312
      %4441 = vst [vmem:[#allocation2 + $0x40] sm:$0xff] %v4313
      %4442 = vst [vmem:[#allocation2 + $0x48] sm:$0xff] %v4314
      %4443 = vst [vmem:[#allocation2 + $0x50] sm:$0xff] %v4315
      %4444 = vst [vmem:[#allocation2 + $0x58] sm:$0xff] %v4316
      %4445 = vst [vmem:[#allocation2 + $0x60] sm:$0xff] %v4317
      %4446 = vst [vmem:[#allocation2 + $0x68] sm:$0xff] %v4318
      %4447 = vst [vmem:[#allocation2 + $0x70] sm:$0xff] %v4319
      %4448 = vst [vmem:[#allocation2 + $0x78] sm:$0xff] %v4320
      %4449 = vst [vmem:[#allocation2 + $0x80] sm:$0xff] %v4321
      %4450 = vst [vmem:[#allocation2 + $0x88] sm:$0xff] %v4322
      %4451 = vst [vmem:[#allocation2 + $0x90] sm:$0xff] %v4323
      %4452 = vst [vmem:[#allocation2 + $0x98] sm:$0xff] %v4324
      %4453 = vst [vmem:[#allocation2 + $0xa0] sm:$0xff] %v4325
      %4454 = vst [vmem:[#allocation2 + $0xa8] sm:$0xff] %v4326
      %4455 = vst [vmem:[#allocation2 + $0xb0] sm:$0xff] %v4327
      %4456 = vst [vmem:[#allocation2 + $0xb8] sm:$0xff] %v4328
      %4457 = vst [vmem:[#allocation2 + $0xc0] sm:$0xff] %v4329
      %4458 = vst [vmem:[#allocation2 + $0xc8] sm:$0xff] %v4330
      %4459 = vst [vmem:[#allocation2 + $0xd0] sm:$0xff] %v4331
      %4460 = vst [vmem:[#allocation2 + $0xd8] sm:$0xff] %v4332
      %4461 = vst [vmem:[#allocation2 + $0xe0] sm:$0xff] %v4333
      %4462 = vst [vmem:[#allocation2 + $0xe8] sm:$0xff] %v4334
      %4463 = vst [vmem:[#allocation2 + $0xf0] sm:$0xff] %v4335
      %4464 = vst [vmem:[#allocation2 + $0xf8] sm:$0xff] %v4336
      %4465 = vst [vmem:[#allocation2 + $0x100] sm:$0xff] %v4337
      %4466 = vst [vmem:[#allocation2 + $0x108] sm:$0xff] %v4338
      %4467 = vst [vmem:[#allocation2 + $0x110] sm:$0xff] %v4339
      %4468 = vst [vmem:[#allocation2 + $0x118] sm:$0xff] %v4340
      %4469 = vst [vmem:[#allocation2 + $0x120] sm:$0xff] %v4341
      %4470 = vst [vmem:[#allocation2 + $0x128] sm:$0xff] %v4342
      %4471 = vst [vmem:[#allocation2 + $0x130] sm:$0xff] %v4343
      %4472 = vst [vmem:[#allocation2 + $0x138] sm:$0xff] %v4344
      %4473 = vst [vmem:[#allocation2 + $0x140] sm:$0xff] %v4345
      %4474 = vst [vmem:[#allocation2 + $0x148] sm:$0xff] %v4346
      %4475 = vst [vmem:[#allocation2 + $0x150] sm:$0xff] %v4347
      %4476 = vst [vmem:[#allocation2 + $0x158] sm:$0xff] %v4348
      %4477 = vst [vmem:[#allocation2 + $0x160] sm:$0xff] %v4349
      %4478 = vst [vmem:[#allocation2 + $0x168] sm:$0xff] %v4350
      %4479 = vst [vmem:[#allocation2 + $0x170] sm:$0xff] %v4351
      %4480 = vst [vmem:[#allocation2 + $0x178] sm:$0xff] %v4352
      %4481 = vst [vmem:[#allocation2 + $0x180] sm:$0xff] %v4353
      %4482 = vst [vmem:[#allocation2 + $0x188] sm:$0xff] %v4354
      %4483 = vst [vmem:[#allocation2 + $0x190] sm:$0xff] %v4355
      %4484 = vst [vmem:[#allocation2 + $0x198] sm:$0xff] %v4356
      %4485 = vst [vmem:[#allocation2 + $0x1a0] sm:$0xff] %v4357
      %4486 = vst [vmem:[#allocation2 + $0x1a8] sm:$0xff] %v4358
      %4487 = vst [vmem:[#allocation2 + $0x1b0] sm:$0xff] %v4359
      %4488 = vst [vmem:[#allocation2 + $0x1b8] sm:$0xff] %v4360
      %4489 = vst [vmem:[#allocation2 + $0x1c0] sm:$0xff] %v4361
      %4490 = vst [vmem:[#allocation2 + $0x1c8] sm:$0xff] %v4362
      %4491 = vst [vmem:[#allocation2 + $0x1d0] sm:$0xff] %v4363
      %4492 = vst [vmem:[#allocation2 + $0x1d8] sm:$0xff] %v4364
      %4493 = vst [vmem:[#allocation2 + $0x1e0] sm:$0xff] %v4365
      %4494 = vst [vmem:[#allocation2 + $0x1e8] sm:$0xff] %v4366
      %4495 = vst [vmem:[#allocation2 + $0x1f0] sm:$0xff] %v4367
      %4496 = vst [vmem:[#allocation2 + $0x1f8] sm:$0xff] %v4368
      %4497 = vst [vmem:[#allocation2 + $0x200] sm:$0xff] %v4369
      %4498 = vst [vmem:[#allocation2 + $0x208] sm:$0xff] %v4370
      %4499 = vst [vmem:[#allocation2 + $0x210] sm:$0xff] %v4371
      %4500 = vst [vmem:[#allocation2 + $0x218] sm:$0xff] %v4372
      %4501 = vst [vmem:[#allocation2 + $0x220] sm:$0xff] %v4373
      %4502 = vst [vmem:[#allocation2 + $0x228] sm:$0xff] %v4374
      %4503 = vst [vmem:[#allocation2 + $0x230] sm:$0xff] %v4375
      %4504 = vst [vmem:[#allocation2 + $0x238] sm:$0xff] %v4376
      %4505 = vst [vmem:[#allocation2 + $0x240] sm:$0xff] %v4377
      %4506 = vst [vmem:[#allocation2 + $0x248] sm:$0xff] %v4378
      %4507 = vst [vmem:[#allocation2 + $0x250] sm:$0xff] %v4379
      %4508 = vst [vmem:[#allocation2 + $0x258] sm:$0xff] %v4380
      %4509 = vst [vmem:[#allocation2 + $0x260] sm:$0xff] %v4381
      %4510 = vst [vmem:[#allocation2 + $0x268] sm:$0xff] %v4382
      %4511 = vst [vmem:[#allocation2 + $0x270] sm:$0xff] %v4383
      %4512 = vst [vmem:[#allocation2 + $0x278] sm:$0xff] %v4384
      %4513 = vst [vmem:[#allocation2 + $0x280] sm:$0xff] %v4385
      %4514 = vst [vmem:[#allocation2 + $0x288] sm:$0xff] %v4386
      %4515 = vst [vmem:[#allocation2 + $0x290] sm:$0xff] %v4387
      %4516 = vst [vmem:[#allocation2 + $0x298] sm:$0xff] %v4388
      %4517 = vst [vmem:[#allocation2 + $0x2a0] sm:$0xff] %v4389
      %4518 = vst [vmem:[#allocation2 + $0x2a8] sm:$0xff] %v4390
      %4519 = vst [vmem:[#allocation2 + $0x2b0] sm:$0xff] %v4391
      %4520 = vst [vmem:[#allocation2 + $0x2b8] sm:$0xff] %v4392
      %4521 = vst [vmem:[#allocation2 + $0x2c0] sm:$0xff] %v4393
      %4522 = vst [vmem:[#allocation2 + $0x2c8] sm:$0xff] %v4394
      %4523 = vst [vmem:[#allocation2 + $0x2d0] sm:$0xff] %v4395
      %4524 = vst [vmem:[#allocation2 + $0x2d8] sm:$0xff] %v4396
      %4525 = vst [vmem:[#allocation2 + $0x2e0] sm:$0xff] %v4397
      %4526 = vst [vmem:[#allocation2 + $0x2e8] sm:$0xff] %v4398
      %4527 = vst [vmem:[#allocation2 + $0x2f0] sm:$0xff] %v4399
      %4528 = vst [vmem:[#allocation2 + $0x2f8] sm:$0xff] %v4400
      %4529 = vst [vmem:[#allocation2 + $0x300] sm:$0xff] %v4401
      %4530 = vst [vmem:[#allocation2 + $0x308] sm:$0xff] %v4402
      %4531 = vst [vmem:[#allocation2 + $0x310] sm:$0xff] %v4403
      %4532 = vst [vmem:[#allocation2 + $0x318] sm:$0xff] %v4404
      %4533 = vst [vmem:[#allocation2 + $0x320] sm:$0xff] %v4405
      %4534 = vst [vmem:[#allocation2 + $0x328] sm:$0xff] %v4406
      %4535 = vst [vmem:[#allocation2 + $0x330] sm:$0xff] %v4407
      %4536 = vst [vmem:[#allocation2 + $0x338] sm:$0xff] %v4408
      %4537 = vst [vmem:[#allocation2 + $0x340] sm:$0xff] %v4409
      %4538 = vst [vmem:[#allocation2 + $0x348] sm:$0xff] %v4410
      %4539 = vst [vmem:[#allocation2 + $0x350] sm:$0xff] %v4411
      %4540 = vst [vmem:[#allocation2 + $0x358] sm:$0xff] %v4412
      %4541 = vst [vmem:[#allocation2 + $0x360] sm:$0xff] %v4413
      %4542 = vst [vmem:[#allocation2 + $0x368] sm:$0xff] %v4414
      %4543 = vst [vmem:[#allocation2 + $0x370] sm:$0xff] %v4415
      %4544 = vst [vmem:[#allocation2 + $0x378] sm:$0xff] %v4416
      %4545 = vst [vmem:[#allocation2 + $0x380] sm:$0xff] %v4417
      %4546 = vst [vmem:[#allocation2 + $0x388] sm:$0xff] %v4418
      %4547 = vst [vmem:[#allocation2 + $0x390] sm:$0xff] %v4419
      %4548 = vst [vmem:[#allocation2 + $0x398] sm:$0xff] %v4420
      %4549 = vst [vmem:[#allocation2 + $0x3a0] sm:$0xff] %v4421
      %4550 = vst [vmem:[#allocation2 + $0x3a8] sm:$0xff] %v4422
      %4551 = vst [vmem:[#allocation2 + $0x3b0] sm:$0xff] %v4423
      %4552 = vst [vmem:[#allocation2 + $0x3b8] sm:$0xff] %v4424
      %4553 = vst [vmem:[#allocation2 + $0x3c0] sm:$0xff] %v4425
      %4554 = vst [vmem:[#allocation2 + $0x3c8] sm:$0xff] %v4426
      %4555 = vst [vmem:[#allocation2 + $0x3d0] sm:$0xff] %v4427
      %4556 = vst [vmem:[#allocation2 + $0x3d8] sm:$0xff] %v4428
      %4557 = vst [vmem:[#allocation2 + $0x3e0] sm:$0xff] %v4429
      %4558 = vst [vmem:[#allocation2 + $0x3e8] sm:$0xff] %v4430
      %4559 = vst [vmem:[#allocation2 + $0x3f0] sm:$0xff] %v4431
      %4560 = vst [vmem:[#allocation2 + $0x3f8] sm:$0xff] %v4432
      // Predicated region
      $region53: #{stn3d_forward.2} parent=47 // pred_check
        %p4561 = pneg %p308
      $region54: #{stn3d_forward.2} parent=47 // pred_check_branch
        %4563 = sbr.rel (%p4561) target = $region56
      $region55: #{stn3d_forward.2} parent=47 // pred_region
        %4564 = vmax.xlane.f32.xlu0 %v4305
        %v4565 = vpop.xlane.xlu0 %4564
        %4566 = vmax.xlane.f32.xlu0 %v4306
        %v4567 = vpop.xlane.xlu0 %4566
        %4568 = vmax.xlane.f32.xlu0 %v4307
        %v4569 = vpop.xlane.xlu0 %4568
        %4570 = vmax.xlane.f32.xlu0 %v4308
        %v4571 = vpop.xlane.xlu0 %4570
        %4572 = vmax.xlane.f32.xlu0 %v4309
        %v4573 = vpop.xlane.xlu0 %4572
        %4574 = vmax.xlane.f32.xlu0 %v4310
        %v4575 = vpop.xlane.xlu0 %4574
        %4576 = vmax.xlane.f32.xlu0 %v4311
        %v4577 = vpop.xlane.xlu0 %4576
        %4578 = vmax.xlane.f32.xlu0 %v4312
        %v4579 = vpop.xlane.xlu0 %4578
        %4580 = vmax.xlane.f32.xlu0 %v4313
        %v4581 = vpop.xlane.xlu0 %4580
        %4582 = vmax.xlane.f32.xlu0 %v4314
        %v4583 = vpop.xlane.xlu0 %4582
        %4584 = vmax.xlane.f32.xlu0 %v4315
        %v4585 = vpop.xlane.xlu0 %4584
        %4586 = vmax.xlane.f32.xlu0 %v4316
        %v4587 = vpop.xlane.xlu0 %4586
        %4588 = vmax.xlane.f32.xlu0 %v4317
        %v4589 = vpop.xlane.xlu0 %4588
        %4590 = vmax.xlane.f32.xlu0 %v4318
        %v4591 = vpop.xlane.xlu0 %4590
        %4592 = vmax.xlane.f32.xlu0 %v4319
        %v4593 = vpop.xlane.xlu0 %4592
        %4594 = vmax.xlane.f32.xlu0 %v4320
        %v4595 = vpop.xlane.xlu0 %4594
        %4596 = vmax.xlane.f32.xlu0 %v4321
        %v4597 = vpop.xlane.xlu0 %4596
        %4598 = vmax.xlane.f32.xlu0 %v4322
        %v4599 = vpop.xlane.xlu0 %4598
        %4600 = vmax.xlane.f32.xlu0 %v4323
        %v4601 = vpop.xlane.xlu0 %4600
        %4602 = vmax.xlane.f32.xlu0 %v4324
        %v4603 = vpop.xlane.xlu0 %4602
        %4604 = vmax.xlane.f32.xlu0 %v4325
        %v4605 = vpop.xlane.xlu0 %4604
        %4606 = vmax.xlane.f32.xlu0 %v4326
        %v4607 = vpop.xlane.xlu0 %4606
        %4608 = vmax.xlane.f32.xlu0 %v4327
        %v4609 = vpop.xlane.xlu0 %4608
        %4610 = vmax.xlane.f32.xlu0 %v4328
        %v4611 = vpop.xlane.xlu0 %4610
        %4612 = vmax.xlane.f32.xlu0 %v4329
        %v4613 = vpop.xlane.xlu0 %4612
        %4614 = vmax.xlane.f32.xlu0 %v4330
        %v4615 = vpop.xlane.xlu0 %4614
        %4616 = vmax.xlane.f32.xlu0 %v4331
        %v4617 = vpop.xlane.xlu0 %4616
        %4618 = vmax.xlane.f32.xlu0 %v4332
        %v4619 = vpop.xlane.xlu0 %4618
        %4620 = vmax.xlane.f32.xlu0 %v4333
        %v4621 = vpop.xlane.xlu0 %4620
        %4622 = vmax.xlane.f32.xlu0 %v4334
        %v4623 = vpop.xlane.xlu0 %4622
        %4624 = vmax.xlane.f32.xlu0 %v4335
        %v4625 = vpop.xlane.xlu0 %4624
        %4626 = vmax.xlane.f32.xlu0 %v4336
        %v4627 = vpop.xlane.xlu0 %4626
        %4628 = vmax.xlane.f32.xlu0 %v4337
        %v4629 = vpop.xlane.xlu0 %4628
        %4630 = vmax.xlane.f32.xlu0 %v4338
        %v4631 = vpop.xlane.xlu0 %4630
        %4632 = vmax.xlane.f32.xlu0 %v4339
        %v4633 = vpop.xlane.xlu0 %4632
        %4634 = vmax.xlane.f32.xlu0 %v4340
        %v4635 = vpop.xlane.xlu0 %4634
        %4636 = vmax.xlane.f32.xlu0 %v4341
        %v4637 = vpop.xlane.xlu0 %4636
        %4638 = vmax.xlane.f32.xlu0 %v4342
        %v4639 = vpop.xlane.xlu0 %4638
        %4640 = vmax.xlane.f32.xlu0 %v4343
        %v4641 = vpop.xlane.xlu0 %4640
        %4642 = vmax.xlane.f32.xlu0 %v4344
        %v4643 = vpop.xlane.xlu0 %4642
        %4644 = vmax.xlane.f32.xlu0 %v4345
        %v4645 = vpop.xlane.xlu0 %4644
        %4646 = vmax.xlane.f32.xlu0 %v4346
        %v4647 = vpop.xlane.xlu0 %4646
        %4648 = vmax.xlane.f32.xlu0 %v4347
        %v4649 = vpop.xlane.xlu0 %4648
        %4650 = vmax.xlane.f32.xlu0 %v4348
        %v4651 = vpop.xlane.xlu0 %4650
        %4652 = vmax.xlane.f32.xlu0 %v4349
        %v4653 = vpop.xlane.xlu0 %4652
        %4654 = vmax.xlane.f32.xlu0 %v4350
        %v4655 = vpop.xlane.xlu0 %4654
        %4656 = vmax.xlane.f32.xlu0 %v4351
        %v4657 = vpop.xlane.xlu0 %4656
        %4658 = vmax.xlane.f32.xlu0 %v4352
        %v4659 = vpop.xlane.xlu0 %4658
        %4660 = vmax.xlane.f32.xlu0 %v4353
        %v4661 = vpop.xlane.xlu0 %4660
        %4662 = vmax.xlane.f32.xlu0 %v4354
        %v4663 = vpop.xlane.xlu0 %4662
        %4664 = vmax.xlane.f32.xlu0 %v4355
        %v4665 = vpop.xlane.xlu0 %4664
        %4666 = vmax.xlane.f32.xlu0 %v4356
        %v4667 = vpop.xlane.xlu0 %4666
        %4668 = vmax.xlane.f32.xlu0 %v4357
        %v4669 = vpop.xlane.xlu0 %4668
        %4670 = vmax.xlane.f32.xlu0 %v4358
        %v4671 = vpop.xlane.xlu0 %4670
        %4672 = vmax.xlane.f32.xlu0 %v4359
        %v4673 = vpop.xlane.xlu0 %4672
        %4674 = vmax.xlane.f32.xlu0 %v4360
        %v4675 = vpop.xlane.xlu0 %4674
        %4676 = vmax.xlane.f32.xlu0 %v4361
        %v4677 = vpop.xlane.xlu0 %4676
        %4678 = vmax.xlane.f32.xlu0 %v4362
        %v4679 = vpop.xlane.xlu0 %4678
        %4680 = vmax.xlane.f32.xlu0 %v4363
        %v4681 = vpop.xlane.xlu0 %4680
        %4682 = vmax.xlane.f32.xlu0 %v4364
        %v4683 = vpop.xlane.xlu0 %4682
        %4684 = vmax.xlane.f32.xlu0 %v4365
        %v4685 = vpop.xlane.xlu0 %4684
        %4686 = vmax.xlane.f32.xlu0 %v4366
        %v4687 = vpop.xlane.xlu0 %4686
        %4688 = vmax.xlane.f32.xlu0 %v4367
        %v4689 = vpop.xlane.xlu0 %4688
        %4690 = vmax.xlane.f32.xlu0 %v4368
        %v4691 = vpop.xlane.xlu0 %4690
        %4692 = vmax.xlane.f32.xlu0 %v4369
        %v4693 = vpop.xlane.xlu0 %4692
        %4694 = vmax.xlane.f32.xlu0 %v4370
        %v4695 = vpop.xlane.xlu0 %4694
        %4696 = vmax.xlane.f32.xlu0 %v4371
        %v4697 = vpop.xlane.xlu0 %4696
        %4698 = vmax.xlane.f32.xlu0 %v4372
        %v4699 = vpop.xlane.xlu0 %4698
        %4700 = vmax.xlane.f32.xlu0 %v4373
        %v4701 = vpop.xlane.xlu0 %4700
        %4702 = vmax.xlane.f32.xlu0 %v4374
        %v4703 = vpop.xlane.xlu0 %4702
        %4704 = vmax.xlane.f32.xlu0 %v4375
        %v4705 = vpop.xlane.xlu0 %4704
        %4706 = vmax.xlane.f32.xlu0 %v4376
        %v4707 = vpop.xlane.xlu0 %4706
        %4708 = vmax.xlane.f32.xlu0 %v4377
        %v4709 = vpop.xlane.xlu0 %4708
        %4710 = vmax.xlane.f32.xlu0 %v4378
        %v4711 = vpop.xlane.xlu0 %4710
        %4712 = vmax.xlane.f32.xlu0 %v4379
        %v4713 = vpop.xlane.xlu0 %4712
        %4714 = vmax.xlane.f32.xlu0 %v4380
        %v4715 = vpop.xlane.xlu0 %4714
        %4716 = vmax.xlane.f32.xlu0 %v4381
        %v4717 = vpop.xlane.xlu0 %4716
        %4718 = vmax.xlane.f32.xlu0 %v4382
        %v4719 = vpop.xlane.xlu0 %4718
        %4720 = vmax.xlane.f32.xlu0 %v4383
        %v4721 = vpop.xlane.xlu0 %4720
        %4722 = vmax.xlane.f32.xlu0 %v4384
        %v4723 = vpop.xlane.xlu0 %4722
        %4724 = vmax.xlane.f32.xlu0 %v4385
        %v4725 = vpop.xlane.xlu0 %4724
        %4726 = vmax.xlane.f32.xlu0 %v4386
        %v4727 = vpop.xlane.xlu0 %4726
        %4728 = vmax.xlane.f32.xlu0 %v4387
        %v4729 = vpop.xlane.xlu0 %4728
        %4730 = vmax.xlane.f32.xlu0 %v4388
        %v4731 = vpop.xlane.xlu0 %4730
        %4732 = vmax.xlane.f32.xlu0 %v4389
        %v4733 = vpop.xlane.xlu0 %4732
        %4734 = vmax.xlane.f32.xlu0 %v4390
        %v4735 = vpop.xlane.xlu0 %4734
        %4736 = vmax.xlane.f32.xlu0 %v4391
        %v4737 = vpop.xlane.xlu0 %4736
        %4738 = vmax.xlane.f32.xlu0 %v4392
        %v4739 = vpop.xlane.xlu0 %4738
        %4740 = vmax.xlane.f32.xlu0 %v4393
        %v4741 = vpop.xlane.xlu0 %4740
        %4742 = vmax.xlane.f32.xlu0 %v4394
        %v4743 = vpop.xlane.xlu0 %4742
        %4744 = vmax.xlane.f32.xlu0 %v4395
        %v4745 = vpop.xlane.xlu0 %4744
        %4746 = vmax.xlane.f32.xlu0 %v4396
        %v4747 = vpop.xlane.xlu0 %4746
        %4748 = vmax.xlane.f32.xlu0 %v4397
        %v4749 = vpop.xlane.xlu0 %4748
        %4750 = vmax.xlane.f32.xlu0 %v4398
        %v4751 = vpop.xlane.xlu0 %4750
        %4752 = vmax.xlane.f32.xlu0 %v4399
        %v4753 = vpop.xlane.xlu0 %4752
        %4754 = vmax.xlane.f32.xlu0 %v4400
        %v4755 = vpop.xlane.xlu0 %4754
        %4756 = vmax.xlane.f32.xlu0 %v4401
        %v4757 = vpop.xlane.xlu0 %4756
        %4758 = vmax.xlane.f32.xlu0 %v4402
        %v4759 = vpop.xlane.xlu0 %4758
        %4760 = vmax.xlane.f32.xlu0 %v4403
        %v4761 = vpop.xlane.xlu0 %4760
        %4762 = vmax.xlane.f32.xlu0 %v4404
        %v4763 = vpop.xlane.xlu0 %4762
        %4764 = vmax.xlane.f32.xlu0 %v4405
        %v4765 = vpop.xlane.xlu0 %4764
        %4766 = vmax.xlane.f32.xlu0 %v4406
        %v4767 = vpop.xlane.xlu0 %4766
        %4768 = vmax.xlane.f32.xlu0 %v4407
        %v4769 = vpop.xlane.xlu0 %4768
        %4770 = vmax.xlane.f32.xlu0 %v4408
        %v4771 = vpop.xlane.xlu0 %4770
        %4772 = vmax.xlane.f32.xlu0 %v4409
        %v4773 = vpop.xlane.xlu0 %4772
        %4774 = vmax.xlane.f32.xlu0 %v4410
        %v4775 = vpop.xlane.xlu0 %4774
        %4776 = vmax.xlane.f32.xlu0 %v4411
        %v4777 = vpop.xlane.xlu0 %4776
        %4778 = vmax.xlane.f32.xlu0 %v4412
        %v4779 = vpop.xlane.xlu0 %4778
        %4780 = vmax.xlane.f32.xlu0 %v4413
        %v4781 = vpop.xlane.xlu0 %4780
        %4782 = vmax.xlane.f32.xlu0 %v4414
        %v4783 = vpop.xlane.xlu0 %4782
        %4784 = vmax.xlane.f32.xlu0 %v4415
        %v4785 = vpop.xlane.xlu0 %4784
        %4786 = vmax.xlane.f32.xlu0 %v4416
        %v4787 = vpop.xlane.xlu0 %4786
        %4788 = vmax.xlane.f32.xlu0 %v4417
        %v4789 = vpop.xlane.xlu0 %4788
        %4790 = vmax.xlane.f32.xlu0 %v4418
        %v4791 = vpop.xlane.xlu0 %4790
        %4792 = vmax.xlane.f32.xlu0 %v4419
        %v4793 = vpop.xlane.xlu0 %4792
        %4794 = vmax.xlane.f32.xlu0 %v4420
        %v4795 = vpop.xlane.xlu0 %4794
        %4796 = vmax.xlane.f32.xlu0 %v4421
        %v4797 = vpop.xlane.xlu0 %4796
        %4798 = vmax.xlane.f32.xlu0 %v4422
        %v4799 = vpop.xlane.xlu0 %4798
        %4800 = vmax.xlane.f32.xlu0 %v4423
        %v4801 = vpop.xlane.xlu0 %4800
        %4802 = vmax.xlane.f32.xlu0 %v4424
        %v4803 = vpop.xlane.xlu0 %4802
        %4804 = vmax.xlane.f32.xlu0 %v4425
        %v4805 = vpop.xlane.xlu0 %4804
        %4806 = vmax.xlane.f32.xlu0 %v4426
        %v4807 = vpop.xlane.xlu0 %4806
        %4808 = vmax.xlane.f32.xlu0 %v4427
        %v4809 = vpop.xlane.xlu0 %4808
        %4810 = vmax.xlane.f32.xlu0 %v4428
        %v4811 = vpop.xlane.xlu0 %4810
        %4812 = vmax.xlane.f32.xlu0 %v4429
        %v4813 = vpop.xlane.xlu0 %4812
        %4814 = vmax.xlane.f32.xlu0 %v4430
        %v4815 = vpop.xlane.xlu0 %4814
        %4816 = vmax.xlane.f32.xlu0 %v4431
        %v4817 = vpop.xlane.xlu0 %4816
        %4818 = vmax.xlane.f32.xlu0 %v4432
        %v4819 = vpop.xlane.xlu0 %4818
        %vm4820 = vcmask 7168
        %4821 = vst.msk [vmem:[%s306] sm:$0xff] %vm4820, %v4565
        %4822 = vst.msk [vmem:[%s306 + $0x8] sm:$0xff] %vm4820, %v4567
        %4823 = vst.msk [vmem:[%s306 + $0x10] sm:$0xff] %vm4820, %v4569
        %4824 = vst.msk [vmem:[%s306 + $0x18] sm:$0xff] %vm4820, %v4571
        %4825 = vst.msk [vmem:[%s306 + $0x20] sm:$0xff] %vm4820, %v4573
        %4826 = vst.msk [vmem:[%s306 + $0x28] sm:$0xff] %vm4820, %v4575
        %4827 = vst.msk [vmem:[%s306 + $0x30] sm:$0xff] %vm4820, %v4577
        %4828 = vst.msk [vmem:[%s306 + $0x38] sm:$0xff] %vm4820, %v4579
        %4829 = vst.msk [vmem:[%s306 + $0x40] sm:$0xff] %vm4820, %v4581
        %4830 = vst.msk [vmem:[%s306 + $0x48] sm:$0xff] %vm4820, %v4583
        %4831 = vst.msk [vmem:[%s306 + $0x50] sm:$0xff] %vm4820, %v4585
        %4832 = vst.msk [vmem:[%s306 + $0x58] sm:$0xff] %vm4820, %v4587
        %4833 = vst.msk [vmem:[%s306 + $0x60] sm:$0xff] %vm4820, %v4589
        %4834 = vst.msk [vmem:[%s306 + $0x68] sm:$0xff] %vm4820, %v4591
        %4835 = vst.msk [vmem:[%s306 + $0x70] sm:$0xff] %vm4820, %v4593
        %4836 = vst.msk [vmem:[%s306 + $0x78] sm:$0xff] %vm4820, %v4595
        %4837 = vst.msk [vmem:[%s306 + $0x80] sm:$0xff] %vm4820, %v4597
        %4838 = vst.msk [vmem:[%s306 + $0x88] sm:$0xff] %vm4820, %v4599
        %4839 = vst.msk [vmem:[%s306 + $0x90] sm:$0xff] %vm4820, %v4601
        %4840 = vst.msk [vmem:[%s306 + $0x98] sm:$0xff] %vm4820, %v4603
        %4841 = vst.msk [vmem:[%s306 + $0xa0] sm:$0xff] %vm4820, %v4605
        %4842 = vst.msk [vmem:[%s306 + $0xa8] sm:$0xff] %vm4820, %v4607
        %4843 = vst.msk [vmem:[%s306 + $0xb0] sm:$0xff] %vm4820, %v4609
        %4844 = vst.msk [vmem:[%s306 + $0xb8] sm:$0xff] %vm4820, %v4611
        %4845 = vst.msk [vmem:[%s306 + $0xc0] sm:$0xff] %vm4820, %v4613
        %4846 = vst.msk [vmem:[%s306 + $0xc8] sm:$0xff] %vm4820, %v4615
        %4847 = vst.msk [vmem:[%s306 + $0xd0] sm:$0xff] %vm4820, %v4617
        %4848 = vst.msk [vmem:[%s306 + $0xd8] sm:$0xff] %vm4820, %v4619
        %4849 = vst.msk [vmem:[%s306 + $0xe0] sm:$0xff] %vm4820, %v4621
        %4850 = vst.msk [vmem:[%s306 + $0xe8] sm:$0xff] %vm4820, %v4623
        %4851 = vst.msk [vmem:[%s306 + $0xf0] sm:$0xff] %vm4820, %v4625
        %4852 = vst.msk [vmem:[%s306 + $0xf8] sm:$0xff] %vm4820, %v4627
        %4853 = vst.msk [vmem:[%s306 + $0x100] sm:$0xff] %vm4820, %v4629
        %4854 = vst.msk [vmem:[%s306 + $0x108] sm:$0xff] %vm4820, %v4631
        %4855 = vst.msk [vmem:[%s306 + $0x110] sm:$0xff] %vm4820, %v4633
        %4856 = vst.msk [vmem:[%s306 + $0x118] sm:$0xff] %vm4820, %v4635
        %4857 = vst.msk [vmem:[%s306 + $0x120] sm:$0xff] %vm4820, %v4637
        %4858 = vst.msk [vmem:[%s306 + $0x128] sm:$0xff] %vm4820, %v4639
        %4859 = vst.msk [vmem:[%s306 + $0x130] sm:$0xff] %vm4820, %v4641
        %4860 = vst.msk [vmem:[%s306 + $0x138] sm:$0xff] %vm4820, %v4643
        %4861 = vst.msk [vmem:[%s306 + $0x140] sm:$0xff] %vm4820, %v4645
        %4862 = vst.msk [vmem:[%s306 + $0x148] sm:$0xff] %vm4820, %v4647
        %4863 = vst.msk [vmem:[%s306 + $0x150] sm:$0xff] %vm4820, %v4649
        %4864 = vst.msk [vmem:[%s306 + $0x158] sm:$0xff] %vm4820, %v4651
        %4865 = vst.msk [vmem:[%s306 + $0x160] sm:$0xff] %vm4820, %v4653
        %4866 = vst.msk [vmem:[%s306 + $0x168] sm:$0xff] %vm4820, %v4655
        %4867 = vst.msk [vmem:[%s306 + $0x170] sm:$0xff] %vm4820, %v4657
        %4868 = vst.msk [vmem:[%s306 + $0x178] sm:$0xff] %vm4820, %v4659
        %4869 = vst.msk [vmem:[%s306 + $0x180] sm:$0xff] %vm4820, %v4661
        %4870 = vst.msk [vmem:[%s306 + $0x188] sm:$0xff] %vm4820, %v4663
        %4871 = vst.msk [vmem:[%s306 + $0x190] sm:$0xff] %vm4820, %v4665
        %4872 = vst.msk [vmem:[%s306 + $0x198] sm:$0xff] %vm4820, %v4667
        %4873 = vst.msk [vmem:[%s306 + $0x1a0] sm:$0xff] %vm4820, %v4669
        %4874 = vst.msk [vmem:[%s306 + $0x1a8] sm:$0xff] %vm4820, %v4671
        %4875 = vst.msk [vmem:[%s306 + $0x1b0] sm:$0xff] %vm4820, %v4673
        %4876 = vst.msk [vmem:[%s306 + $0x1b8] sm:$0xff] %vm4820, %v4675
        %4877 = vst.msk [vmem:[%s306 + $0x1c0] sm:$0xff] %vm4820, %v4677
        %4878 = vst.msk [vmem:[%s306 + $0x1c8] sm:$0xff] %vm4820, %v4679
        %4879 = vst.msk [vmem:[%s306 + $0x1d0] sm:$0xff] %vm4820, %v4681
        %4880 = vst.msk [vmem:[%s306 + $0x1d8] sm:$0xff] %vm4820, %v4683
        %4881 = vst.msk [vmem:[%s306 + $0x1e0] sm:$0xff] %vm4820, %v4685
        %4882 = vst.msk [vmem:[%s306 + $0x1e8] sm:$0xff] %vm4820, %v4687
        %4883 = vst.msk [vmem:[%s306 + $0x1f0] sm:$0xff] %vm4820, %v4689
        %4884 = vst.msk [vmem:[%s306 + $0x1f8] sm:$0xff] %vm4820, %v4691
        %4885 = vst.msk [vmem:[%s306 + $0x200] sm:$0xff] %vm4820, %v4693
        %4886 = vst.msk [vmem:[%s306 + $0x208] sm:$0xff] %vm4820, %v4695
        %4887 = vst.msk [vmem:[%s306 + $0x210] sm:$0xff] %vm4820, %v4697
        %4888 = vst.msk [vmem:[%s306 + $0x218] sm:$0xff] %vm4820, %v4699
        %4889 = vst.msk [vmem:[%s306 + $0x220] sm:$0xff] %vm4820, %v4701
        %4890 = vst.msk [vmem:[%s306 + $0x228] sm:$0xff] %vm4820, %v4703
        %4891 = vst.msk [vmem:[%s306 + $0x230] sm:$0xff] %vm4820, %v4705
        %4892 = vst.msk [vmem:[%s306 + $0x238] sm:$0xff] %vm4820, %v4707
        %4893 = vst.msk [vmem:[%s306 + $0x240] sm:$0xff] %vm4820, %v4709
        %4894 = vst.msk [vmem:[%s306 + $0x248] sm:$0xff] %vm4820, %v4711
        %4895 = vst.msk [vmem:[%s306 + $0x250] sm:$0xff] %vm4820, %v4713
        %4896 = vst.msk [vmem:[%s306 + $0x258] sm:$0xff] %vm4820, %v4715
        %4897 = vst.msk [vmem:[%s306 + $0x260] sm:$0xff] %vm4820, %v4717
        %4898 = vst.msk [vmem:[%s306 + $0x268] sm:$0xff] %vm4820, %v4719
        %4899 = vst.msk [vmem:[%s306 + $0x270] sm:$0xff] %vm4820, %v4721
        %4900 = vst.msk [vmem:[%s306 + $0x278] sm:$0xff] %vm4820, %v4723
        %4901 = vst.msk [vmem:[%s306 + $0x280] sm:$0xff] %vm4820, %v4725
        %4902 = vst.msk [vmem:[%s306 + $0x288] sm:$0xff] %vm4820, %v4727
        %4903 = vst.msk [vmem:[%s306 + $0x290] sm:$0xff] %vm4820, %v4729
        %4904 = vst.msk [vmem:[%s306 + $0x298] sm:$0xff] %vm4820, %v4731
        %4905 = vst.msk [vmem:[%s306 + $0x2a0] sm:$0xff] %vm4820, %v4733
        %4906 = vst.msk [vmem:[%s306 + $0x2a8] sm:$0xff] %vm4820, %v4735
        %4907 = vst.msk [vmem:[%s306 + $0x2b0] sm:$0xff] %vm4820, %v4737
        %4908 = vst.msk [vmem:[%s306 + $0x2b8] sm:$0xff] %vm4820, %v4739
        %4909 = vst.msk [vmem:[%s306 + $0x2c0] sm:$0xff] %vm4820, %v4741
        %4910 = vst.msk [vmem:[%s306 + $0x2c8] sm:$0xff] %vm4820, %v4743
        %4911 = vst.msk [vmem:[%s306 + $0x2d0] sm:$0xff] %vm4820, %v4745
        %4912 = vst.msk [vmem:[%s306 + $0x2d8] sm:$0xff] %vm4820, %v4747
        %4913 = vst.msk [vmem:[%s306 + $0x2e0] sm:$0xff] %vm4820, %v4749
        %4914 = vst.msk [vmem:[%s306 + $0x2e8] sm:$0xff] %vm4820, %v4751
        %4915 = vst.msk [vmem:[%s306 + $0x2f0] sm:$0xff] %vm4820, %v4753
        %4916 = vst.msk [vmem:[%s306 + $0x2f8] sm:$0xff] %vm4820, %v4755
        %4917 = vst.msk [vmem:[%s306 + $0x300] sm:$0xff] %vm4820, %v4757
        %4918 = vst.msk [vmem:[%s306 + $0x308] sm:$0xff] %vm4820, %v4759
        %4919 = vst.msk [vmem:[%s306 + $0x310] sm:$0xff] %vm4820, %v4761
        %4920 = vst.msk [vmem:[%s306 + $0x318] sm:$0xff] %vm4820, %v4763
        %4921 = vst.msk [vmem:[%s306 + $0x320] sm:$0xff] %vm4820, %v4765
        %4922 = vst.msk [vmem:[%s306 + $0x328] sm:$0xff] %vm4820, %v4767
        %4923 = vst.msk [vmem:[%s306 + $0x330] sm:$0xff] %vm4820, %v4769
        %4924 = vst.msk [vmem:[%s306 + $0x338] sm:$0xff] %vm4820, %v4771
        %4925 = vst.msk [vmem:[%s306 + $0x340] sm:$0xff] %vm4820, %v4773
        %4926 = vst.msk [vmem:[%s306 + $0x348] sm:$0xff] %vm4820, %v4775
        %4927 = vst.msk [vmem:[%s306 + $0x350] sm:$0xff] %vm4820, %v4777
        %4928 = vst.msk [vmem:[%s306 + $0x358] sm:$0xff] %vm4820, %v4779
        %4929 = vst.msk [vmem:[%s306 + $0x360] sm:$0xff] %vm4820, %v4781
        %4930 = vst.msk [vmem:[%s306 + $0x368] sm:$0xff] %vm4820, %v4783
        %4931 = vst.msk [vmem:[%s306 + $0x370] sm:$0xff] %vm4820, %v4785
        %4932 = vst.msk [vmem:[%s306 + $0x378] sm:$0xff] %vm4820, %v4787
        %4933 = vst.msk [vmem:[%s306 + $0x380] sm:$0xff] %vm4820, %v4789
        %4934 = vst.msk [vmem:[%s306 + $0x388] sm:$0xff] %vm4820, %v4791
        %4935 = vst.msk [vmem:[%s306 + $0x390] sm:$0xff] %vm4820, %v4793
        %4936 = vst.msk [vmem:[%s306 + $0x398] sm:$0xff] %vm4820, %v4795
        %4937 = vst.msk [vmem:[%s306 + $0x3a0] sm:$0xff] %vm4820, %v4797
        %4938 = vst.msk [vmem:[%s306 + $0x3a8] sm:$0xff] %vm4820, %v4799
        %4939 = vst.msk [vmem:[%s306 + $0x3b0] sm:$0xff] %vm4820, %v4801
        %4940 = vst.msk [vmem:[%s306 + $0x3b8] sm:$0xff] %vm4820, %v4803
        %4941 = vst.msk [vmem:[%s306 + $0x3c0] sm:$0xff] %vm4820, %v4805
        %4942 = vst.msk [vmem:[%s306 + $0x3c8] sm:$0xff] %vm4820, %v4807
        %4943 = vst.msk [vmem:[%s306 + $0x3d0] sm:$0xff] %vm4820, %v4809
        %4944 = vst.msk [vmem:[%s306 + $0x3d8] sm:$0xff] %vm4820, %v4811
        %4945 = vst.msk [vmem:[%s306 + $0x3e0] sm:$0xff] %vm4820, %v4813
        %4946 = vst.msk [vmem:[%s306 + $0x3e8] sm:$0xff] %vm4820, %v4815
        %4947 = vst.msk [vmem:[%s306 + $0x3f0] sm:$0xff] %vm4820, %v4817
        %4948 = vst.msk [vmem:[%s306 + $0x3f8] sm:$0xff] %vm4820, %v4819
      $region56: #{stn3d_forward.2} parent=47 // pred_fallthru
        _
      %p4949 = scmp.lt.s32.totalorder %s22, 1
      %s4950 = scalar_select %p4949, %s22, 1
      %s4951 = smul.addr %s4950, 128
      %s4952 = smul.addr %s4951, 8
      %s4953 = scalar_lea.vmem %s7, %s4952
      // Predicated region
      $region57: #{stn3d_forward.2} parent=47 // pred_check
        %p4954 = pneg %p202
      $region58: #{stn3d_forward.2} parent=47 // pred_check_branch
        %4956 = sbr.rel (%p4954) target = $region60
      $region59: #{stn3d_forward.2} parent=47 // pred_region
        _
      $region60: #{stn3d_forward.2} parent=47 // pred_fallthru
        _
    $region48: #{stn3d_forward.2} parent=5 // pred_fallthru
      _
    %p4957 = scmp.le.s32.totalorder 2, %s13
    // Predicated region
    $region61: #{stn3d_forward.2} parent=5 // pred_check
      %p4958 = pneg %p4957
    $region62: #{stn3d_forward.2} parent=5 // pred_check_branch
      %4960 = sbr.rel (%p4958) target = $region64
    $region63: #{stn3d_forward.2} parent=5 // pred_region
      %s4961 = ssub.s32 %s13, 2
      // Predicated region
      $region65: #{stn3d_forward.2} parent=63 // pred_check
        %p4962 = pneg %p208
      $region66: #{stn3d_forward.2} parent=63 // pred_check_branch
        %4964 = sbr.rel (%p4962) target = $region68
      $region67: #{stn3d_forward.2} parent=63 // pred_region
        %p4965 = scmp.lt.s32.totalorder %s24, 1
        %s4966 = scalar_select %p4965, %s24, 1
        %s4967 = smul.addr %s4966, 128
        %s4968 = smul.addr %s4967, 8
        %s4969 = scalar_lea.vmem %s7, %s4968
      $region68: #{stn3d_forward.2} parent=63 // pred_fallthru
        _
    $region64: #{stn3d_forward.2} parent=5 // pred_fallthru
      _
  $region6: #{stn3d_forward.2} parent=0 // loop_footer
    %s17 = sadd.s32 1, %s13
  $region7: #{stn3d_forward.2} parent=0 // loop_footer_branch
    %12 = sbr.rel target = $region3
  $region8: #{stn3d_forward.2} parent=0 // loop_exit
    _

</llo_original>
